<compile_context>
chip_gen: v7x
topology: tpu7x:2x2x1
jax: 0.10.0
libtpu: 0.0.40
codegen_flags: <defaults>
</compile_context>

<pallas_src>
import math
from functools import lru_cache, partial

import numpy as np
import jax
import jax.numpy as jnp
from jax import lax
from jax.experimental import pallas as pl
from jax.experimental.pallas import tpu as pltpu

# ----------------------------------------------------------------------------
# config (small synthetic XCiT: img_size=32, patch_size=8, embed_dim=32,
# depth=4, num_heads=4, mlp_ratio=4, qkv_bias=True, eta=1.0, out_indices=0..3)
IMG_SIZE = 32
PATCH_SIZE = 8
IN_CHANS = 3
EMBED_DIM = 32
DEPTH = 4
NUM_HEADS = 4
MLP_RATIO = 4
POS_HIDDEN = 32
ETA = 1.0
LN_EPS = 1e-6
BN_EPS = 1e-5
HP = IMG_SIZE // PATCH_SIZE          # token-grid height = 4
WP = IMG_SIZE // PATCH_SIZE          # token-grid width  = 4
N_TOK = HP * WP                      # 16 tokens
MLP_HID = EMBED_DIM * MLP_RATIO      # 128

# layout of the packed per-depth vector slab (DEPTH, N_VEC_ROWS, C)
_VEC_FIELDS = ('ln1_w', 'ln1_b', 'bq', 'bk', 'bv', 'temp', 'bproj', 'gamma1',
               'ln3_w', 'ln3_b', 'lpi_b1', 'lpi_bn_s', 'lpi_bn_t', 'lpi_b2',
               'gamma3', 'ln2_w', 'ln2_b', 'mlp_b2', 'gamma2')
_VEC_IDX = {n: i for i, n in enumerate(_VEC_FIELDS)}
_LPI_W1_ROW = len(_VEC_FIELDS)       # rows 19..27: depthwise conv1 taps (9, C)
_LPI_W2_ROW = _LPI_W1_ROW + 9        # rows 28..36: depthwise conv2 taps (9, C)
N_VEC_ROWS = _LPI_W2_ROW + 9         # 37


# ----------------------------------------------------------------------------
# in-kernel helpers
def _gelu(x):
    # TODO(synk): PyTorch nn.GELU() defaults to the exact erf form; the tanh
    # approximation is used inside the Pallas kernel since erf lowering in
    # Mosaic is not guaranteed (the XLA-side patch-embed uses the exact form).
    c = math.sqrt(2.0 / math.pi)
    return 0.5 * x * (1.0 + jnp.tanh(c * (x + 0.044715 * x * x * x)))


def _layernorm(x, w, b, eps=LN_EPS):
    mu = jnp.mean(x, axis=-1, keepdims=True)
    var = jnp.mean(jnp.square(x - mu), axis=-1, keepdims=True)
    return (x - mu) * lax.rsqrt(var + eps) * w + b


# ----------------------------------------------------------------------------
# Fused trunk kernel: pos-add + DEPTH x (XCA -> LPI -> MLP) + fused FPN1 matmul.
# Tokens (B*N, C) stay in vregs/VMEM for all DEPTH blocks; both outputs are
# lane-dense 128-column slabs.
def _trunk_kernel(B, tok_ref, pos_ref, mask_ref, sstack_ref,
                  vec_ref, mat_ref, mw2_ref, mb1_ref, fpnw_ref, fpnb_ref,
                  out_ref, fpn_ref):
    x = tok_ref[...] + pos_ref[...]              # (B*N, C)
    BN, C = x.shape
    N = BN // B
    mask = mask_ref[...]                         # (C, C) block-diag additive mask
    sstack = sstack_ref[...]                     # (9*B*N, B*N) stacked shift matrix
    feats = []

    for d in range(DEPTH):
        vd = vec_ref[d]                          # (N_VEC_ROWS, C)
        md = mat_ref[d]                          # (C, 8C) = [wqkv | wproj | mlp_w1]
        wqkv = md[:, 0:3 * C]
        wproj = md[:, 3 * C:4 * C]
        mw1 = md[:, 4 * C:8 * C]

        def row(name, _vd=vd):
            return _vd[_VEC_IDX[name]]

        # ---------------- XCA:  x = x + gamma1 * XCA(LN1(x)) ----------------
        xn = _layernorm(x, row('ln1_w'), row('ln1_b'))
        qkv = jnp.dot(xn, wqkv, preferred_element_type=jnp.float32)
        q = qkv[:, 0:C] + row('bq')
        k = qkv[:, C:2 * C] + row('bk')
        v = qkv[:, 2 * C:3 * C] + row('bv')
        xa_parts = []
        for b in range(B):                       # tiny static per-sample loop
            qb = q[b * N:(b + 1) * N]
            kb = k[b * N:(b + 1) * N]
            vb = v[b * N:(b + 1) * N]
            # L2-normalize over the token axis (per channel), fold in temperature.
            qb = qb * lax.rsqrt(jnp.maximum(jnp.sum(qb * qb, axis=0, keepdims=True), 1e-24))
            kb = kb * lax.rsqrt(jnp.maximum(jnp.sum(kb * kb, axis=0, keepdims=True), 1e-24))
            qb = qb * row('temp')
            # (C, C) cross-covariance, contracting the token axis (no transposes).
            attn = lax.dot_general(qb, kb, (((0,), (0,)), ((), ())),
                                   preferred_element_type=jnp.float32) + mask
            attn = attn - jnp.max(attn, axis=-1, keepdims=True)
            attn = jnp.exp(attn)
            attn = attn / jnp.sum(attn, axis=-1, keepdims=True)
            # out[n, i] = sum_j attn[i, j] * v[n, j]  (contract last axes).
            xa_parts.append(lax.dot_general(vb, attn, (((1,), (1,)), ((), ())),
                                            preferred_element_type=jnp.float32))
        xa = jnp.concatenate(xa_parts, axis=0)   # (B*N, C)
        proj = jnp.dot(xa, wproj, preferred_element_type=jnp.float32) + row('bproj')
        x = x + row('gamma1') * proj

        # ---------------- LPI:  x = x + gamma3 * LPI(LN3(x)) ----------------
        # depthwise 3x3 -> GELU -> BN(eval) -> depthwise 3x3.  Each conv is one
        # matmul against the stacked (9*BN, BN) shift matrix + a VPU tap-sum.
        xn = _layernorm(x, row('ln3_w'), row('ln3_b'))
        lw1 = vd[_LPI_W1_ROW:_LPI_W1_ROW + 9]    # (9, C)
        lw2 = vd[_LPI_W2_ROW:_LPI_W2_ROW + 9]    # (9, C)
        y9 = jnp.dot(sstack, xn, preferred_element_type=jnp.float32).reshape(9, BN, C)
        y = jnp.sum(y9 * lw1[:, None, :], axis=0) + row('lpi_b1')
        y = _gelu(y)
        y = y * row('lpi_bn_s') + row('lpi_bn_t')
        z9 = jnp.dot(sstack, y, preferred_element_type=jnp.float32).reshape(9, BN, C)
        z = jnp.sum(z9 * lw2[:, None, :], axis=0) + row('lpi_b2')
        x = x + row('gamma3') * z

        # ---------------- MLP:  x = x + gamma2 * MLP(LN2(x)) ----------------
        xn = _layernorm(x, row('ln2_w'), row('ln2_b'))
        h = _gelu(jnp.dot(xn, mw1, preferred_element_type=jnp.float32) + mb1_ref[d])
        y2 = jnp.dot(h, mw2_ref[d], preferred_element_type=jnp.float32) + row('mlp_b2')
        x = x + row('gamma2') * y2

        feats.append(x)

        # fused FPN1 ConvTranspose2d(k=2,s=2) on the block-0 features (4C = 128 lanes)
        if d == 0:
            fpn_ref[...] = (jnp.dot(x, fpnw_ref[...], preferred_element_type=jnp.float32)
                            + fpnb_ref[...])

    # single lane-dense (B*N, DEPTH*C = 128) store instead of DEPTH masked stores
    out_ref[...] = jnp.concatenate(feats, axis=-1)


@lru_cache(maxsize=None)
def _stacked_shift_np(Hp, Wp, B):
    """Vertically stacked, batch-block-diagonal (9*B*N, B*N) token-shift matrices
    encoding the zero-padded 3x3 window (one matmul per depthwise conv)."""
    N = Hp * Wp
    base = np.zeros((9, N, N), np.float32)
    for dh in range(3):
        for dw in range(3):
            t = dh * 3 + dw
            for i in range(Hp):
                for j in range(Wp):
                    ii, jj = i + dh - 1, j + dw - 1
                    if 0 <= ii < Hp and 0 <= jj < Wp:
                        base[t, i * Wp + j, ii * Wp + jj] = 1.0
    stacked = np.zeros((9, B * N, B * N), np.float32)
    for b in range(B):
        stacked[:, b * N:(b + 1) * N, b * N:(b + 1) * N] = base
    return stacked.reshape(9 * B * N, B * N)


def transformer_trunk(tokens, p, Hp, Wp):
    """One gridless pallas_call; batch folded into the sublane (row) axis."""
    B, N, C = tokens.shape
    x = tokens.reshape(B * N, C)
    pos = jnp.tile(p['pos_nc'], (B, 1))                    # (B*N, C)
    sstack = jnp.asarray(_stacked_shift_np(Hp, Wp, B))     # trace-time constant
    out, fpn = pl.pallas_call(
        partial(_trunk_kernel, B),
        out_shape=(jax.ShapeDtypeStruct((B * N, DEPTH * C), jnp.float32),
                   jax.ShapeDtypeStruct((B * N, 4 * C), jnp.float32)),
        compiler_params=pltpu.CompilerParams(vmem_limit_bytes=32 * 1024 * 1024),
    )(x, pos, p['attn_mask'], sstack,
      p['vec_slab'], p['mat_slab'], p['mlp_w2'], p['mlp_b1'],
      p['fpn1_wr'], p['fpn1_br'])
    return out, fpn


# ----------------------------------------------------------------------------
# ConvPatchEmbed (3x conv3x3/s2 + folded BN + GELU)
def conv3x3_bn(x, w, scale, shift, stride, apply_gelu):
    y = lax.conv_general_dilated(
        x, w, window_strides=(stride, stride), padding=((1, 1), (1, 1)),
        dimension_numbers=('NCHW', 'OIHW', 'NCHW'))
    y = y * scale[None, :, None, None] + shift[None, :, None, None]
    if apply_gelu:
        y = jax.nn.gelu(y, approximate=False)
    return y


def patch_embed(x, p):
    # TODO(synk): the stride-2 3-channel convs are left to XLA's conv (per perf
    # review) -- a Pallas im2col path at 8/16/32 output lanes is pure launch +
    # masked-store overhead with an almost idle MXU.
    x = conv3x3_bn(x, p['pe_w0'], p['pe_s0'], p['pe_t0'], 2, True)
    x = conv3x3_bn(x, p['pe_w1'], p['pe_s1'], p['pe_t1'], 2, True)
    x = conv3x3_bn(x, p['pe_w2'], p['pe_s2'], p['pe_t2'], 2, False)
    B, C, Hp, Wp = x.shape
    tokens = jnp.transpose(x.reshape(B, C, Hp * Wp), (0, 2, 1))   # (B, N, C)
    return tokens, Hp, Wp


def maxpool(x, k):
    B, C, H, W = x.shape
    return jnp.max(x.reshape(B, C, H // k, k, W // k, k), axis=(3, 5))


# ----------------------------------------------------------------------------
# full forward
def xcit_forward(x, params):
    B = x.shape[0]
    C = EMBED_DIM
    tokens, Hp, Wp = patch_embed(x, params)                   # (B, N, C)
    N = Hp * Wp
    out, fpn_raw = transformer_trunk(tokens, params, Hp, Wp)  # (B*N, D*C), (B*N, 4*C)

    def depth_feat(d):
        t = out[:, d * C:(d + 1) * C].reshape(B, N, C)
        return jnp.transpose(t, (0, 2, 1)).reshape(B, C, Hp, Wp)

    # out_indices = (0,1,2,3); patch_size=8 FPN: deconv / identity / mp2 / mp4
    f0 = fpn_raw.reshape(B, Hp, Wp, 2, 2, C)
    f0 = jnp.transpose(f0, (0, 5, 1, 3, 2, 4)).reshape(B, C, 2 * Hp, 2 * Wp)
    f1 = depth_feat(1)
    f2 = maxpool(depth_feat(2), 2)
    f3 = maxpool(depth_feat(3), 4)
    return (f0, f1, f2, f3)


# ----------------------------------------------------------------------------
# init-time precomputations
def _compute_pos_nc(pos_w, pos_b, H, W):
    """PositionalEncodingFourier -> (N, C), computed once at init."""
    scale = 2 * math.pi
    temperature = 10000.0
    hd = POS_HIDDEN
    eps = 1e-6
    y_embed = jnp.broadcast_to(
        jnp.arange(1, H + 1, dtype=jnp.float32)[:, None], (H, W)) / (H + eps) * scale
    x_embed = jnp.broadcast_to(
        jnp.arange(1, W + 1, dtype=jnp.float32)[None, :], (H, W)) / (W + eps) * scale
    dim_t = jnp.arange(hd, dtype=jnp.float32)
    dim_t = temperature ** (2.0 * jnp.floor(dim_t / 2.0) / hd)
    pos_x = x_embed[:, :, None] / dim_t
    pos_y = y_embed[:, :, None] / dim_t
    pos_x = jnp.stack((jnp.sin(pos_x[:, :, 0::2]), jnp.cos(pos_x[:, :, 1::2])),
                      axis=3).reshape(H, W, hd)
    pos_y = jnp.stack((jnp.sin(pos_y[:, :, 0::2]), jnp.cos(pos_y[:, :, 1::2])),
                      axis=3).reshape(H, W, hd)
    pos = jnp.concatenate((pos_y, pos_x), axis=2).reshape(H * W, 2 * hd)
    return (pos @ pos_w.T + pos_b).astype(jnp.float32)            # (N, C)


def _build_attn_mask(C, num_heads):
    """Additive block-diagonal mask so per-head softmax can run on (C, C)."""
    head = np.arange(C) // (C // num_heads)
    mask = np.where(head[:, None] == head[None, :], 0.0, -1e9).astype(np.float32)
    return jnp.asarray(mask)


# deterministic synthetic parameters (random weights, zero biases, LN w=1/b=0,
# BN eval stats mean=0/var=1 folded into scale/shift, gamma=eta, temperature=1)
def init_params(key):
    keys = iter(jax.random.split(key, 64))

    def nrm(shape, std):
        return (std * jax.random.normal(next(keys), shape)).astype(jnp.float32)

    C, D, H = EMBED_DIM, DEPTH, MLP_HID
    bn_scale = 1.0 / math.sqrt(1.0 + BN_EPS)
    p = {}

    # patch embed (3 -> C/4 -> C/2 -> C), BN folded to scale/shift
    dims = [IN_CHANS, C // 4, C // 2, C]
    for i in range(3):
        p[f'pe_w{i}'] = nrm((dims[i + 1], dims[i], 3, 3), 0.1)
        p[f'pe_s{i}'] = jnp.full((dims[i + 1],), bn_scale, jnp.float32)
        p[f'pe_t{i}'] = jnp.zeros((dims[i + 1],), jnp.float32)

    # positional encoding, precomputed to (N, C)
    pos_w = nrm((C, 2 * POS_HIDDEN), 0.02)
    pos_b = jnp.zeros((C,), jnp.float32)
    p['pos_nc'] = _compute_pos_nc(pos_w, pos_b, HP, WP)

    # raw per-depth trunk weights, then packed into 4 slabs
    wqkv = nrm((D, C, 3 * C), 0.02)
    bqkv = jnp.zeros((D, 3 * C), jnp.float32)
    wproj = nrm((D, C, C), 0.02)
    lpi_w1 = nrm((D, 9, C), 0.1)
    lpi_w2 = nrm((D, 9, C), 0.1)
    mlp_w1 = nrm((D, C, H), 0.02)
    mlp_w2 = nrm((D, H, C), 0.02)

    vec_parts = {
        'ln1_w': jnp.ones((D, C), jnp.float32), 'ln1_b': jnp.zeros((D, C), jnp.float32),
        'bq': bqkv[:, 0:C], 'bk': bqkv[:, C:2 * C], 'bv': bqkv[:, 2 * C:3 * C],
        'temp': jnp.ones((D, C), jnp.float32),   # per-head temperature tiled per channel
        'bproj': jnp.zeros((D, C), jnp.float32),
        'gamma1': jnp.full((D, C), ETA, jnp.float32),
        'ln3_w': jnp.ones((D, C), jnp.float32), 'ln3_b': jnp.zeros((D, C), jnp.float32),
        'lpi_b1': jnp.zeros((D, C), jnp.float32),
        'lpi_bn_s': jnp.full((D, C), bn_scale, jnp.float32),
        'lpi_bn_t': jnp.zeros((D, C), jnp.float32),
        'lpi_b2': jnp.zeros((D, C), jnp.float32),
        'gamma3': jnp.full((D, C), ETA, jnp.float32),
        'ln2_w': jnp.ones((D, C), jnp.float32), 'ln2_b': jnp.zeros((D, C), jnp.float32),
        'mlp_b2': jnp.zeros((D, C), jnp.float32),
        'gamma2': jnp.full((D, C), ETA, jnp.float32),
    }
    p['vec_slab'] = jnp.concatenate(
        [jnp.stack([vec_parts[n] for n in _VEC_FIELDS], axis=1), lpi_w1, lpi_w2], axis=1)
    assert p['vec_slab'].shape == (D, N_VEC_ROWS, C)
    p['mat_slab'] = jnp.concatenate([wqkv, wproj, mlp_w1], axis=2)   # (D, C, 8C)
    p['mlp_w2'] = mlp_w2                                             # (D, H, C)
    p['mlp_b1'] = jnp.zeros((D, H), jnp.float32)

    # block-independent constant
    p['attn_mask'] = _build_attn_mask(C, NUM_HEADS)

    # FPN1 ConvTranspose2d, weight (Cin, Cout, 2, 2) -> (Cin, 4*Cout), bias tiled
    fpn_w = nrm((C, C, 2, 2), 0.05)
    fpn_b = jnp.zeros((C,), jnp.float32)
    p['fpn1_wr'] = jnp.transpose(fpn_w, (0, 2, 3, 1)).reshape(C, 4 * C)
    p['fpn1_br'] = jnp.tile(fpn_b, 4).reshape(1, 4 * C)
    return p


if __name__ == "__main__":
    key = jax.random.PRNGKey(0)
    pkey, xkey = jax.random.split(key)
    params = init_params(pkey)
    x = jax.random.normal(xkey, (2, IN_CHANS, IMG_SIZE, IMG_SIZE), jnp.float32)

    feats = jax.jit(xcit_forward)(x, params)
    feats = jax.block_until_ready(feats)

    assert feats[0].shape == (2, EMBED_DIM, 8, 8)
    assert feats[1].shape == (2, EMBED_DIM, 4, 4)
    assert feats[2].shape == (2, EMBED_DIM, 2, 2)
    assert feats[3].shape == (2, EMBED_DIM, 1, 1)
    assert all(bool(jnp.all(jnp.isfinite(f))) for f in feats)
    print("KERNEL_OK")
</pallas_src>

<mosaic_0001>
module attributes {stable_mosaic.version = 11 : i64} {
  func.func @_trunk_kernel(%arg0: memref<32x32xf32, #tpu.memory_space<vmem>>, %arg1: memref<32x32xf32, #tpu.memory_space<vmem>>, %arg2: memref<32x32xf32, #tpu.memory_space<vmem>>, %arg3: memref<288x32xf32, #tpu.memory_space<vmem>>, %arg4: memref<4x37x32xf32, #tpu.memory_space<vmem>>, %arg5: memref<4x32x256xf32, #tpu.memory_space<vmem>>, %arg6: memref<4x128x32xf32, #tpu.memory_space<vmem>>, %arg7: memref<4x128xf32, #tpu.memory_space<vmem>>, %arg8: memref<32x128xf32, #tpu.memory_space<vmem>>, %arg9: memref<1x128xf32, #tpu.memory_space<vmem>>, %arg10: memref<32x128xf32, #tpu.memory_space<vmem>>, %arg11: memref<32x128xf32, #tpu.memory_space<vmem>>) attributes {dimension_semantics = [], scalar_prefetch = 0 : i64, scratch_operands = 0 : i64, tpu.core_type = #tpu.core_type<tc>} {
    %c0 = arith.constant 0 : index
    %c0_0 = arith.constant 0 : index
    %0 = vector.load %arg0[%c0, %c0_0] : memref<32x32xf32, #tpu.memory_space<vmem>>, vector<32x32xf32>
    %c0_1 = arith.constant 0 : index
    %c0_2 = arith.constant 0 : index
    %1 = vector.load %arg1[%c0_1, %c0_2] : memref<32x32xf32, #tpu.memory_space<vmem>>, vector<32x32xf32>
    %2 = arith.addf %0, %1 : vector<32x32xf32>
    %c0_3 = arith.constant 0 : index
    %c0_4 = arith.constant 0 : index
    %3 = vector.load %arg2[%c0_3, %c0_4] : memref<32x32xf32, #tpu.memory_space<vmem>>, vector<32x32xf32>
    %c0_5 = arith.constant 0 : index
    %c0_6 = arith.constant 0 : index
    %4 = vector.load %arg3[%c0_5, %c0_6] : memref<288x32xf32, #tpu.memory_space<vmem>>, vector<288x32xf32>
    %c0_7 = arith.constant 0 : index
    %c0_8 = arith.constant 0 : index
    %c0_9 = arith.constant 0 : index
    %5 = vector.load %arg4[%c0_7, %c0_8, %c0_9] : memref<4x37x32xf32, #tpu.memory_space<vmem>>, vector<1x37x32xf32>
    %6 = vector.shape_cast %5 : vector<1x37x32xf32> to vector<37x32xf32>
    %c0_10 = arith.constant 0 : index
    %c0_11 = arith.constant 0 : index
    %c0_12 = arith.constant 0 : index
    %7 = vector.load %arg5[%c0_10, %c0_11, %c0_12] : memref<4x32x256xf32, #tpu.memory_space<vmem>>, vector<1x32x256xf32>
    %8 = vector.shape_cast %7 : vector<1x32x256xf32> to vector<32x256xf32>
    %9 = vector.extract_strided_slice %8 {offsets = [0, 0], sizes = [32, 96], strides = [1, 1]} : vector<32x256xf32> to vector<32x96xf32>
    %10 = vector.extract_strided_slice %8 {offsets = [0, 96], sizes = [32, 32], strides = [1, 1]} : vector<32x256xf32> to vector<32x32xf32>
    %11 = vector.extract_strided_slice %8 {offsets = [0, 128], sizes = [32, 128], strides = [1, 1]} : vector<32x256xf32> to vector<32x128xf32>
    %12 = vector.extract_strided_slice %6 {offsets = [0, 0], sizes = [1, 32], strides = [1, 1]} : vector<37x32xf32> to vector<1x32xf32>
    %13 = vector.shape_cast %12 : vector<1x32xf32> to vector<32xf32>
    %14 = vector.extract_strided_slice %6 {offsets = [1, 0], sizes = [1, 32], strides = [1, 1]} : vector<37x32xf32> to vector<1x32xf32>
    %15 = vector.shape_cast %14 : vector<1x32xf32> to vector<32xf32>
    %cst = arith.constant dense<0.000000e+00> : vector<32xf32>
    %16 = vector.multi_reduction <add>, %2, %cst [1] : vector<32x32xf32> to vector<32xf32>
    %17 = vector.shape_cast %16 : vector<32xf32> to vector<32x1xf32>
    %cst_13 = arith.constant 3.200000e+01 : f32
    %18 = vector.broadcast %cst_13 : f32 to vector<32x1xf32>
    %19 = arith.divf %17, %18 : vector<32x1xf32>
    %20 = vector.broadcast %19 : vector<32x1xf32> to vector<32x32xf32>
    %21 = arith.subf %2, %20 : vector<32x32xf32>
    %22 = arith.mulf %21, %21 : vector<32x32xf32>
    %cst_14 = arith.constant dense<0.000000e+00> : vector<32xf32>
    %23 = vector.multi_reduction <add>, %22, %cst_14 [1] : vector<32x32xf32> to vector<32xf32>
    %24 = vector.shape_cast %23 : vector<32xf32> to vector<32x1xf32>
    %cst_15 = arith.constant 3.200000e+01 : f32
    %25 = vector.broadcast %cst_15 : f32 to vector<32x1xf32>
    %26 = arith.divf %24, %25 : vector<32x1xf32>
    %27 = vector.broadcast %19 : vector<32x1xf32> to vector<32x32xf32>
    %28 = arith.subf %2, %27 : vector<32x32xf32>
    %cst_16 = arith.constant 9.99999997E-7 : f32
    %29 = vector.broadcast %cst_16 : f32 to vector<32x1xf32>
    %30 = arith.addf %26, %29 : vector<32x1xf32>
    %31 = math.rsqrt %30 : vector<32x1xf32>
    %32 = vector.broadcast %31 : vector<32x1xf32> to vector<32x32xf32>
    %33 = arith.mulf %28, %32 : vector<32x32xf32>
    %34 = vector.shape_cast %13 : vector<32xf32> to vector<1x32xf32>
    %35 = vector.broadcast %34 : vector<1x32xf32> to vector<32x32xf32>
    %36 = arith.mulf %33, %35 : vector<32x32xf32>
    %37 = vector.shape_cast %15 : vector<32xf32> to vector<1x32xf32>
    %38 = vector.broadcast %37 : vector<1x32xf32> to vector<32x32xf32>
    %39 = arith.addf %36, %38 : vector<32x32xf32>
    %cst_17 = arith.constant dense<0.000000e+00> : vector<32x96xf32>
    %40 = tpu.matmul %39, %9, %cst_17 {dimension_numbers = #tpu.dot_dimension_numbers<[1], [0], [0], [1], [0, 0, 1, 1], [], []>} : vector<32x32xf32>, vector<32x96xf32>, vector<32x96xf32> -> vector<32x96xf32>
    %41 = vector.extract_strided_slice %40 {offsets = [0, 0], sizes = [32, 32], strides = [1, 1]} : vector<32x96xf32> to vector<32x32xf32>
    %42 = vector.extract_strided_slice %6 {offsets = [2, 0], sizes = [1, 32], strides = [1, 1]} : vector<37x32xf32> to vector<1x32xf32>
    %43 = vector.shape_cast %42 : vector<1x32xf32> to vector<32xf32>
    %44 = vector.shape_cast %43 : vector<32xf32> to vector<1x32xf32>
    %45 = vector.broadcast %44 : vector<1x32xf32> to vector<32x32xf32>
    %46 = arith.addf %41, %45 : vector<32x32xf32>
    %47 = vector.extract_strided_slice %40 {offsets = [0, 32], sizes = [32, 32], strides = [1, 1]} : vector<32x96xf32> to vector<32x32xf32>
    %48 = vector.extract_strided_slice %6 {offsets = [3, 0], sizes = [1, 32], strides = [1, 1]} : vector<37x32xf32> to vector<1x32xf32>
    %49 = vector.shape_cast %48 : vector<1x32xf32> to vector<32xf32>
    %50 = vector.shape_cast %49 : vector<32xf32> to vector<1x32xf32>
    %51 = vector.broadcast %50 : vector<1x32xf32> to vector<32x32xf32>
    %52 = arith.addf %47, %51 : vector<32x32xf32>
    %53 = vector.extract_strided_slice %40 {offsets = [0, 64], sizes = [32, 32], strides = [1, 1]} : vector<32x96xf32> to vector<32x32xf32>
    %54 = vector.extract_strided_slice %6 {offsets = [4, 0], sizes = [1, 32], strides = [1, 1]} : vector<37x32xf32> to vector<1x32xf32>
    %55 = vector.shape_cast %54 : vector<1x32xf32> to vector<32xf32>
    %56 = vector.shape_cast %55 : vector<32xf32> to vector<1x32xf32>
    %57 = vector.broadcast %56 : vector<1x32xf32> to vector<32x32xf32>
    %58 = arith.addf %53, %57 : vector<32x32xf32>
    %59 = vector.extract_strided_slice %46 {offsets = [0, 0], sizes = [16, 32], strides = [1, 1]} : vector<32x32xf32> to vector<16x32xf32>
    %60 = vector.extract_strided_slice %52 {offsets = [0, 0], sizes = [16, 32], strides = [1, 1]} : vector<32x32xf32> to vector<16x32xf32>
    %61 = vector.extract_strided_slice %58 {offsets = [0, 0], sizes = [16, 32], strides = [1, 1]} : vector<32x32xf32> to vector<16x32xf32>
    %62 = arith.mulf %59, %59 : vector<16x32xf32>
    %cst_18 = arith.constant dense<0.000000e+00> : vector<32xf32>
    %63 = vector.multi_reduction <add>, %62, %cst_18 [0] : vector<16x32xf32> to vector<32xf32>
    %64 = vector.shape_cast %63 : vector<32xf32> to vector<1x32xf32>
    %cst_19 = arith.constant 1.000000e-24 : f32
    %65 = vector.broadcast %cst_19 : f32 to vector<1x32xf32>
    %66 = arith.maximumf %64, %65 : vector<1x32xf32>
    %67 = math.rsqrt %66 : vector<1x32xf32>
    %68 = vector.broadcast %67 : vector<1x32xf32> to vector<16x32xf32>
    %69 = arith.mulf %59, %68 : vector<16x32xf32>
    %70 = arith.mulf %60, %60 : vector<16x32xf32>
    %cst_20 = arith.constant dense<0.000000e+00> : vector<32xf32>
    %71 = vector.multi_reduction <add>, %70, %cst_20 [0] : vector<16x32xf32> to vector<32xf32>
    %72 = vector.shape_cast %71 : vector<32xf32> to vector<1x32xf32>
    %cst_21 = arith.constant 1.000000e-24 : f32
    %73 = vector.broadcast %cst_21 : f32 to vector<1x32xf32>
    %74 = arith.maximumf %72, %73 : vector<1x32xf32>
    %75 = math.rsqrt %74 : vector<1x32xf32>
    %76 = vector.broadcast %75 : vector<1x32xf32> to vector<16x32xf32>
    %77 = arith.mulf %60, %76 : vector<16x32xf32>
    %78 = vector.extract_strided_slice %6 {offsets = [5, 0], sizes = [1, 32], strides = [1, 1]} : vector<37x32xf32> to vector<1x32xf32>
    %79 = vector.shape_cast %78 : vector<1x32xf32> to vector<32xf32>
    %80 = vector.shape_cast %79 : vector<32xf32> to vector<1x32xf32>
    %81 = vector.broadcast %80 : vector<1x32xf32> to vector<16x32xf32>
    %82 = arith.mulf %69, %81 : vector<16x32xf32>
    %cst_22 = arith.constant dense<0.000000e+00> : vector<32x32xf32>
    %83 = tpu.matmul %82, %77, %cst_22 {dimension_numbers = #tpu.dot_dimension_numbers<[0], [0], [1], [1], [0, 1, 1, 1], [], []>} : vector<16x32xf32>, vector<16x32xf32>, vector<32x32xf32> -> vector<32x32xf32>
    %84 = arith.addf %83, %3 : vector<32x32xf32>
    %cst_23 = arith.constant dense<0xFF800000> : vector<32xf32>
    %85 = vector.multi_reduction <maximumf>, %84, %cst_23 [1] : vector<32x32xf32> to vector<32xf32>
    %86 = vector.shape_cast %85 : vector<32xf32> to vector<32x1xf32>
    %87 = vector.broadcast %86 : vector<32x1xf32> to vector<32x32xf32>
    %88 = arith.subf %84, %87 : vector<32x32xf32>
    %89 = math.exp %88 : vector<32x32xf32>
    %cst_24 = arith.constant dense<0.000000e+00> : vector<32xf32>
    %90 = vector.multi_reduction <add>, %89, %cst_24 [1] : vector<32x32xf32> to vector<32xf32>
    %91 = vector.shape_cast %90 : vector<32xf32> to vector<32x1xf32>
    %92 = vector.broadcast %91 : vector<32x1xf32> to vector<32x32xf32>
    %93 = arith.divf %89, %92 : vector<32x32xf32>
    %cst_25 = arith.constant dense<0.000000e+00> : vector<16x32xf32>
    %94 = tpu.matmul %61, %93, %cst_25 {dimension_numbers = #tpu.dot_dimension_numbers<[1], [1], [0], [0], [0, 0, 1, 0], [], []>} : vector<16x32xf32>, vector<32x32xf32>, vector<16x32xf32> -> vector<16x32xf32>
    %95 = vector.extract_strided_slice %46 {offsets = [16, 0], sizes = [16, 32], strides = [1, 1]} : vector<32x32xf32> to vector<16x32xf32>
    %96 = vector.extract_strided_slice %52 {offsets = [16, 0], sizes = [16, 32], strides = [1, 1]} : vector<32x32xf32> to vector<16x32xf32>
    %97 = vector.extract_strided_slice %58 {offsets = [16, 0], sizes = [16, 32], strides = [1, 1]} : vector<32x32xf32> to vector<16x32xf32>
    %98 = arith.mulf %95, %95 : vector<16x32xf32>
    %cst_26 = arith.constant dense<0.000000e+00> : vector<32xf32>
    %99 = vector.multi_reduction <add>, %98, %cst_26 [0] : vector<16x32xf32> to vector<32xf32>
    %100 = vector.shape_cast %99 : vector<32xf32> to vector<1x32xf32>
    %cst_27 = arith.constant 1.000000e-24 : f32
    %101 = vector.broadcast %cst_27 : f32 to vector<1x32xf32>
    %102 = arith.maximumf %100, %101 : vector<1x32xf32>
    %103 = math.rsqrt %102 : vector<1x32xf32>
    %104 = vector.broadcast %103 : vector<1x32xf32> to vector<16x32xf32>
    %105 = arith.mulf %95, %104 : vector<16x32xf32>
    %106 = arith.mulf %96, %96 : vector<16x32xf32>
    %cst_28 = arith.constant dense<0.000000e+00> : vector<32xf32>
    %107 = vector.multi_reduction <add>, %106, %cst_28 [0] : vector<16x32xf32> to vector<32xf32>
    %108 = vector.shape_cast %107 : vector<32xf32> to vector<1x32xf32>
    %cst_29 = arith.constant 1.000000e-24 : f32
    %109 = vector.broadcast %cst_29 : f32 to vector<1x32xf32>
    %110 = arith.maximumf %108, %109 : vector<1x32xf32>
    %111 = math.rsqrt %110 : vector<1x32xf32>
    %112 = vector.broadcast %111 : vector<1x32xf32> to vector<16x32xf32>
    %113 = arith.mulf %96, %112 : vector<16x32xf32>
    %114 = vector.extract_strided_slice %6 {offsets = [5, 0], sizes = [1, 32], strides = [1, 1]} : vector<37x32xf32> to vector<1x32xf32>
    %115 = vector.shape_cast %114 : vector<1x32xf32> to vector<32xf32>
    %116 = vector.shape_cast %115 : vector<32xf32> to vector<1x32xf32>
    %117 = vector.broadcast %116 : vector<1x32xf32> to vector<16x32xf32>
    %118 = arith.mulf %105, %117 : vector<16x32xf32>
    %cst_30 = arith.constant dense<0.000000e+00> : vector<32x32xf32>
    %119 = tpu.matmul %118, %113, %cst_30 {dimension_numbers = #tpu.dot_dimension_numbers<[0], [0], [1], [1], [0, 1, 1, 1], [], []>} : vector<16x32xf32>, vector<16x32xf32>, vector<32x32xf32> -> vector<32x32xf32>
    %120 = arith.addf %119, %3 : vector<32x32xf32>
    %cst_31 = arith.constant dense<0xFF800000> : vector<32xf32>
    %121 = vector.multi_reduction <maximumf>, %120, %cst_31 [1] : vector<32x32xf32> to vector<32xf32>
    %122 = vector.shape_cast %121 : vector<32xf32> to vector<32x1xf32>
    %123 = vector.broadcast %122 : vector<32x1xf32> to vector<32x32xf32>
    %124 = arith.subf %120, %123 : vector<32x32xf32>
    %125 = math.exp %124 : vector<32x32xf32>
    %cst_32 = arith.constant dense<0.000000e+00> : vector<32xf32>
    %126 = vector.multi_reduction <add>, %125, %cst_32 [1] : vector<32x32xf32> to vector<32xf32>
    %127 = vector.shape_cast %126 : vector<32xf32> to vector<32x1xf32>
    %128 = vector.broadcast %127 : vector<32x1xf32> to vector<32x32xf32>
    %129 = arith.divf %125, %128 : vector<32x32xf32>
    %cst_33 = arith.constant dense<0.000000e+00> : vector<16x32xf32>
    %130 = tpu.matmul %97, %129, %cst_33 {dimension_numbers = #tpu.dot_dimension_numbers<[1], [1], [0], [0], [0, 0, 1, 0], [], []>} : vector<16x32xf32>, vector<32x32xf32>, vector<16x32xf32> -> vector<16x32xf32>
    %131 = tpu.concatenate %94, %130 in 0 : vector<16x32xf32>, vector<16x32xf32> -> vector<32x32xf32>
    %cst_34 = arith.constant dense<0.000000e+00> : vector<32x32xf32>
    %132 = tpu.matmul %131, %10, %cst_34 {dimension_numbers = #tpu.dot_dimension_numbers<[1], [0], [0], [1], [0, 0, 1, 1], [], []>} : vector<32x32xf32>, vector<32x32xf32>, vector<32x32xf32> -> vector<32x32xf32>
    %133 = vector.extract_strided_slice %6 {offsets = [6, 0], sizes = [1, 32], strides = [1, 1]} : vector<37x32xf32> to vector<1x32xf32>
    %134 = vector.shape_cast %133 : vector<1x32xf32> to vector<32xf32>
    %135 = vector.shape_cast %134 : vector<32xf32> to vector<1x32xf32>
    %136 = vector.broadcast %135 : vector<1x32xf32> to vector<32x32xf32>
    %137 = arith.addf %132, %136 : vector<32x32xf32>
    %138 = vector.extract_strided_slice %6 {offsets = [7, 0], sizes = [1, 32], strides = [1, 1]} : vector<37x32xf32> to vector<1x32xf32>
    %139 = vector.shape_cast %138 : vector<1x32xf32> to vector<32xf32>
    %140 = vector.shape_cast %139 : vector<32xf32> to vector<1x32xf32>
    %141 = vector.broadcast %140 : vector<1x32xf32> to vector<32x32xf32>
    %142 = arith.mulf %141, %137 : vector<32x32xf32>
    %143 = arith.addf %2, %142 : vector<32x32xf32>
    %144 = vector.extract_strided_slice %6 {offsets = [8, 0], sizes = [1, 32], strides = [1, 1]} : vector<37x32xf32> to vector<1x32xf32>
    %145 = vector.shape_cast %144 : vector<1x32xf32> to vector<32xf32>
    %146 = vector.extract_strided_slice %6 {offsets = [9, 0], sizes = [1, 32], strides = [1, 1]} : vector<37x32xf32> to vector<1x32xf32>
    %147 = vector.shape_cast %146 : vector<1x32xf32> to vector<32xf32>
    %cst_35 = arith.constant dense<0.000000e+00> : vector<32xf32>
    %148 = vector.multi_reduction <add>, %143, %cst_35 [1] : vector<32x32xf32> to vector<32xf32>
    %149 = vector.shape_cast %148 : vector<32xf32> to vector<32x1xf32>
    %cst_36 = arith.constant 3.200000e+01 : f32
    %150 = vector.broadcast %cst_36 : f32 to vector<32x1xf32>
    %151 = arith.divf %149, %150 : vector<32x1xf32>
    %152 = vector.broadcast %151 : vector<32x1xf32> to vector<32x32xf32>
    %153 = arith.subf %143, %152 : vector<32x32xf32>
    %154 = arith.mulf %153, %153 : vector<32x32xf32>
    %cst_37 = arith.constant dense<0.000000e+00> : vector<32xf32>
    %155 = vector.multi_reduction <add>, %154, %cst_37 [1] : vector<32x32xf32> to vector<32xf32>
    %156 = vector.shape_cast %155 : vector<32xf32> to vector<32x1xf32>
    %cst_38 = arith.constant 3.200000e+01 : f32
    %157 = vector.broadcast %cst_38 : f32 to vector<32x1xf32>
    %158 = arith.divf %156, %157 : vector<32x1xf32>
    %159 = vector.broadcast %151 : vector<32x1xf32> to vector<32x32xf32>
    %160 = arith.subf %143, %159 : vector<32x32xf32>
    %cst_39 = arith.constant 9.99999997E-7 : f32
    %161 = vector.broadcast %cst_39 : f32 to vector<32x1xf32>
    %162 = arith.addf %158, %161 : vector<32x1xf32>
    %163 = math.rsqrt %162 : vector<32x1xf32>
    %164 = vector.broadcast %163 : vector<32x1xf32> to vector<32x32xf32>
    %165 = arith.mulf %160, %164 : vector<32x32xf32>
    %166 = vector.shape_cast %145 : vector<32xf32> to vector<1x32xf32>
    %167 = vector.broadcast %166 : vector<1x32xf32> to vector<32x32xf32>
    %168 = arith.mulf %165, %167 : vector<32x32xf32>
    %169 = vector.shape_cast %147 : vector<32xf32> to vector<1x32xf32>
    %170 = vector.broadcast %169 : vector<1x32xf32> to vector<32x32xf32>
    %171 = arith.addf %168, %170 : vector<32x32xf32>
    %172 = vector.extract_strided_slice %6 {offsets = [19, 0], sizes = [9, 32], strides = [1, 1]} : vector<37x32xf32> to vector<9x32xf32>
    %173 = vector.extract_strided_slice %6 {offsets = [28, 0], sizes = [9, 32], strides = [1, 1]} : vector<37x32xf32> to vector<9x32xf32>
    %cst_40 = arith.constant dense<0.000000e+00> : vector<288x32xf32>
    %174 = tpu.matmul %4, %171, %cst_40 {dimension_numbers = #tpu.dot_dimension_numbers<[1], [0], [0], [1], [0, 0, 1, 1], [], []>} : vector<288x32xf32>, vector<32x32xf32>, vector<288x32xf32> -> vector<288x32xf32>
    %175 = vector.shape_cast %174 : vector<288x32xf32> to vector<9x32x32xf32>
    %176 = vector.shape_cast %172 : vector<9x32xf32> to vector<9x1x32xf32>
    %177 = vector.broadcast %176 : vector<9x1x32xf32> to vector<9x32x32xf32>
    %178 = arith.mulf %175, %177 : vector<9x32x32xf32>
    %cst_41 = arith.constant dense<0.000000e+00> : vector<32x32xf32>
    %179 = vector.multi_reduction <add>, %178, %cst_41 [0] : vector<9x32x32xf32> to vector<32x32xf32>
    %180 = vector.extract_strided_slice %6 {offsets = [10, 0], sizes = [1, 32], strides = [1, 1]} : vector<37x32xf32> to vector<1x32xf32>
    %181 = vector.shape_cast %180 : vector<1x32xf32> to vector<32xf32>
    %182 = vector.shape_cast %181 : vector<32xf32> to vector<1x32xf32>
    %183 = vector.broadcast %182 : vector<1x32xf32> to vector<32x32xf32>
    %184 = arith.addf %179, %183 : vector<32x32xf32>
    %cst_42 = arith.constant 5.000000e-01 : f32
    %185 = vector.broadcast %cst_42 : f32 to vector<32x32xf32>
    %186 = arith.mulf %185, %184 : vector<32x32xf32>
    %cst_43 = arith.constant 4.471500e-02 : f32
    %187 = vector.broadcast %cst_43 : f32 to vector<32x32xf32>
    %188 = arith.mulf %187, %184 : vector<32x32xf32>
    %189 = arith.mulf %188, %184 : vector<32x32xf32>
    %190 = arith.mulf %189, %184 : vector<32x32xf32>
    %191 = arith.addf %184, %190 : vector<32x32xf32>
    %cst_44 = arith.constant 0.797884583 : f32
    %192 = vector.broadcast %cst_44 : f32 to vector<32x32xf32>
    %193 = arith.mulf %192, %191 : vector<32x32xf32>
    %194 = math.tanh %193 : vector<32x32xf32>
    %cst_45 = arith.constant 1.000000e+00 : f32
    %195 = vector.broadcast %cst_45 : f32 to vector<32x32xf32>
    %196 = arith.addf %195, %194 : vector<32x32xf32>
    %197 = arith.mulf %186, %196 : vector<32x32xf32>
    %198 = vector.extract_strided_slice %6 {offsets = [11, 0], sizes = [1, 32], strides = [1, 1]} : vector<37x32xf32> to vector<1x32xf32>
    %199 = vector.shape_cast %198 : vector<1x32xf32> to vector<32xf32>
    %200 = vector.shape_cast %199 : vector<32xf32> to vector<1x32xf32>
    %201 = vector.broadcast %200 : vector<1x32xf32> to vector<32x32xf32>
    %202 = arith.mulf %197, %201 : vector<32x32xf32>
    %203 = vector.extract_strided_slice %6 {offsets = [12, 0], sizes = [1, 32], strides = [1, 1]} : vector<37x32xf32> to vector<1x32xf32>
    %204 = vector.shape_cast %203 : vector<1x32xf32> to vector<32xf32>
    %205 = vector.shape_cast %204 : vector<32xf32> to vector<1x32xf32>
    %206 = vector.broadcast %205 : vector<1x32xf32> to vector<32x32xf32>
    %207 = arith.addf %202, %206 : vector<32x32xf32>
    %cst_46 = arith.constant dense<0.000000e+00> : vector<288x32xf32>
    %208 = tpu.matmul %4, %207, %cst_46 {dimension_numbers = #tpu.dot_dimension_numbers<[1], [0], [0], [1], [0, 0, 1, 1], [], []>} : vector<288x32xf32>, vector<32x32xf32>, vector<288x32xf32> -> vector<288x32xf32>
    %209 = vector.shape_cast %208 : vector<288x32xf32> to vector<9x32x32xf32>
    %210 = vector.shape_cast %173 : vector<9x32xf32> to vector<9x1x32xf32>
    %211 = vector.broadcast %210 : vector<9x1x32xf32> to vector<9x32x32xf32>
    %212 = arith.mulf %209, %211 : vector<9x32x32xf32>
    %cst_47 = arith.constant dense<0.000000e+00> : vector<32x32xf32>
    %213 = vector.multi_reduction <add>, %212, %cst_47 [0] : vector<9x32x32xf32> to vector<32x32xf32>
    %214 = vector.extract_strided_slice %6 {offsets = [13, 0], sizes = [1, 32], strides = [1, 1]} : vector<37x32xf32> to vector<1x32xf32>
    %215 = vector.shape_cast %214 : vector<1x32xf32> to vector<32xf32>
    %216 = vector.shape_cast %215 : vector<32xf32> to vector<1x32xf32>
    %217 = vector.broadcast %216 : vector<1x32xf32> to vector<32x32xf32>
    %218 = arith.addf %213, %217 : vector<32x32xf32>
    %219 = vector.extract_strided_slice %6 {offsets = [14, 0], sizes = [1, 32], strides = [1, 1]} : vector<37x32xf32> to vector<1x32xf32>
    %220 = vector.shape_cast %219 : vector<1x32xf32> to vector<32xf32>
    %221 = vector.shape_cast %220 : vector<32xf32> to vector<1x32xf32>
    %222 = vector.broadcast %221 : vector<1x32xf32> to vector<32x32xf32>
    %223 = arith.mulf %222, %218 : vector<32x32xf32>
    %224 = arith.addf %143, %223 : vector<32x32xf32>
    %225 = vector.extract_strided_slice %6 {offsets = [15, 0], sizes = [1, 32], strides = [1, 1]} : vector<37x32xf32> to vector<1x32xf32>
    %226 = vector.shape_cast %225 : vector<1x32xf32> to vector<32xf32>
    %227 = vector.extract_strided_slice %6 {offsets = [16, 0], sizes = [1, 32], strides = [1, 1]} : vector<37x32xf32> to vector<1x32xf32>
    %228 = vector.shape_cast %227 : vector<1x32xf32> to vector<32xf32>
    %cst_48 = arith.constant dense<0.000000e+00> : vector<32xf32>
    %229 = vector.multi_reduction <add>, %224, %cst_48 [1] : vector<32x32xf32> to vector<32xf32>
    %230 = vector.shape_cast %229 : vector<32xf32> to vector<32x1xf32>
    %cst_49 = arith.constant 3.200000e+01 : f32
    %231 = vector.broadcast %cst_49 : f32 to vector<32x1xf32>
    %232 = arith.divf %230, %231 : vector<32x1xf32>
    %233 = vector.broadcast %232 : vector<32x1xf32> to vector<32x32xf32>
    %234 = arith.subf %224, %233 : vector<32x32xf32>
    %235 = arith.mulf %234, %234 : vector<32x32xf32>
    %cst_50 = arith.constant dense<0.000000e+00> : vector<32xf32>
    %236 = vector.multi_reduction <add>, %235, %cst_50 [1] : vector<32x32xf32> to vector<32xf32>
    %237 = vector.shape_cast %236 : vector<32xf32> to vector<32x1xf32>
    %cst_51 = arith.constant 3.200000e+01 : f32
    %238 = vector.broadcast %cst_51 : f32 to vector<32x1xf32>
    %239 = arith.divf %237, %238 : vector<32x1xf32>
    %240 = vector.broadcast %232 : vector<32x1xf32> to vector<32x32xf32>
    %241 = arith.subf %224, %240 : vector<32x32xf32>
    %cst_52 = arith.constant 9.99999997E-7 : f32
    %242 = vector.broadcast %cst_52 : f32 to vector<32x1xf32>
    %243 = arith.addf %239, %242 : vector<32x1xf32>
    %244 = math.rsqrt %243 : vector<32x1xf32>
    %245 = vector.broadcast %244 : vector<32x1xf32> to vector<32x32xf32>
    %246 = arith.mulf %241, %245 : vector<32x32xf32>
    %247 = vector.shape_cast %226 : vector<32xf32> to vector<1x32xf32>
    %248 = vector.broadcast %247 : vector<1x32xf32> to vector<32x32xf32>
    %249 = arith.mulf %246, %248 : vector<32x32xf32>
    %250 = vector.shape_cast %228 : vector<32xf32> to vector<1x32xf32>
    %251 = vector.broadcast %250 : vector<1x32xf32> to vector<32x32xf32>
    %252 = arith.addf %249, %251 : vector<32x32xf32>
    %cst_53 = arith.constant dense<0.000000e+00> : vector<32x128xf32>
    %253 = tpu.matmul %252, %11, %cst_53 {dimension_numbers = #tpu.dot_dimension_numbers<[1], [0], [0], [1], [0, 0, 1, 1], [], []>} : vector<32x32xf32>, vector<32x128xf32>, vector<32x128xf32> -> vector<32x128xf32>
    %c0_54 = arith.constant 0 : index
    %c0_55 = arith.constant 0 : index
    %254 = vector.load %arg7[%c0_54, %c0_55] : memref<4x128xf32, #tpu.memory_space<vmem>>, vector<1x128xf32>
    %255 = vector.shape_cast %254 : vector<1x128xf32> to vector<128xf32>
    %256 = vector.shape_cast %255 : vector<128xf32> to vector<1x128xf32>
    %257 = vector.broadcast %256 : vector<1x128xf32> to vector<32x128xf32>
    %258 = arith.addf %253, %257 : vector<32x128xf32>
    %cst_56 = arith.constant 5.000000e-01 : f32
    %259 = vector.broadcast %cst_56 : f32 to vector<32x128xf32>
    %260 = arith.mulf %259, %258 : vector<32x128xf32>
    %cst_57 = arith.constant 4.471500e-02 : f32
    %261 = vector.broadcast %cst_57 : f32 to vector<32x128xf32>
    %262 = arith.mulf %261, %258 : vector<32x128xf32>
    %263 = arith.mulf %262, %258 : vector<32x128xf32>
    %264 = arith.mulf %263, %258 : vector<32x128xf32>
    %265 = arith.addf %258, %264 : vector<32x128xf32>
    %cst_58 = arith.constant 0.797884583 : f32
    %266 = vector.broadcast %cst_58 : f32 to vector<32x128xf32>
    %267 = arith.mulf %266, %265 : vector<32x128xf32>
    %268 = math.tanh %267 : vector<32x128xf32>
    %cst_59 = arith.constant 1.000000e+00 : f32
    %269 = vector.broadcast %cst_59 : f32 to vector<32x128xf32>
    %270 = arith.addf %269, %268 : vector<32x128xf32>
    %271 = arith.mulf %260, %270 : vector<32x128xf32>
    %c0_60 = arith.constant 0 : index
    %c0_61 = arith.constant 0 : index
    %c0_62 = arith.constant 0 : index
    %272 = vector.load %arg6[%c0_60, %c0_61, %c0_62] : memref<4x128x32xf32, #tpu.memory_space<vmem>>, vector<1x128x32xf32>
    %273 = vector.shape_cast %272 : vector<1x128x32xf32> to vector<128x32xf32>
    %cst_63 = arith.constant dense<0.000000e+00> : vector<32x32xf32>
    %274 = tpu.matmul %271, %273, %cst_63 {dimension_numbers = #tpu.dot_dimension_numbers<[1], [0], [0], [1], [0, 0, 1, 1], [], []>} : vector<32x128xf32>, vector<128x32xf32>, vector<32x32xf32> -> vector<32x32xf32>
    %275 = vector.extract_strided_slice %6 {offsets = [17, 0], sizes = [1, 32], strides = [1, 1]} : vector<37x32xf32> to vector<1x32xf32>
    %276 = vector.shape_cast %275 : vector<1x32xf32> to vector<32xf32>
    %277 = vector.shape_cast %276 : vector<32xf32> to vector<1x32xf32>
    %278 = vector.broadcast %277 : vector<1x32xf32> to vector<32x32xf32>
    %279 = arith.addf %274, %278 : vector<32x32xf32>
    %280 = vector.extract_strided_slice %6 {offsets = [18, 0], sizes = [1, 32], strides = [1, 1]} : vector<37x32xf32> to vector<1x32xf32>
    %281 = vector.shape_cast %280 : vector<1x32xf32> to vector<32xf32>
    %282 = vector.shape_cast %281 : vector<32xf32> to vector<1x32xf32>
    %283 = vector.broadcast %282 : vector<1x32xf32> to vector<32x32xf32>
    %284 = arith.mulf %283, %279 : vector<32x32xf32>
    %285 = arith.addf %224, %284 : vector<32x32xf32>
    %c0_64 = arith.constant 0 : index
    %c0_65 = arith.constant 0 : index
    %286 = vector.load %arg8[%c0_64, %c0_65] : memref<32x128xf32, #tpu.memory_space<vmem>>, vector<32x128xf32>
    %cst_66 = arith.constant dense<0.000000e+00> : vector<32x128xf32>
    %287 = tpu.matmul %285, %286, %cst_66 {dimension_numbers = #tpu.dot_dimension_numbers<[1], [0], [0], [1], [0, 0, 1, 1], [], []>} : vector<32x32xf32>, vector<32x128xf32>, vector<32x128xf32> -> vector<32x128xf32>
    %c0_67 = arith.constant 0 : index
    %c0_68 = arith.constant 0 : index
    %288 = vector.load %arg9[%c0_67, %c0_68] : memref<1x128xf32, #tpu.memory_space<vmem>>, vector<1x128xf32>
    %289 = vector.broadcast %288 : vector<1x128xf32> to vector<32x128xf32>
    %290 = arith.addf %287, %289 : vector<32x128xf32>
    %c0_69 = arith.constant 0 : index
    %c0_70 = arith.constant 0 : index
    %291 = vector.load %arg11[%c0_69, %c0_70] : memref<32x128xf32, #tpu.memory_space<vmem>>, vector<32x128xf32>
    tpu.vector_store %arg11[%c0_69, %c0_70], %290 {strides = array<i32>} : memref<32x128xf32, #tpu.memory_space<vmem>>, vector<32x128xf32>,
    %c1 = arith.constant 1 : index
    %c0_71 = arith.constant 0 : index
    %c0_72 = arith.constant 0 : index
    %292 = vector.load %arg4[%c1, %c0_71, %c0_72] : memref<4x37x32xf32, #tpu.memory_space<vmem>>, vector<1x37x32xf32>
    %293 = vector.shape_cast %292 : vector<1x37x32xf32> to vector<37x32xf32>
    %c1_73 = arith.constant 1 : index
    %c0_74 = arith.constant 0 : index
    %c0_75 = arith.constant 0 : index
    %294 = vector.load %arg5[%c1_73, %c0_74, %c0_75] : memref<4x32x256xf32, #tpu.memory_space<vmem>>, vector<1x32x256xf32>
    %295 = vector.shape_cast %294 : vector<1x32x256xf32> to vector<32x256xf32>
    %296 = vector.extract_strided_slice %295 {offsets = [0, 0], sizes = [32, 96], strides = [1, 1]} : vector<32x256xf32> to vector<32x96xf32>
    %297 = vector.extract_strided_slice %295 {offsets = [0, 96], sizes = [32, 32], strides = [1, 1]} : vector<32x256xf32> to vector<32x32xf32>
    %298 = vector.extract_strided_slice %295 {offsets = [0, 128], sizes = [32, 128], strides = [1, 1]} : vector<32x256xf32> to vector<32x128xf32>
    %299 = vector.extract_strided_slice %293 {offsets = [0, 0], sizes = [1, 32], strides = [1, 1]} : vector<37x32xf32> to vector<1x32xf32>
    %300 = vector.shape_cast %299 : vector<1x32xf32> to vector<32xf32>
    %301 = vector.extract_strided_slice %293 {offsets = [1, 0], sizes = [1, 32], strides = [1, 1]} : vector<37x32xf32> to vector<1x32xf32>
    %302 = vector.shape_cast %301 : vector<1x32xf32> to vector<32xf32>
    %cst_76 = arith.constant dense<0.000000e+00> : vector<32xf32>
    %303 = vector.multi_reduction <add>, %285, %cst_76 [1] : vector<32x32xf32> to vector<32xf32>
    %304 = vector.shape_cast %303 : vector<32xf32> to vector<32x1xf32>
    %cst_77 = arith.constant 3.200000e+01 : f32
    %305 = vector.broadcast %cst_77 : f32 to vector<32x1xf32>
    %306 = arith.divf %304, %305 : vector<32x1xf32>
    %307 = vector.broadcast %306 : vector<32x1xf32> to vector<32x32xf32>
    %308 = arith.subf %285, %307 : vector<32x32xf32>
    %309 = arith.mulf %308, %308 : vector<32x32xf32>
    %cst_78 = arith.constant dense<0.000000e+00> : vector<32xf32>
    %310 = vector.multi_reduction <add>, %309, %cst_78 [1] : vector<32x32xf32> to vector<32xf32>
    %311 = vector.shape_cast %310 : vector<32xf32> to vector<32x1xf32>
    %cst_79 = arith.constant 3.200000e+01 : f32
    %312 = vector.broadcast %cst_79 : f32 to vector<32x1xf32>
    %313 = arith.divf %311, %312 : vector<32x1xf32>
    %314 = vector.broadcast %306 : vector<32x1xf32> to vector<32x32xf32>
    %315 = arith.subf %285, %314 : vector<32x32xf32>
    %cst_80 = arith.constant 9.99999997E-7 : f32
    %316 = vector.broadcast %cst_80 : f32 to vector<32x1xf32>
    %317 = arith.addf %313, %316 : vector<32x1xf32>
    %318 = math.rsqrt %317 : vector<32x1xf32>
    %319 = vector.broadcast %318 : vector<32x1xf32> to vector<32x32xf32>
    %320 = arith.mulf %315, %319 : vector<32x32xf32>
    %321 = vector.shape_cast %300 : vector<32xf32> to vector<1x32xf32>
    %322 = vector.broadcast %321 : vector<1x32xf32> to vector<32x32xf32>
    %323 = arith.mulf %320, %322 : vector<32x32xf32>
    %324 = vector.shape_cast %302 : vector<32xf32> to vector<1x32xf32>
    %325 = vector.broadcast %324 : vector<1x32xf32> to vector<32x32xf32>
    %326 = arith.addf %323, %325 : vector<32x32xf32>
    %cst_81 = arith.constant dense<0.000000e+00> : vector<32x96xf32>
    %327 = tpu.matmul %326, %296, %cst_81 {dimension_numbers = #tpu.dot_dimension_numbers<[1], [0], [0], [1], [0, 0, 1, 1], [], []>} : vector<32x32xf32>, vector<32x96xf32>, vector<32x96xf32> -> vector<32x96xf32>
    %328 = vector.extract_strided_slice %327 {offsets = [0, 0], sizes = [32, 32], strides = [1, 1]} : vector<32x96xf32> to vector<32x32xf32>
    %329 = vector.extract_strided_slice %293 {offsets = [2, 0], sizes = [1, 32], strides = [1, 1]} : vector<37x32xf32> to vector<1x32xf32>
    %330 = vector.shape_cast %329 : vector<1x32xf32> to vector<32xf32>
    %331 = vector.shape_cast %330 : vector<32xf32> to vector<1x32xf32>
    %332 = vector.broadcast %331 : vector<1x32xf32> to vector<32x32xf32>
    %333 = arith.addf %328, %332 : vector<32x32xf32>
    %334 = vector.extract_strided_slice %327 {offsets = [0, 32], sizes = [32, 32], strides = [1, 1]} : vector<32x96xf32> to vector<32x32xf32>
    %335 = vector.extract_strided_slice %293 {offsets = [3, 0], sizes = [1, 32], strides = [1, 1]} : vector<37x32xf32> to vector<1x32xf32>
    %336 = vector.shape_cast %335 : vector<1x32xf32> to vector<32xf32>
    %337 = vector.shape_cast %336 : vector<32xf32> to vector<1x32xf32>
    %338 = vector.broadcast %337 : vector<1x32xf32> to vector<32x32xf32>
    %339 = arith.addf %334, %338 : vector<32x32xf32>
    %340 = vector.extract_strided_slice %327 {offsets = [0, 64], sizes = [32, 32], strides = [1, 1]} : vector<32x96xf32> to vector<32x32xf32>
    %341 = vector.extract_strided_slice %293 {offsets = [4, 0], sizes = [1, 32], strides = [1, 1]} : vector<37x32xf32> to vector<1x32xf32>
    %342 = vector.shape_cast %341 : vector<1x32xf32> to vector<32xf32>
    %343 = vector.shape_cast %342 : vector<32xf32> to vector<1x32xf32>
    %344 = vector.broadcast %343 : vector<1x32xf32> to vector<32x32xf32>
    %345 = arith.addf %340, %344 : vector<32x32xf32>
    %346 = vector.extract_strided_slice %333 {offsets = [0, 0], sizes = [16, 32], strides = [1, 1]} : vector<32x32xf32> to vector<16x32xf32>
    %347 = vector.extract_strided_slice %339 {offsets = [0, 0], sizes = [16, 32], strides = [1, 1]} : vector<32x32xf32> to vector<16x32xf32>
    %348 = vector.extract_strided_slice %345 {offsets = [0, 0], sizes = [16, 32], strides = [1, 1]} : vector<32x32xf32> to vector<16x32xf32>
    %349 = arith.mulf %346, %346 : vector<16x32xf32>
    %cst_82 = arith.constant dense<0.000000e+00> : vector<32xf32>
    %350 = vector.multi_reduction <add>, %349, %cst_82 [0] : vector<16x32xf32> to vector<32xf32>
    %351 = vector.shape_cast %350 : vector<32xf32> to vector<1x32xf32>
    %cst_83 = arith.constant 1.000000e-24 : f32
    %352 = vector.broadcast %cst_83 : f32 to vector<1x32xf32>
    %353 = arith.maximumf %351, %352 : vector<1x32xf32>
    %354 = math.rsqrt %353 : vector<1x32xf32>
    %355 = vector.broadcast %354 : vector<1x32xf32> to vector<16x32xf32>
    %356 = arith.mulf %346, %355 : vector<16x32xf32>
    %357 = arith.mulf %347, %347 : vector<16x32xf32>
    %cst_84 = arith.constant dense<0.000000e+00> : vector<32xf32>
    %358 = vector.multi_reduction <add>, %357, %cst_84 [0] : vector<16x32xf32> to vector<32xf32>
    %359 = vector.shape_cast %358 : vector<32xf32> to vector<1x32xf32>
    %cst_85 = arith.constant 1.000000e-24 : f32
    %360 = vector.broadcast %cst_85 : f32 to vector<1x32xf32>
    %361 = arith.maximumf %359, %360 : vector<1x32xf32>
    %362 = math.rsqrt %361 : vector<1x32xf32>
    %363 = vector.broadcast %362 : vector<1x32xf32> to vector<16x32xf32>
    %364 = arith.mulf %347, %363 : vector<16x32xf32>
    %365 = vector.extract_strided_slice %293 {offsets = [5, 0], sizes = [1, 32], strides = [1, 1]} : vector<37x32xf32> to vector<1x32xf32>
    %366 = vector.shape_cast %365 : vector<1x32xf32> to vector<32xf32>
    %367 = vector.shape_cast %366 : vector<32xf32> to vector<1x32xf32>
    %368 = vector.broadcast %367 : vector<1x32xf32> to vector<16x32xf32>
    %369 = arith.mulf %356, %368 : vector<16x32xf32>
    %cst_86 = arith.constant dense<0.000000e+00> : vector<32x32xf32>
    %370 = tpu.matmul %369, %364, %cst_86 {dimension_numbers = #tpu.dot_dimension_numbers<[0], [0], [1], [1], [0, 1, 1, 1], [], []>} : vector<16x32xf32>, vector<16x32xf32>, vector<32x32xf32> -> vector<32x32xf32>
    %371 = arith.addf %370, %3 : vector<32x32xf32>
    %cst_87 = arith.constant dense<0xFF800000> : vector<32xf32>
    %372 = vector.multi_reduction <maximumf>, %371, %cst_87 [1] : vector<32x32xf32> to vector<32xf32>
    %373 = vector.shape_cast %372 : vector<32xf32> to vector<32x1xf32>
    %374 = vector.broadcast %373 : vector<32x1xf32> to vector<32x32xf32>
    %375 = arith.subf %371, %374 : vector<32x32xf32>
    %376 = math.exp %375 : vector<32x32xf32>
    %cst_88 = arith.constant dense<0.000000e+00> : vector<32xf32>
    %377 = vector.multi_reduction <add>, %376, %cst_88 [1] : vector<32x32xf32> to vector<32xf32>
    %378 = vector.shape_cast %377 : vector<32xf32> to vector<32x1xf32>
    %379 = vector.broadcast %378 : vector<32x1xf32> to vector<32x32xf32>
    %380 = arith.divf %376, %379 : vector<32x32xf32>
    %cst_89 = arith.constant dense<0.000000e+00> : vector<16x32xf32>
    %381 = tpu.matmul %348, %380, %cst_89 {dimension_numbers = #tpu.dot_dimension_numbers<[1], [1], [0], [0], [0, 0, 1, 0], [], []>} : vector<16x32xf32>, vector<32x32xf32>, vector<16x32xf32> -> vector<16x32xf32>
    %382 = vector.extract_strided_slice %333 {offsets = [16, 0], sizes = [16, 32], strides = [1, 1]} : vector<32x32xf32> to vector<16x32xf32>
    %383 = vector.extract_strided_slice %339 {offsets = [16, 0], sizes = [16, 32], strides = [1, 1]} : vector<32x32xf32> to vector<16x32xf32>
    %384 = vector.extract_strided_slice %345 {offsets = [16, 0], sizes = [16, 32], strides = [1, 1]} : vector<32x32xf32> to vector<16x32xf32>
    %385 = arith.mulf %382, %382 : vector<16x32xf32>
    %cst_90 = arith.constant dense<0.000000e+00> : vector<32xf32>
    %386 = vector.multi_reduction <add>, %385, %cst_90 [0] : vector<16x32xf32> to vector<32xf32>
    %387 = vector.shape_cast %386 : vector<32xf32> to vector<1x32xf32>
    %cst_91 = arith.constant 1.000000e-24 : f32
    %388 = vector.broadcast %cst_91 : f32 to vector<1x32xf32>
    %389 = arith.maximumf %387, %388 : vector<1x32xf32>
    %390 = math.rsqrt %389 : vector<1x32xf32>
    %391 = vector.broadcast %390 : vector<1x32xf32> to vector<16x32xf32>
    %392 = arith.mulf %382, %391 : vector<16x32xf32>
    %393 = arith.mulf %383, %383 : vector<16x32xf32>
    %cst_92 = arith.constant dense<0.000000e+00> : vector<32xf32>
    %394 = vector.multi_reduction <add>, %393, %cst_92 [0] : vector<16x32xf32> to vector<32xf32>
    %395 = vector.shape_cast %394 : vector<32xf32> to vector<1x32xf32>
    %cst_93 = arith.constant 1.000000e-24 : f32
    %396 = vector.broadcast %cst_93 : f32 to vector<1x32xf32>
    %397 = arith.maximumf %395, %396 : vector<1x32xf32>
    %398 = math.rsqrt %397 : vector<1x32xf32>
    %399 = vector.broadcast %398 : vector<1x32xf32> to vector<16x32xf32>
    %400 = arith.mulf %383, %399 : vector<16x32xf32>
    %401 = vector.extract_strided_slice %293 {offsets = [5, 0], sizes = [1, 32], strides = [1, 1]} : vector<37x32xf32> to vector<1x32xf32>
    %402 = vector.shape_cast %401 : vector<1x32xf32> to vector<32xf32>
    %403 = vector.shape_cast %402 : vector<32xf32> to vector<1x32xf32>
    %404 = vector.broadcast %403 : vector<1x32xf32> to vector<16x32xf32>
    %405 = arith.mulf %392, %404 : vector<16x32xf32>
    %cst_94 = arith.constant dense<0.000000e+00> : vector<32x32xf32>
    %406 = tpu.matmul %405, %400, %cst_94 {dimension_numbers = #tpu.dot_dimension_numbers<[0], [0], [1], [1], [0, 1, 1, 1], [], []>} : vector<16x32xf32>, vector<16x32xf32>, vector<32x32xf32> -> vector<32x32xf32>
    %407 = arith.addf %406, %3 : vector<32x32xf32>
    %cst_95 = arith.constant dense<0xFF800000> : vector<32xf32>
    %408 = vector.multi_reduction <maximumf>, %407, %cst_95 [1] : vector<32x32xf32> to vector<32xf32>
    %409 = vector.shape_cast %408 : vector<32xf32> to vector<32x1xf32>
    %410 = vector.broadcast %409 : vector<32x1xf32> to vector<32x32xf32>
    %411 = arith.subf %407, %410 : vector<32x32xf32>
    %412 = math.exp %411 : vector<32x32xf32>
    %cst_96 = arith.constant dense<0.000000e+00> : vector<32xf32>
    %413 = vector.multi_reduction <add>, %412, %cst_96 [1] : vector<32x32xf32> to vector<32xf32>
    %414 = vector.shape_cast %413 : vector<32xf32> to vector<32x1xf32>
    %415 = vector.broadcast %414 : vector<32x1xf32> to vector<32x32xf32>
    %416 = arith.divf %412, %415 : vector<32x32xf32>
    %cst_97 = arith.constant dense<0.000000e+00> : vector<16x32xf32>
    %417 = tpu.matmul %384, %416, %cst_97 {dimension_numbers = #tpu.dot_dimension_numbers<[1], [1], [0], [0], [0, 0, 1, 0], [], []>} : vector<16x32xf32>, vector<32x32xf32>, vector<16x32xf32> -> vector<16x32xf32>
    %418 = tpu.concatenate %381, %417 in 0 : vector<16x32xf32>, vector<16x32xf32> -> vector<32x32xf32>
    %cst_98 = arith.constant dense<0.000000e+00> : vector<32x32xf32>
    %419 = tpu.matmul %418, %297, %cst_98 {dimension_numbers = #tpu.dot_dimension_numbers<[1], [0], [0], [1], [0, 0, 1, 1], [], []>} : vector<32x32xf32>, vector<32x32xf32>, vector<32x32xf32> -> vector<32x32xf32>
    %420 = vector.extract_strided_slice %293 {offsets = [6, 0], sizes = [1, 32], strides = [1, 1]} : vector<37x32xf32> to vector<1x32xf32>
    %421 = vector.shape_cast %420 : vector<1x32xf32> to vector<32xf32>
    %422 = vector.shape_cast %421 : vector<32xf32> to vector<1x32xf32>
    %423 = vector.broadcast %422 : vector<1x32xf32> to vector<32x32xf32>
    %424 = arith.addf %419, %423 : vector<32x32xf32>
    %425 = vector.extract_strided_slice %293 {offsets = [7, 0], sizes = [1, 32], strides = [1, 1]} : vector<37x32xf32> to vector<1x32xf32>
    %426 = vector.shape_cast %425 : vector<1x32xf32> to vector<32xf32>
    %427 = vector.shape_cast %426 : vector<32xf32> to vector<1x32xf32>
    %428 = vector.broadcast %427 : vector<1x32xf32> to vector<32x32xf32>
    %429 = arith.mulf %428, %424 : vector<32x32xf32>
    %430 = arith.addf %285, %429 : vector<32x32xf32>
    %431 = vector.extract_strided_slice %293 {offsets = [8, 0], sizes = [1, 32], strides = [1, 1]} : vector<37x32xf32> to vector<1x32xf32>
    %432 = vector.shape_cast %431 : vector<1x32xf32> to vector<32xf32>
    %433 = vector.extract_strided_slice %293 {offsets = [9, 0], sizes = [1, 32], strides = [1, 1]} : vector<37x32xf32> to vector<1x32xf32>
    %434 = vector.shape_cast %433 : vector<1x32xf32> to vector<32xf32>
    %cst_99 = arith.constant dense<0.000000e+00> : vector<32xf32>
    %435 = vector.multi_reduction <add>, %430, %cst_99 [1] : vector<32x32xf32> to vector<32xf32>
    %436 = vector.shape_cast %435 : vector<32xf32> to vector<32x1xf32>
    %cst_100 = arith.constant 3.200000e+01 : f32
    %437 = vector.broadcast %cst_100 : f32 to vector<32x1xf32>
    %438 = arith.divf %436, %437 : vector<32x1xf32>
    %439 = vector.broadcast %438 : vector<32x1xf32> to vector<32x32xf32>
    %440 = arith.subf %430, %439 : vector<32x32xf32>
    %441 = arith.mulf %440, %440 : vector<32x32xf32>
    %cst_101 = arith.constant dense<0.000000e+00> : vector<32xf32>
    %442 = vector.multi_reduction <add>, %441, %cst_101 [1] : vector<32x32xf32> to vector<32xf32>
    %443 = vector.shape_cast %442 : vector<32xf32> to vector<32x1xf32>
    %cst_102 = arith.constant 3.200000e+01 : f32
    %444 = vector.broadcast %cst_102 : f32 to vector<32x1xf32>
    %445 = arith.divf %443, %444 : vector<32x1xf32>
    %446 = vector.broadcast %438 : vector<32x1xf32> to vector<32x32xf32>
    %447 = arith.subf %430, %446 : vector<32x32xf32>
    %cst_103 = arith.constant 9.99999997E-7 : f32
    %448 = vector.broadcast %cst_103 : f32 to vector<32x1xf32>
    %449 = arith.addf %445, %448 : vector<32x1xf32>
    %450 = math.rsqrt %449 : vector<32x1xf32>
    %451 = vector.broadcast %450 : vector<32x1xf32> to vector<32x32xf32>
    %452 = arith.mulf %447, %451 : vector<32x32xf32>
    %453 = vector.shape_cast %432 : vector<32xf32> to vector<1x32xf32>
    %454 = vector.broadcast %453 : vector<1x32xf32> to vector<32x32xf32>
    %455 = arith.mulf %452, %454 : vector<32x32xf32>
    %456 = vector.shape_cast %434 : vector<32xf32> to vector<1x32xf32>
    %457 = vector.broadcast %456 : vector<1x32xf32> to vector<32x32xf32>
    %458 = arith.addf %455, %457 : vector<32x32xf32>
    %459 = vector.extract_strided_slice %293 {offsets = [19, 0], sizes = [9, 32], strides = [1, 1]} : vector<37x32xf32> to vector<9x32xf32>
    %460 = vector.extract_strided_slice %293 {offsets = [28, 0], sizes = [9, 32], strides = [1, 1]} : vector<37x32xf32> to vector<9x32xf32>
    %cst_104 = arith.constant dense<0.000000e+00> : vector<288x32xf32>
    %461 = tpu.matmul %4, %458, %cst_104 {dimension_numbers = #tpu.dot_dimension_numbers<[1], [0], [0], [1], [0, 0, 1, 1], [], []>} : vector<288x32xf32>, vector<32x32xf32>, vector<288x32xf32> -> vector<288x32xf32>
    %462 = vector.shape_cast %461 : vector<288x32xf32> to vector<9x32x32xf32>
    %463 = vector.shape_cast %459 : vector<9x32xf32> to vector<9x1x32xf32>
    %464 = vector.broadcast %463 : vector<9x1x32xf32> to vector<9x32x32xf32>
    %465 = arith.mulf %462, %464 : vector<9x32x32xf32>
    %cst_105 = arith.constant dense<0.000000e+00> : vector<32x32xf32>
    %466 = vector.multi_reduction <add>, %465, %cst_105 [0] : vector<9x32x32xf32> to vector<32x32xf32>
    %467 = vector.extract_strided_slice %293 {offsets = [10, 0], sizes = [1, 32], strides = [1, 1]} : vector<37x32xf32> to vector<1x32xf32>
    %468 = vector.shape_cast %467 : vector<1x32xf32> to vector<32xf32>
    %469 = vector.shape_cast %468 : vector<32xf32> to vector<1x32xf32>
    %470 = vector.broadcast %469 : vector<1x32xf32> to vector<32x32xf32>
    %471 = arith.addf %466, %470 : vector<32x32xf32>
    %cst_106 = arith.constant 5.000000e-01 : f32
    %472 = vector.broadcast %cst_106 : f32 to vector<32x32xf32>
    %473 = arith.mulf %472, %471 : vector<32x32xf32>
    %cst_107 = arith.constant 4.471500e-02 : f32
    %474 = vector.broadcast %cst_107 : f32 to vector<32x32xf32>
    %475 = arith.mulf %474, %471 : vector<32x32xf32>
    %476 = arith.mulf %475, %471 : vector<32x32xf32>
    %477 = arith.mulf %476, %471 : vector<32x32xf32>
    %478 = arith.addf %471, %477 : vector<32x32xf32>
    %cst_108 = arith.constant 0.797884583 : f32
    %479 = vector.broadcast %cst_108 : f32 to vector<32x32xf32>
    %480 = arith.mulf %479, %478 : vector<32x32xf32>
    %481 = math.tanh %480 : vector<32x32xf32>
    %cst_109 = arith.constant 1.000000e+00 : f32
    %482 = vector.broadcast %cst_109 : f32 to vector<32x32xf32>
    %483 = arith.addf %482, %481 : vector<32x32xf32>
    %484 = arith.mulf %473, %483 : vector<32x32xf32>
    %485 = vector.extract_strided_slice %293 {offsets = [11, 0], sizes = [1, 32], strides = [1, 1]} : vector<37x32xf32> to vector<1x32xf32>
    %486 = vector.shape_cast %485 : vector<1x32xf32> to vector<32xf32>
    %487 = vector.shape_cast %486 : vector<32xf32> to vector<1x32xf32>
    %488 = vector.broadcast %487 : vector<1x32xf32> to vector<32x32xf32>
    %489 = arith.mulf %484, %488 : vector<32x32xf32>
    %490 = vector.extract_strided_slice %293 {offsets = [12, 0], sizes = [1, 32], strides = [1, 1]} : vector<37x32xf32> to vector<1x32xf32>
    %491 = vector.shape_cast %490 : vector<1x32xf32> to vector<32xf32>
    %492 = vector.shape_cast %491 : vector<32xf32> to vector<1x32xf32>
    %493 = vector.broadcast %492 : vector<1x32xf32> to vector<32x32xf32>
    %494 = arith.addf %489, %493 : vector<32x32xf32>
    %cst_110 = arith.constant dense<0.000000e+00> : vector<288x32xf32>
    %495 = tpu.matmul %4, %494, %cst_110 {dimension_numbers = #tpu.dot_dimension_numbers<[1], [0], [0], [1], [0, 0, 1, 1], [], []>} : vector<288x32xf32>, vector<32x32xf32>, vector<288x32xf32> -> vector<288x32xf32>
    %496 = vector.shape_cast %495 : vector<288x32xf32> to vector<9x32x32xf32>
    %497 = vector.shape_cast %460 : vector<9x32xf32> to vector<9x1x32xf32>
    %498 = vector.broadcast %497 : vector<9x1x32xf32> to vector<9x32x32xf32>
    %499 = arith.mulf %496, %498 : vector<9x32x32xf32>
    %cst_111 = arith.constant dense<0.000000e+00> : vector<32x32xf32>
    %500 = vector.multi_reduction <add>, %499, %cst_111 [0] : vector<9x32x32xf32> to vector<32x32xf32>
    %501 = vector.extract_strided_slice %293 {offsets = [13, 0], sizes = [1, 32], strides = [1, 1]} : vector<37x32xf32> to vector<1x32xf32>
    %502 = vector.shape_cast %501 : vector<1x32xf32> to vector<32xf32>
    %503 = vector.shape_cast %502 : vector<32xf32> to vector<1x32xf32>
    %504 = vector.broadcast %503 : vector<1x32xf32> to vector<32x32xf32>
    %505 = arith.addf %500, %504 : vector<32x32xf32>
    %506 = vector.extract_strided_slice %293 {offsets = [14, 0], sizes = [1, 32], strides = [1, 1]} : vector<37x32xf32> to vector<1x32xf32>
    %507 = vector.shape_cast %506 : vector<1x32xf32> to vector<32xf32>
    %508 = vector.shape_cast %507 : vector<32xf32> to vector<1x32xf32>
    %509 = vector.broadcast %508 : vector<1x32xf32> to vector<32x32xf32>
    %510 = arith.mulf %509, %505 : vector<32x32xf32>
    %511 = arith.addf %430, %510 : vector<32x32xf32>
    %512 = vector.extract_strided_slice %293 {offsets = [15, 0], sizes = [1, 32], strides = [1, 1]} : vector<37x32xf32> to vector<1x32xf32>
    %513 = vector.shape_cast %512 : vector<1x32xf32> to vector<32xf32>
    %514 = vector.extract_strided_slice %293 {offsets = [16, 0], sizes = [1, 32], strides = [1, 1]} : vector<37x32xf32> to vector<1x32xf32>
    %515 = vector.shape_cast %514 : vector<1x32xf32> to vector<32xf32>
    %cst_112 = arith.constant dense<0.000000e+00> : vector<32xf32>
    %516 = vector.multi_reduction <add>, %511, %cst_112 [1] : vector<32x32xf32> to vector<32xf32>
    %517 = vector.shape_cast %516 : vector<32xf32> to vector<32x1xf32>
    %cst_113 = arith.constant 3.200000e+01 : f32
    %518 = vector.broadcast %cst_113 : f32 to vector<32x1xf32>
    %519 = arith.divf %517, %518 : vector<32x1xf32>
    %520 = vector.broadcast %519 : vector<32x1xf32> to vector<32x32xf32>
    %521 = arith.subf %511, %520 : vector<32x32xf32>
    %522 = arith.mulf %521, %521 : vector<32x32xf32>
    %cst_114 = arith.constant dense<0.000000e+00> : vector<32xf32>
    %523 = vector.multi_reduction <add>, %522, %cst_114 [1] : vector<32x32xf32> to vector<32xf32>
    %524 = vector.shape_cast %523 : vector<32xf32> to vector<32x1xf32>
    %cst_115 = arith.constant 3.200000e+01 : f32
    %525 = vector.broadcast %cst_115 : f32 to vector<32x1xf32>
    %526 = arith.divf %524, %525 : vector<32x1xf32>
    %527 = vector.broadcast %519 : vector<32x1xf32> to vector<32x32xf32>
    %528 = arith.subf %511, %527 : vector<32x32xf32>
    %cst_116 = arith.constant 9.99999997E-7 : f32
    %529 = vector.broadcast %cst_116 : f32 to vector<32x1xf32>
    %530 = arith.addf %526, %529 : vector<32x1xf32>
    %531 = math.rsqrt %530 : vector<32x1xf32>
    %532 = vector.broadcast %531 : vector<32x1xf32> to vector<32x32xf32>
    %533 = arith.mulf %528, %532 : vector<32x32xf32>
    %534 = vector.shape_cast %513 : vector<32xf32> to vector<1x32xf32>
    %535 = vector.broadcast %534 : vector<1x32xf32> to vector<32x32xf32>
    %536 = arith.mulf %533, %535 : vector<32x32xf32>
    %537 = vector.shape_cast %515 : vector<32xf32> to vector<1x32xf32>
    %538 = vector.broadcast %537 : vector<1x32xf32> to vector<32x32xf32>
    %539 = arith.addf %536, %538 : vector<32x32xf32>
    %cst_117 = arith.constant dense<0.000000e+00> : vector<32x128xf32>
    %540 = tpu.matmul %539, %298, %cst_117 {dimension_numbers = #tpu.dot_dimension_numbers<[1], [0], [0], [1], [0, 0, 1, 1], [], []>} : vector<32x32xf32>, vector<32x128xf32>, vector<32x128xf32> -> vector<32x128xf32>
    %c1_118 = arith.constant 1 : index
    %c0_119 = arith.constant 0 : index
    %541 = vector.load %arg7[%c1_118, %c0_119] : memref<4x128xf32, #tpu.memory_space<vmem>>, vector<1x128xf32>
    %542 = vector.shape_cast %541 : vector<1x128xf32> to vector<128xf32>
    %543 = vector.shape_cast %542 : vector<128xf32> to vector<1x128xf32>
    %544 = vector.broadcast %543 : vector<1x128xf32> to vector<32x128xf32>
    %545 = arith.addf %540, %544 : vector<32x128xf32>
    %cst_120 = arith.constant 5.000000e-01 : f32
    %546 = vector.broadcast %cst_120 : f32 to vector<32x128xf32>
    %547 = arith.mulf %546, %545 : vector<32x128xf32>
    %cst_121 = arith.constant 4.471500e-02 : f32
    %548 = vector.broadcast %cst_121 : f32 to vector<32x128xf32>
    %549 = arith.mulf %548, %545 : vector<32x128xf32>
    %550 = arith.mulf %549, %545 : vector<32x128xf32>
    %551 = arith.mulf %550, %545 : vector<32x128xf32>
    %552 = arith.addf %545, %551 : vector<32x128xf32>
    %cst_122 = arith.constant 0.797884583 : f32
    %553 = vector.broadcast %cst_122 : f32 to vector<32x128xf32>
    %554 = arith.mulf %553, %552 : vector<32x128xf32>
    %555 = math.tanh %554 : vector<32x128xf32>
    %cst_123 = arith.constant 1.000000e+00 : f32
    %556 = vector.broadcast %cst_123 : f32 to vector<32x128xf32>
    %557 = arith.addf %556, %555 : vector<32x128xf32>
    %558 = arith.mulf %547, %557 : vector<32x128xf32>
    %c1_124 = arith.constant 1 : index
    %c0_125 = arith.constant 0 : index
    %c0_126 = arith.constant 0 : index
    %559 = vector.load %arg6[%c1_124, %c0_125, %c0_126] : memref<4x128x32xf32, #tpu.memory_space<vmem>>, vector<1x128x32xf32>
    %560 = vector.shape_cast %559 : vector<1x128x32xf32> to vector<128x32xf32>
    %cst_127 = arith.constant dense<0.000000e+00> : vector<32x32xf32>
    %561 = tpu.matmul %558, %560, %cst_127 {dimension_numbers = #tpu.dot_dimension_numbers<[1], [0], [0], [1], [0, 0, 1, 1], [], []>} : vector<32x128xf32>, vector<128x32xf32>, vector<32x32xf32> -> vector<32x32xf32>
    %562 = vector.extract_strided_slice %293 {offsets = [17, 0], sizes = [1, 32], strides = [1, 1]} : vector<37x32xf32> to vector<1x32xf32>
    %563 = vector.shape_cast %562 : vector<1x32xf32> to vector<32xf32>
    %564 = vector.shape_cast %563 : vector<32xf32> to vector<1x32xf32>
    %565 = vector.broadcast %564 : vector<1x32xf32> to vector<32x32xf32>
    %566 = arith.addf %561, %565 : vector<32x32xf32>
    %567 = vector.extract_strided_slice %293 {offsets = [18, 0], sizes = [1, 32], strides = [1, 1]} : vector<37x32xf32> to vector<1x32xf32>
    %568 = vector.shape_cast %567 : vector<1x32xf32> to vector<32xf32>
    %569 = vector.shape_cast %568 : vector<32xf32> to vector<1x32xf32>
    %570 = vector.broadcast %569 : vector<1x32xf32> to vector<32x32xf32>
    %571 = arith.mulf %570, %566 : vector<32x32xf32>
    %572 = arith.addf %511, %571 : vector<32x32xf32>
    %c2 = arith.constant 2 : index
    %c0_128 = arith.constant 0 : index
    %c0_129 = arith.constant 0 : index
    %573 = vector.load %arg4[%c2, %c0_128, %c0_129] : memref<4x37x32xf32, #tpu.memory_space<vmem>>, vector<1x37x32xf32>
    %574 = vector.shape_cast %573 : vector<1x37x32xf32> to vector<37x32xf32>
    %c2_130 = arith.constant 2 : index
    %c0_131 = arith.constant 0 : index
    %c0_132 = arith.constant 0 : index
    %575 = vector.load %arg5[%c2_130, %c0_131, %c0_132] : memref<4x32x256xf32, #tpu.memory_space<vmem>>, vector<1x32x256xf32>
    %576 = vector.shape_cast %575 : vector<1x32x256xf32> to vector<32x256xf32>
    %577 = vector.extract_strided_slice %576 {offsets = [0, 0], sizes = [32, 96], strides = [1, 1]} : vector<32x256xf32> to vector<32x96xf32>
    %578 = vector.extract_strided_slice %576 {offsets = [0, 96], sizes = [32, 32], strides = [1, 1]} : vector<32x256xf32> to vector<32x32xf32>
    %579 = vector.extract_strided_slice %576 {offsets = [0, 128], sizes = [32, 128], strides = [1, 1]} : vector<32x256xf32> to vector<32x128xf32>
    %580 = vector.extract_strided_slice %574 {offsets = [0, 0], sizes = [1, 32], strides = [1, 1]} : vector<37x32xf32> to vector<1x32xf32>
    %581 = vector.shape_cast %580 : vector<1x32xf32> to vector<32xf32>
    %582 = vector.extract_strided_slice %574 {offsets = [1, 0], sizes = [1, 32], strides = [1, 1]} : vector<37x32xf32> to vector<1x32xf32>
    %583 = vector.shape_cast %582 : vector<1x32xf32> to vector<32xf32>
    %cst_133 = arith.constant dense<0.000000e+00> : vector<32xf32>
    %584 = vector.multi_reduction <add>, %572, %cst_133 [1] : vector<32x32xf32> to vector<32xf32>
    %585 = vector.shape_cast %584 : vector<32xf32> to vector<32x1xf32>
    %cst_134 = arith.constant 3.200000e+01 : f32
    %586 = vector.broadcast %cst_134 : f32 to vector<32x1xf32>
    %587 = arith.divf %585, %586 : vector<32x1xf32>
    %588 = vector.broadcast %587 : vector<32x1xf32> to vector<32x32xf32>
    %589 = arith.subf %572, %588 : vector<32x32xf32>
    %590 = arith.mulf %589, %589 : vector<32x32xf32>
    %cst_135 = arith.constant dense<0.000000e+00> : vector<32xf32>
    %591 = vector.multi_reduction <add>, %590, %cst_135 [1] : vector<32x32xf32> to vector<32xf32>
    %592 = vector.shape_cast %591 : vector<32xf32> to vector<32x1xf32>
    %cst_136 = arith.constant 3.200000e+01 : f32
    %593 = vector.broadcast %cst_136 : f32 to vector<32x1xf32>
    %594 = arith.divf %592, %593 : vector<32x1xf32>
    %595 = vector.broadcast %587 : vector<32x1xf32> to vector<32x32xf32>
    %596 = arith.subf %572, %595 : vector<32x32xf32>
    %cst_137 = arith.constant 9.99999997E-7 : f32
    %597 = vector.broadcast %cst_137 : f32 to vector<32x1xf32>
    %598 = arith.addf %594, %597 : vector<32x1xf32>
    %599 = math.rsqrt %598 : vector<32x1xf32>
    %600 = vector.broadcast %599 : vector<32x1xf32> to vector<32x32xf32>
    %601 = arith.mulf %596, %600 : vector<32x32xf32>
    %602 = vector.shape_cast %581 : vector<32xf32> to vector<1x32xf32>
    %603 = vector.broadcast %602 : vector<1x32xf32> to vector<32x32xf32>
    %604 = arith.mulf %601, %603 : vector<32x32xf32>
    %605 = vector.shape_cast %583 : vector<32xf32> to vector<1x32xf32>
    %606 = vector.broadcast %605 : vector<1x32xf32> to vector<32x32xf32>
    %607 = arith.addf %604, %606 : vector<32x32xf32>
    %cst_138 = arith.constant dense<0.000000e+00> : vector<32x96xf32>
    %608 = tpu.matmul %607, %577, %cst_138 {dimension_numbers = #tpu.dot_dimension_numbers<[1], [0], [0], [1], [0, 0, 1, 1], [], []>} : vector<32x32xf32>, vector<32x96xf32>, vector<32x96xf32> -> vector<32x96xf32>
    %609 = vector.extract_strided_slice %608 {offsets = [0, 0], sizes = [32, 32], strides = [1, 1]} : vector<32x96xf32> to vector<32x32xf32>
    %610 = vector.extract_strided_slice %574 {offsets = [2, 0], sizes = [1, 32], strides = [1, 1]} : vector<37x32xf32> to vector<1x32xf32>
    %611 = vector.shape_cast %610 : vector<1x32xf32> to vector<32xf32>
    %612 = vector.shape_cast %611 : vector<32xf32> to vector<1x32xf32>
    %613 = vector.broadcast %612 : vector<1x32xf32> to vector<32x32xf32>
    %614 = arith.addf %609, %613 : vector<32x32xf32>
    %615 = vector.extract_strided_slice %608 {offsets = [0, 32], sizes = [32, 32], strides = [1, 1]} : vector<32x96xf32> to vector<32x32xf32>
    %616 = vector.extract_strided_slice %574 {offsets = [3, 0], sizes = [1, 32], strides = [1, 1]} : vector<37x32xf32> to vector<1x32xf32>
    %617 = vector.shape_cast %616 : vector<1x32xf32> to vector<32xf32>
    %618 = vector.shape_cast %617 : vector<32xf32> to vector<1x32xf32>
    %619 = vector.broadcast %618 : vector<1x32xf32> to vector<32x32xf32>
    %620 = arith.addf %615, %619 : vector<32x32xf32>
    %621 = vector.extract_strided_slice %608 {offsets = [0, 64], sizes = [32, 32], strides = [1, 1]} : vector<32x96xf32> to vector<32x32xf32>
    %622 = vector.extract_strided_slice %574 {offsets = [4, 0], sizes = [1, 32], strides = [1, 1]} : vector<37x32xf32> to vector<1x32xf32>
    %623 = vector.shape_cast %622 : vector<1x32xf32> to vector<32xf32>
    %624 = vector.shape_cast %623 : vector<32xf32> to vector<1x32xf32>
    %625 = vector.broadcast %624 : vector<1x32xf32> to vector<32x32xf32>
    %626 = arith.addf %621, %625 : vector<32x32xf32>
    %627 = vector.extract_strided_slice %614 {offsets = [0, 0], sizes = [16, 32], strides = [1, 1]} : vector<32x32xf32> to vector<16x32xf32>
    %628 = vector.extract_strided_slice %620 {offsets = [0, 0], sizes = [16, 32], strides = [1, 1]} : vector<32x32xf32> to vector<16x32xf32>
    %629 = vector.extract_strided_slice %626 {offsets = [0, 0], sizes = [16, 32], strides = [1, 1]} : vector<32x32xf32> to vector<16x32xf32>
    %630 = arith.mulf %627, %627 : vector<16x32xf32>
    %cst_139 = arith.constant dense<0.000000e+00> : vector<32xf32>
    %631 = vector.multi_reduction <add>, %630, %cst_139 [0] : vector<16x32xf32> to vector<32xf32>
    %632 = vector.shape_cast %631 : vector<32xf32> to vector<1x32xf32>
    %cst_140 = arith.constant 1.000000e-24 : f32
    %633 = vector.broadcast %cst_140 : f32 to vector<1x32xf32>
    %634 = arith.maximumf %632, %633 : vector<1x32xf32>
    %635 = math.rsqrt %634 : vector<1x32xf32>
    %636 = vector.broadcast %635 : vector<1x32xf32> to vector<16x32xf32>
    %637 = arith.mulf %627, %636 : vector<16x32xf32>
    %638 = arith.mulf %628, %628 : vector<16x32xf32>
    %cst_141 = arith.constant dense<0.000000e+00> : vector<32xf32>
    %639 = vector.multi_reduction <add>, %638, %cst_141 [0] : vector<16x32xf32> to vector<32xf32>
    %640 = vector.shape_cast %639 : vector<32xf32> to vector<1x32xf32>
    %cst_142 = arith.constant 1.000000e-24 : f32
    %641 = vector.broadcast %cst_142 : f32 to vector<1x32xf32>
    %642 = arith.maximumf %640, %641 : vector<1x32xf32>
    %643 = math.rsqrt %642 : vector<1x32xf32>
    %644 = vector.broadcast %643 : vector<1x32xf32> to vector<16x32xf32>
    %645 = arith.mulf %628, %644 : vector<16x32xf32>
    %646 = vector.extract_strided_slice %574 {offsets = [5, 0], sizes = [1, 32], strides = [1, 1]} : vector<37x32xf32> to vector<1x32xf32>
    %647 = vector.shape_cast %646 : vector<1x32xf32> to vector<32xf32>
    %648 = vector.shape_cast %647 : vector<32xf32> to vector<1x32xf32>
    %649 = vector.broadcast %648 : vector<1x32xf32> to vector<16x32xf32>
    %650 = arith.mulf %637, %649 : vector<16x32xf32>
    %cst_143 = arith.constant dense<0.000000e+00> : vector<32x32xf32>
    %651 = tpu.matmul %650, %645, %cst_143 {dimension_numbers = #tpu.dot_dimension_numbers<[0], [0], [1], [1], [0, 1, 1, 1], [], []>} : vector<16x32xf32>, vector<16x32xf32>, vector<32x32xf32> -> vector<32x32xf32>
    %652 = arith.addf %651, %3 : vector<32x32xf32>
    %cst_144 = arith.constant dense<0xFF800000> : vector<32xf32>
    %653 = vector.multi_reduction <maximumf>, %652, %cst_144 [1] : vector<32x32xf32> to vector<32xf32>
    %654 = vector.shape_cast %653 : vector<32xf32> to vector<32x1xf32>
    %655 = vector.broadcast %654 : vector<32x1xf32> to vector<32x32xf32>
    %656 = arith.subf %652, %655 : vector<32x32xf32>
    %657 = math.exp %656 : vector<32x32xf32>
    %cst_145 = arith.constant dense<0.000000e+00> : vector<32xf32>
    %658 = vector.multi_reduction <add>, %657, %cst_145 [1] : vector<32x32xf32> to vector<32xf32>
    %659 = vector.shape_cast %658 : vector<32xf32> to vector<32x1xf32>
    %660 = vector.broadcast %659 : vector<32x1xf32> to vector<32x32xf32>
    %661 = arith.divf %657, %660 : vector<32x32xf32>
    %cst_146 = arith.constant dense<0.000000e+00> : vector<16x32xf32>
    %662 = tpu.matmul %629, %661, %cst_146 {dimension_numbers = #tpu.dot_dimension_numbers<[1], [1], [0], [0], [0, 0, 1, 0], [], []>} : vector<16x32xf32>, vector<32x32xf32>, vector<16x32xf32> -> vector<16x32xf32>
    %663 = vector.extract_strided_slice %614 {offsets = [16, 0], sizes = [16, 32], strides = [1, 1]} : vector<32x32xf32> to vector<16x32xf32>
    %664 = vector.extract_strided_slice %620 {offsets = [16, 0], sizes = [16, 32], strides = [1, 1]} : vector<32x32xf32> to vector<16x32xf32>
    %665 = vector.extract_strided_slice %626 {offsets = [16, 0], sizes = [16, 32], strides = [1, 1]} : vector<32x32xf32> to vector<16x32xf32>
    %666 = arith.mulf %663, %663 : vector<16x32xf32>
    %cst_147 = arith.constant dense<0.000000e+00> : vector<32xf32>
    %667 = vector.multi_reduction <add>, %666, %cst_147 [0] : vector<16x32xf32> to vector<32xf32>
    %668 = vector.shape_cast %667 : vector<32xf32> to vector<1x32xf32>
    %cst_148 = arith.constant 1.000000e-24 : f32
    %669 = vector.broadcast %cst_148 : f32 to vector<1x32xf32>
    %670 = arith.maximumf %668, %669 : vector<1x32xf32>
    %671 = math.rsqrt %670 : vector<1x32xf32>
    %672 = vector.broadcast %671 : vector<1x32xf32> to vector<16x32xf32>
    %673 = arith.mulf %663, %672 : vector<16x32xf32>
    %674 = arith.mulf %664, %664 : vector<16x32xf32>
    %cst_149 = arith.constant dense<0.000000e+00> : vector<32xf32>
    %675 = vector.multi_reduction <add>, %674, %cst_149 [0] : vector<16x32xf32> to vector<32xf32>
    %676 = vector.shape_cast %675 : vector<32xf32> to vector<1x32xf32>
    %cst_150 = arith.constant 1.000000e-24 : f32
    %677 = vector.broadcast %cst_150 : f32 to vector<1x32xf32>
    %678 = arith.maximumf %676, %677 : vector<1x32xf32>
    %679 = math.rsqrt %678 : vector<1x32xf32>
    %680 = vector.broadcast %679 : vector<1x32xf32> to vector<16x32xf32>
    %681 = arith.mulf %664, %680 : vector<16x32xf32>
    %682 = vector.extract_strided_slice %574 {offsets = [5, 0], sizes = [1, 32], strides = [1, 1]} : vector<37x32xf32> to vector<1x32xf32>
    %683 = vector.shape_cast %682 : vector<1x32xf32> to vector<32xf32>
    %684 = vector.shape_cast %683 : vector<32xf32> to vector<1x32xf32>
    %685 = vector.broadcast %684 : vector<1x32xf32> to vector<16x32xf32>
    %686 = arith.mulf %673, %685 : vector<16x32xf32>
    %cst_151 = arith.constant dense<0.000000e+00> : vector<32x32xf32>
    %687 = tpu.matmul %686, %681, %cst_151 {dimension_numbers = #tpu.dot_dimension_numbers<[0], [0], [1], [1], [0, 1, 1, 1], [], []>} : vector<16x32xf32>, vector<16x32xf32>, vector<32x32xf32> -> vector<32x32xf32>
    %688 = arith.addf %687, %3 : vector<32x32xf32>
    %cst_152 = arith.constant dense<0xFF800000> : vector<32xf32>
    %689 = vector.multi_reduction <maximumf>, %688, %cst_152 [1] : vector<32x32xf32> to vector<32xf32>
    %690 = vector.shape_cast %689 : vector<32xf32> to vector<32x1xf32>
    %691 = vector.broadcast %690 : vector<32x1xf32> to vector<32x32xf32>
    %692 = arith.subf %688, %691 : vector<32x32xf32>
    %693 = math.exp %692 : vector<32x32xf32>
    %cst_153 = arith.constant dense<0.000000e+00> : vector<32xf32>
    %694 = vector.multi_reduction <add>, %693, %cst_153 [1] : vector<32x32xf32> to vector<32xf32>
    %695 = vector.shape_cast %694 : vector<32xf32> to vector<32x1xf32>
    %696 = vector.broadcast %695 : vector<32x1xf32> to vector<32x32xf32>
    %697 = arith.divf %693, %696 : vector<32x32xf32>
    %cst_154 = arith.constant dense<0.000000e+00> : vector<16x32xf32>
    %698 = tpu.matmul %665, %697, %cst_154 {dimension_numbers = #tpu.dot_dimension_numbers<[1], [1], [0], [0], [0, 0, 1, 0], [], []>} : vector<16x32xf32>, vector<32x32xf32>, vector<16x32xf32> -> vector<16x32xf32>
    %699 = tpu.concatenate %662, %698 in 0 : vector<16x32xf32>, vector<16x32xf32> -> vector<32x32xf32>
    %cst_155 = arith.constant dense<0.000000e+00> : vector<32x32xf32>
    %700 = tpu.matmul %699, %578, %cst_155 {dimension_numbers = #tpu.dot_dimension_numbers<[1], [0], [0], [1], [0, 0, 1, 1], [], []>} : vector<32x32xf32>, vector<32x32xf32>, vector<32x32xf32> -> vector<32x32xf32>
    %701 = vector.extract_strided_slice %574 {offsets = [6, 0], sizes = [1, 32], strides = [1, 1]} : vector<37x32xf32> to vector<1x32xf32>
    %702 = vector.shape_cast %701 : vector<1x32xf32> to vector<32xf32>
    %703 = vector.shape_cast %702 : vector<32xf32> to vector<1x32xf32>
    %704 = vector.broadcast %703 : vector<1x32xf32> to vector<32x32xf32>
    %705 = arith.addf %700, %704 : vector<32x32xf32>
    %706 = vector.extract_strided_slice %574 {offsets = [7, 0], sizes = [1, 32], strides = [1, 1]} : vector<37x32xf32> to vector<1x32xf32>
    %707 = vector.shape_cast %706 : vector<1x32xf32> to vector<32xf32>
    %708 = vector.shape_cast %707 : vector<32xf32> to vector<1x32xf32>
    %709 = vector.broadcast %708 : vector<1x32xf32> to vector<32x32xf32>
    %710 = arith.mulf %709, %705 : vector<32x32xf32>
    %711 = arith.addf %572, %710 : vector<32x32xf32>
    %712 = vector.extract_strided_slice %574 {offsets = [8, 0], sizes = [1, 32], strides = [1, 1]} : vector<37x32xf32> to vector<1x32xf32>
    %713 = vector.shape_cast %712 : vector<1x32xf32> to vector<32xf32>
    %714 = vector.extract_strided_slice %574 {offsets = [9, 0], sizes = [1, 32], strides = [1, 1]} : vector<37x32xf32> to vector<1x32xf32>
    %715 = vector.shape_cast %714 : vector<1x32xf32> to vector<32xf32>
    %cst_156 = arith.constant dense<0.000000e+00> : vector<32xf32>
    %716 = vector.multi_reduction <add>, %711, %cst_156 [1] : vector<32x32xf32> to vector<32xf32>
    %717 = vector.shape_cast %716 : vector<32xf32> to vector<32x1xf32>
    %cst_157 = arith.constant 3.200000e+01 : f32
    %718 = vector.broadcast %cst_157 : f32 to vector<32x1xf32>
    %719 = arith.divf %717, %718 : vector<32x1xf32>
    %720 = vector.broadcast %719 : vector<32x1xf32> to vector<32x32xf32>
    %721 = arith.subf %711, %720 : vector<32x32xf32>
    %722 = arith.mulf %721, %721 : vector<32x32xf32>
    %cst_158 = arith.constant dense<0.000000e+00> : vector<32xf32>
    %723 = vector.multi_reduction <add>, %722, %cst_158 [1] : vector<32x32xf32> to vector<32xf32>
    %724 = vector.shape_cast %723 : vector<32xf32> to vector<32x1xf32>
    %cst_159 = arith.constant 3.200000e+01 : f32
    %725 = vector.broadcast %cst_159 : f32 to vector<32x1xf32>
    %726 = arith.divf %724, %725 : vector<32x1xf32>
    %727 = vector.broadcast %719 : vector<32x1xf32> to vector<32x32xf32>
    %728 = arith.subf %711, %727 : vector<32x32xf32>
    %cst_160 = arith.constant 9.99999997E-7 : f32
    %729 = vector.broadcast %cst_160 : f32 to vector<32x1xf32>
    %730 = arith.addf %726, %729 : vector<32x1xf32>
    %731 = math.rsqrt %730 : vector<32x1xf32>
    %732 = vector.broadcast %731 : vector<32x1xf32> to vector<32x32xf32>
    %733 = arith.mulf %728, %732 : vector<32x32xf32>
    %734 = vector.shape_cast %713 : vector<32xf32> to vector<1x32xf32>
    %735 = vector.broadcast %734 : vector<1x32xf32> to vector<32x32xf32>
    %736 = arith.mulf %733, %735 : vector<32x32xf32>
    %737 = vector.shape_cast %715 : vector<32xf32> to vector<1x32xf32>
    %738 = vector.broadcast %737 : vector<1x32xf32> to vector<32x32xf32>
    %739 = arith.addf %736, %738 : vector<32x32xf32>
    %740 = vector.extract_strided_slice %574 {offsets = [19, 0], sizes = [9, 32], strides = [1, 1]} : vector<37x32xf32> to vector<9x32xf32>
    %741 = vector.extract_strided_slice %574 {offsets = [28, 0], sizes = [9, 32], strides = [1, 1]} : vector<37x32xf32> to vector<9x32xf32>
    %cst_161 = arith.constant dense<0.000000e+00> : vector<288x32xf32>
    %742 = tpu.matmul %4, %739, %cst_161 {dimension_numbers = #tpu.dot_dimension_numbers<[1], [0], [0], [1], [0, 0, 1, 1], [], []>} : vector<288x32xf32>, vector<32x32xf32>, vector<288x32xf32> -> vector<288x32xf32>
    %743 = vector.shape_cast %742 : vector<288x32xf32> to vector<9x32x32xf32>
    %744 = vector.shape_cast %740 : vector<9x32xf32> to vector<9x1x32xf32>
    %745 = vector.broadcast %744 : vector<9x1x32xf32> to vector<9x32x32xf32>
    %746 = arith.mulf %743, %745 : vector<9x32x32xf32>
    %cst_162 = arith.constant dense<0.000000e+00> : vector<32x32xf32>
    %747 = vector.multi_reduction <add>, %746, %cst_162 [0] : vector<9x32x32xf32> to vector<32x32xf32>
    %748 = vector.extract_strided_slice %574 {offsets = [10, 0], sizes = [1, 32], strides = [1, 1]} : vector<37x32xf32> to vector<1x32xf32>
    %749 = vector.shape_cast %748 : vector<1x32xf32> to vector<32xf32>
    %750 = vector.shape_cast %749 : vector<32xf32> to vector<1x32xf32>
    %751 = vector.broadcast %750 : vector<1x32xf32> to vector<32x32xf32>
    %752 = arith.addf %747, %751 : vector<32x32xf32>
    %cst_163 = arith.constant 5.000000e-01 : f32
    %753 = vector.broadcast %cst_163 : f32 to vector<32x32xf32>
    %754 = arith.mulf %753, %752 : vector<32x32xf32>
    %cst_164 = arith.constant 4.471500e-02 : f32
    %755 = vector.broadcast %cst_164 : f32 to vector<32x32xf32>
    %756 = arith.mulf %755, %752 : vector<32x32xf32>
    %757 = arith.mulf %756, %752 : vector<32x32xf32>
    %758 = arith.mulf %757, %752 : vector<32x32xf32>
    %759 = arith.addf %752, %758 : vector<32x32xf32>
    %cst_165 = arith.constant 0.797884583 : f32
    %760 = vector.broadcast %cst_165 : f32 to vector<32x32xf32>
    %761 = arith.mulf %760, %759 : vector<32x32xf32>
    %762 = math.tanh %761 : vector<32x32xf32>
    %cst_166 = arith.constant 1.000000e+00 : f32
    %763 = vector.broadcast %cst_166 : f32 to vector<32x32xf32>
    %764 = arith.addf %763, %762 : vector<32x32xf32>
    %765 = arith.mulf %754, %764 : vector<32x32xf32>
    %766 = vector.extract_strided_slice %574 {offsets = [11, 0], sizes = [1, 32], strides = [1, 1]} : vector<37x32xf32> to vector<1x32xf32>
    %767 = vector.shape_cast %766 : vector<1x32xf32> to vector<32xf32>
    %768 = vector.shape_cast %767 : vector<32xf32> to vector<1x32xf32>
    %769 = vector.broadcast %768 : vector<1x32xf32> to vector<32x32xf32>
    %770 = arith.mulf %765, %769 : vector<32x32xf32>
    %771 = vector.extract_strided_slice %574 {offsets = [12, 0], sizes = [1, 32], strides = [1, 1]} : vector<37x32xf32> to vector<1x32xf32>
    %772 = vector.shape_cast %771 : vector<1x32xf32> to vector<32xf32>
    %773 = vector.shape_cast %772 : vector<32xf32> to vector<1x32xf32>
    %774 = vector.broadcast %773 : vector<1x32xf32> to vector<32x32xf32>
    %775 = arith.addf %770, %774 : vector<32x32xf32>
    %cst_167 = arith.constant dense<0.000000e+00> : vector<288x32xf32>
    %776 = tpu.matmul %4, %775, %cst_167 {dimension_numbers = #tpu.dot_dimension_numbers<[1], [0], [0], [1], [0, 0, 1, 1], [], []>} : vector<288x32xf32>, vector<32x32xf32>, vector<288x32xf32> -> vector<288x32xf32>
    %777 = vector.shape_cast %776 : vector<288x32xf32> to vector<9x32x32xf32>
    %778 = vector.shape_cast %741 : vector<9x32xf32> to vector<9x1x32xf32>
    %779 = vector.broadcast %778 : vector<9x1x32xf32> to vector<9x32x32xf32>
    %780 = arith.mulf %777, %779 : vector<9x32x32xf32>
    %cst_168 = arith.constant dense<0.000000e+00> : vector<32x32xf32>
    %781 = vector.multi_reduction <add>, %780, %cst_168 [0] : vector<9x32x32xf32> to vector<32x32xf32>
    %782 = vector.extract_strided_slice %574 {offsets = [13, 0], sizes = [1, 32], strides = [1, 1]} : vector<37x32xf32> to vector<1x32xf32>
    %783 = vector.shape_cast %782 : vector<1x32xf32> to vector<32xf32>
    %784 = vector.shape_cast %783 : vector<32xf32> to vector<1x32xf32>
    %785 = vector.broadcast %784 : vector<1x32xf32> to vector<32x32xf32>
    %786 = arith.addf %781, %785 : vector<32x32xf32>
    %787 = vector.extract_strided_slice %574 {offsets = [14, 0], sizes = [1, 32], strides = [1, 1]} : vector<37x32xf32> to vector<1x32xf32>
    %788 = vector.shape_cast %787 : vector<1x32xf32> to vector<32xf32>
    %789 = vector.shape_cast %788 : vector<32xf32> to vector<1x32xf32>
    %790 = vector.broadcast %789 : vector<1x32xf32> to vector<32x32xf32>
    %791 = arith.mulf %790, %786 : vector<32x32xf32>
    %792 = arith.addf %711, %791 : vector<32x32xf32>
    %793 = vector.extract_strided_slice %574 {offsets = [15, 0], sizes = [1, 32], strides = [1, 1]} : vector<37x32xf32> to vector<1x32xf32>
    %794 = vector.shape_cast %793 : vector<1x32xf32> to vector<32xf32>
    %795 = vector.extract_strided_slice %574 {offsets = [16, 0], sizes = [1, 32], strides = [1, 1]} : vector<37x32xf32> to vector<1x32xf32>
    %796 = vector.shape_cast %795 : vector<1x32xf32> to vector<32xf32>
    %cst_169 = arith.constant dense<0.000000e+00> : vector<32xf32>
    %797 = vector.multi_reduction <add>, %792, %cst_169 [1] : vector<32x32xf32> to vector<32xf32>
    %798 = vector.shape_cast %797 : vector<32xf32> to vector<32x1xf32>
    %cst_170 = arith.constant 3.200000e+01 : f32
    %799 = vector.broadcast %cst_170 : f32 to vector<32x1xf32>
    %800 = arith.divf %798, %799 : vector<32x1xf32>
    %801 = vector.broadcast %800 : vector<32x1xf32> to vector<32x32xf32>
    %802 = arith.subf %792, %801 : vector<32x32xf32>
    %803 = arith.mulf %802, %802 : vector<32x32xf32>
    %cst_171 = arith.constant dense<0.000000e+00> : vector<32xf32>
    %804 = vector.multi_reduction <add>, %803, %cst_171 [1] : vector<32x32xf32> to vector<32xf32>
    %805 = vector.shape_cast %804 : vector<32xf32> to vector<32x1xf32>
    %cst_172 = arith.constant 3.200000e+01 : f32
    %806 = vector.broadcast %cst_172 : f32 to vector<32x1xf32>
    %807 = arith.divf %805, %806 : vector<32x1xf32>
    %808 = vector.broadcast %800 : vector<32x1xf32> to vector<32x32xf32>
    %809 = arith.subf %792, %808 : vector<32x32xf32>
    %cst_173 = arith.constant 9.99999997E-7 : f32
    %810 = vector.broadcast %cst_173 : f32 to vector<32x1xf32>
    %811 = arith.addf %807, %810 : vector<32x1xf32>
    %812 = math.rsqrt %811 : vector<32x1xf32>
    %813 = vector.broadcast %812 : vector<32x1xf32> to vector<32x32xf32>
    %814 = arith.mulf %809, %813 : vector<32x32xf32>
    %815 = vector.shape_cast %794 : vector<32xf32> to vector<1x32xf32>
    %816 = vector.broadcast %815 : vector<1x32xf32> to vector<32x32xf32>
    %817 = arith.mulf %814, %816 : vector<32x32xf32>
    %818 = vector.shape_cast %796 : vector<32xf32> to vector<1x32xf32>
    %819 = vector.broadcast %818 : vector<1x32xf32> to vector<32x32xf32>
    %820 = arith.addf %817, %819 : vector<32x32xf32>
    %cst_174 = arith.constant dense<0.000000e+00> : vector<32x128xf32>
    %821 = tpu.matmul %820, %579, %cst_174 {dimension_numbers = #tpu.dot_dimension_numbers<[1], [0], [0], [1], [0, 0, 1, 1], [], []>} : vector<32x32xf32>, vector<32x128xf32>, vector<32x128xf32> -> vector<32x128xf32>
    %c2_175 = arith.constant 2 : index
    %c0_176 = arith.constant 0 : index
    %822 = vector.load %arg7[%c2_175, %c0_176] : memref<4x128xf32, #tpu.memory_space<vmem>>, vector<1x128xf32>
    %823 = vector.shape_cast %822 : vector<1x128xf32> to vector<128xf32>
    %824 = vector.shape_cast %823 : vector<128xf32> to vector<1x128xf32>
    %825 = vector.broadcast %824 : vector<1x128xf32> to vector<32x128xf32>
    %826 = arith.addf %821, %825 : vector<32x128xf32>
    %cst_177 = arith.constant 5.000000e-01 : f32
    %827 = vector.broadcast %cst_177 : f32 to vector<32x128xf32>
    %828 = arith.mulf %827, %826 : vector<32x128xf32>
    %cst_178 = arith.constant 4.471500e-02 : f32
    %829 = vector.broadcast %cst_178 : f32 to vector<32x128xf32>
    %830 = arith.mulf %829, %826 : vector<32x128xf32>
    %831 = arith.mulf %830, %826 : vector<32x128xf32>
    %832 = arith.mulf %831, %826 : vector<32x128xf32>
    %833 = arith.addf %826, %832 : vector<32x128xf32>
    %cst_179 = arith.constant 0.797884583 : f32
    %834 = vector.broadcast %cst_179 : f32 to vector<32x128xf32>
    %835 = arith.mulf %834, %833 : vector<32x128xf32>
    %836 = math.tanh %835 : vector<32x128xf32>
    %cst_180 = arith.constant 1.000000e+00 : f32
    %837 = vector.broadcast %cst_180 : f32 to vector<32x128xf32>
    %838 = arith.addf %837, %836 : vector<32x128xf32>
    %839 = arith.mulf %828, %838 : vector<32x128xf32>
    %c2_181 = arith.constant 2 : index
    %c0_182 = arith.constant 0 : index
    %c0_183 = arith.constant 0 : index
    %840 = vector.load %arg6[%c2_181, %c0_182, %c0_183] : memref<4x128x32xf32, #tpu.memory_space<vmem>>, vector<1x128x32xf32>
    %841 = vector.shape_cast %840 : vector<1x128x32xf32> to vector<128x32xf32>
    %cst_184 = arith.constant dense<0.000000e+00> : vector<32x32xf32>
    %842 = tpu.matmul %839, %841, %cst_184 {dimension_numbers = #tpu.dot_dimension_numbers<[1], [0], [0], [1], [0, 0, 1, 1], [], []>} : vector<32x128xf32>, vector<128x32xf32>, vector<32x32xf32> -> vector<32x32xf32>
    %843 = vector.extract_strided_slice %574 {offsets = [17, 0], sizes = [1, 32], strides = [1, 1]} : vector<37x32xf32> to vector<1x32xf32>
    %844 = vector.shape_cast %843 : vector<1x32xf32> to vector<32xf32>
    %845 = vector.shape_cast %844 : vector<32xf32> to vector<1x32xf32>
    %846 = vector.broadcast %845 : vector<1x32xf32> to vector<32x32xf32>
    %847 = arith.addf %842, %846 : vector<32x32xf32>
    %848 = vector.extract_strided_slice %574 {offsets = [18, 0], sizes = [1, 32], strides = [1, 1]} : vector<37x32xf32> to vector<1x32xf32>
    %849 = vector.shape_cast %848 : vector<1x32xf32> to vector<32xf32>
    %850 = vector.shape_cast %849 : vector<32xf32> to vector<1x32xf32>
    %851 = vector.broadcast %850 : vector<1x32xf32> to vector<32x32xf32>
    %852 = arith.mulf %851, %847 : vector<32x32xf32>
    %853 = arith.addf %792, %852 : vector<32x32xf32>
    %c3 = arith.constant 3 : index
    %c0_185 = arith.constant 0 : index
    %c0_186 = arith.constant 0 : index
    %854 = vector.load %arg4[%c3, %c0_185, %c0_186] : memref<4x37x32xf32, #tpu.memory_space<vmem>>, vector<1x37x32xf32>
    %855 = vector.shape_cast %854 : vector<1x37x32xf32> to vector<37x32xf32>
    %c3_187 = arith.constant 3 : index
    %c0_188 = arith.constant 0 : index
    %c0_189 = arith.constant 0 : index
    %856 = vector.load %arg5[%c3_187, %c0_188, %c0_189] : memref<4x32x256xf32, #tpu.memory_space<vmem>>, vector<1x32x256xf32>
    %857 = vector.shape_cast %856 : vector<1x32x256xf32> to vector<32x256xf32>
    %858 = vector.extract_strided_slice %857 {offsets = [0, 0], sizes = [32, 96], strides = [1, 1]} : vector<32x256xf32> to vector<32x96xf32>
    %859 = vector.extract_strided_slice %857 {offsets = [0, 96], sizes = [32, 32], strides = [1, 1]} : vector<32x256xf32> to vector<32x32xf32>
    %860 = vector.extract_strided_slice %857 {offsets = [0, 128], sizes = [32, 128], strides = [1, 1]} : vector<32x256xf32> to vector<32x128xf32>
    %861 = vector.extract_strided_slice %855 {offsets = [0, 0], sizes = [1, 32], strides = [1, 1]} : vector<37x32xf32> to vector<1x32xf32>
    %862 = vector.shape_cast %861 : vector<1x32xf32> to vector<32xf32>
    %863 = vector.extract_strided_slice %855 {offsets = [1, 0], sizes = [1, 32], strides = [1, 1]} : vector<37x32xf32> to vector<1x32xf32>
    %864 = vector.shape_cast %863 : vector<1x32xf32> to vector<32xf32>
    %cst_190 = arith.constant dense<0.000000e+00> : vector<32xf32>
    %865 = vector.multi_reduction <add>, %853, %cst_190 [1] : vector<32x32xf32> to vector<32xf32>
    %866 = vector.shape_cast %865 : vector<32xf32> to vector<32x1xf32>
    %cst_191 = arith.constant 3.200000e+01 : f32
    %867 = vector.broadcast %cst_191 : f32 to vector<32x1xf32>
    %868 = arith.divf %866, %867 : vector<32x1xf32>
    %869 = vector.broadcast %868 : vector<32x1xf32> to vector<32x32xf32>
    %870 = arith.subf %853, %869 : vector<32x32xf32>
    %871 = arith.mulf %870, %870 : vector<32x32xf32>
    %cst_192 = arith.constant dense<0.000000e+00> : vector<32xf32>
    %872 = vector.multi_reduction <add>, %871, %cst_192 [1] : vector<32x32xf32> to vector<32xf32>
    %873 = vector.shape_cast %872 : vector<32xf32> to vector<32x1xf32>
    %cst_193 = arith.constant 3.200000e+01 : f32
    %874 = vector.broadcast %cst_193 : f32 to vector<32x1xf32>
    %875 = arith.divf %873, %874 : vector<32x1xf32>
    %876 = vector.broadcast %868 : vector<32x1xf32> to vector<32x32xf32>
    %877 = arith.subf %853, %876 : vector<32x32xf32>
    %cst_194 = arith.constant 9.99999997E-7 : f32
    %878 = vector.broadcast %cst_194 : f32 to vector<32x1xf32>
    %879 = arith.addf %875, %878 : vector<32x1xf32>
    %880 = math.rsqrt %879 : vector<32x1xf32>
    %881 = vector.broadcast %880 : vector<32x1xf32> to vector<32x32xf32>
    %882 = arith.mulf %877, %881 : vector<32x32xf32>
    %883 = vector.shape_cast %862 : vector<32xf32> to vector<1x32xf32>
    %884 = vector.broadcast %883 : vector<1x32xf32> to vector<32x32xf32>
    %885 = arith.mulf %882, %884 : vector<32x32xf32>
    %886 = vector.shape_cast %864 : vector<32xf32> to vector<1x32xf32>
    %887 = vector.broadcast %886 : vector<1x32xf32> to vector<32x32xf32>
    %888 = arith.addf %885, %887 : vector<32x32xf32>
    %cst_195 = arith.constant dense<0.000000e+00> : vector<32x96xf32>
    %889 = tpu.matmul %888, %858, %cst_195 {dimension_numbers = #tpu.dot_dimension_numbers<[1], [0], [0], [1], [0, 0, 1, 1], [], []>} : vector<32x32xf32>, vector<32x96xf32>, vector<32x96xf32> -> vector<32x96xf32>
    %890 = vector.extract_strided_slice %889 {offsets = [0, 0], sizes = [32, 32], strides = [1, 1]} : vector<32x96xf32> to vector<32x32xf32>
    %891 = vector.extract_strided_slice %855 {offsets = [2, 0], sizes = [1, 32], strides = [1, 1]} : vector<37x32xf32> to vector<1x32xf32>
    %892 = vector.shape_cast %891 : vector<1x32xf32> to vector<32xf32>
    %893 = vector.shape_cast %892 : vector<32xf32> to vector<1x32xf32>
    %894 = vector.broadcast %893 : vector<1x32xf32> to vector<32x32xf32>
    %895 = arith.addf %890, %894 : vector<32x32xf32>
    %896 = vector.extract_strided_slice %889 {offsets = [0, 32], sizes = [32, 32], strides = [1, 1]} : vector<32x96xf32> to vector<32x32xf32>
    %897 = vector.extract_strided_slice %855 {offsets = [3, 0], sizes = [1, 32], strides = [1, 1]} : vector<37x32xf32> to vector<1x32xf32>
    %898 = vector.shape_cast %897 : vector<1x32xf32> to vector<32xf32>
    %899 = vector.shape_cast %898 : vector<32xf32> to vector<1x32xf32>
    %900 = vector.broadcast %899 : vector<1x32xf32> to vector<32x32xf32>
    %901 = arith.addf %896, %900 : vector<32x32xf32>
    %902 = vector.extract_strided_slice %889 {offsets = [0, 64], sizes = [32, 32], strides = [1, 1]} : vector<32x96xf32> to vector<32x32xf32>
    %903 = vector.extract_strided_slice %855 {offsets = [4, 0], sizes = [1, 32], strides = [1, 1]} : vector<37x32xf32> to vector<1x32xf32>
    %904 = vector.shape_cast %903 : vector<1x32xf32> to vector<32xf32>
    %905 = vector.shape_cast %904 : vector<32xf32> to vector<1x32xf32>
    %906 = vector.broadcast %905 : vector<1x32xf32> to vector<32x32xf32>
    %907 = arith.addf %902, %906 : vector<32x32xf32>
    %908 = vector.extract_strided_slice %895 {offsets = [0, 0], sizes = [16, 32], strides = [1, 1]} : vector<32x32xf32> to vector<16x32xf32>
    %909 = vector.extract_strided_slice %901 {offsets = [0, 0], sizes = [16, 32], strides = [1, 1]} : vector<32x32xf32> to vector<16x32xf32>
    %910 = vector.extract_strided_slice %907 {offsets = [0, 0], sizes = [16, 32], strides = [1, 1]} : vector<32x32xf32> to vector<16x32xf32>
    %911 = arith.mulf %908, %908 : vector<16x32xf32>
    %cst_196 = arith.constant dense<0.000000e+00> : vector<32xf32>
    %912 = vector.multi_reduction <add>, %911, %cst_196 [0] : vector<16x32xf32> to vector<32xf32>
    %913 = vector.shape_cast %912 : vector<32xf32> to vector<1x32xf32>
    %cst_197 = arith.constant 1.000000e-24 : f32
    %914 = vector.broadcast %cst_197 : f32 to vector<1x32xf32>
    %915 = arith.maximumf %913, %914 : vector<1x32xf32>
    %916 = math.rsqrt %915 : vector<1x32xf32>
    %917 = vector.broadcast %916 : vector<1x32xf32> to vector<16x32xf32>
    %918 = arith.mulf %908, %917 : vector<16x32xf32>
    %919 = arith.mulf %909, %909 : vector<16x32xf32>
    %cst_198 = arith.constant dense<0.000000e+00> : vector<32xf32>
    %920 = vector.multi_reduction <add>, %919, %cst_198 [0] : vector<16x32xf32> to vector<32xf32>
    %921 = vector.shape_cast %920 : vector<32xf32> to vector<1x32xf32>
    %cst_199 = arith.constant 1.000000e-24 : f32
    %922 = vector.broadcast %cst_199 : f32 to vector<1x32xf32>
    %923 = arith.maximumf %921, %922 : vector<1x32xf32>
    %924 = math.rsqrt %923 : vector<1x32xf32>
    %925 = vector.broadcast %924 : vector<1x32xf32> to vector<16x32xf32>
    %926 = arith.mulf %909, %925 : vector<16x32xf32>
    %927 = vector.extract_strided_slice %855 {offsets = [5, 0], sizes = [1, 32], strides = [1, 1]} : vector<37x32xf32> to vector<1x32xf32>
    %928 = vector.shape_cast %927 : vector<1x32xf32> to vector<32xf32>
    %929 = vector.shape_cast %928 : vector<32xf32> to vector<1x32xf32>
    %930 = vector.broadcast %929 : vector<1x32xf32> to vector<16x32xf32>
    %931 = arith.mulf %918, %930 : vector<16x32xf32>
    %cst_200 = arith.constant dense<0.000000e+00> : vector<32x32xf32>
    %932 = tpu.matmul %931, %926, %cst_200 {dimension_numbers = #tpu.dot_dimension_numbers<[0], [0], [1], [1], [0, 1, 1, 1], [], []>} : vector<16x32xf32>, vector<16x32xf32>, vector<32x32xf32> -> vector<32x32xf32>
    %933 = arith.addf %932, %3 : vector<32x32xf32>
    %cst_201 = arith.constant dense<0xFF800000> : vector<32xf32>
    %934 = vector.multi_reduction <maximumf>, %933, %cst_201 [1] : vector<32x32xf32> to vector<32xf32>
    %935 = vector.shape_cast %934 : vector<32xf32> to vector<32x1xf32>
    %936 = vector.broadcast %935 : vector<32x1xf32> to vector<32x32xf32>
    %937 = arith.subf %933, %936 : vector<32x32xf32>
    %938 = math.exp %937 : vector<32x32xf32>
    %cst_202 = arith.constant dense<0.000000e+00> : vector<32xf32>
    %939 = vector.multi_reduction <add>, %938, %cst_202 [1] : vector<32x32xf32> to vector<32xf32>
    %940 = vector.shape_cast %939 : vector<32xf32> to vector<32x1xf32>
    %941 = vector.broadcast %940 : vector<32x1xf32> to vector<32x32xf32>
    %942 = arith.divf %938, %941 : vector<32x32xf32>
    %cst_203 = arith.constant dense<0.000000e+00> : vector<16x32xf32>
    %943 = tpu.matmul %910, %942, %cst_203 {dimension_numbers = #tpu.dot_dimension_numbers<[1], [1], [0], [0], [0, 0, 1, 0], [], []>} : vector<16x32xf32>, vector<32x32xf32>, vector<16x32xf32> -> vector<16x32xf32>
    %944 = vector.extract_strided_slice %895 {offsets = [16, 0], sizes = [16, 32], strides = [1, 1]} : vector<32x32xf32> to vector<16x32xf32>
    %945 = vector.extract_strided_slice %901 {offsets = [16, 0], sizes = [16, 32], strides = [1, 1]} : vector<32x32xf32> to vector<16x32xf32>
    %946 = vector.extract_strided_slice %907 {offsets = [16, 0], sizes = [16, 32], strides = [1, 1]} : vector<32x32xf32> to vector<16x32xf32>
    %947 = arith.mulf %944, %944 : vector<16x32xf32>
    %cst_204 = arith.constant dense<0.000000e+00> : vector<32xf32>
    %948 = vector.multi_reduction <add>, %947, %cst_204 [0] : vector<16x32xf32> to vector<32xf32>
    %949 = vector.shape_cast %948 : vector<32xf32> to vector<1x32xf32>
    %cst_205 = arith.constant 1.000000e-24 : f32
    %950 = vector.broadcast %cst_205 : f32 to vector<1x32xf32>
    %951 = arith.maximumf %949, %950 : vector<1x32xf32>
    %952 = math.rsqrt %951 : vector<1x32xf32>
    %953 = vector.broadcast %952 : vector<1x32xf32> to vector<16x32xf32>
    %954 = arith.mulf %944, %953 : vector<16x32xf32>
    %955 = arith.mulf %945, %945 : vector<16x32xf32>
    %cst_206 = arith.constant dense<0.000000e+00> : vector<32xf32>
    %956 = vector.multi_reduction <add>, %955, %cst_206 [0] : vector<16x32xf32> to vector<32xf32>
    %957 = vector.shape_cast %956 : vector<32xf32> to vector<1x32xf32>
    %cst_207 = arith.constant 1.000000e-24 : f32
    %958 = vector.broadcast %cst_207 : f32 to vector<1x32xf32>
    %959 = arith.maximumf %957, %958 : vector<1x32xf32>
    %960 = math.rsqrt %959 : vector<1x32xf32>
    %961 = vector.broadcast %960 : vector<1x32xf32> to vector<16x32xf32>
    %962 = arith.mulf %945, %961 : vector<16x32xf32>
    %963 = vector.extract_strided_slice %855 {offsets = [5, 0], sizes = [1, 32], strides = [1, 1]} : vector<37x32xf32> to vector<1x32xf32>
    %964 = vector.shape_cast %963 : vector<1x32xf32> to vector<32xf32>
    %965 = vector.shape_cast %964 : vector<32xf32> to vector<1x32xf32>
    %966 = vector.broadcast %965 : vector<1x32xf32> to vector<16x32xf32>
    %967 = arith.mulf %954, %966 : vector<16x32xf32>
    %cst_208 = arith.constant dense<0.000000e+00> : vector<32x32xf32>
    %968 = tpu.matmul %967, %962, %cst_208 {dimension_numbers = #tpu.dot_dimension_numbers<[0], [0], [1], [1], [0, 1, 1, 1], [], []>} : vector<16x32xf32>, vector<16x32xf32>, vector<32x32xf32> -> vector<32x32xf32>
    %969 = arith.addf %968, %3 : vector<32x32xf32>
    %cst_209 = arith.constant dense<0xFF800000> : vector<32xf32>
    %970 = vector.multi_reduction <maximumf>, %969, %cst_209 [1] : vector<32x32xf32> to vector<32xf32>
    %971 = vector.shape_cast %970 : vector<32xf32> to vector<32x1xf32>
    %972 = vector.broadcast %971 : vector<32x1xf32> to vector<32x32xf32>
    %973 = arith.subf %969, %972 : vector<32x32xf32>
    %974 = math.exp %973 : vector<32x32xf32>
    %cst_210 = arith.constant dense<0.000000e+00> : vector<32xf32>
    %975 = vector.multi_reduction <add>, %974, %cst_210 [1] : vector<32x32xf32> to vector<32xf32>
    %976 = vector.shape_cast %975 : vector<32xf32> to vector<32x1xf32>
    %977 = vector.broadcast %976 : vector<32x1xf32> to vector<32x32xf32>
    %978 = arith.divf %974, %977 : vector<32x32xf32>
    %cst_211 = arith.constant dense<0.000000e+00> : vector<16x32xf32>
    %979 = tpu.matmul %946, %978, %cst_211 {dimension_numbers = #tpu.dot_dimension_numbers<[1], [1], [0], [0], [0, 0, 1, 0], [], []>} : vector<16x32xf32>, vector<32x32xf32>, vector<16x32xf32> -> vector<16x32xf32>
    %980 = tpu.concatenate %943, %979 in 0 : vector<16x32xf32>, vector<16x32xf32> -> vector<32x32xf32>
    %cst_212 = arith.constant dense<0.000000e+00> : vector<32x32xf32>
    %981 = tpu.matmul %980, %859, %cst_212 {dimension_numbers = #tpu.dot_dimension_numbers<[1], [0], [0], [1], [0, 0, 1, 1], [], []>} : vector<32x32xf32>, vector<32x32xf32>, vector<32x32xf32> -> vector<32x32xf32>
    %982 = vector.extract_strided_slice %855 {offsets = [6, 0], sizes = [1, 32], strides = [1, 1]} : vector<37x32xf32> to vector<1x32xf32>
    %983 = vector.shape_cast %982 : vector<1x32xf32> to vector<32xf32>
    %984 = vector.shape_cast %983 : vector<32xf32> to vector<1x32xf32>
    %985 = vector.broadcast %984 : vector<1x32xf32> to vector<32x32xf32>
    %986 = arith.addf %981, %985 : vector<32x32xf32>
    %987 = vector.extract_strided_slice %855 {offsets = [7, 0], sizes = [1, 32], strides = [1, 1]} : vector<37x32xf32> to vector<1x32xf32>
    %988 = vector.shape_cast %987 : vector<1x32xf32> to vector<32xf32>
    %989 = vector.shape_cast %988 : vector<32xf32> to vector<1x32xf32>
    %990 = vector.broadcast %989 : vector<1x32xf32> to vector<32x32xf32>
    %991 = arith.mulf %990, %986 : vector<32x32xf32>
    %992 = arith.addf %853, %991 : vector<32x32xf32>
    %993 = vector.extract_strided_slice %855 {offsets = [8, 0], sizes = [1, 32], strides = [1, 1]} : vector<37x32xf32> to vector<1x32xf32>
    %994 = vector.shape_cast %993 : vector<1x32xf32> to vector<32xf32>
    %995 = vector.extract_strided_slice %855 {offsets = [9, 0], sizes = [1, 32], strides = [1, 1]} : vector<37x32xf32> to vector<1x32xf32>
    %996 = vector.shape_cast %995 : vector<1x32xf32> to vector<32xf32>
    %cst_213 = arith.constant dense<0.000000e+00> : vector<32xf32>
    %997 = vector.multi_reduction <add>, %992, %cst_213 [1] : vector<32x32xf32> to vector<32xf32>
    %998 = vector.shape_cast %997 : vector<32xf32> to vector<32x1xf32>
    %cst_214 = arith.constant 3.200000e+01 : f32
    %999 = vector.broadcast %cst_214 : f32 to vector<32x1xf32>
    %1000 = arith.divf %998, %999 : vector<32x1xf32>
    %1001 = vector.broadcast %1000 : vector<32x1xf32> to vector<32x32xf32>
    %1002 = arith.subf %992, %1001 : vector<32x32xf32>
    %1003 = arith.mulf %1002, %1002 : vector<32x32xf32>
    %cst_215 = arith.constant dense<0.000000e+00> : vector<32xf32>
    %1004 = vector.multi_reduction <add>, %1003, %cst_215 [1] : vector<32x32xf32> to vector<32xf32>
    %1005 = vector.shape_cast %1004 : vector<32xf32> to vector<32x1xf32>
    %cst_216 = arith.constant 3.200000e+01 : f32
    %1006 = vector.broadcast %cst_216 : f32 to vector<32x1xf32>
    %1007 = arith.divf %1005, %1006 : vector<32x1xf32>
    %1008 = vector.broadcast %1000 : vector<32x1xf32> to vector<32x32xf32>
    %1009 = arith.subf %992, %1008 : vector<32x32xf32>
    %cst_217 = arith.constant 9.99999997E-7 : f32
    %1010 = vector.broadcast %cst_217 : f32 to vector<32x1xf32>
    %1011 = arith.addf %1007, %1010 : vector<32x1xf32>
    %1012 = math.rsqrt %1011 : vector<32x1xf32>
    %1013 = vector.broadcast %1012 : vector<32x1xf32> to vector<32x32xf32>
    %1014 = arith.mulf %1009, %1013 : vector<32x32xf32>
    %1015 = vector.shape_cast %994 : vector<32xf32> to vector<1x32xf32>
    %1016 = vector.broadcast %1015 : vector<1x32xf32> to vector<32x32xf32>
    %1017 = arith.mulf %1014, %1016 : vector<32x32xf32>
    %1018 = vector.shape_cast %996 : vector<32xf32> to vector<1x32xf32>
    %1019 = vector.broadcast %1018 : vector<1x32xf32> to vector<32x32xf32>
    %1020 = arith.addf %1017, %1019 : vector<32x32xf32>
    %1021 = vector.extract_strided_slice %855 {offsets = [19, 0], sizes = [9, 32], strides = [1, 1]} : vector<37x32xf32> to vector<9x32xf32>
    %1022 = vector.extract_strided_slice %855 {offsets = [28, 0], sizes = [9, 32], strides = [1, 1]} : vector<37x32xf32> to vector<9x32xf32>
    %cst_218 = arith.constant dense<0.000000e+00> : vector<288x32xf32>
    %1023 = tpu.matmul %4, %1020, %cst_218 {dimension_numbers = #tpu.dot_dimension_numbers<[1], [0], [0], [1], [0, 0, 1, 1], [], []>} : vector<288x32xf32>, vector<32x32xf32>, vector<288x32xf32> -> vector<288x32xf32>
    %1024 = vector.shape_cast %1023 : vector<288x32xf32> to vector<9x32x32xf32>
    %1025 = vector.shape_cast %1021 : vector<9x32xf32> to vector<9x1x32xf32>
    %1026 = vector.broadcast %1025 : vector<9x1x32xf32> to vector<9x32x32xf32>
    %1027 = arith.mulf %1024, %1026 : vector<9x32x32xf32>
    %cst_219 = arith.constant dense<0.000000e+00> : vector<32x32xf32>
    %1028 = vector.multi_reduction <add>, %1027, %cst_219 [0] : vector<9x32x32xf32> to vector<32x32xf32>
    %1029 = vector.extract_strided_slice %855 {offsets = [10, 0], sizes = [1, 32], strides = [1, 1]} : vector<37x32xf32> to vector<1x32xf32>
    %1030 = vector.shape_cast %1029 : vector<1x32xf32> to vector<32xf32>
    %1031 = vector.shape_cast %1030 : vector<32xf32> to vector<1x32xf32>
    %1032 = vector.broadcast %1031 : vector<1x32xf32> to vector<32x32xf32>
    %1033 = arith.addf %1028, %1032 : vector<32x32xf32>
    %cst_220 = arith.constant 5.000000e-01 : f32
    %1034 = vector.broadcast %cst_220 : f32 to vector<32x32xf32>
    %1035 = arith.mulf %1034, %1033 : vector<32x32xf32>
    %cst_221 = arith.constant 4.471500e-02 : f32
    %1036 = vector.broadcast %cst_221 : f32 to vector<32x32xf32>
    %1037 = arith.mulf %1036, %1033 : vector<32x32xf32>
    %1038 = arith.mulf %1037, %1033 : vector<32x32xf32>
    %1039 = arith.mulf %1038, %1033 : vector<32x32xf32>
    %1040 = arith.addf %1033, %1039 : vector<32x32xf32>
    %cst_222 = arith.constant 0.797884583 : f32
    %1041 = vector.broadcast %cst_222 : f32 to vector<32x32xf32>
    %1042 = arith.mulf %1041, %1040 : vector<32x32xf32>
    %1043 = math.tanh %1042 : vector<32x32xf32>
    %cst_223 = arith.constant 1.000000e+00 : f32
    %1044 = vector.broadcast %cst_223 : f32 to vector<32x32xf32>
    %1045 = arith.addf %1044, %1043 : vector<32x32xf32>
    %1046 = arith.mulf %1035, %1045 : vector<32x32xf32>
    %1047 = vector.extract_strided_slice %855 {offsets = [11, 0], sizes = [1, 32], strides = [1, 1]} : vector<37x32xf32> to vector<1x32xf32>
    %1048 = vector.shape_cast %1047 : vector<1x32xf32> to vector<32xf32>
    %1049 = vector.shape_cast %1048 : vector<32xf32> to vector<1x32xf32>
    %1050 = vector.broadcast %1049 : vector<1x32xf32> to vector<32x32xf32>
    %1051 = arith.mulf %1046, %1050 : vector<32x32xf32>
    %1052 = vector.extract_strided_slice %855 {offsets = [12, 0], sizes = [1, 32], strides = [1, 1]} : vector<37x32xf32> to vector<1x32xf32>
    %1053 = vector.shape_cast %1052 : vector<1x32xf32> to vector<32xf32>
    %1054 = vector.shape_cast %1053 : vector<32xf32> to vector<1x32xf32>
    %1055 = vector.broadcast %1054 : vector<1x32xf32> to vector<32x32xf32>
    %1056 = arith.addf %1051, %1055 : vector<32x32xf32>
    %cst_224 = arith.constant dense<0.000000e+00> : vector<288x32xf32>
    %1057 = tpu.matmul %4, %1056, %cst_224 {dimension_numbers = #tpu.dot_dimension_numbers<[1], [0], [0], [1], [0, 0, 1, 1], [], []>} : vector<288x32xf32>, vector<32x32xf32>, vector<288x32xf32> -> vector<288x32xf32>
    %1058 = vector.shape_cast %1057 : vector<288x32xf32> to vector<9x32x32xf32>
    %1059 = vector.shape_cast %1022 : vector<9x32xf32> to vector<9x1x32xf32>
    %1060 = vector.broadcast %1059 : vector<9x1x32xf32> to vector<9x32x32xf32>
    %1061 = arith.mulf %1058, %1060 : vector<9x32x32xf32>
    %cst_225 = arith.constant dense<0.000000e+00> : vector<32x32xf32>
    %1062 = vector.multi_reduction <add>, %1061, %cst_225 [0] : vector<9x32x32xf32> to vector<32x32xf32>
    %1063 = vector.extract_strided_slice %855 {offsets = [13, 0], sizes = [1, 32], strides = [1, 1]} : vector<37x32xf32> to vector<1x32xf32>
    %1064 = vector.shape_cast %1063 : vector<1x32xf32> to vector<32xf32>
    %1065 = vector.shape_cast %1064 : vector<32xf32> to vector<1x32xf32>
    %1066 = vector.broadcast %1065 : vector<1x32xf32> to vector<32x32xf32>
    %1067 = arith.addf %1062, %1066 : vector<32x32xf32>
    %1068 = vector.extract_strided_slice %855 {offsets = [14, 0], sizes = [1, 32], strides = [1, 1]} : vector<37x32xf32> to vector<1x32xf32>
    %1069 = vector.shape_cast %1068 : vector<1x32xf32> to vector<32xf32>
    %1070 = vector.shape_cast %1069 : vector<32xf32> to vector<1x32xf32>
    %1071 = vector.broadcast %1070 : vector<1x32xf32> to vector<32x32xf32>
    %1072 = arith.mulf %1071, %1067 : vector<32x32xf32>
    %1073 = arith.addf %992, %1072 : vector<32x32xf32>
    %1074 = vector.extract_strided_slice %855 {offsets = [15, 0], sizes = [1, 32], strides = [1, 1]} : vector<37x32xf32> to vector<1x32xf32>
    %1075 = vector.shape_cast %1074 : vector<1x32xf32> to vector<32xf32>
    %1076 = vector.extract_strided_slice %855 {offsets = [16, 0], sizes = [1, 32], strides = [1, 1]} : vector<37x32xf32> to vector<1x32xf32>
    %1077 = vector.shape_cast %1076 : vector<1x32xf32> to vector<32xf32>
    %cst_226 = arith.constant dense<0.000000e+00> : vector<32xf32>
    %1078 = vector.multi_reduction <add>, %1073, %cst_226 [1] : vector<32x32xf32> to vector<32xf32>
    %1079 = vector.shape_cast %1078 : vector<32xf32> to vector<32x1xf32>
    %cst_227 = arith.constant 3.200000e+01 : f32
    %1080 = vector.broadcast %cst_227 : f32 to vector<32x1xf32>
    %1081 = arith.divf %1079, %1080 : vector<32x1xf32>
    %1082 = vector.broadcast %1081 : vector<32x1xf32> to vector<32x32xf32>
    %1083 = arith.subf %1073, %1082 : vector<32x32xf32>
    %1084 = arith.mulf %1083, %1083 : vector<32x32xf32>
    %cst_228 = arith.constant dense<0.000000e+00> : vector<32xf32>
    %1085 = vector.multi_reduction <add>, %1084, %cst_228 [1] : vector<32x32xf32> to vector<32xf32>
    %1086 = vector.shape_cast %1085 : vector<32xf32> to vector<32x1xf32>
    %cst_229 = arith.constant 3.200000e+01 : f32
    %1087 = vector.broadcast %cst_229 : f32 to vector<32x1xf32>
    %1088 = arith.divf %1086, %1087 : vector<32x1xf32>
    %1089 = vector.broadcast %1081 : vector<32x1xf32> to vector<32x32xf32>
    %1090 = arith.subf %1073, %1089 : vector<32x32xf32>
    %cst_230 = arith.constant 9.99999997E-7 : f32
    %1091 = vector.broadcast %cst_230 : f32 to vector<32x1xf32>
    %1092 = arith.addf %1088, %1091 : vector<32x1xf32>
    %1093 = math.rsqrt %1092 : vector<32x1xf32>
    %1094 = vector.broadcast %1093 : vector<32x1xf32> to vector<32x32xf32>
    %1095 = arith.mulf %1090, %1094 : vector<32x32xf32>
    %1096 = vector.shape_cast %1075 : vector<32xf32> to vector<1x32xf32>
    %1097 = vector.broadcast %1096 : vector<1x32xf32> to vector<32x32xf32>
    %1098 = arith.mulf %1095, %1097 : vector<32x32xf32>
    %1099 = vector.shape_cast %1077 : vector<32xf32> to vector<1x32xf32>
    %1100 = vector.broadcast %1099 : vector<1x32xf32> to vector<32x32xf32>
    %1101 = arith.addf %1098, %1100 : vector<32x32xf32>
    %cst_231 = arith.constant dense<0.000000e+00> : vector<32x128xf32>
    %1102 = tpu.matmul %1101, %860, %cst_231 {dimension_numbers = #tpu.dot_dimension_numbers<[1], [0], [0], [1], [0, 0, 1, 1], [], []>} : vector<32x32xf32>, vector<32x128xf32>, vector<32x128xf32> -> vector<32x128xf32>
    %c3_232 = arith.constant 3 : index
    %c0_233 = arith.constant 0 : index
    %1103 = vector.load %arg7[%c3_232, %c0_233] : memref<4x128xf32, #tpu.memory_space<vmem>>, vector<1x128xf32>
    %1104 = vector.shape_cast %1103 : vector<1x128xf32> to vector<128xf32>
    %1105 = vector.shape_cast %1104 : vector<128xf32> to vector<1x128xf32>
    %1106 = vector.broadcast %1105 : vector<1x128xf32> to vector<32x128xf32>
    %1107 = arith.addf %1102, %1106 : vector<32x128xf32>
    %cst_234 = arith.constant 5.000000e-01 : f32
    %1108 = vector.broadcast %cst_234 : f32 to vector<32x128xf32>
    %1109 = arith.mulf %1108, %1107 : vector<32x128xf32>
    %cst_235 = arith.constant 4.471500e-02 : f32
    %1110 = vector.broadcast %cst_235 : f32 to vector<32x128xf32>
    %1111 = arith.mulf %1110, %1107 : vector<32x128xf32>
    %1112 = arith.mulf %1111, %1107 : vector<32x128xf32>
    %1113 = arith.mulf %1112, %1107 : vector<32x128xf32>
    %1114 = arith.addf %1107, %1113 : vector<32x128xf32>
    %cst_236 = arith.constant 0.797884583 : f32
    %1115 = vector.broadcast %cst_236 : f32 to vector<32x128xf32>
    %1116 = arith.mulf %1115, %1114 : vector<32x128xf32>
    %1117 = math.tanh %1116 : vector<32x128xf32>
    %cst_237 = arith.constant 1.000000e+00 : f32
    %1118 = vector.broadcast %cst_237 : f32 to vector<32x128xf32>
    %1119 = arith.addf %1118, %1117 : vector<32x128xf32>
    %1120 = arith.mulf %1109, %1119 : vector<32x128xf32>
    %c3_238 = arith.constant 3 : index
    %c0_239 = arith.constant 0 : index
    %c0_240 = arith.constant 0 : index
    %1121 = vector.load %arg6[%c3_238, %c0_239, %c0_240] : memref<4x128x32xf32, #tpu.memory_space<vmem>>, vector<1x128x32xf32>
    %1122 = vector.shape_cast %1121 : vector<1x128x32xf32> to vector<128x32xf32>
    %cst_241 = arith.constant dense<0.000000e+00> : vector<32x32xf32>
    %1123 = tpu.matmul %1120, %1122, %cst_241 {dimension_numbers = #tpu.dot_dimension_numbers<[1], [0], [0], [1], [0, 0, 1, 1], [], []>} : vector<32x128xf32>, vector<128x32xf32>, vector<32x32xf32> -> vector<32x32xf32>
    %1124 = vector.extract_strided_slice %855 {offsets = [17, 0], sizes = [1, 32], strides = [1, 1]} : vector<37x32xf32> to vector<1x32xf32>
    %1125 = vector.shape_cast %1124 : vector<1x32xf32> to vector<32xf32>
    %1126 = vector.shape_cast %1125 : vector<32xf32> to vector<1x32xf32>
    %1127 = vector.broadcast %1126 : vector<1x32xf32> to vector<32x32xf32>
    %1128 = arith.addf %1123, %1127 : vector<32x32xf32>
    %1129 = vector.extract_strided_slice %855 {offsets = [18, 0], sizes = [1, 32], strides = [1, 1]} : vector<37x32xf32> to vector<1x32xf32>
    %1130 = vector.shape_cast %1129 : vector<1x32xf32> to vector<32xf32>
    %1131 = vector.shape_cast %1130 : vector<32xf32> to vector<1x32xf32>
    %1132 = vector.broadcast %1131 : vector<1x32xf32> to vector<32x32xf32>
    %1133 = arith.mulf %1132, %1128 : vector<32x32xf32>
    %1134 = arith.addf %1073, %1133 : vector<32x32xf32>
    %1135 = tpu.concatenate %285, %572, %853, %1134 in 1 : vector<32x32xf32>, vector<32x32xf32>, vector<32x32xf32>, vector<32x32xf32> -> vector<32x128xf32>
    %c0_242 = arith.constant 0 : index
    %c0_243 = arith.constant 0 : index
    %1136 = vector.load %arg10[%c0_242, %c0_243] : memref<32x128xf32, #tpu.memory_space<vmem>>, vector<32x128xf32>
    tpu.vector_store %arg10[%c0_242, %c0_243], %1135 {strides = array<i32>} : memref<32x128xf32, #tpu.memory_space<vmem>>, vector<32x128xf32>,
    return
  }
}

</mosaic_0001>

<llo_original>
// kernel: xcit_forward.1
$region0: #{xcit_forward.1}
  #allocation0 [shape = 'u32[]', space=smem, size = 0x4, offset = 0x4, fixed_abs, tag = 'smem constant byte address 0x4 - core index']
  #allocation1 [shape = 'u32[144,128]{1,0:T(1,128)}', space=vmem, size = 0x12000, scoped, tag = 'internal scratch']
  %s0 = inlined_call_operand.vmem [shape: f32[32,32], index: 0, kind: input, shape index: {}]
  %s1 = inlined_call_operand.vmem [shape: f32[32,32], index: 1, kind: input, shape index: {}]
  %s2 = inlined_call_operand.vmem [shape: f32[32,32], index: 2, kind: input, shape index: {}]
  %s3 = inlined_call_operand.vmem [shape: f32[288,32], index: 3, kind: input, shape index: {}]
  %s4 = inlined_call_operand.vmem [shape: f32[4,37,32], index: 4, kind: input, shape index: {}]
  %s5 = inlined_call_operand.vmem [shape: f32[4,32,256], index: 5, kind: input, shape index: {}]
  %s6 = inlined_call_operand.vmem [shape: f32[4,128,32], index: 6, kind: input, shape index: {}]
  %s7 = inlined_call_operand.vmem [shape: f32[4,128], index: 7, kind: input, shape index: {}]
  %s8 = inlined_call_operand.vmem [shape: f32[32,128], index: 8, kind: input, shape index: {}]
  %s9 = inlined_call_operand.vmem [shape: f32[1,128], index: 9, kind: input, shape index: {}]
  %s10 = inlined_call_operand.vmem [shape: f32[32,128], index: 10, kind: output, shape index: {0}]
  %s11 = inlined_call_operand.vmem [shape: f32[32,128], index: 11, kind: output, shape index: {1}]
  %12 = xla_tuple %s10, %s11
  %s13 = sld [smem:[#allocation0]]
  $region58: #{xcit_forward.1} parent=0
    _
  %s15 = ssub.s32 1, %s13
  %s16 = scalar_select 0, %s15, %s13
  // Predicated region
  $region2: #{xcit_forward.1} parent=0 // pred_check
    _
  $region3: #{xcit_forward.1} parent=0 // pred_check_branch
    %18 = sbr.rel (0) target = $region5
  $region4: #{xcit_forward.1} parent=0 // pred_region
    _
  $region5: #{xcit_forward.1} parent=0 // pred_fallthru
    _
  // Predicated region
  $region6: #{xcit_forward.1} parent=0 // pred_check
    _
  $region7: #{xcit_forward.1} parent=0 // pred_check_branch
    %20 = sbr.rel (0) target = $region9
  $region8: #{xcit_forward.1} parent=0 // pred_region
    _
  $region9: #{xcit_forward.1} parent=0 // pred_fallthru
    _
  // Predicated region
  $region10: #{xcit_forward.1} parent=0 // pred_check
    _
  $region11: #{xcit_forward.1} parent=0 // pred_check_branch
    %22 = sbr.rel (0) target = $region13
  $region12: #{xcit_forward.1} parent=0 // pred_region
    _
  $region13: #{xcit_forward.1} parent=0 // pred_fallthru
    _
  // Predicated region
  $region14: #{xcit_forward.1} parent=0 // pred_check
    _
  $region15: #{xcit_forward.1} parent=0 // pred_check_branch
    %24 = sbr.rel (0) target = $region17
  $region16: #{xcit_forward.1} parent=0 // pred_region
    _
  $region17: #{xcit_forward.1} parent=0 // pred_fallthru
    _
  // Predicated region
  $region18: #{xcit_forward.1} parent=0 // pred_check
    _
  $region19: #{xcit_forward.1} parent=0 // pred_check_branch
    %26 = sbr.rel (0) target = $region21
  $region20: #{xcit_forward.1} parent=0 // pred_region
    _
  $region21: #{xcit_forward.1} parent=0 // pred_fallthru
    _
  // Predicated region
  $region22: #{xcit_forward.1} parent=0 // pred_check
    _
  $region23: #{xcit_forward.1} parent=0 // pred_check_branch
    %28 = sbr.rel (0) target = $region25
  $region24: #{xcit_forward.1} parent=0 // pred_region
    _
  $region25: #{xcit_forward.1} parent=0 // pred_fallthru
    _
  // Predicated region
  $region26: #{xcit_forward.1} parent=0 // pred_check
    _
  $region27: #{xcit_forward.1} parent=0 // pred_check_branch
    %30 = sbr.rel (0) target = $region29
  $region28: #{xcit_forward.1} parent=0 // pred_region
    _
  $region29: #{xcit_forward.1} parent=0 // pred_fallthru
    _
  // Predicated region
  $region30: #{xcit_forward.1} parent=0 // pred_check
    _
  $region31: #{xcit_forward.1} parent=0 // pred_check_branch
    %32 = sbr.rel (0) target = $region33
  $region32: #{xcit_forward.1} parent=0 // pred_region
    _
  $region33: #{xcit_forward.1} parent=0 // pred_fallthru
    _
  // Predicated region
  $region34: #{xcit_forward.1} parent=0 // pred_check
    _
  $region35: #{xcit_forward.1} parent=0 // pred_check_branch
    %34 = sbr.rel (0) target = $region37
  $region36: #{xcit_forward.1} parent=0 // pred_region
    _
  $region37: #{xcit_forward.1} parent=0 // pred_fallthru
    _
  // Predicated region
  $region38: #{xcit_forward.1} parent=0 // pred_check
    _
  $region39: #{xcit_forward.1} parent=0 // pred_check_branch
    %36 = sbr.rel (0) target = $region41
  $region40: #{xcit_forward.1} parent=0 // pred_region
    _
  $region41: #{xcit_forward.1} parent=0 // pred_fallthru
    _
  %v37 = vld [vmem:[%s0] sm:$0xff]
  %v38 = vld [vmem:[%s0 + $0x8] sm:$0xff]
  %v39 = vld [vmem:[%s0 + $0x10] sm:$0xff]
  %v40 = vld [vmem:[%s0 + $0x18] sm:$0xff]
  %v41 = vld [vmem:[%s1] sm:$0xff]
  %v42 = vld [vmem:[%s1 + $0x8] sm:$0xff]
  %v43 = vld [vmem:[%s1 + $0x10] sm:$0xff]
  %v44 = vld [vmem:[%s1 + $0x18] sm:$0xff]
  %v45 = vadd.f32 %v37, %v41
  %v46 = vadd.f32 %v38, %v42
  %v47 = vadd.f32 %v39, %v43
  %v48 = vadd.f32 %v40, %v44
  %v49 = vld [vmem:[%s2] sm:$0xff]
  %v50 = vld [vmem:[%s2 + $0x8] sm:$0xff]
  %v51 = vld [vmem:[%s2 + $0x10] sm:$0xff]
  %v52 = vld [vmem:[%s2 + $0x18] sm:$0xff]
  %v53 = vld [vmem:[%s3] sm:$0xff]
  %v54 = vld [vmem:[%s3 + $0x8] sm:$0xff]
  %v55 = vld [vmem:[%s3 + $0x10] sm:$0xff]
  %v56 = vld [vmem:[%s3 + $0x18] sm:$0xff]
  %v57 = vld [vmem:[%s3 + $0x20] sm:$0xff]
  %v58 = vld [vmem:[%s3 + $0x28] sm:$0xff]
  %v59 = vld [vmem:[%s3 + $0x30] sm:$0xff]
  %v60 = vld [vmem:[%s3 + $0x38] sm:$0xff]
  %v61 = vld [vmem:[%s3 + $0x40] sm:$0xff]
  %v62 = vld [vmem:[%s3 + $0x48] sm:$0xff]
  %v63 = vld [vmem:[%s3 + $0x50] sm:$0xff]
  %v64 = vld [vmem:[%s3 + $0x58] sm:$0xff]
  %v65 = vld [vmem:[%s3 + $0x60] sm:$0xff]
  %v66 = vld [vmem:[%s3 + $0x68] sm:$0xff]
  %v67 = vld [vmem:[%s3 + $0x70] sm:$0xff]
  %v68 = vld [vmem:[%s3 + $0x78] sm:$0xff]
  %v69 = vld [vmem:[%s3 + $0x80] sm:$0xff]
  %v70 = vld [vmem:[%s3 + $0x88] sm:$0xff]
  %v71 = vld [vmem:[%s3 + $0x90] sm:$0xff]
  %v72 = vld [vmem:[%s3 + $0x98] sm:$0xff]
  %v73 = vld [vmem:[%s3 + $0xa0] sm:$0xff]
  %v74 = vld [vmem:[%s3 + $0xa8] sm:$0xff]
  %v75 = vld [vmem:[%s3 + $0xb0] sm:$0xff]
  %v76 = vld [vmem:[%s3 + $0xb8] sm:$0xff]
  %v77 = vld [vmem:[%s3 + $0xc0] sm:$0xff]
  %v78 = vld [vmem:[%s3 + $0xc8] sm:$0xff]
  %v79 = vld [vmem:[%s3 + $0xd0] sm:$0xff]
  %v80 = vld [vmem:[%s3 + $0xd8] sm:$0xff]
  %v81 = vld [vmem:[%s3 + $0xe0] sm:$0xff]
  %v82 = vld [vmem:[%s3 + $0xe8] sm:$0xff]
  %v83 = vld [vmem:[%s3 + $0xf0] sm:$0xff]
  %v84 = vld [vmem:[%s3 + $0xf8] sm:$0xff]
  %v85 = vld [vmem:[%s3 + $0x100] sm:$0xff]
  %v86 = vld [vmem:[%s3 + $0x108] sm:$0xff]
  %v87 = vld [vmem:[%s3 + $0x110] sm:$0xff]
  %v88 = vld [vmem:[%s3 + $0x118] sm:$0xff]
  %v89 = vld [vmem:[%s4] sm:$0xff]
  %v90 = vld [vmem:[%s4 + $0x8] sm:$0xff]
  %v91 = vld [vmem:[%s4 + $0x10] sm:$0xff]
  %v92 = vld [vmem:[%s4 + $0x18] sm:$0xff]
  %v93 = vld [vmem:[%s4 + $0x20] sm:$0x1f]
  %v94 = vld [vmem:[%s5] sm:$0xff]
  %v95 = vld [vmem:[%s5 + $0x8] sm:$0xff]
  %v96 = vld [vmem:[%s5 + $0x10] sm:$0xff]
  %v97 = vld [vmem:[%s5 + $0x18] sm:$0xff]
  %v98 = vld [vmem:[%s5 + $0x20] sm:$0xff]
  %v99 = vld [vmem:[%s5 + $0x28] sm:$0xff]
  %v100 = vld [vmem:[%s5 + $0x30] sm:$0xff]
  %v101 = vld [vmem:[%s5 + $0x38] sm:$0xff]
  %vm102 = vcmask 261120
  %v103 = vsel %vm102, %v45, 0.0
  %104 = vadd.xlane.f32.xlu0 %v103
  %v105 = vpop.xlane.xlu0 %104
  %v106 = vsel %vm102, %v46, 0.0
  %107 = vadd.xlane.f32.xlu0 %v106
  %v108 = vpop.xlane.xlu0 %107
  %v109 = vsel %vm102, %v47, 0.0
  %110 = vadd.xlane.f32.xlu0 %v109
  %v111 = vpop.xlane.xlu0 %110
  %v112 = vsel %vm102, %v48, 0.0
  %113 = vadd.xlane.f32.xlu0 %v112
  %v114 = vpop.xlane.xlu0 %113
  %v115 = vrcp.pop 32.0
  %v116 = vmul.f32 %v105, %v115
  %v117 = vmul.f32 %v108, %v115
  %v118 = vmul.f32 %v111, %v115
  %v119 = vmul.f32 %v114, %v115
  %v120 = vsub.f32 %v45, %v116
  %v121 = vsub.f32 %v46, %v117
  %v122 = vsub.f32 %v47, %v118
  %v123 = vsub.f32 %v48, %v119
  %v124 = vmul.f32 %v120, %v120
  %v125 = vmul.f32 %v121, %v121
  %v126 = vmul.f32 %v122, %v122
  %v127 = vmul.f32 %v123, %v123
  %v128 = vsel %vm102, %v124, 0.0
  %129 = vadd.xlane.f32.xlu0 %v128
  %v130 = vpop.xlane.xlu0 %129
  %v131 = vsel %vm102, %v125, 0.0
  %132 = vadd.xlane.f32.xlu0 %v131
  %v133 = vpop.xlane.xlu0 %132
  %v134 = vsel %vm102, %v126, 0.0
  %135 = vadd.xlane.f32.xlu0 %v134
  %v136 = vpop.xlane.xlu0 %135
  %v137 = vsel %vm102, %v127, 0.0
  %138 = vadd.xlane.f32.xlu0 %v137
  %v139 = vpop.xlane.xlu0 %138
  %v140 = vmul.f32 %v130, %v115
  %v141 = vmul.f32 %v133, %v115
  %v142 = vmul.f32 %v136, %v115
  %v143 = vmul.f32 %v139, %v115
  %v144 = vadd.f32 %v140, 1e-06
  %v145 = vadd.f32 %v141, 1e-06
  %v146 = vadd.f32 %v142, 1e-06
  %v147 = vadd.f32 %v143, 1e-06
  %v148 = vrsqrt.pop %v144
  %v149 = vrsqrt.pop %v145
  %v150 = vrsqrt.pop %v146
  %v151 = vrsqrt.pop %v147
  %v152 = vmul.f32 %v120, %v148
  %v153 = vmul.f32 %v121, %v149
  %v154 = vmul.f32 %v122, %v150
  %v155 = vmul.f32 %v123, %v151
  %v156 = vlaneseq
  %v157 = vshrl.u32 %v156, 7
  %v158 = vsub.s32 0, %v157
  %v159 = vrot.slane %v89, %v158
  %v160 = vmul.f32 %v152, %v159
  %v161 = vmul.f32 %v153, %v159
  %v162 = vmul.f32 %v154, %v159
  %v163 = vmul.f32 %v155, %v159
  %v164 = vlaneseq
  %v165 = vshrl.u32 %v164, 7
  %v166 = vsub.s32 1, %v165
  %v167 = vrot.slane %v89, %v166
  %v168 = vadd.f32 %v160, %v167
  %v169 = vadd.f32 %v161, %v167
  %v170 = vadd.f32 %v162, %v167
  %v171 = vadd.f32 %v163, %v167
  %v173 = vsel %vm102, %v168, 0
  %v176 = vsel %vm102, %v169, 0
  %v179 = vsel %vm102, %v170, 0
  %v182 = vsel %vm102, %v171, 0
  %184 = vmatprep.subr.mxu0 0.0
  %185 = vmatpush1.msra.mxu0 %v94
  %186 = vmatprep.subr.mxu0 0.0
  %187 = vmatpush1.msra.mxu0 %v96
  %188 = vmatprep.subr.mxu0 0.0
  %189 = vmatpush1.msra.mxu0 %v98
  %190 = vmatprep.subr.mxu0 0.0
  %191 = vmatpush1.msra.mxu0 %v100
  %192 = vmatprep.subr.mxu0 0.0
  %193 = vmatpush1.msra.mxu0 0.0
  %194 = vmatprep.subr.mxu0 0.0
  %195 = vmatpush1.msra.mxu0 0.0
  %196 = vmatprep.subr.mxu0 0.0
  %197 = vmatpush1.msra.mxu0 0.0
  %198 = vmatprep.subr.mxu0 0.0
  %199 = vmatpush1.msra.mxu0 0.0
  %200 = vmatprep.subr.mxu0 0.0
  %201 = vmatpush1.msra.mxu0 0.0
  %202 = vmatprep.subr.mxu0 0.0
  %203 = vmatpush1.msra.mxu0 0.0
  %204 = vmatprep.subr.mxu0 0.0
  %205 = vmatpush1.msra.mxu0 0.0
  %206 = vmatprep.subr.mxu0 0.0
  %207 = vmatpush1.msra.mxu0 0.0
  %208 = vmatprep.subr.mxu0 0.0
  %209 = vmatpush1.msra.mxu0 0.0
  %210 = vmatprep.subr.mxu0 0.0
  %211 = vmatpush1.msra.mxu0 0.0
  %212 = vmatprep.subr.mxu0 0.0
  %213 = vmatpush1.msra.mxu0 0.0
  %214 = vmatprep.subr.mxu0 0.0
  %215 = vmatpush1.msra.mxu0 0.0
  %216 = vmatprep.subr.mxu0 0.0
  %217 = vmatpush1.msra.mxu0 0.0
  %218 = vmatprep.subr.mxu0 0.0
  %219 = vmatpush1.msra.mxu0 0.0
  %220 = vmatprep.subr.mxu0 0.0
  %221 = vmatpush1.msra.mxu0 0.0
  %222 = vmatprep.subr.mxu0 0.0
  %223 = vmatpush1.msra.mxu0 0.0
  %224 = vmatprep.subr.mxu0 0.0
  %225 = vmatpush1.msra.mxu0 0.0
  %226 = vmatprep.subr.mxu0 0.0
  %227 = vmatpush1.msra.mxu0 0.0
  %228 = vmatprep.subr.mxu0 0.0
  %229 = vmatpush1.msra.mxu0 0.0
  %230 = vmatprep.subr.mxu0 0.0
  %231 = vmatpush1.msra.mxu0 0.0
  %232 = vmatprep.subr.mxu0 0.0
  %233 = vmatpush1.msra.mxu0 0.0
  %234 = vmatprep.subr.mxu0 0.0
  %235 = vmatpush1.msra.mxu0 0.0
  %236 = vmatprep.subr.mxu0 0.0
  %237 = vmatpush1.msra.mxu0 0.0
  %238 = vmatprep.subr.mxu0 0.0
  %239 = vmatpush1.msra.mxu0 0.0
  %240 = vmatprep.subr.mxu0 0.0
  %241 = vmatpush1.msra.mxu0 0.0
  %242 = vmatprep.subr.mxu0 0.0
  %243 = vmatpush1.msra.mxu0 0.0
  %244 = vmatprep.subr.mxu0 0.0
  %245 = vmatpush1.msra.mxu0 0.0
  %246 = vmatprep.subr.mxu0 0.0
  %247 = vmatpush1.msra.mxu0 0.0
  %248 = vmatprep.mubr.f32.mxu0 0.0
  %249 = vmatmul.mubr.f32.gmra.mrb[0].mxu0 %v173
  %v250 = vpop.f32.mrb[0].mxu0
  %v251 = vadd.f32 0.0, %v250
  %v252 = vpop.f32.mrb[0].mxu0
  %253 = vmatprep.mubr.f32.mxu0 0.0
  %254 = vmatmul.mubr.f32.gmra.mrb[0].mxu0 %v176
  %v255 = vpop.f32.mrb[0].mxu0
  %v256 = vadd.f32 0.0, %v255
  %v257 = vpop.f32.mrb[0].mxu0
  %258 = vmatprep.mubr.f32.mxu0 0.0
  %259 = vmatmul.mubr.f32.gmra.mrb[0].mxu0 %v179
  %v260 = vpop.f32.mrb[0].mxu0
  %v261 = vadd.f32 0.0, %v260
  %v262 = vpop.f32.mrb[0].mxu0
  %263 = vmatprep.mubr.f32.mxu0 0.0
  %264 = vmatmul.mubr.f32.gmra.mrb[0].mxu0 %v182
  %v265 = vpop.f32.mrb[0].mxu0
  %v266 = vadd.f32 0.0, %v265
  %v267 = vpop.f32.mrb[0].mxu0
  %268 = vdwg.mxu0
  %v269 = vlaneseq
  %v270 = vshrl.u32 %v269, 7
  %v271 = vsub.s32 2, %v270
  %v272 = vrot.slane %v89, %v271
  %v273 = vadd.f32 %v251, %v272
  %v274 = vadd.f32 %v256, %v272
  %v275 = vadd.f32 %v261, %v272
  %v276 = vadd.f32 %v266, %v272
  %v277 = vlaneseq
  %v278 = vshrl.u32 %v277, 7
  %v279 = vsub.s32 3, %v278
  %v280 = vrot.slane %v89, %v279
  %282 = vrot.lane.b32.xlu0 %v280, 32
  %v283 = vpop.permute.xlu0 %282
  %v285 = vadd.f32 %v251, %v283
  %v286 = vadd.f32 %v256, %v283
  %v287 = vadd.f32 %v261, %v283
  %v288 = vadd.f32 %v266, %v283
  %v289 = vlaneseq
  %v290 = vshrl.u32 %v289, 7
  %v291 = vsub.s32 4, %v290
  %v292 = vrot.slane %v89, %v291
  %294 = vrot.lane.b32.xlu0 %v292, 64
  %v295 = vpop.permute.xlu0 %294
  %v297 = vadd.f32 %v251, %v295
  %v298 = vadd.f32 %v256, %v295
  %v299 = vadd.f32 %v261, %v295
  %v300 = vadd.f32 %v266, %v295
  %v301 = vmul.f32 %v273, %v273
  %v302 = vmul.f32 %v274, %v274
  %v303 = vsel %vm102, %v301, 0.0
  %v304 = vsel %vm102, %v302, 0.0
  %v305 = vadd.f32 %v303, %v304
  %v306 = vrot.slane %v305, 4
  %v307 = vadd.f32 %v305, %v306
  %v308 = vrot.slane %v307, 2
  %v309 = vadd.f32 %v307, %v308
  %v310 = vrot.slane %v309, 1
  %v311 = vadd.f32 %v309, %v310
  %v312 = vmax.f32 %v311, 1e-24
  %v313 = vrsqrt.pop %v312
  %v314 = vmul.f32 %v273, %v313
  %v315 = vmul.f32 %v274, %v313
  %v316 = vmul.f32 %v285, %v285
  %v317 = vmul.f32 %v286, %v286
  %vm318 = vcmask 523520
  %v319 = vsel %vm318, %v316, 0.0
  %v320 = vsel %vm318, %v317, 0.0
  %v321 = vadd.f32 %v319, %v320
  %v322 = vrot.slane %v321, 4
  %v323 = vadd.f32 %v321, %v322
  %v324 = vrot.slane %v323, 2
  %v325 = vadd.f32 %v323, %v324
  %v326 = vrot.slane %v325, 1
  %v327 = vadd.f32 %v325, %v326
  %v328 = vmax.f32 %v327, 1e-24
  %v329 = vrsqrt.pop %v328
  %v330 = vmul.f32 %v285, %v329
  %v331 = vmul.f32 %v286, %v329
  %v332 = vlaneseq
  %v333 = vshrl.u32 %v332, 7
  %v334 = vsub.s32 5, %v333
  %v335 = vrot.slane %v89, %v334
  %v336 = vmul.f32 %v314, %v335
  %v337 = vmul.f32 %v315, %v335
  %338 = vxpose.xlu0.b32.start [1/16] %v336, 128
  %339 = vxpose.xlu0.b32.cont [2/16] %v337, 128
  %340 = vxpose.xlu0.b32.cont [3/16] 0.0, 128
  %341 = vxpose.xlu0.b32.cont [4/16] 0.0, 128
  %342 = vxpose.xlu0.b32.cont [5/16] 0.0, 128
  %343 = vxpose.xlu0.b32.cont [6/16] 0.0, 128
  %344 = vxpose.xlu0.b32.cont [7/16] 0.0, 128
  %345 = vxpose.xlu0.b32.cont [8/16] 0.0, 128
  %346 = vxpose.xlu0.b32.cont [9/16] 0.0, 128
  %347 = vxpose.xlu0.b32.cont [10/16] 0.0, 128
  %348 = vxpose.xlu0.b32.cont [11/16] 0.0, 128
  %349 = vxpose.xlu0.b32.cont [12/16] 0.0, 128
  %350 = vxpose.xlu0.b32.cont [13/16] 0.0, 128
  %351 = vxpose.xlu0.b32.cont [14/16] 0.0, 128
  %352 = vxpose.xlu0.b32.cont [15/16] 0.0, 128
  %353 = vxpose.xlu0.b32.end [16/16] 0.0, 128
  %v354 = vpop.trf.xlu0
  %v355 = vpop.trf.xlu0
  %v356 = vpop.trf.xlu0
  %v357 = vpop.trf.xlu0
  %v358 = vpop.trf.xlu0
  %v359 = vpop.trf.xlu0
  %v360 = vpop.trf.xlu0
  %v361 = vpop.trf.xlu0
  %v362 = vpop.trf.xlu0
  %v363 = vpop.trf.xlu0
  %v364 = vpop.trf.xlu0
  %v365 = vpop.trf.xlu0
  %v366 = vpop.trf.xlu0
  %v367 = vpop.trf.xlu0
  %v368 = vpop.trf.xlu0
  %v369 = vpop.trf.xlu0
  %372 = vrot.lane.b32.xlu0 %v330, 96
  %v373 = vpop.permute.xlu0 %372
  %374 = vrot.lane.b32.xlu0 %v331, 96
  %v375 = vpop.permute.xlu0 %374
  %vm378 = vcmask 130048
  %v380 = vsel %vm378, %v354, 0
  %v383 = vsel %vm378, %v355, 0
  %v386 = vsel %vm378, %v356, 0
  %v389 = vsel %vm378, %v357, 0
  %391 = vmatprep.subr.mxu0 0.0
  %392 = vmatpush1.msra.mxu0 %v373
  %393 = vmatprep.subr.mxu0 0.0
  %394 = vmatpush1.msra.mxu0 %v375
  %395 = vmatprep.subr.mxu0 0.0
  %396 = vmatpush1.msra.mxu0 0.0
  %397 = vmatprep.subr.mxu0 0.0
  %398 = vmatpush1.msra.mxu0 0.0
  %399 = vmatprep.subr.mxu0 0.0
  %400 = vmatpush1.msra.mxu0 0.0
  %401 = vmatprep.subr.mxu0 0.0
  %402 = vmatpush1.msra.mxu0 0.0
  %403 = vmatprep.subr.mxu0 0.0
  %404 = vmatpush1.msra.mxu0 0.0
  %405 = vmatprep.subr.mxu0 0.0
  %406 = vmatpush1.msra.mxu0 0.0
  %407 = vmatprep.subr.mxu0 0.0
  %408 = vmatpush1.msra.mxu0 0.0
  %409 = vmatprep.subr.mxu0 0.0
  %410 = vmatpush1.msra.mxu0 0.0
  %411 = vmatprep.subr.mxu0 0.0
  %412 = vmatpush1.msra.mxu0 0.0
  %413 = vmatprep.subr.mxu0 0.0
  %414 = vmatpush1.msra.mxu0 0.0
  %415 = vmatprep.subr.mxu0 0.0
  %416 = vmatpush1.msra.mxu0 0.0
  %417 = vmatprep.subr.mxu0 0.0
  %418 = vmatpush1.msra.mxu0 0.0
  %419 = vmatprep.subr.mxu0 0.0
  %420 = vmatpush1.msra.mxu0 0.0
  %421 = vmatprep.subr.mxu0 0.0
  %422 = vmatpush1.msra.mxu0 0.0
  %423 = vmatprep.subr.mxu0 0.0
  %424 = vmatpush1.msra.mxu0 0.0
  %425 = vmatprep.subr.mxu0 0.0
  %426 = vmatpush1.msra.mxu0 0.0
  %427 = vmatprep.subr.mxu0 0.0
  %428 = vmatpush1.msra.mxu0 0.0
  %429 = vmatprep.subr.mxu0 0.0
  %430 = vmatpush1.msra.mxu0 0.0
  %431 = vmatprep.subr.mxu0 0.0
  %432 = vmatpush1.msra.mxu0 0.0
  %433 = vmatprep.subr.mxu0 0.0
  %434 = vmatpush1.msra.mxu0 0.0
  %435 = vmatprep.subr.mxu0 0.0
  %436 = vmatpush1.msra.mxu0 0.0
  %437 = vmatprep.subr.mxu0 0.0
  %438 = vmatpush1.msra.mxu0 0.0
  %439 = vmatprep.subr.mxu0 0.0
  %440 = vmatpush1.msra.mxu0 0.0
  %441 = vmatprep.subr.mxu0 0.0
  %442 = vmatpush1.msra.mxu0 0.0
  %443 = vmatprep.subr.mxu0 0.0
  %444 = vmatpush1.msra.mxu0 0.0
  %445 = vmatprep.subr.mxu0 0.0
  %446 = vmatpush1.msra.mxu0 0.0
  %447 = vmatprep.subr.mxu0 0.0
  %448 = vmatpush1.msra.mxu0 0.0
  %449 = vmatprep.subr.mxu0 0.0
  %450 = vmatpush1.msra.mxu0 0.0
  %451 = vmatprep.subr.mxu0 0.0
  %452 = vmatpush1.msra.mxu0 0.0
  %453 = vmatprep.subr.mxu0 0.0
  %454 = vmatpush1.msra.mxu0 0.0
  %455 = vmatprep.mubr.f32.mxu0 0.0
  %456 = vmatmul.mubr.f32.gmra.mrb[0].mxu0 %v380
  %v457 = vpop.f32.mrb[0].mxu0
  %v458 = vadd.f32 %v49, %v457
  %v459 = vpop.f32.mrb[0].mxu0
  %460 = vmatprep.mubr.f32.mxu0 0.0
  %461 = vmatmul.mubr.f32.gmra.mrb[0].mxu0 %v383
  %v462 = vpop.f32.mrb[0].mxu0
  %v463 = vadd.f32 %v50, %v462
  %v464 = vpop.f32.mrb[0].mxu0
  %465 = vmatprep.mubr.f32.mxu0 0.0
  %466 = vmatmul.mubr.f32.gmra.mrb[0].mxu0 %v386
  %v467 = vpop.f32.mrb[0].mxu0
  %v468 = vadd.f32 %v51, %v467
  %v469 = vpop.f32.mrb[0].mxu0
  %470 = vmatprep.mubr.f32.mxu0 0.0
  %471 = vmatmul.mubr.f32.gmra.mrb[0].mxu0 %v389
  %v472 = vpop.f32.mrb[0].mxu0
  %v473 = vadd.f32 %v52, %v472
  %v474 = vpop.f32.mrb[0].mxu0
  %475 = vdwg.mxu0
  %v476 = vsel %vm102, %v458, -inf
  %477 = vmax.xlane.f32.xlu0 %v476
  %v478 = vpop.xlane.xlu0 %477
  %v479 = vsel %vm102, %v463, -inf
  %480 = vmax.xlane.f32.xlu0 %v479
  %v481 = vpop.xlane.xlu0 %480
  %v482 = vsel %vm102, %v468, -inf
  %483 = vmax.xlane.f32.xlu0 %v482
  %v484 = vpop.xlane.xlu0 %483
  %v485 = vsel %vm102, %v473, -inf
  %486 = vmax.xlane.f32.xlu0 %v485
  %v487 = vpop.xlane.xlu0 %486
  %v488 = vsub.f32 %v458, %v478
  %v489 = vsub.f32 %v463, %v481
  %v490 = vsub.f32 %v468, %v484
  %v491 = vsub.f32 %v473, %v487
  %v492 = vmul.f32 %v488, 1.442695
  %v493 = vpow.pop %v492
  %v494 = vmul.f32 %v489, 1.442695
  %v495 = vpow.pop %v494
  %v496 = vmul.f32 %v490, 1.442695
  %v497 = vpow.pop %v496
  %v498 = vmul.f32 %v491, 1.442695
  %v499 = vpow.pop %v498
  %v500 = vsel %vm102, %v493, 0.0
  %501 = vadd.xlane.f32.xlu0 %v500
  %v502 = vpop.xlane.xlu0 %501
  %v503 = vsel %vm102, %v495, 0.0
  %504 = vadd.xlane.f32.xlu0 %v503
  %v505 = vpop.xlane.xlu0 %504
  %v506 = vsel %vm102, %v497, 0.0
  %507 = vadd.xlane.f32.xlu0 %v506
  %v508 = vpop.xlane.xlu0 %507
  %v509 = vsel %vm102, %v499, 0.0
  %510 = vadd.xlane.f32.xlu0 %v509
  %v511 = vpop.xlane.xlu0 %510
  %v512 = vrcp.pop %v502
  %v513 = vmul.f32 %v493, %v512
  %v514 = vrcp.pop %v505
  %v515 = vmul.f32 %v495, %v514
  %v516 = vrcp.pop %v508
  %v517 = vmul.f32 %v497, %v516
  %v518 = vrcp.pop %v511
  %v519 = vmul.f32 %v499, %v518
  %522 = vrot.lane.b32.xlu0 %v297, 64
  %v523 = vpop.permute.xlu0 %522
  %524 = vrot.lane.b32.xlu0 %v298, 64
  %v525 = vpop.permute.xlu0 %524
  %v526 = vsel %vm102, %v523, 0
  %v528 = vsel %vm102, %v525, 0
  %v531 = vsel %vm102, %v513, 0
  %v534 = vsel %vm102, %v515, 0
  %v537 = vsel %vm102, %v517, 0
  %v540 = vsel %vm102, %v519, 0
  %542 = vmatprep.subr.mxu0 0.0
  %543 = vmatpush1.xpose.msra.mxu0 %v531
  %544 = vmatprep.subr.mxu0 0.0
  %545 = vmatpush1.xpose.msra.mxu0 %v534
  %546 = vmatprep.subr.mxu0 0.0
  %547 = vmatpush1.xpose.msra.mxu0 %v537
  %548 = vmatprep.subr.mxu0 0.0
  %549 = vmatpush1.xpose.msra.mxu0 %v540
  %550 = vmatprep.subr.mxu0 0.0
  %551 = vmatpush1.xpose.msra.mxu0 0.0
  %552 = vmatprep.subr.mxu0 0.0
  %553 = vmatpush1.xpose.msra.mxu0 0.0
  %554 = vmatprep.subr.mxu0 0.0
  %555 = vmatpush1.xpose.msra.mxu0 0.0
  %556 = vmatprep.subr.mxu0 0.0
  %557 = vmatpush1.xpose.msra.mxu0 0.0
  %558 = vmatprep.subr.mxu0 0.0
  %559 = vmatpush1.xpose.msra.mxu0 0.0
  %560 = vmatprep.subr.mxu0 0.0
  %561 = vmatpush1.xpose.msra.mxu0 0.0
  %562 = vmatprep.subr.mxu0 0.0
  %563 = vmatpush1.xpose.msra.mxu0 0.0
  %564 = vmatprep.subr.mxu0 0.0
  %565 = vmatpush1.xpose.msra.mxu0 0.0
  %566 = vmatprep.subr.mxu0 0.0
  %567 = vmatpush1.xpose.msra.mxu0 0.0
  %568 = vmatprep.subr.mxu0 0.0
  %569 = vmatpush1.xpose.msra.mxu0 0.0
  %570 = vmatprep.subr.mxu0 0.0
  %571 = vmatpush1.xpose.msra.mxu0 0.0
  %572 = vmatprep.subr.mxu0 0.0
  %573 = vmatpush1.xpose.msra.mxu0 0.0
  %574 = vmatprep.subr.mxu0 0.0
  %575 = vmatpush1.xpose.msra.mxu0 0.0
  %576 = vmatprep.subr.mxu0 0.0
  %577 = vmatpush1.xpose.msra.mxu0 0.0
  %578 = vmatprep.subr.mxu0 0.0
  %579 = vmatpush1.xpose.msra.mxu0 0.0
  %580 = vmatprep.subr.mxu0 0.0
  %581 = vmatpush1.xpose.msra.mxu0 0.0
  %582 = vmatprep.subr.mxu0 0.0
  %583 = vmatpush1.xpose.msra.mxu0 0.0
  %584 = vmatprep.subr.mxu0 0.0
  %585 = vmatpush1.xpose.msra.mxu0 0.0
  %586 = vmatprep.subr.mxu0 0.0
  %587 = vmatpush1.xpose.msra.mxu0 0.0
  %588 = vmatprep.subr.mxu0 0.0
  %589 = vmatpush1.xpose.msra.mxu0 0.0
  %590 = vmatprep.subr.mxu0 0.0
  %591 = vmatpush1.xpose.msra.mxu0 0.0
  %592 = vmatprep.subr.mxu0 0.0
  %593 = vmatpush1.xpose.msra.mxu0 0.0
  %594 = vmatprep.subr.mxu0 0.0
  %595 = vmatpush1.xpose.msra.mxu0 0.0
  %596 = vmatprep.subr.mxu0 0.0
  %597 = vmatpush1.xpose.msra.mxu0 0.0
  %598 = vmatprep.subr.mxu0 0.0
  %599 = vmatpush1.xpose.msra.mxu0 0.0
  %600 = vmatprep.subr.mxu0 0.0
  %601 = vmatpush1.xpose.msra.mxu0 0.0
  %602 = vmatprep.subr.mxu0 0.0
  %603 = vmatpush1.xpose.msra.mxu0 0.0
  %604 = vmatprep.subr.mxu0 0.0
  %605 = vmatpush1.xpose.msra.mxu0 0.0
  %606 = vmatprep.mubr.f32.mxu0 0.0
  %607 = vmatmul.mubr.f32.gmra.mrb[0].mxu0 %v526
  %v608 = vpop.f32.mrb[0].mxu0
  %v609 = vadd.f32 0.0, %v608
  %v610 = vpop.f32.mrb[0].mxu0
  %611 = vmatprep.mubr.f32.mxu0 0.0
  %612 = vmatmul.mubr.f32.gmra.mrb[0].mxu0 %v528
  %v613 = vpop.f32.mrb[0].mxu0
  %v614 = vadd.f32 0.0, %v613
  %v615 = vpop.f32.mrb[0].mxu0
  %616 = vdwg.mxu0
  %v617 = vmul.f32 %v275, %v275
  %v618 = vmul.f32 %v276, %v276
  %v619 = vsel %vm102, %v617, 0.0
  %v620 = vsel %vm102, %v618, 0.0
  %v621 = vadd.f32 %v619, %v620
  %v622 = vrot.slane %v621, 4
  %v623 = vadd.f32 %v621, %v622
  %v624 = vrot.slane %v623, 2
  %v625 = vadd.f32 %v623, %v624
  %v626 = vrot.slane %v625, 1
  %v627 = vadd.f32 %v625, %v626
  %v628 = vmax.f32 %v627, 1e-24
  %v629 = vrsqrt.pop %v628
  %v630 = vmul.f32 %v275, %v629
  %v631 = vmul.f32 %v276, %v629
  %v632 = vmul.f32 %v287, %v287
  %v633 = vmul.f32 %v288, %v288
  %v634 = vsel %vm318, %v632, 0.0
  %v635 = vsel %vm318, %v633, 0.0
  %v636 = vadd.f32 %v634, %v635
  %v637 = vrot.slane %v636, 4
  %v638 = vadd.f32 %v636, %v637
  %v639 = vrot.slane %v638, 2
  %v640 = vadd.f32 %v638, %v639
  %v641 = vrot.slane %v640, 1
  %v642 = vadd.f32 %v640, %v641
  %v643 = vmax.f32 %v642, 1e-24
  %v644 = vrsqrt.pop %v643
  %v645 = vmul.f32 %v287, %v644
  %v646 = vmul.f32 %v288, %v644
  %v647 = vmul.f32 %v630, %v335
  %v648 = vmul.f32 %v631, %v335
  %649 = vxpose.xlu0.b32.start [1/16] %v647, 128
  %650 = vxpose.xlu0.b32.cont [2/16] %v648, 128
  %651 = vxpose.xlu0.b32.cont [3/16] 0.0, 128
  %652 = vxpose.xlu0.b32.cont [4/16] 0.0, 128
  %653 = vxpose.xlu0.b32.cont [5/16] 0.0, 128
  %654 = vxpose.xlu0.b32.cont [6/16] 0.0, 128
  %655 = vxpose.xlu0.b32.cont [7/16] 0.0, 128
  %656 = vxpose.xlu0.b32.cont [8/16] 0.0, 128
  %657 = vxpose.xlu0.b32.cont [9/16] 0.0, 128
  %658 = vxpose.xlu0.b32.cont [10/16] 0.0, 128
  %659 = vxpose.xlu0.b32.cont [11/16] 0.0, 128
  %660 = vxpose.xlu0.b32.cont [12/16] 0.0, 128
  %661 = vxpose.xlu0.b32.cont [13/16] 0.0, 128
  %662 = vxpose.xlu0.b32.cont [14/16] 0.0, 128
  %663 = vxpose.xlu0.b32.cont [15/16] 0.0, 128
  %664 = vxpose.xlu0.b32.end [16/16] 0.0, 128
  %v665 = vpop.trf.xlu0
  %v666 = vpop.trf.xlu0
  %v667 = vpop.trf.xlu0
  %v668 = vpop.trf.xlu0
  %v669 = vpop.trf.xlu0
  %v670 = vpop.trf.xlu0
  %v671 = vpop.trf.xlu0
  %v672 = vpop.trf.xlu0
  %v673 = vpop.trf.xlu0
  %v674 = vpop.trf.xlu0
  %v675 = vpop.trf.xlu0
  %v676 = vpop.trf.xlu0
  %v677 = vpop.trf.xlu0
  %v678 = vpop.trf.xlu0
  %v679 = vpop.trf.xlu0
  %v680 = vpop.trf.xlu0
  %683 = vrot.lane.b32.xlu0 %v645, 96
  %v684 = vpop.permute.xlu0 %683
  %685 = vrot.lane.b32.xlu0 %v646, 96
  %v686 = vpop.permute.xlu0 %685
  %v690 = vsel %vm378, %v665, 0
  %v693 = vsel %vm378, %v666, 0
  %v696 = vsel %vm378, %v667, 0
  %v699 = vsel %vm378, %v668, 0
  %701 = vmatprep.subr.mxu0 0.0
  %702 = vmatpush1.msra.mxu0 %v684
  %703 = vmatprep.subr.mxu0 0.0
  %704 = vmatpush1.msra.mxu0 %v686
  %705 = vmatprep.subr.mxu0 0.0
  %706 = vmatpush1.msra.mxu0 0.0
  %707 = vmatprep.subr.mxu0 0.0
  %708 = vmatpush1.msra.mxu0 0.0
  %709 = vmatprep.subr.mxu0 0.0
  %710 = vmatpush1.msra.mxu0 0.0
  %711 = vmatprep.subr.mxu0 0.0
  %712 = vmatpush1.msra.mxu0 0.0
  %713 = vmatprep.subr.mxu0 0.0
  %714 = vmatpush1.msra.mxu0 0.0
  %715 = vmatprep.subr.mxu0 0.0
  %716 = vmatpush1.msra.mxu0 0.0
  %717 = vmatprep.subr.mxu0 0.0
  %718 = vmatpush1.msra.mxu0 0.0
  %719 = vmatprep.subr.mxu0 0.0
  %720 = vmatpush1.msra.mxu0 0.0
  %721 = vmatprep.subr.mxu0 0.0
  %722 = vmatpush1.msra.mxu0 0.0
  %723 = vmatprep.subr.mxu0 0.0
  %724 = vmatpush1.msra.mxu0 0.0
  %725 = vmatprep.subr.mxu0 0.0
  %726 = vmatpush1.msra.mxu0 0.0
  %727 = vmatprep.subr.mxu0 0.0
  %728 = vmatpush1.msra.mxu0 0.0
  %729 = vmatprep.subr.mxu0 0.0
  %730 = vmatpush1.msra.mxu0 0.0
  %731 = vmatprep.subr.mxu0 0.0
  %732 = vmatpush1.msra.mxu0 0.0
  %733 = vmatprep.subr.mxu0 0.0
  %734 = vmatpush1.msra.mxu0 0.0
  %735 = vmatprep.subr.mxu0 0.0
  %736 = vmatpush1.msra.mxu0 0.0
  %737 = vmatprep.subr.mxu0 0.0
  %738 = vmatpush1.msra.mxu0 0.0
  %739 = vmatprep.subr.mxu0 0.0
  %740 = vmatpush1.msra.mxu0 0.0
  %741 = vmatprep.subr.mxu0 0.0
  %742 = vmatpush1.msra.mxu0 0.0
  %743 = vmatprep.subr.mxu0 0.0
  %744 = vmatpush1.msra.mxu0 0.0
  %745 = vmatprep.subr.mxu0 0.0
  %746 = vmatpush1.msra.mxu0 0.0
  %747 = vmatprep.subr.mxu0 0.0
  %748 = vmatpush1.msra.mxu0 0.0
  %749 = vmatprep.subr.mxu0 0.0
  %750 = vmatpush1.msra.mxu0 0.0
  %751 = vmatprep.subr.mxu0 0.0
  %752 = vmatpush1.msra.mxu0 0.0
  %753 = vmatprep.subr.mxu0 0.0
  %754 = vmatpush1.msra.mxu0 0.0
  %755 = vmatprep.subr.mxu0 0.0
  %756 = vmatpush1.msra.mxu0 0.0
  %757 = vmatprep.subr.mxu0 0.0
  %758 = vmatpush1.msra.mxu0 0.0
  %759 = vmatprep.subr.mxu0 0.0
  %760 = vmatpush1.msra.mxu0 0.0
  %761 = vmatprep.subr.mxu0 0.0
  %762 = vmatpush1.msra.mxu0 0.0
  %763 = vmatprep.subr.mxu0 0.0
  %764 = vmatpush1.msra.mxu0 0.0
  %765 = vmatprep.mubr.f32.mxu0 0.0
  %766 = vmatmul.mubr.f32.gmra.mrb[0].mxu0 %v690
  %v767 = vpop.f32.mrb[0].mxu0
  %v768 = vadd.f32 %v49, %v767
  %v769 = vpop.f32.mrb[0].mxu0
  %770 = vmatprep.mubr.f32.mxu0 0.0
  %771 = vmatmul.mubr.f32.gmra.mrb[0].mxu0 %v693
  %v772 = vpop.f32.mrb[0].mxu0
  %v773 = vadd.f32 %v50, %v772
  %v774 = vpop.f32.mrb[0].mxu0
  %775 = vmatprep.mubr.f32.mxu0 0.0
  %776 = vmatmul.mubr.f32.gmra.mrb[0].mxu0 %v696
  %v777 = vpop.f32.mrb[0].mxu0
  %v778 = vadd.f32 %v51, %v777
  %v779 = vpop.f32.mrb[0].mxu0
  %780 = vmatprep.mubr.f32.mxu0 0.0
  %781 = vmatmul.mubr.f32.gmra.mrb[0].mxu0 %v699
  %v782 = vpop.f32.mrb[0].mxu0
  %v783 = vadd.f32 %v52, %v782
  %v784 = vpop.f32.mrb[0].mxu0
  %785 = vdwg.mxu0
  %v786 = vsel %vm102, %v768, -inf
  %787 = vmax.xlane.f32.xlu0 %v786
  %v788 = vpop.xlane.xlu0 %787
  %v789 = vsel %vm102, %v773, -inf
  %790 = vmax.xlane.f32.xlu0 %v789
  %v791 = vpop.xlane.xlu0 %790
  %v792 = vsel %vm102, %v778, -inf
  %793 = vmax.xlane.f32.xlu0 %v792
  %v794 = vpop.xlane.xlu0 %793
  %v795 = vsel %vm102, %v783, -inf
  %796 = vmax.xlane.f32.xlu0 %v795
  %v797 = vpop.xlane.xlu0 %796
  %v798 = vsub.f32 %v768, %v788
  %v799 = vsub.f32 %v773, %v791
  %v800 = vsub.f32 %v778, %v794
  %v801 = vsub.f32 %v783, %v797
  %v802 = vmul.f32 %v798, 1.442695
  %v803 = vpow.pop %v802
  %v804 = vmul.f32 %v799, 1.442695
  %v805 = vpow.pop %v804
  %v806 = vmul.f32 %v800, 1.442695
  %v807 = vpow.pop %v806
  %v808 = vmul.f32 %v801, 1.442695
  %v809 = vpow.pop %v808
  %v810 = vsel %vm102, %v803, 0.0
  %811 = vadd.xlane.f32.xlu0 %v810
  %v812 = vpop.xlane.xlu0 %811
  %v813 = vsel %vm102, %v805, 0.0
  %814 = vadd.xlane.f32.xlu0 %v813
  %v815 = vpop.xlane.xlu0 %814
  %v816 = vsel %vm102, %v807, 0.0
  %817 = vadd.xlane.f32.xlu0 %v816
  %v818 = vpop.xlane.xlu0 %817
  %v819 = vsel %vm102, %v809, 0.0
  %820 = vadd.xlane.f32.xlu0 %v819
  %v821 = vpop.xlane.xlu0 %820
  %v822 = vrcp.pop %v812
  %v823 = vmul.f32 %v803, %v822
  %v824 = vrcp.pop %v815
  %v825 = vmul.f32 %v805, %v824
  %v826 = vrcp.pop %v818
  %v827 = vmul.f32 %v807, %v826
  %v828 = vrcp.pop %v821
  %v829 = vmul.f32 %v809, %v828
  %832 = vrot.lane.b32.xlu0 %v299, 64
  %v833 = vpop.permute.xlu0 %832
  %834 = vrot.lane.b32.xlu0 %v300, 64
  %v835 = vpop.permute.xlu0 %834
  %v836 = vsel %vm102, %v833, 0
  %v838 = vsel %vm102, %v835, 0
  %v841 = vsel %vm102, %v823, 0
  %v844 = vsel %vm102, %v825, 0
  %v847 = vsel %vm102, %v827, 0
  %v850 = vsel %vm102, %v829, 0
  %852 = vmatprep.subr.mxu0 0.0
  %853 = vmatpush1.xpose.msra.mxu0 %v841
  %854 = vmatprep.subr.mxu0 0.0
  %855 = vmatpush1.xpose.msra.mxu0 %v844
  %856 = vmatprep.subr.mxu0 0.0
  %857 = vmatpush1.xpose.msra.mxu0 %v847
  %858 = vmatprep.subr.mxu0 0.0
  %859 = vmatpush1.xpose.msra.mxu0 %v850
  %860 = vmatprep.subr.mxu0 0.0
  %861 = vmatpush1.xpose.msra.mxu0 0.0
  %862 = vmatprep.subr.mxu0 0.0
  %863 = vmatpush1.xpose.msra.mxu0 0.0
  %864 = vmatprep.subr.mxu0 0.0
  %865 = vmatpush1.xpose.msra.mxu0 0.0
  %866 = vmatprep.subr.mxu0 0.0
  %867 = vmatpush1.xpose.msra.mxu0 0.0
  %868 = vmatprep.subr.mxu0 0.0
  %869 = vmatpush1.xpose.msra.mxu0 0.0
  %870 = vmatprep.subr.mxu0 0.0
  %871 = vmatpush1.xpose.msra.mxu0 0.0
  %872 = vmatprep.subr.mxu0 0.0
  %873 = vmatpush1.xpose.msra.mxu0 0.0
  %874 = vmatprep.subr.mxu0 0.0
  %875 = vmatpush1.xpose.msra.mxu0 0.0
  %876 = vmatprep.subr.mxu0 0.0
  %877 = vmatpush1.xpose.msra.mxu0 0.0
  %878 = vmatprep.subr.mxu0 0.0
  %879 = vmatpush1.xpose.msra.mxu0 0.0
  %880 = vmatprep.subr.mxu0 0.0
  %881 = vmatpush1.xpose.msra.mxu0 0.0
  %882 = vmatprep.subr.mxu0 0.0
  %883 = vmatpush1.xpose.msra.mxu0 0.0
  %884 = vmatprep.subr.mxu0 0.0
  %885 = vmatpush1.xpose.msra.mxu0 0.0
  %886 = vmatprep.subr.mxu0 0.0
  %887 = vmatpush1.xpose.msra.mxu0 0.0
  %888 = vmatprep.subr.mxu0 0.0
  %889 = vmatpush1.xpose.msra.mxu0 0.0
  %890 = vmatprep.subr.mxu0 0.0
  %891 = vmatpush1.xpose.msra.mxu0 0.0
  %892 = vmatprep.subr.mxu0 0.0
  %893 = vmatpush1.xpose.msra.mxu0 0.0
  %894 = vmatprep.subr.mxu0 0.0
  %895 = vmatpush1.xpose.msra.mxu0 0.0
  %896 = vmatprep.subr.mxu0 0.0
  %897 = vmatpush1.xpose.msra.mxu0 0.0
  %898 = vmatprep.subr.mxu0 0.0
  %899 = vmatpush1.xpose.msra.mxu0 0.0
  %900 = vmatprep.subr.mxu0 0.0
  %901 = vmatpush1.xpose.msra.mxu0 0.0
  %902 = vmatprep.subr.mxu0 0.0
  %903 = vmatpush1.xpose.msra.mxu0 0.0
  %904 = vmatprep.subr.mxu0 0.0
  %905 = vmatpush1.xpose.msra.mxu0 0.0
  %906 = vmatprep.subr.mxu0 0.0
  %907 = vmatpush1.xpose.msra.mxu0 0.0
  %908 = vmatprep.subr.mxu0 0.0
  %909 = vmatpush1.xpose.msra.mxu0 0.0
  %910 = vmatprep.subr.mxu0 0.0
  %911 = vmatpush1.xpose.msra.mxu0 0.0
  %912 = vmatprep.subr.mxu0 0.0
  %913 = vmatpush1.xpose.msra.mxu0 0.0
  %914 = vmatprep.subr.mxu0 0.0
  %915 = vmatpush1.xpose.msra.mxu0 0.0
  %916 = vmatprep.mubr.f32.mxu0 0.0
  %917 = vmatmul.mubr.f32.gmra.mrb[0].mxu0 %v836
  %v918 = vpop.f32.mrb[0].mxu0
  %v919 = vadd.f32 0.0, %v918
  %v920 = vpop.f32.mrb[0].mxu0
  %921 = vmatprep.mubr.f32.mxu0 0.0
  %922 = vmatmul.mubr.f32.gmra.mrb[0].mxu0 %v838
  %v923 = vpop.f32.mrb[0].mxu0
  %v924 = vadd.f32 0.0, %v923
  %v925 = vpop.f32.mrb[0].mxu0
  %926 = vdwg.mxu0
  %v927 = vlaneseq
  %v928 = vshrl.u32 %v927, 7
  %v929 = vsub.s32 6, %v928
  %v930 = vrot.slane %v89, %v929
  %935 = vrot.lane.b32.xlu0 %v94, 32
  %v936 = vpop.permute.xlu0 %935
  %937 = vrot.lane.b32.xlu0 %v96, 32
  %v938 = vpop.permute.xlu0 %937
  %939 = vrot.lane.b32.xlu0 %v98, 32
  %v940 = vpop.permute.xlu0 %939
  %941 = vrot.lane.b32.xlu0 %v100, 32
  %v942 = vpop.permute.xlu0 %941
  %v948 = vsel %vm102, %v609, 0
  %v951 = vsel %vm102, %v614, 0
  %v954 = vsel %vm102, %v919, 0
  %v957 = vsel %vm102, %v924, 0
  %959 = vmatprep.subr.mxu0 0.0
  %960 = vmatpush1.msra.mxu0 %v936
  %961 = vmatprep.subr.mxu0 0.0
  %962 = vmatpush1.msra.mxu0 %v938
  %963 = vmatprep.subr.mxu0 0.0
  %964 = vmatpush1.msra.mxu0 %v940
  %965 = vmatprep.subr.mxu0 0.0
  %966 = vmatpush1.msra.mxu0 %v942
  %967 = vmatprep.subr.mxu0 0.0
  %968 = vmatpush1.msra.mxu0 0.0
  %969 = vmatprep.subr.mxu0 0.0
  %970 = vmatpush1.msra.mxu0 0.0
  %971 = vmatprep.subr.mxu0 0.0
  %972 = vmatpush1.msra.mxu0 0.0
  %973 = vmatprep.subr.mxu0 0.0
  %974 = vmatpush1.msra.mxu0 0.0
  %975 = vmatprep.subr.mxu0 0.0
  %976 = vmatpush1.msra.mxu0 0.0
  %977 = vmatprep.subr.mxu0 0.0
  %978 = vmatpush1.msra.mxu0 0.0
  %979 = vmatprep.subr.mxu0 0.0
  %980 = vmatpush1.msra.mxu0 0.0
  %981 = vmatprep.subr.mxu0 0.0
  %982 = vmatpush1.msra.mxu0 0.0
  %983 = vmatprep.subr.mxu0 0.0
  %984 = vmatpush1.msra.mxu0 0.0
  %985 = vmatprep.subr.mxu0 0.0
  %986 = vmatpush1.msra.mxu0 0.0
  %987 = vmatprep.subr.mxu0 0.0
  %988 = vmatpush1.msra.mxu0 0.0
  %989 = vmatprep.subr.mxu0 0.0
  %990 = vmatpush1.msra.mxu0 0.0
  %991 = vmatprep.subr.mxu0 0.0
  %992 = vmatpush1.msra.mxu0 0.0
  %993 = vmatprep.subr.mxu0 0.0
  %994 = vmatpush1.msra.mxu0 0.0
  %995 = vmatprep.subr.mxu0 0.0
  %996 = vmatpush1.msra.mxu0 0.0
  %997 = vmatprep.subr.mxu0 0.0
  %998 = vmatpush1.msra.mxu0 0.0
  %999 = vmatprep.subr.mxu0 0.0
  %1000 = vmatpush1.msra.mxu0 0.0
  %1001 = vmatprep.subr.mxu0 0.0
  %1002 = vmatpush1.msra.mxu0 0.0
  %1003 = vmatprep.subr.mxu0 0.0
  %1004 = vmatpush1.msra.mxu0 0.0
  %1005 = vmatprep.subr.mxu0 0.0
  %1006 = vmatpush1.msra.mxu0 0.0
  %1007 = vmatprep.subr.mxu0 0.0
  %1008 = vmatpush1.msra.mxu0 0.0
  %1009 = vmatprep.subr.mxu0 0.0
  %1010 = vmatpush1.msra.mxu0 0.0
  %1011 = vmatprep.subr.mxu0 0.0
  %1012 = vmatpush1.msra.mxu0 0.0
  %1013 = vmatprep.subr.mxu0 0.0
  %1014 = vmatpush1.msra.mxu0 0.0
  %1015 = vmatprep.subr.mxu0 0.0
  %1016 = vmatpush1.msra.mxu0 0.0
  %1017 = vmatprep.subr.mxu0 0.0
  %1018 = vmatpush1.msra.mxu0 0.0
  %1019 = vmatprep.subr.mxu0 0.0
  %1020 = vmatpush1.msra.mxu0 0.0
  %1021 = vmatprep.subr.mxu0 0.0
  %1022 = vmatpush1.msra.mxu0 0.0
  %1023 = vmatprep.mubr.f32.mxu0 0.0
  %1024 = vmatmul.mubr.f32.gmra.mrb[0].mxu0 %v948
  %v1025 = vpop.f32.mrb[0].mxu0
  %v1026 = vadd.f32 %v930, %v1025
  %v1027 = vpop.f32.mrb[0].mxu0
  %1028 = vmatprep.mubr.f32.mxu0 0.0
  %1029 = vmatmul.mubr.f32.gmra.mrb[0].mxu0 %v951
  %v1030 = vpop.f32.mrb[0].mxu0
  %v1031 = vadd.f32 %v930, %v1030
  %v1032 = vpop.f32.mrb[0].mxu0
  %1033 = vmatprep.mubr.f32.mxu0 0.0
  %1034 = vmatmul.mubr.f32.gmra.mrb[0].mxu0 %v954
  %v1035 = vpop.f32.mrb[0].mxu0
  %v1036 = vadd.f32 %v930, %v1035
  %v1037 = vpop.f32.mrb[0].mxu0
  %1038 = vmatprep.mubr.f32.mxu0 0.0
  %1039 = vmatmul.mubr.f32.gmra.mrb[0].mxu0 %v957
  %v1040 = vpop.f32.mrb[0].mxu0
  %v1041 = vadd.f32 %v930, %v1040
  %v1042 = vpop.f32.mrb[0].mxu0
  %1043 = vdwg.mxu0
  %v1044 = vlaneseq
  %v1045 = vshrl.u32 %v1044, 7
  %v1046 = vsub.s32 7, %v1045
  %v1047 = vrot.slane %v89, %v1046
  %v1048 = vmul.f32 %v1047, %v1026
  %v1049 = vmul.f32 %v1047, %v1031
  %v1050 = vmul.f32 %v1047, %v1036
  %v1051 = vmul.f32 %v1047, %v1041
  %v1052 = vadd.f32 %v45, %v1048
  %v1053 = vadd.f32 %v46, %v1049
  %v1054 = vadd.f32 %v47, %v1050
  %v1055 = vadd.f32 %v48, %v1051
  %v1056 = vsel %vm102, %v1052, 0.0
  %1057 = vadd.xlane.f32.xlu0 %v1056
  %v1058 = vpop.xlane.xlu0 %1057
  %v1059 = vsel %vm102, %v1053, 0.0
  %1060 = vadd.xlane.f32.xlu0 %v1059
  %v1061 = vpop.xlane.xlu0 %1060
  %v1062 = vsel %vm102, %v1054, 0.0
  %1063 = vadd.xlane.f32.xlu0 %v1062
  %v1064 = vpop.xlane.xlu0 %1063
  %v1065 = vsel %vm102, %v1055, 0.0
  %1066 = vadd.xlane.f32.xlu0 %v1065
  %v1067 = vpop.xlane.xlu0 %1066
  %v1068 = vmul.f32 %v1058, %v115
  %v1069 = vmul.f32 %v1061, %v115
  %v1070 = vmul.f32 %v1064, %v115
  %v1071 = vmul.f32 %v1067, %v115
  %v1072 = vsub.f32 %v1052, %v1068
  %v1073 = vsub.f32 %v1053, %v1069
  %v1074 = vsub.f32 %v1054, %v1070
  %v1075 = vsub.f32 %v1055, %v1071
  %v1076 = vmul.f32 %v1072, %v1072
  %v1077 = vmul.f32 %v1073, %v1073
  %v1078 = vmul.f32 %v1074, %v1074
  %v1079 = vmul.f32 %v1075, %v1075
  %v1080 = vsel %vm102, %v1076, 0.0
  %1081 = vadd.xlane.f32.xlu0 %v1080
  %v1082 = vpop.xlane.xlu0 %1081
  %v1083 = vsel %vm102, %v1077, 0.0
  %1084 = vadd.xlane.f32.xlu0 %v1083
  %v1085 = vpop.xlane.xlu0 %1084
  %v1086 = vsel %vm102, %v1078, 0.0
  %1087 = vadd.xlane.f32.xlu0 %v1086
  %v1088 = vpop.xlane.xlu0 %1087
  %v1089 = vsel %vm102, %v1079, 0.0
  %1090 = vadd.xlane.f32.xlu0 %v1089
  %v1091 = vpop.xlane.xlu0 %1090
  %v1092 = vmul.f32 %v1082, %v115
  %v1093 = vmul.f32 %v1085, %v115
  %v1094 = vmul.f32 %v1088, %v115
  %v1095 = vmul.f32 %v1091, %v115
  %v1096 = vadd.f32 %v1092, 1e-06
  %v1097 = vadd.f32 %v1093, 1e-06
  %v1098 = vadd.f32 %v1094, 1e-06
  %v1099 = vadd.f32 %v1095, 1e-06
  %v1100 = vrsqrt.pop %v1096
  %v1101 = vrsqrt.pop %v1097
  %v1102 = vrsqrt.pop %v1098
  %v1103 = vrsqrt.pop %v1099
  %v1104 = vmul.f32 %v1072, %v1100
  %v1105 = vmul.f32 %v1073, %v1101
  %v1106 = vmul.f32 %v1074, %v1102
  %v1107 = vmul.f32 %v1075, %v1103
  %v1108 = vlaneseq
  %v1109 = vshrl.u32 %v1108, 7
  %v1110 = vsub.s32 0, %v1109
  %v1111 = vrot.slane %v90, %v1110
  %v1112 = vmul.f32 %v1104, %v1111
  %v1113 = vmul.f32 %v1105, %v1111
  %v1114 = vmul.f32 %v1106, %v1111
  %v1115 = vmul.f32 %v1107, %v1111
  %v1116 = vlaneseq
  %v1117 = vshrl.u32 %v1116, 7
  %v1118 = vsub.s32 1, %v1117
  %v1119 = vrot.slane %v90, %v1118
  %v1120 = vadd.f32 %v1112, %v1119
  %v1121 = vadd.f32 %v1113, %v1119
  %v1122 = vadd.f32 %v1114, %v1119
  %v1123 = vadd.f32 %v1115, %v1119
  %v1125 = vsel %vm102, %v53, 0
  %v1128 = vsel %vm102, %v54, 0
  %v1131 = vsel %vm102, %v55, 0
  %v1134 = vsel %vm102, %v56, 0
  %v1137 = vsel %vm102, %v57, 0
  %v1140 = vsel %vm102, %v58, 0
  %v1143 = vsel %vm102, %v59, 0
  %v1146 = vsel %vm102, %v60, 0
  %v1149 = vsel %vm102, %v61, 0
  %v1152 = vsel %vm102, %v62, 0
  %v1155 = vsel %vm102, %v63, 0
  %v1158 = vsel %vm102, %v64, 0
  %v1161 = vsel %vm102, %v65, 0
  %v1164 = vsel %vm102, %v66, 0
  %v1167 = vsel %vm102, %v67, 0
  %v1170 = vsel %vm102, %v68, 0
  %v1173 = vsel %vm102, %v69, 0
  %v1176 = vsel %vm102, %v70, 0
  %v1179 = vsel %vm102, %v71, 0
  %v1182 = vsel %vm102, %v72, 0
  %v1185 = vsel %vm102, %v73, 0
  %v1188 = vsel %vm102, %v74, 0
  %v1191 = vsel %vm102, %v75, 0
  %v1194 = vsel %vm102, %v76, 0
  %v1197 = vsel %vm102, %v77, 0
  %v1200 = vsel %vm102, %v78, 0
  %v1203 = vsel %vm102, %v79, 0
  %v1206 = vsel %vm102, %v80, 0
  %v1209 = vsel %vm102, %v81, 0
  %v1212 = vsel %vm102, %v82, 0
  %v1215 = vsel %vm102, %v83, 0
  %v1218 = vsel %vm102, %v84, 0
  %v1221 = vsel %vm102, %v85, 0
  %v1224 = vsel %vm102, %v86, 0
  %v1227 = vsel %vm102, %v87, 0
  %v1230 = vsel %vm102, %v88, 0
  %1232 = vmatprep.subr.mxu0 0.0
  %1233 = vmatpush1.msra.mxu0 %v1120
  %1234 = vmatprep.subr.mxu0 0.0
  %1235 = vmatpush1.msra.mxu0 %v1121
  %1236 = vmatprep.subr.mxu0 0.0
  %1237 = vmatpush1.msra.mxu0 %v1122
  %1238 = vmatprep.subr.mxu0 0.0
  %1239 = vmatpush1.msra.mxu0 %v1123
  %1240 = vmatprep.subr.mxu0 0.0
  %1241 = vmatpush1.msra.mxu0 0.0
  %1242 = vmatprep.subr.mxu0 0.0
  %1243 = vmatpush1.msra.mxu0 0.0
  %1244 = vmatprep.subr.mxu0 0.0
  %1245 = vmatpush1.msra.mxu0 0.0
  %1246 = vmatprep.subr.mxu0 0.0
  %1247 = vmatpush1.msra.mxu0 0.0
  %1248 = vmatprep.subr.mxu0 0.0
  %1249 = vmatpush1.msra.mxu0 0.0
  %1250 = vmatprep.subr.mxu0 0.0
  %1251 = vmatpush1.msra.mxu0 0.0
  %1252 = vmatprep.subr.mxu0 0.0
  %1253 = vmatpush1.msra.mxu0 0.0
  %1254 = vmatprep.subr.mxu0 0.0
  %1255 = vmatpush1.msra.mxu0 0.0
  %1256 = vmatprep.subr.mxu0 0.0
  %1257 = vmatpush1.msra.mxu0 0.0
  %1258 = vmatprep.subr.mxu0 0.0
  %1259 = vmatpush1.msra.mxu0 0.0
  %1260 = vmatprep.subr.mxu0 0.0
  %1261 = vmatpush1.msra.mxu0 0.0
  %1262 = vmatprep.subr.mxu0 0.0
  %1263 = vmatpush1.msra.mxu0 0.0
  %1264 = vmatprep.subr.mxu0 0.0
  %1265 = vmatpush1.msra.mxu0 0.0
  %1266 = vmatprep.subr.mxu0 0.0
  %1267 = vmatpush1.msra.mxu0 0.0
  %1268 = vmatprep.subr.mxu0 0.0
  %1269 = vmatpush1.msra.mxu0 0.0
  %1270 = vmatprep.subr.mxu0 0.0
  %1271 = vmatpush1.msra.mxu0 0.0
  %1272 = vmatprep.subr.mxu0 0.0
  %1273 = vmatpush1.msra.mxu0 0.0
  %1274 = vmatprep.subr.mxu0 0.0
  %1275 = vmatpush1.msra.mxu0 0.0
  %1276 = vmatprep.subr.mxu0 0.0
  %1277 = vmatpush1.msra.mxu0 0.0
  %1278 = vmatprep.subr.mxu0 0.0
  %1279 = vmatpush1.msra.mxu0 0.0
  %1280 = vmatprep.subr.mxu0 0.0
  %1281 = vmatpush1.msra.mxu0 0.0
  %1282 = vmatprep.subr.mxu0 0.0
  %1283 = vmatpush1.msra.mxu0 0.0
  %1284 = vmatprep.subr.mxu0 0.0
  %1285 = vmatpush1.msra.mxu0 0.0
  %1286 = vmatprep.subr.mxu0 0.0
  %1287 = vmatpush1.msra.mxu0 0.0
  %1288 = vmatprep.subr.mxu0 0.0
  %1289 = vmatpush1.msra.mxu0 0.0
  %1290 = vmatprep.subr.mxu0 0.0
  %1291 = vmatpush1.msra.mxu0 0.0
  %1292 = vmatprep.subr.mxu0 0.0
  %1293 = vmatpush1.msra.mxu0 0.0
  %1294 = vmatprep.subr.mxu0 0.0
  %1295 = vmatpush1.msra.mxu0 0.0
  %1296 = vmatprep.mubr.f32.mxu0 0.0
  %1297 = vmatmul.mubr.f32.gmra.mrb[0].mxu0 %v1125
  %v1298 = vpop.f32.mrb[0].mxu0
  %v1299 = vadd.f32 0.0, %v1298
  %v1300 = vpop.f32.mrb[0].mxu0
  %1301 = vmatprep.mubr.f32.mxu0 0.0
  %1302 = vmatmul.mubr.f32.gmra.mrb[0].mxu0 %v1128
  %v1303 = vpop.f32.mrb[0].mxu0
  %v1304 = vadd.f32 0.0, %v1303
  %v1305 = vpop.f32.mrb[0].mxu0
  %1306 = vmatprep.mubr.f32.mxu0 0.0
  %1307 = vmatmul.mubr.f32.gmra.mrb[0].mxu0 %v1131
  %v1308 = vpop.f32.mrb[0].mxu0
  %v1309 = vadd.f32 0.0, %v1308
  %v1310 = vpop.f32.mrb[0].mxu0
  %1311 = vmatprep.mubr.f32.mxu0 0.0
  %1312 = vmatmul.mubr.f32.gmra.mrb[0].mxu0 %v1134
  %v1313 = vpop.f32.mrb[0].mxu0
  %v1314 = vadd.f32 0.0, %v1313
  %v1315 = vpop.f32.mrb[0].mxu0
  %1316 = vmatprep.mubr.f32.mxu0 0.0
  %1317 = vmatmul.mubr.f32.gmra.mrb[0].mxu0 %v1137
  %v1318 = vpop.f32.mrb[0].mxu0
  %v1319 = vadd.f32 0.0, %v1318
  %v1320 = vpop.f32.mrb[0].mxu0
  %1321 = vmatprep.mubr.f32.mxu0 0.0
  %1322 = vmatmul.mubr.f32.gmra.mrb[0].mxu0 %v1140
  %v1323 = vpop.f32.mrb[0].mxu0
  %v1324 = vadd.f32 0.0, %v1323
  %v1325 = vpop.f32.mrb[0].mxu0
  %1326 = vmatprep.mubr.f32.mxu0 0.0
  %1327 = vmatmul.mubr.f32.gmra.mrb[0].mxu0 %v1143
  %v1328 = vpop.f32.mrb[0].mxu0
  %v1329 = vadd.f32 0.0, %v1328
  %v1330 = vpop.f32.mrb[0].mxu0
  %1331 = vmatprep.mubr.f32.mxu0 0.0
  %1332 = vmatmul.mubr.f32.gmra.mrb[0].mxu0 %v1146
  %v1333 = vpop.f32.mrb[0].mxu0
  %v1334 = vadd.f32 0.0, %v1333
  %v1335 = vpop.f32.mrb[0].mxu0
  %1336 = vmatprep.mubr.f32.mxu0 0.0
  %1337 = vmatmul.mubr.f32.gmra.mrb[0].mxu0 %v1149
  %v1338 = vpop.f32.mrb[0].mxu0
  %v1339 = vadd.f32 0.0, %v1338
  %v1340 = vpop.f32.mrb[0].mxu0
  %1341 = vmatprep.mubr.f32.mxu0 0.0
  %1342 = vmatmul.mubr.f32.gmra.mrb[0].mxu0 %v1152
  %v1343 = vpop.f32.mrb[0].mxu0
  %v1344 = vadd.f32 0.0, %v1343
  %v1345 = vpop.f32.mrb[0].mxu0
  %1346 = vmatprep.mubr.f32.mxu0 0.0
  %1347 = vmatmul.mubr.f32.gmra.mrb[0].mxu0 %v1155
  %v1348 = vpop.f32.mrb[0].mxu0
  %v1349 = vadd.f32 0.0, %v1348
  %v1350 = vpop.f32.mrb[0].mxu0
  %1351 = vmatprep.mubr.f32.mxu0 0.0
  %1352 = vmatmul.mubr.f32.gmra.mrb[0].mxu0 %v1158
  %v1353 = vpop.f32.mrb[0].mxu0
  %v1354 = vadd.f32 0.0, %v1353
  %v1355 = vpop.f32.mrb[0].mxu0
  %1356 = vmatprep.mubr.f32.mxu0 0.0
  %1357 = vmatmul.mubr.f32.gmra.mrb[0].mxu0 %v1161
  %v1358 = vpop.f32.mrb[0].mxu0
  %v1359 = vadd.f32 0.0, %v1358
  %v1360 = vpop.f32.mrb[0].mxu0
  %1361 = vmatprep.mubr.f32.mxu0 0.0
  %1362 = vmatmul.mubr.f32.gmra.mrb[0].mxu0 %v1164
  %v1363 = vpop.f32.mrb[0].mxu0
  %v1364 = vadd.f32 0.0, %v1363
  %v1365 = vpop.f32.mrb[0].mxu0
  %1366 = vmatprep.mubr.f32.mxu0 0.0
  %1367 = vmatmul.mubr.f32.gmra.mrb[0].mxu0 %v1167
  %v1368 = vpop.f32.mrb[0].mxu0
  %v1369 = vadd.f32 0.0, %v1368
  %v1370 = vpop.f32.mrb[0].mxu0
  %1371 = vmatprep.mubr.f32.mxu0 0.0
  %1372 = vmatmul.mubr.f32.gmra.mrb[0].mxu0 %v1170
  %v1373 = vpop.f32.mrb[0].mxu0
  %v1374 = vadd.f32 0.0, %v1373
  %v1375 = vpop.f32.mrb[0].mxu0
  %1376 = vmatprep.mubr.f32.mxu0 0.0
  %1377 = vmatmul.mubr.f32.gmra.mrb[0].mxu0 %v1173
  %v1378 = vpop.f32.mrb[0].mxu0
  %v1379 = vadd.f32 0.0, %v1378
  %v1380 = vpop.f32.mrb[0].mxu0
  %1381 = vmatprep.mubr.f32.mxu0 0.0
  %1382 = vmatmul.mubr.f32.gmra.mrb[0].mxu0 %v1176
  %v1383 = vpop.f32.mrb[0].mxu0
  %v1384 = vadd.f32 0.0, %v1383
  %v1385 = vpop.f32.mrb[0].mxu0
  %1386 = vmatprep.mubr.f32.mxu0 0.0
  %1387 = vmatmul.mubr.f32.gmra.mrb[0].mxu0 %v1179
  %v1388 = vpop.f32.mrb[0].mxu0
  %v1389 = vadd.f32 0.0, %v1388
  %v1390 = vpop.f32.mrb[0].mxu0
  %1391 = vmatprep.mubr.f32.mxu0 0.0
  %1392 = vmatmul.mubr.f32.gmra.mrb[0].mxu0 %v1182
  %v1393 = vpop.f32.mrb[0].mxu0
  %v1394 = vadd.f32 0.0, %v1393
  %v1395 = vpop.f32.mrb[0].mxu0
  %1396 = vmatprep.mubr.f32.mxu0 0.0
  %1397 = vmatmul.mubr.f32.gmra.mrb[0].mxu0 %v1185
  %v1398 = vpop.f32.mrb[0].mxu0
  %v1399 = vadd.f32 0.0, %v1398
  %v1400 = vpop.f32.mrb[0].mxu0
  %1401 = vmatprep.mubr.f32.mxu0 0.0
  %1402 = vmatmul.mubr.f32.gmra.mrb[0].mxu0 %v1188
  %v1403 = vpop.f32.mrb[0].mxu0
  %v1404 = vadd.f32 0.0, %v1403
  %v1405 = vpop.f32.mrb[0].mxu0
  %1406 = vmatprep.mubr.f32.mxu0 0.0
  %1407 = vmatmul.mubr.f32.gmra.mrb[0].mxu0 %v1191
  %v1408 = vpop.f32.mrb[0].mxu0
  %v1409 = vadd.f32 0.0, %v1408
  %v1410 = vpop.f32.mrb[0].mxu0
  %1411 = vmatprep.mubr.f32.mxu0 0.0
  %1412 = vmatmul.mubr.f32.gmra.mrb[0].mxu0 %v1194
  %v1413 = vpop.f32.mrb[0].mxu0
  %v1414 = vadd.f32 0.0, %v1413
  %v1415 = vpop.f32.mrb[0].mxu0
  %1416 = vmatprep.mubr.f32.mxu0 0.0
  %1417 = vmatmul.mubr.f32.gmra.mrb[0].mxu0 %v1197
  %v1418 = vpop.f32.mrb[0].mxu0
  %v1419 = vadd.f32 0.0, %v1418
  %v1420 = vpop.f32.mrb[0].mxu0
  %1421 = vmatprep.mubr.f32.mxu0 0.0
  %1422 = vmatmul.mubr.f32.gmra.mrb[0].mxu0 %v1200
  %v1423 = vpop.f32.mrb[0].mxu0
  %v1424 = vadd.f32 0.0, %v1423
  %v1425 = vpop.f32.mrb[0].mxu0
  %1426 = vmatprep.mubr.f32.mxu0 0.0
  %1427 = vmatmul.mubr.f32.gmra.mrb[0].mxu0 %v1203
  %v1428 = vpop.f32.mrb[0].mxu0
  %v1429 = vadd.f32 0.0, %v1428
  %v1430 = vpop.f32.mrb[0].mxu0
  %1431 = vmatprep.mubr.f32.mxu0 0.0
  %1432 = vmatmul.mubr.f32.gmra.mrb[0].mxu0 %v1206
  %v1433 = vpop.f32.mrb[0].mxu0
  %v1434 = vadd.f32 0.0, %v1433
  %v1435 = vpop.f32.mrb[0].mxu0
  %1436 = vmatprep.mubr.f32.mxu0 0.0
  %1437 = vmatmul.mubr.f32.gmra.mrb[0].mxu0 %v1209
  %v1438 = vpop.f32.mrb[0].mxu0
  %v1439 = vadd.f32 0.0, %v1438
  %v1440 = vpop.f32.mrb[0].mxu0
  %1441 = vmatprep.mubr.f32.mxu0 0.0
  %1442 = vmatmul.mubr.f32.gmra.mrb[0].mxu0 %v1212
  %v1443 = vpop.f32.mrb[0].mxu0
  %v1444 = vadd.f32 0.0, %v1443
  %v1445 = vpop.f32.mrb[0].mxu0
  %1446 = vmatprep.mubr.f32.mxu0 0.0
  %1447 = vmatmul.mubr.f32.gmra.mrb[0].mxu0 %v1215
  %v1448 = vpop.f32.mrb[0].mxu0
  %v1449 = vadd.f32 0.0, %v1448
  %v1450 = vpop.f32.mrb[0].mxu0
  %1451 = vmatprep.mubr.f32.mxu0 0.0
  %1452 = vmatmul.mubr.f32.gmra.mrb[0].mxu0 %v1218
  %v1453 = vpop.f32.mrb[0].mxu0
  %v1454 = vadd.f32 0.0, %v1453
  %v1455 = vpop.f32.mrb[0].mxu0
  %1456 = vmatprep.mubr.f32.mxu0 0.0
  %1457 = vmatmul.mubr.f32.gmra.mrb[0].mxu0 %v1221
  %v1458 = vpop.f32.mrb[0].mxu0
  %v1459 = vadd.f32 0.0, %v1458
  %v1460 = vpop.f32.mrb[0].mxu0
  %1461 = vmatprep.mubr.f32.mxu0 0.0
  %1462 = vmatmul.mubr.f32.gmra.mrb[0].mxu0 %v1224
  %v1463 = vpop.f32.mrb[0].mxu0
  %v1464 = vadd.f32 0.0, %v1463
  %v1465 = vpop.f32.mrb[0].mxu0
  %1466 = vmatprep.mubr.f32.mxu0 0.0
  %1467 = vmatmul.mubr.f32.gmra.mrb[0].mxu0 %v1227
  %v1468 = vpop.f32.mrb[0].mxu0
  %v1469 = vadd.f32 0.0, %v1468
  %v1470 = vpop.f32.mrb[0].mxu0
  %1471 = vmatprep.mubr.f32.mxu0 0.0
  %1472 = vmatmul.mubr.f32.gmra.mrb[0].mxu0 %v1230
  %v1473 = vpop.f32.mrb[0].mxu0
  %v1474 = vadd.f32 0.0, %v1473
  %v1475 = vpop.f32.mrb[0].mxu0
  %1476 = vdwg.mxu0
  %v1479 = vcombine.high %v91, %v91
  %v1481 = vunpack.c.l.s4 1966171168
  %v1482 = vunpack.c.0.s8 %v1481
  %v1483 = vlaneseq
  %v1484 = vshrl.u32 %v1483, 7
  %v1485 = vsub.s32 %v1482, %v1484
  %v1486 = vrot.slane %v91, %v1485
  %v1488 = vunpack.c.l.s4 1966171168
  %v1489 = vunpack.c.0.s8 %v1488
  %v1490 = vlaneseq
  %v1491 = vshrl.u32 %v1490, 7
  %v1492 = vsub.s32 %v1489, %v1491
  %v1493 = vrot.slane %v1479, %v1492
  %v1494 = vcombine.high %v1486, %v1486
  %v1495 = vcombine.high %v1493, %v1493
  %v1497 = vunpack.c.l.s4 1966171168
  %v1498 = vunpack.c.0.s8 %v1497
  %v1499 = vlaneseq
  %v1500 = vshrl.u32 %v1499, 7
  %v1501 = vsub.s32 %v1498, %v1500
  %v1502 = vrot.slane %v1493, %v1501
  %v1504 = vunpack.c.l.s4 1966171168
  %v1505 = vunpack.c.0.s8 %v1504
  %v1506 = vlaneseq
  %v1507 = vshrl.u32 %v1506, 7
  %v1508 = vsub.s32 %v1505, %v1507
  %v1509 = vrot.slane %v1494, %v1508
  %v1511 = vunpack.c.l.s4 1966171168
  %v1512 = vunpack.c.0.s8 %v1511
  %v1513 = vlaneseq
  %v1514 = vshrl.u32 %v1513, 7
  %v1515 = vsub.s32 %v1512, %v1514
  %v1516 = vrot.slane %v1495, %v1515
  %v1517 = vcombine.high %v1502, %v1502
  %v1518 = vcombine.high %v1509, %v1509
  %v1519 = vcombine.high %v1516, %v1516
  %v1521 = vunpack.c.l.s4 1966171168
  %v1522 = vunpack.c.0.s8 %v1521
  %v1523 = vlaneseq
  %v1524 = vshrl.u32 %v1523, 7
  %v1525 = vsub.s32 %v1522, %v1524
  %v1526 = vrot.slane %v92, %v1525
  %v1527 = vcombine.high %v1526, %v1526
  %v1529 = vunpack.c.l.s4 1966171168
  %v1530 = vunpack.c.0.s8 %v1529
  %v1531 = vlaneseq
  %v1532 = vshrl.u32 %v1531, 7
  %v1533 = vsub.s32 %v1530, %v1532
  %v1534 = vrot.slane %v1526, %v1533
  %v1536 = vunpack.c.l.s4 1966171168
  %v1537 = vunpack.c.0.s8 %v1536
  %v1538 = vlaneseq
  %v1539 = vshrl.u32 %v1538, 7
  %v1540 = vsub.s32 %v1537, %v1539
  %v1541 = vrot.slane %v1527, %v1540
  %v1542 = vcombine.high %v1534, %v1534
  %v1543 = vcombine.high %v1541, %v1541
  %v1544 = vlaneseq
  %v1545 = vshrl.u32 %v1544, 7
  %v1546 = vsub.s32 0, %v1545
  %v1547 = vrot.slane %v1518, %v1546
  %v1548 = vlaneseq
  %v1549 = vshrl.u32 %v1548, 7
  %v1550 = vsub.s32 0, %v1549
  %v1551 = vrot.slane %v1502, %v1550
  %v1552 = vlaneseq
  %v1553 = vshrl.u32 %v1552, 7
  %v1554 = vsub.s32 0, %v1553
  %v1555 = vrot.slane %v1516, %v1554
  %v1556 = vlaneseq
  %v1557 = vshrl.u32 %v1556, 7
  %v1558 = vsub.s32 0, %v1557
  %v1559 = vrot.slane %v1517, %v1558
  %v1560 = vlaneseq
  %v1561 = vshrl.u32 %v1560, 7
  %v1562 = vsub.s32 0, %v1561
  %v1563 = vrot.slane %v1519, %v1562
  %v1564 = vlaneseq
  %v1565 = vshrl.u32 %v1564, 7
  %v1566 = vsub.s32 0, %v1565
  %v1567 = vrot.slane %v1534, %v1566
  %v1568 = vlaneseq
  %v1569 = vshrl.u32 %v1568, 7
  %v1570 = vsub.s32 0, %v1569
  %v1571 = vrot.slane %v1541, %v1570
  %v1572 = vlaneseq
  %v1573 = vshrl.u32 %v1572, 7
  %v1574 = vsub.s32 0, %v1573
  %v1575 = vrot.slane %v1542, %v1574
  %v1576 = vlaneseq
  %v1577 = vshrl.u32 %v1576, 7
  %v1578 = vsub.s32 0, %v1577
  %v1579 = vrot.slane %v1543, %v1578
  %v1589 = vmul.f32 %v1299, %v1547
  %v1590 = vmul.f32 %v1304, %v1547
  %v1591 = vmul.f32 %v1309, %v1547
  %v1592 = vmul.f32 %v1314, %v1547
  %v1593 = vmul.f32 %v1319, %v1551
  %v1594 = vmul.f32 %v1324, %v1551
  %v1595 = vmul.f32 %v1329, %v1551
  %v1596 = vmul.f32 %v1334, %v1551
  %v1597 = vmul.f32 %v1339, %v1555
  %v1598 = vmul.f32 %v1344, %v1555
  %v1599 = vmul.f32 %v1349, %v1555
  %v1600 = vmul.f32 %v1354, %v1555
  %v1601 = vmul.f32 %v1359, %v1559
  %v1602 = vmul.f32 %v1364, %v1559
  %v1603 = vmul.f32 %v1369, %v1559
  %v1604 = vmul.f32 %v1374, %v1559
  %v1605 = vmul.f32 %v1379, %v1563
  %v1606 = vmul.f32 %v1384, %v1563
  %v1607 = vmul.f32 %v1389, %v1563
  %v1608 = vmul.f32 %v1394, %v1563
  %v1609 = vmul.f32 %v1399, %v1567
  %v1610 = vmul.f32 %v1404, %v1567
  %v1611 = vmul.f32 %v1409, %v1567
  %v1612 = vmul.f32 %v1414, %v1567
  %v1613 = vmul.f32 %v1419, %v1571
  %v1614 = vmul.f32 %v1424, %v1571
  %v1615 = vmul.f32 %v1429, %v1571
  %v1616 = vmul.f32 %v1434, %v1571
  %v1617 = vmul.f32 %v1439, %v1575
  %v1618 = vmul.f32 %v1444, %v1575
  %v1619 = vmul.f32 %v1449, %v1575
  %v1620 = vmul.f32 %v1454, %v1575
  %v1621 = vmul.f32 %v1459, %v1579
  %v1622 = vmul.f32 %v1464, %v1579
  %v1623 = vmul.f32 %v1469, %v1579
  %v1624 = vmul.f32 %v1474, %v1579
  %v1625 = vsel %vm102, %v1589, 0.0
  %v1626 = vsel %vm102, %v1593, 0.0
  %v1627 = vadd.f32 %v1625, %v1626
  %v1628 = vsel %vm102, %v1597, 0.0
  %v1629 = vadd.f32 %v1627, %v1628
  %v1630 = vsel %vm102, %v1601, 0.0
  %v1631 = vadd.f32 %v1629, %v1630
  %v1632 = vsel %vm102, %v1605, 0.0
  %v1633 = vadd.f32 %v1631, %v1632
  %v1634 = vsel %vm102, %v1609, 0.0
  %v1635 = vadd.f32 %v1633, %v1634
  %v1636 = vsel %vm102, %v1613, 0.0
  %v1637 = vadd.f32 %v1635, %v1636
  %v1638 = vsel %vm102, %v1617, 0.0
  %v1639 = vadd.f32 %v1637, %v1638
  %v1640 = vsel %vm102, %v1621, 0.0
  %v1641 = vadd.f32 %v1639, %v1640
  %v1642 = vsel %vm102, %v1590, 0.0
  %v1643 = vsel %vm102, %v1594, 0.0
  %v1644 = vadd.f32 %v1642, %v1643
  %v1645 = vsel %vm102, %v1598, 0.0
  %v1646 = vadd.f32 %v1644, %v1645
  %v1647 = vsel %vm102, %v1602, 0.0
  %v1648 = vadd.f32 %v1646, %v1647
  %v1649 = vsel %vm102, %v1606, 0.0
  %v1650 = vadd.f32 %v1648, %v1649
  %v1651 = vsel %vm102, %v1610, 0.0
  %v1652 = vadd.f32 %v1650, %v1651
  %v1653 = vsel %vm102, %v1614, 0.0
  %v1654 = vadd.f32 %v1652, %v1653
  %v1655 = vsel %vm102, %v1618, 0.0
  %v1656 = vadd.f32 %v1654, %v1655
  %v1657 = vsel %vm102, %v1622, 0.0
  %v1658 = vadd.f32 %v1656, %v1657
  %v1659 = vsel %vm102, %v1591, 0.0
  %v1660 = vsel %vm102, %v1595, 0.0
  %v1661 = vadd.f32 %v1659, %v1660
  %v1662 = vsel %vm102, %v1599, 0.0
  %v1663 = vadd.f32 %v1661, %v1662
  %v1664 = vsel %vm102, %v1603, 0.0
  %v1665 = vadd.f32 %v1663, %v1664
  %v1666 = vsel %vm102, %v1607, 0.0
  %v1667 = vadd.f32 %v1665, %v1666
  %v1668 = vsel %vm102, %v1611, 0.0
  %v1669 = vadd.f32 %v1667, %v1668
  %v1670 = vsel %vm102, %v1615, 0.0
  %v1671 = vadd.f32 %v1669, %v1670
  %v1672 = vsel %vm102, %v1619, 0.0
  %v1673 = vadd.f32 %v1671, %v1672
  %v1674 = vsel %vm102, %v1623, 0.0
  %v1675 = vadd.f32 %v1673, %v1674
  %v1676 = vsel %vm102, %v1592, 0.0
  %v1677 = vsel %vm102, %v1596, 0.0
  %v1678 = vadd.f32 %v1676, %v1677
  %v1679 = vsel %vm102, %v1600, 0.0
  %v1680 = vadd.f32 %v1678, %v1679
  %v1681 = vsel %vm102, %v1604, 0.0
  %v1682 = vadd.f32 %v1680, %v1681
  %v1683 = vsel %vm102, %v1608, 0.0
  %v1684 = vadd.f32 %v1682, %v1683
  %v1685 = vsel %vm102, %v1612, 0.0
  %v1686 = vadd.f32 %v1684, %v1685
  %v1687 = vsel %vm102, %v1616, 0.0
  %v1688 = vadd.f32 %v1686, %v1687
  %v1689 = vsel %vm102, %v1620, 0.0
  %v1690 = vadd.f32 %v1688, %v1689
  %v1691 = vsel %vm102, %v1624, 0.0
  %v1692 = vadd.f32 %v1690, %v1691
  %v1693 = vlaneseq
  %v1694 = vshrl.u32 %v1693, 7
  %v1695 = vsub.s32 2, %v1694
  %v1696 = vrot.slane %v90, %v1695
  %v1697 = vadd.f32 %v1641, %v1696
  %v1698 = vadd.f32 %v1658, %v1696
  %v1699 = vadd.f32 %v1675, %v1696
  %v1700 = vadd.f32 %v1692, %v1696
  %v1701 = vmul.f32 %v1697, 0.5
  %v1702 = vmul.f32 %v1698, 0.5
  %v1703 = vmul.f32 %v1699, 0.5
  %v1704 = vmul.f32 %v1700, 0.5
  %v1705 = vmul.f32 %v1697, 0.044715
  %v1706 = vmul.f32 %v1698, 0.044715
  %v1707 = vmul.f32 %v1699, 0.044715
  %v1708 = vmul.f32 %v1700, 0.044715
  %v1709 = vmul.f32 %v1705, %v1697
  %v1710 = vmul.f32 %v1706, %v1698
  %v1711 = vmul.f32 %v1707, %v1699
  %v1712 = vmul.f32 %v1708, %v1700
  %v1713 = vmul.f32 %v1709, %v1697
  %v1714 = vmul.f32 %v1710, %v1698
  %v1715 = vmul.f32 %v1711, %v1699
  %v1716 = vmul.f32 %v1712, %v1700
  %v1717 = vadd.f32 %v1697, %v1713
  %v1718 = vadd.f32 %v1698, %v1714
  %v1719 = vadd.f32 %v1699, %v1715
  %v1720 = vadd.f32 %v1700, %v1716
  %v1721 = vmul.f32 %v1717, 0.7978846
  %v1722 = vmul.f32 %v1718, 0.7978846
  %v1723 = vmul.f32 %v1719, 0.7978846
  %v1724 = vmul.f32 %v1720, 0.7978846
  %v1725 = vtanh.pop %v1721
  %v1726 = vtanh.pop %v1722
  %v1727 = vtanh.pop %v1723
  %v1728 = vtanh.pop %v1724
  %v1729 = vadd.f32 %v1725, 1.0
  %v1730 = vadd.f32 %v1726, 1.0
  %v1731 = vadd.f32 %v1727, 1.0
  %v1732 = vadd.f32 %v1728, 1.0
  %v1733 = vmul.f32 %v1701, %v1729
  %v1734 = vmul.f32 %v1702, %v1730
  %v1735 = vmul.f32 %v1703, %v1731
  %v1736 = vmul.f32 %v1704, %v1732
  %v1737 = vlaneseq
  %v1738 = vshrl.u32 %v1737, 7
  %v1739 = vsub.s32 3, %v1738
  %v1740 = vrot.slane %v90, %v1739
  %v1741 = vmul.f32 %v1733, %v1740
  %v1742 = vmul.f32 %v1734, %v1740
  %v1743 = vmul.f32 %v1735, %v1740
  %v1744 = vmul.f32 %v1736, %v1740
  %v1745 = vlaneseq
  %v1746 = vshrl.u32 %v1745, 7
  %v1747 = vsub.s32 4, %v1746
  %v1748 = vrot.slane %v90, %v1747
  %v1749 = vadd.f32 %v1741, %v1748
  %v1750 = vadd.f32 %v1742, %v1748
  %v1751 = vadd.f32 %v1743, %v1748
  %v1752 = vadd.f32 %v1744, %v1748
  %1753 = vmatprep.subr.mxu0 0.0
  %1754 = vmatpush1.msra.mxu0 %v1749
  %1755 = vmatprep.subr.mxu0 0.0
  %1756 = vmatpush1.msra.mxu0 %v1750
  %1757 = vmatprep.subr.mxu0 0.0
  %1758 = vmatpush1.msra.mxu0 %v1751
  %1759 = vmatprep.subr.mxu0 0.0
  %1760 = vmatpush1.msra.mxu0 %v1752
  %1761 = vmatprep.subr.mxu0 0.0
  %1762 = vmatpush1.msra.mxu0 0.0
  %1763 = vmatprep.subr.mxu0 0.0
  %1764 = vmatpush1.msra.mxu0 0.0
  %1765 = vmatprep.subr.mxu0 0.0
  %1766 = vmatpush1.msra.mxu0 0.0
  %1767 = vmatprep.subr.mxu0 0.0
  %1768 = vmatpush1.msra.mxu0 0.0
  %1769 = vmatprep.subr.mxu0 0.0
  %1770 = vmatpush1.msra.mxu0 0.0
  %1771 = vmatprep.subr.mxu0 0.0
  %1772 = vmatpush1.msra.mxu0 0.0
  %1773 = vmatprep.subr.mxu0 0.0
  %1774 = vmatpush1.msra.mxu0 0.0
  %1775 = vmatprep.subr.mxu0 0.0
  %1776 = vmatpush1.msra.mxu0 0.0
  %1777 = vmatprep.subr.mxu0 0.0
  %1778 = vmatpush1.msra.mxu0 0.0
  %1779 = vmatprep.subr.mxu0 0.0
  %1780 = vmatpush1.msra.mxu0 0.0
  %1781 = vmatprep.subr.mxu0 0.0
  %1782 = vmatpush1.msra.mxu0 0.0
  %1783 = vmatprep.subr.mxu0 0.0
  %1784 = vmatpush1.msra.mxu0 0.0
  %1785 = vmatprep.subr.mxu0 0.0
  %1786 = vmatpush1.msra.mxu0 0.0
  %1787 = vmatprep.subr.mxu0 0.0
  %1788 = vmatpush1.msra.mxu0 0.0
  %1789 = vmatprep.subr.mxu0 0.0
  %1790 = vmatpush1.msra.mxu0 0.0
  %1791 = vmatprep.subr.mxu0 0.0
  %1792 = vmatpush1.msra.mxu0 0.0
  %1793 = vmatprep.subr.mxu0 0.0
  %1794 = vmatpush1.msra.mxu0 0.0
  %1795 = vmatprep.subr.mxu0 0.0
  %1796 = vmatpush1.msra.mxu0 0.0
  %1797 = vmatprep.subr.mxu0 0.0
  %1798 = vmatpush1.msra.mxu0 0.0
  %1799 = vmatprep.subr.mxu0 0.0
  %1800 = vmatpush1.msra.mxu0 0.0
  %1801 = vmatprep.subr.mxu0 0.0
  %1802 = vmatpush1.msra.mxu0 0.0
  %1803 = vmatprep.subr.mxu0 0.0
  %1804 = vmatpush1.msra.mxu0 0.0
  %1805 = vmatprep.subr.mxu0 0.0
  %1806 = vmatpush1.msra.mxu0 0.0
  %1807 = vmatprep.subr.mxu0 0.0
  %1808 = vmatpush1.msra.mxu0 0.0
  %1809 = vmatprep.subr.mxu0 0.0
  %1810 = vmatpush1.msra.mxu0 0.0
  %1811 = vmatprep.subr.mxu0 0.0
  %1812 = vmatpush1.msra.mxu0 0.0
  %1813 = vmatprep.subr.mxu0 0.0
  %1814 = vmatpush1.msra.mxu0 0.0
  %1815 = vmatprep.subr.mxu0 0.0
  %1816 = vmatpush1.msra.mxu0 0.0
  %1817 = vmatprep.mubr.f32.mxu0 0.0
  %1818 = vmatmul.mubr.f32.gmra.mrb[0].mxu0 %v1125
  %v1819 = vpop.f32.mrb[0].mxu0
  %v1820 = vadd.f32 0.0, %v1819
  %v1821 = vpop.f32.mrb[0].mxu0
  %1822 = vmatprep.mubr.f32.mxu0 0.0
  %1823 = vmatmul.mubr.f32.gmra.mrb[0].mxu0 %v1128
  %v1824 = vpop.f32.mrb[0].mxu0
  %v1825 = vadd.f32 0.0, %v1824
  %v1826 = vpop.f32.mrb[0].mxu0
  %1827 = vmatprep.mubr.f32.mxu0 0.0
  %1828 = vmatmul.mubr.f32.gmra.mrb[0].mxu0 %v1131
  %v1829 = vpop.f32.mrb[0].mxu0
  %v1830 = vadd.f32 0.0, %v1829
  %v1831 = vpop.f32.mrb[0].mxu0
  %1832 = vmatprep.mubr.f32.mxu0 0.0
  %1833 = vmatmul.mubr.f32.gmra.mrb[0].mxu0 %v1134
  %v1834 = vpop.f32.mrb[0].mxu0
  %v1835 = vadd.f32 0.0, %v1834
  %v1836 = vpop.f32.mrb[0].mxu0
  %1837 = vmatprep.mubr.f32.mxu0 0.0
  %1838 = vmatmul.mubr.f32.gmra.mrb[0].mxu0 %v1137
  %v1839 = vpop.f32.mrb[0].mxu0
  %v1840 = vadd.f32 0.0, %v1839
  %v1841 = vpop.f32.mrb[0].mxu0
  %1842 = vmatprep.mubr.f32.mxu0 0.0
  %1843 = vmatmul.mubr.f32.gmra.mrb[0].mxu0 %v1140
  %v1844 = vpop.f32.mrb[0].mxu0
  %v1845 = vadd.f32 0.0, %v1844
  %v1846 = vpop.f32.mrb[0].mxu0
  %1847 = vmatprep.mubr.f32.mxu0 0.0
  %1848 = vmatmul.mubr.f32.gmra.mrb[0].mxu0 %v1143
  %v1849 = vpop.f32.mrb[0].mxu0
  %v1850 = vadd.f32 0.0, %v1849
  %v1851 = vpop.f32.mrb[0].mxu0
  %1852 = vmatprep.mubr.f32.mxu0 0.0
  %1853 = vmatmul.mubr.f32.gmra.mrb[0].mxu0 %v1146
  %v1854 = vpop.f32.mrb[0].mxu0
  %v1855 = vadd.f32 0.0, %v1854
  %v1856 = vpop.f32.mrb[0].mxu0
  %1857 = vmatprep.mubr.f32.mxu0 0.0
  %1858 = vmatmul.mubr.f32.gmra.mrb[0].mxu0 %v1149
  %v1859 = vpop.f32.mrb[0].mxu0
  %v1860 = vadd.f32 0.0, %v1859
  %v1861 = vpop.f32.mrb[0].mxu0
  %1862 = vmatprep.mubr.f32.mxu0 0.0
  %1863 = vmatmul.mubr.f32.gmra.mrb[0].mxu0 %v1152
  %v1864 = vpop.f32.mrb[0].mxu0
  %v1865 = vadd.f32 0.0, %v1864
  %v1866 = vpop.f32.mrb[0].mxu0
  %1867 = vmatprep.mubr.f32.mxu0 0.0
  %1868 = vmatmul.mubr.f32.gmra.mrb[0].mxu0 %v1155
  %v1869 = vpop.f32.mrb[0].mxu0
  %v1870 = vadd.f32 0.0, %v1869
  %v1871 = vpop.f32.mrb[0].mxu0
  %1872 = vmatprep.mubr.f32.mxu0 0.0
  %1873 = vmatmul.mubr.f32.gmra.mrb[0].mxu0 %v1158
  %v1874 = vpop.f32.mrb[0].mxu0
  %v1875 = vadd.f32 0.0, %v1874
  %v1876 = vpop.f32.mrb[0].mxu0
  %1877 = vmatprep.mubr.f32.mxu0 0.0
  %1878 = vmatmul.mubr.f32.gmra.mrb[0].mxu0 %v1161
  %v1879 = vpop.f32.mrb[0].mxu0
  %v1880 = vadd.f32 0.0, %v1879
  %v1881 = vpop.f32.mrb[0].mxu0
  %1882 = vmatprep.mubr.f32.mxu0 0.0
  %1883 = vmatmul.mubr.f32.gmra.mrb[0].mxu0 %v1164
  %v1884 = vpop.f32.mrb[0].mxu0
  %v1885 = vadd.f32 0.0, %v1884
  %v1886 = vpop.f32.mrb[0].mxu0
  %1887 = vmatprep.mubr.f32.mxu0 0.0
  %1888 = vmatmul.mubr.f32.gmra.mrb[0].mxu0 %v1167
  %v1889 = vpop.f32.mrb[0].mxu0
  %v1890 = vadd.f32 0.0, %v1889
  %v1891 = vpop.f32.mrb[0].mxu0
  %1892 = vmatprep.mubr.f32.mxu0 0.0
  %1893 = vmatmul.mubr.f32.gmra.mrb[0].mxu0 %v1170
  %v1894 = vpop.f32.mrb[0].mxu0
  %v1895 = vadd.f32 0.0, %v1894
  %v1896 = vpop.f32.mrb[0].mxu0
  %1897 = vmatprep.mubr.f32.mxu0 0.0
  %1898 = vmatmul.mubr.f32.gmra.mrb[0].mxu0 %v1173
  %v1899 = vpop.f32.mrb[0].mxu0
  %v1900 = vadd.f32 0.0, %v1899
  %v1901 = vpop.f32.mrb[0].mxu0
  %1902 = vmatprep.mubr.f32.mxu0 0.0
  %1903 = vmatmul.mubr.f32.gmra.mrb[0].mxu0 %v1176
  %v1904 = vpop.f32.mrb[0].mxu0
  %v1905 = vadd.f32 0.0, %v1904
  %v1906 = vpop.f32.mrb[0].mxu0
  %1907 = vmatprep.mubr.f32.mxu0 0.0
  %1908 = vmatmul.mubr.f32.gmra.mrb[0].mxu0 %v1179
  %v1909 = vpop.f32.mrb[0].mxu0
  %v1910 = vadd.f32 0.0, %v1909
  %v1911 = vpop.f32.mrb[0].mxu0
  %1912 = vmatprep.mubr.f32.mxu0 0.0
  %1913 = vmatmul.mubr.f32.gmra.mrb[0].mxu0 %v1182
  %v1914 = vpop.f32.mrb[0].mxu0
  %v1915 = vadd.f32 0.0, %v1914
  %v1916 = vpop.f32.mrb[0].mxu0
  %1917 = vmatprep.mubr.f32.mxu0 0.0
  %1918 = vmatmul.mubr.f32.gmra.mrb[0].mxu0 %v1185
  %v1919 = vpop.f32.mrb[0].mxu0
  %v1920 = vadd.f32 0.0, %v1919
  %v1921 = vpop.f32.mrb[0].mxu0
  %1922 = vmatprep.mubr.f32.mxu0 0.0
  %1923 = vmatmul.mubr.f32.gmra.mrb[0].mxu0 %v1188
  %v1924 = vpop.f32.mrb[0].mxu0
  %v1925 = vadd.f32 0.0, %v1924
  %v1926 = vpop.f32.mrb[0].mxu0
  %1927 = vmatprep.mubr.f32.mxu0 0.0
  %1928 = vmatmul.mubr.f32.gmra.mrb[0].mxu0 %v1191
  %v1929 = vpop.f32.mrb[0].mxu0
  %v1930 = vadd.f32 0.0, %v1929
  %v1931 = vpop.f32.mrb[0].mxu0
  %1932 = vmatprep.mubr.f32.mxu0 0.0
  %1933 = vmatmul.mubr.f32.gmra.mrb[0].mxu0 %v1194
  %v1934 = vpop.f32.mrb[0].mxu0
  %v1935 = vadd.f32 0.0, %v1934
  %v1936 = vpop.f32.mrb[0].mxu0
  %1937 = vmatprep.mubr.f32.mxu0 0.0
  %1938 = vmatmul.mubr.f32.gmra.mrb[0].mxu0 %v1197
  %v1939 = vpop.f32.mrb[0].mxu0
  %v1940 = vadd.f32 0.0, %v1939
  %v1941 = vpop.f32.mrb[0].mxu0
  %1942 = vmatprep.mubr.f32.mxu0 0.0
  %1943 = vmatmul.mubr.f32.gmra.mrb[0].mxu0 %v1200
  %v1944 = vpop.f32.mrb[0].mxu0
  %v1945 = vadd.f32 0.0, %v1944
  %v1946 = vpop.f32.mrb[0].mxu0
  %1947 = vmatprep.mubr.f32.mxu0 0.0
  %1948 = vmatmul.mubr.f32.gmra.mrb[0].mxu0 %v1203
  %v1949 = vpop.f32.mrb[0].mxu0
  %v1950 = vadd.f32 0.0, %v1949
  %v1951 = vpop.f32.mrb[0].mxu0
  %1952 = vmatprep.mubr.f32.mxu0 0.0
  %1953 = vmatmul.mubr.f32.gmra.mrb[0].mxu0 %v1206
  %v1954 = vpop.f32.mrb[0].mxu0
  %v1955 = vadd.f32 0.0, %v1954
  %v1956 = vpop.f32.mrb[0].mxu0
  %1957 = vmatprep.mubr.f32.mxu0 0.0
  %1958 = vmatmul.mubr.f32.gmra.mrb[0].mxu0 %v1209
  %v1959 = vpop.f32.mrb[0].mxu0
  %v1960 = vadd.f32 0.0, %v1959
  %v1961 = vpop.f32.mrb[0].mxu0
  %1962 = vmatprep.mubr.f32.mxu0 0.0
  %1963 = vmatmul.mubr.f32.gmra.mrb[0].mxu0 %v1212
  %v1964 = vpop.f32.mrb[0].mxu0
  %v1965 = vadd.f32 0.0, %v1964
  %v1966 = vpop.f32.mrb[0].mxu0
  %1967 = vmatprep.mubr.f32.mxu0 0.0
  %1968 = vmatmul.mubr.f32.gmra.mrb[0].mxu0 %v1215
  %v1969 = vpop.f32.mrb[0].mxu0
  %v1970 = vadd.f32 0.0, %v1969
  %v1971 = vpop.f32.mrb[0].mxu0
  %1972 = vmatprep.mubr.f32.mxu0 0.0
  %1973 = vmatmul.mubr.f32.gmra.mrb[0].mxu0 %v1218
  %v1974 = vpop.f32.mrb[0].mxu0
  %v1975 = vadd.f32 0.0, %v1974
  %v1976 = vpop.f32.mrb[0].mxu0
  %1977 = vmatprep.mubr.f32.mxu0 0.0
  %1978 = vmatmul.mubr.f32.gmra.mrb[0].mxu0 %v1221
  %v1979 = vpop.f32.mrb[0].mxu0
  %v1980 = vadd.f32 0.0, %v1979
  %v1981 = vpop.f32.mrb[0].mxu0
  %1982 = vmatprep.mubr.f32.mxu0 0.0
  %1983 = vmatmul.mubr.f32.gmra.mrb[0].mxu0 %v1224
  %v1984 = vpop.f32.mrb[0].mxu0
  %v1985 = vadd.f32 0.0, %v1984
  %v1986 = vpop.f32.mrb[0].mxu0
  %1987 = vmatprep.mubr.f32.mxu0 0.0
  %1988 = vmatmul.mubr.f32.gmra.mrb[0].mxu0 %v1227
  %v1989 = vpop.f32.mrb[0].mxu0
  %v1990 = vadd.f32 0.0, %v1989
  %v1991 = vpop.f32.mrb[0].mxu0
  %1992 = vmatprep.mubr.f32.mxu0 0.0
  %1993 = vmatmul.mubr.f32.gmra.mrb[0].mxu0 %v1230
  %v1994 = vpop.f32.mrb[0].mxu0
  %v1995 = vadd.f32 0.0, %v1994
  %v1996 = vpop.f32.mrb[0].mxu0
  %1997 = vdwg.mxu0
  %v1999 = vcombine.high %v92, %v92
  %v2001 = vunpack.c.l.s4 1966171168
  %v2002 = vunpack.c.0.s8 %v2001
  %v2003 = vlaneseq
  %v2004 = vshrl.u32 %v2003, 7
  %v2005 = vsub.s32 %v2002, %v2004
  %v2006 = vrot.slane %v1999, %v2005
  %v2007 = vcombine.high %v2006, %v2006
  %v2009 = vunpack.c.l.s4 1966171168
  %v2010 = vunpack.c.0.s8 %v2009
  %v2011 = vlaneseq
  %v2012 = vshrl.u32 %v2011, 7
  %v2013 = vsub.s32 %v2010, %v2012
  %v2014 = vrot.slane %v2006, %v2013
  %v2016 = vunpack.c.l.s4 1966171168
  %v2017 = vunpack.c.0.s8 %v2016
  %v2018 = vlaneseq
  %v2019 = vshrl.u32 %v2018, 7
  %v2020 = vsub.s32 %v2017, %v2019
  %v2021 = vrot.slane %v2007, %v2020
  %v2022 = vcombine.high %v2014, %v2014
  %v2023 = vcombine.high %v2021, %v2021
  %v2024 = vcombine.high %v93, %v93
  %v2026 = vunpack.c.l.s4 1966171168
  %v2027 = vunpack.c.0.s8 %v2026
  %v2028 = vlaneseq
  %v2029 = vshrl.u32 %v2028, 7
  %v2030 = vsub.s32 %v2027, %v2029
  %v2031 = vrot.slane %v93, %v2030
  %v2033 = vunpack.c.l.s4 1966171168
  %v2034 = vunpack.c.0.s8 %v2033
  %v2035 = vlaneseq
  %v2036 = vshrl.u32 %v2035, 7
  %v2037 = vsub.s32 %v2034, %v2036
  %v2038 = vrot.slane %v2024, %v2037
  %v2039 = vcombine.high %v2031, %v2031
  %v2041 = vunpack.c.l.s4 1966171168
  %v2042 = vunpack.c.0.s8 %v2041
  %v2043 = vlaneseq
  %v2044 = vshrl.u32 %v2043, 7
  %v2045 = vsub.s32 %v2042, %v2044
  %v2046 = vrot.slane %v2031, %v2045
  %v2048 = vunpack.c.l.s4 1966171168
  %v2049 = vunpack.c.0.s8 %v2048
  %v2050 = vlaneseq
  %v2051 = vshrl.u32 %v2050, 7
  %v2052 = vsub.s32 %v2049, %v2051
  %v2053 = vrot.slane %v2038, %v2052
  %v2055 = vunpack.c.l.s4 1966171168
  %v2056 = vunpack.c.0.s8 %v2055
  %v2057 = vlaneseq
  %v2058 = vshrl.u32 %v2057, 7
  %v2059 = vsub.s32 %v2056, %v2058
  %v2060 = vrot.slane %v2039, %v2059
  %v2061 = vcombine.high %v2046, %v2046
  %v2062 = vcombine.high %v2060, %v2060
  %v2063 = vlaneseq
  %v2064 = vshrl.u32 %v2063, 7
  %v2065 = vsub.s32 0, %v2064
  %v2066 = vrot.slane %v2014, %v2065
  %v2067 = vlaneseq
  %v2068 = vshrl.u32 %v2067, 7
  %v2069 = vsub.s32 0, %v2068
  %v2070 = vrot.slane %v2021, %v2069
  %v2071 = vlaneseq
  %v2072 = vshrl.u32 %v2071, 7
  %v2073 = vsub.s32 0, %v2072
  %v2074 = vrot.slane %v2022, %v2073
  %v2075 = vlaneseq
  %v2076 = vshrl.u32 %v2075, 7
  %v2077 = vsub.s32 0, %v2076
  %v2078 = vrot.slane %v2023, %v2077
  %v2079 = vlaneseq
  %v2080 = vshrl.u32 %v2079, 7
  %v2081 = vsub.s32 0, %v2080
  %v2082 = vrot.slane %v2046, %v2081
  %v2083 = vlaneseq
  %v2084 = vshrl.u32 %v2083, 7
  %v2085 = vsub.s32 0, %v2084
  %v2086 = vrot.slane %v2060, %v2085
  %v2087 = vlaneseq
  %v2088 = vshrl.u32 %v2087, 7
  %v2089 = vsub.s32 0, %v2088
  %v2090 = vrot.slane %v2061, %v2089
  %v2091 = vlaneseq
  %v2092 = vshrl.u32 %v2091, 7
  %v2093 = vsub.s32 0, %v2092
  %v2094 = vrot.slane %v2062, %v2093
  %v2095 = vlaneseq
  %v2096 = vshrl.u32 %v2095, 7
  %v2097 = vsub.s32 0, %v2096
  %v2098 = vrot.slane %v2053, %v2097
  %v2108 = vmul.f32 %v1820, %v2066
  %v2109 = vmul.f32 %v1825, %v2066
  %v2110 = vmul.f32 %v1830, %v2066
  %v2111 = vmul.f32 %v1835, %v2066
  %v2112 = vmul.f32 %v1840, %v2070
  %v2113 = vmul.f32 %v1845, %v2070
  %v2114 = vmul.f32 %v1850, %v2070
  %v2115 = vmul.f32 %v1855, %v2070
  %v2116 = vmul.f32 %v1860, %v2074
  %v2117 = vmul.f32 %v1865, %v2074
  %v2118 = vmul.f32 %v1870, %v2074
  %v2119 = vmul.f32 %v1875, %v2074
  %v2120 = vmul.f32 %v1880, %v2078
  %v2121 = vmul.f32 %v1885, %v2078
  %v2122 = vmul.f32 %v1890, %v2078
  %v2123 = vmul.f32 %v1895, %v2078
  %v2124 = vmul.f32 %v1900, %v2082
  %v2125 = vmul.f32 %v1905, %v2082
  %v2126 = vmul.f32 %v1910, %v2082
  %v2127 = vmul.f32 %v1915, %v2082
  %v2128 = vmul.f32 %v1920, %v2086
  %v2129 = vmul.f32 %v1925, %v2086
  %v2130 = vmul.f32 %v1930, %v2086
  %v2131 = vmul.f32 %v1935, %v2086
  %v2132 = vmul.f32 %v1940, %v2090
  %v2133 = vmul.f32 %v1945, %v2090
  %v2134 = vmul.f32 %v1950, %v2090
  %v2135 = vmul.f32 %v1955, %v2090
  %v2136 = vmul.f32 %v1960, %v2094
  %v2137 = vmul.f32 %v1965, %v2094
  %v2138 = vmul.f32 %v1970, %v2094
  %v2139 = vmul.f32 %v1975, %v2094
  %v2140 = vmul.f32 %v1980, %v2098
  %v2141 = vmul.f32 %v1985, %v2098
  %v2142 = vmul.f32 %v1990, %v2098
  %v2143 = vmul.f32 %v1995, %v2098
  %v2144 = vsel %vm102, %v2108, 0.0
  %v2145 = vsel %vm102, %v2112, 0.0
  %v2146 = vadd.f32 %v2144, %v2145
  %v2147 = vsel %vm102, %v2116, 0.0
  %v2148 = vadd.f32 %v2146, %v2147
  %v2149 = vsel %vm102, %v2120, 0.0
  %v2150 = vadd.f32 %v2148, %v2149
  %v2151 = vsel %vm102, %v2124, 0.0
  %v2152 = vadd.f32 %v2150, %v2151
  %v2153 = vsel %vm102, %v2128, 0.0
  %v2154 = vadd.f32 %v2152, %v2153
  %v2155 = vsel %vm102, %v2132, 0.0
  %v2156 = vadd.f32 %v2154, %v2155
  %v2157 = vsel %vm102, %v2136, 0.0
  %v2158 = vadd.f32 %v2156, %v2157
  %v2159 = vsel %vm102, %v2140, 0.0
  %v2160 = vadd.f32 %v2158, %v2159
  %v2161 = vsel %vm102, %v2109, 0.0
  %v2162 = vsel %vm102, %v2113, 0.0
  %v2163 = vadd.f32 %v2161, %v2162
  %v2164 = vsel %vm102, %v2117, 0.0
  %v2165 = vadd.f32 %v2163, %v2164
  %v2166 = vsel %vm102, %v2121, 0.0
  %v2167 = vadd.f32 %v2165, %v2166
  %v2168 = vsel %vm102, %v2125, 0.0
  %v2169 = vadd.f32 %v2167, %v2168
  %v2170 = vsel %vm102, %v2129, 0.0
  %v2171 = vadd.f32 %v2169, %v2170
  %v2172 = vsel %vm102, %v2133, 0.0
  %v2173 = vadd.f32 %v2171, %v2172
  %v2174 = vsel %vm102, %v2137, 0.0
  %v2175 = vadd.f32 %v2173, %v2174
  %v2176 = vsel %vm102, %v2141, 0.0
  %v2177 = vadd.f32 %v2175, %v2176
  %v2178 = vsel %vm102, %v2110, 0.0
  %v2179 = vsel %vm102, %v2114, 0.0
  %v2180 = vadd.f32 %v2178, %v2179
  %v2181 = vsel %vm102, %v2118, 0.0
  %v2182 = vadd.f32 %v2180, %v2181
  %v2183 = vsel %vm102, %v2122, 0.0
  %v2184 = vadd.f32 %v2182, %v2183
  %v2185 = vsel %vm102, %v2126, 0.0
  %v2186 = vadd.f32 %v2184, %v2185
  %v2187 = vsel %vm102, %v2130, 0.0
  %v2188 = vadd.f32 %v2186, %v2187
  %v2189 = vsel %vm102, %v2134, 0.0
  %v2190 = vadd.f32 %v2188, %v2189
  %v2191 = vsel %vm102, %v2138, 0.0
  %v2192 = vadd.f32 %v2190, %v2191
  %v2193 = vsel %vm102, %v2142, 0.0
  %v2194 = vadd.f32 %v2192, %v2193
  %v2195 = vsel %vm102, %v2111, 0.0
  %v2196 = vsel %vm102, %v2115, 0.0
  %v2197 = vadd.f32 %v2195, %v2196
  %v2198 = vsel %vm102, %v2119, 0.0
  %v2199 = vadd.f32 %v2197, %v2198
  %v2200 = vsel %vm102, %v2123, 0.0
  %v2201 = vadd.f32 %v2199, %v2200
  %v2202 = vsel %vm102, %v2127, 0.0
  %v2203 = vadd.f32 %v2201, %v2202
  %v2204 = vsel %vm102, %v2131, 0.0
  %v2205 = vadd.f32 %v2203, %v2204
  %v2206 = vsel %vm102, %v2135, 0.0
  %v2207 = vadd.f32 %v2205, %v2206
  %v2208 = vsel %vm102, %v2139, 0.0
  %v2209 = vadd.f32 %v2207, %v2208
  %v2210 = vsel %vm102, %v2143, 0.0
  %v2211 = vadd.f32 %v2209, %v2210
  %v2212 = vlaneseq
  %v2213 = vshrl.u32 %v2212, 7
  %v2214 = vsub.s32 5, %v2213
  %v2215 = vrot.slane %v90, %v2214
  %v2216 = vadd.f32 %v2160, %v2215
  %v2217 = vadd.f32 %v2177, %v2215
  %v2218 = vadd.f32 %v2194, %v2215
  %v2219 = vadd.f32 %v2211, %v2215
  %v2220 = vlaneseq
  %v2221 = vshrl.u32 %v2220, 7
  %v2222 = vsub.s32 6, %v2221
  %v2223 = vrot.slane %v90, %v2222
  %v2224 = vmul.f32 %v2223, %v2216
  %v2225 = vmul.f32 %v2223, %v2217
  %v2226 = vmul.f32 %v2223, %v2218
  %v2227 = vmul.f32 %v2223, %v2219
  %v2228 = vadd.f32 %v1052, %v2224
  %v2229 = vadd.f32 %v1053, %v2225
  %v2230 = vadd.f32 %v1054, %v2226
  %v2231 = vadd.f32 %v1055, %v2227
  %v2232 = vsel %vm102, %v2228, 0.0
  %2233 = vadd.xlane.f32.xlu0 %v2232
  %v2234 = vpop.xlane.xlu0 %2233
  %v2235 = vsel %vm102, %v2229, 0.0
  %2236 = vadd.xlane.f32.xlu0 %v2235
  %v2237 = vpop.xlane.xlu0 %2236
  %v2238 = vsel %vm102, %v2230, 0.0
  %2239 = vadd.xlane.f32.xlu0 %v2238
  %v2240 = vpop.xlane.xlu0 %2239
  %v2241 = vsel %vm102, %v2231, 0.0
  %2242 = vadd.xlane.f32.xlu0 %v2241
  %v2243 = vpop.xlane.xlu0 %2242
  %v2244 = vmul.f32 %v2234, %v115
  %v2245 = vmul.f32 %v2237, %v115
  %v2246 = vmul.f32 %v2240, %v115
  %v2247 = vmul.f32 %v2243, %v115
  %v2248 = vsub.f32 %v2228, %v2244
  %v2249 = vsub.f32 %v2229, %v2245
  %v2250 = vsub.f32 %v2230, %v2246
  %v2251 = vsub.f32 %v2231, %v2247
  %v2252 = vmul.f32 %v2248, %v2248
  %v2253 = vmul.f32 %v2249, %v2249
  %v2254 = vmul.f32 %v2250, %v2250
  %v2255 = vmul.f32 %v2251, %v2251
  %v2256 = vsel %vm102, %v2252, 0.0
  %2257 = vadd.xlane.f32.xlu0 %v2256
  %v2258 = vpop.xlane.xlu0 %2257
  %v2259 = vsel %vm102, %v2253, 0.0
  %2260 = vadd.xlane.f32.xlu0 %v2259
  %v2261 = vpop.xlane.xlu0 %2260
  %v2262 = vsel %vm102, %v2254, 0.0
  %2263 = vadd.xlane.f32.xlu0 %v2262
  %v2264 = vpop.xlane.xlu0 %2263
  %v2265 = vsel %vm102, %v2255, 0.0
  %2266 = vadd.xlane.f32.xlu0 %v2265
  %v2267 = vpop.xlane.xlu0 %2266
  %v2268 = vmul.f32 %v2258, %v115
  %v2269 = vmul.f32 %v2261, %v115
  %v2270 = vmul.f32 %v2264, %v115
  %v2271 = vmul.f32 %v2267, %v115
  %v2272 = vadd.f32 %v2268, 1e-06
  %v2273 = vadd.f32 %v2269, 1e-06
  %v2274 = vadd.f32 %v2270, 1e-06
  %v2275 = vadd.f32 %v2271, 1e-06
  %v2276 = vrsqrt.pop %v2272
  %v2277 = vrsqrt.pop %v2273
  %v2278 = vrsqrt.pop %v2274
  %v2279 = vrsqrt.pop %v2275
  %v2280 = vmul.f32 %v2248, %v2276
  %v2281 = vmul.f32 %v2249, %v2277
  %v2282 = vmul.f32 %v2250, %v2278
  %v2283 = vmul.f32 %v2251, %v2279
  %v2284 = vlaneseq
  %v2285 = vshrl.u32 %v2284, 7
  %v2286 = vsub.s32 7, %v2285
  %v2287 = vrot.slane %v90, %v2286
  %v2288 = vmul.f32 %v2280, %v2287
  %v2289 = vmul.f32 %v2281, %v2287
  %v2290 = vmul.f32 %v2282, %v2287
  %v2291 = vmul.f32 %v2283, %v2287
  %v2292 = vlaneseq
  %v2293 = vshrl.u32 %v2292, 7
  %v2294 = vsub.s32 0, %v2293
  %v2295 = vrot.slane %v91, %v2294
  %v2296 = vadd.f32 %v2288, %v2295
  %v2297 = vadd.f32 %v2289, %v2295
  %v2298 = vadd.f32 %v2290, %v2295
  %v2299 = vadd.f32 %v2291, %v2295
  %v2300 = vld [vmem:[%s7] sm:$0x1]
  %v2301 = vlaneseq
  %v2302 = vshrl.u32 %v2301, 7
  %v2303 = vsub.s32 0, %v2302
  %v2304 = vrot.slane %v2300, %v2303
  %v2306 = vsel %vm102, %v2296, 0
  %v2309 = vsel %vm102, %v2297, 0
  %v2312 = vsel %vm102, %v2298, 0
  %v2315 = vsel %vm102, %v2299, 0
  %2317 = vmatprep.subr.mxu0 0.0
  %2318 = vmatpush1.msra.mxu0 %v95
  %2319 = vmatprep.subr.mxu0 0.0
  %2320 = vmatpush1.msra.mxu0 %v97
  %2321 = vmatprep.subr.mxu0 0.0
  %2322 = vmatpush1.msra.mxu0 %v99
  %2323 = vmatprep.subr.mxu0 0.0
  %2324 = vmatpush1.msra.mxu0 %v101
  %2325 = vmatprep.subr.mxu0 0.0
  %2326 = vmatpush1.msra.mxu0 0.0
  %2327 = vmatprep.subr.mxu0 0.0
  %2328 = vmatpush1.msra.mxu0 0.0
  %2329 = vmatprep.subr.mxu0 0.0
  %2330 = vmatpush1.msra.mxu0 0.0
  %2331 = vmatprep.subr.mxu0 0.0
  %2332 = vmatpush1.msra.mxu0 0.0
  %2333 = vmatprep.subr.mxu0 0.0
  %2334 = vmatpush1.msra.mxu0 0.0
  %2335 = vmatprep.subr.mxu0 0.0
  %2336 = vmatpush1.msra.mxu0 0.0
  %2337 = vmatprep.subr.mxu0 0.0
  %2338 = vmatpush1.msra.mxu0 0.0
  %2339 = vmatprep.subr.mxu0 0.0
  %2340 = vmatpush1.msra.mxu0 0.0
  %2341 = vmatprep.subr.mxu0 0.0
  %2342 = vmatpush1.msra.mxu0 0.0
  %2343 = vmatprep.subr.mxu0 0.0
  %2344 = vmatpush1.msra.mxu0 0.0
  %2345 = vmatprep.subr.mxu0 0.0
  %2346 = vmatpush1.msra.mxu0 0.0
  %2347 = vmatprep.subr.mxu0 0.0
  %2348 = vmatpush1.msra.mxu0 0.0
  %2349 = vmatprep.subr.mxu0 0.0
  %2350 = vmatpush1.msra.mxu0 0.0
  %2351 = vmatprep.subr.mxu0 0.0
  %2352 = vmatpush1.msra.mxu0 0.0
  %2353 = vmatprep.subr.mxu0 0.0
  %2354 = vmatpush1.msra.mxu0 0.0
  %2355 = vmatprep.subr.mxu0 0.0
  %2356 = vmatpush1.msra.mxu0 0.0
  %2357 = vmatprep.subr.mxu0 0.0
  %2358 = vmatpush1.msra.mxu0 0.0
  %2359 = vmatprep.subr.mxu0 0.0
  %2360 = vmatpush1.msra.mxu0 0.0
  %2361 = vmatprep.subr.mxu0 0.0
  %2362 = vmatpush1.msra.mxu0 0.0
  %2363 = vmatprep.subr.mxu0 0.0
  %2364 = vmatpush1.msra.mxu0 0.0
  %2365 = vmatprep.subr.mxu0 0.0
  %2366 = vmatpush1.msra.mxu0 0.0
  %2367 = vmatprep.subr.mxu0 0.0
  %2368 = vmatpush1.msra.mxu0 0.0
  %2369 = vmatprep.subr.mxu0 0.0
  %2370 = vmatpush1.msra.mxu0 0.0
  %2371 = vmatprep.subr.mxu0 0.0
  %2372 = vmatpush1.msra.mxu0 0.0
  %2373 = vmatprep.subr.mxu0 0.0
  %2374 = vmatpush1.msra.mxu0 0.0
  %2375 = vmatprep.subr.mxu0 0.0
  %2376 = vmatpush1.msra.mxu0 0.0
  %2377 = vmatprep.subr.mxu0 0.0
  %2378 = vmatpush1.msra.mxu0 0.0
  %2379 = vmatprep.subr.mxu0 0.0
  %2380 = vmatpush1.msra.mxu0 0.0
  %2381 = vmatprep.mubr.f32.mxu0 0.0
  %2382 = vmatmul.mubr.f32.gmra.mrb[0].mxu0 %v2306
  %v2383 = vpop.f32.mrb[0].mxu0
  %v2384 = vadd.f32 %v2304, %v2383
  %v2385 = vpop.f32.mrb[0].mxu0
  %2386 = vmatprep.mubr.f32.mxu0 0.0
  %2387 = vmatmul.mubr.f32.gmra.mrb[0].mxu0 %v2309
  %v2388 = vpop.f32.mrb[0].mxu0
  %v2389 = vadd.f32 %v2304, %v2388
  %v2390 = vpop.f32.mrb[0].mxu0
  %2391 = vmatprep.mubr.f32.mxu0 0.0
  %2392 = vmatmul.mubr.f32.gmra.mrb[0].mxu0 %v2312
  %v2393 = vpop.f32.mrb[0].mxu0
  %v2394 = vadd.f32 %v2304, %v2393
  %v2395 = vpop.f32.mrb[0].mxu0
  %2396 = vmatprep.mubr.f32.mxu0 0.0
  %2397 = vmatmul.mubr.f32.gmra.mrb[0].mxu0 %v2315
  %v2398 = vpop.f32.mrb[0].mxu0
  %v2399 = vadd.f32 %v2304, %v2398
  %v2400 = vpop.f32.mrb[0].mxu0
  %2401 = vdwg.mxu0
  %v2402 = vmul.f32 %v2384, 0.5
  %v2403 = vmul.f32 %v2389, 0.5
  %v2404 = vmul.f32 %v2394, 0.5
  %v2405 = vmul.f32 %v2399, 0.5
  %v2406 = vmul.f32 %v2384, 0.044715
  %v2407 = vmul.f32 %v2389, 0.044715
  %v2408 = vmul.f32 %v2394, 0.044715
  %v2409 = vmul.f32 %v2399, 0.044715
  %v2410 = vmul.f32 %v2406, %v2384
  %v2411 = vmul.f32 %v2407, %v2389
  %v2412 = vmul.f32 %v2408, %v2394
  %v2413 = vmul.f32 %v2409, %v2399
  %v2414 = vmul.f32 %v2410, %v2384
  %v2415 = vmul.f32 %v2411, %v2389
  %v2416 = vmul.f32 %v2412, %v2394
  %v2417 = vmul.f32 %v2413, %v2399
  %v2418 = vadd.f32 %v2384, %v2414
  %v2419 = vadd.f32 %v2389, %v2415
  %v2420 = vadd.f32 %v2394, %v2416
  %v2421 = vadd.f32 %v2399, %v2417
  %v2422 = vmul.f32 %v2418, 0.7978846
  %v2423 = vmul.f32 %v2419, 0.7978846
  %v2424 = vmul.f32 %v2420, 0.7978846
  %v2425 = vmul.f32 %v2421, 0.7978846
  %v2426 = vtanh.pop %v2422
  %v2427 = vtanh.pop %v2423
  %v2428 = vtanh.pop %v2424
  %v2429 = vtanh.pop %v2425
  %v2430 = vadd.f32 %v2426, 1.0
  %v2431 = vadd.f32 %v2427, 1.0
  %v2432 = vadd.f32 %v2428, 1.0
  %v2433 = vadd.f32 %v2429, 1.0
  %v2434 = vmul.f32 %v2402, %v2430
  %v2435 = vmul.f32 %v2403, %v2431
  %v2436 = vmul.f32 %v2404, %v2432
  %v2437 = vmul.f32 %v2405, %v2433
  %v2438 = vld [vmem:[%s6] sm:$0xff]
  %v2439 = vld [vmem:[%s6 + $0x8] sm:$0xff]
  %v2440 = vld [vmem:[%s6 + $0x10] sm:$0xff]
  %v2441 = vld [vmem:[%s6 + $0x18] sm:$0xff]
  %v2442 = vld [vmem:[%s6 + $0x20] sm:$0xff]
  %v2443 = vld [vmem:[%s6 + $0x28] sm:$0xff]
  %v2444 = vld [vmem:[%s6 + $0x30] sm:$0xff]
  %v2445 = vld [vmem:[%s6 + $0x38] sm:$0xff]
  %v2446 = vld [vmem:[%s6 + $0x40] sm:$0xff]
  %v2447 = vld [vmem:[%s6 + $0x48] sm:$0xff]
  %v2448 = vld [vmem:[%s6 + $0x50] sm:$0xff]
  %v2449 = vld [vmem:[%s6 + $0x58] sm:$0xff]
  %v2450 = vld [vmem:[%s6 + $0x60] sm:$0xff]
  %v2451 = vld [vmem:[%s6 + $0x68] sm:$0xff]
  %v2452 = vld [vmem:[%s6 + $0x70] sm:$0xff]
  %v2453 = vld [vmem:[%s6 + $0x78] sm:$0xff]
  %v2454 = vlaneseq
  %v2455 = vshrl.u32 %v2454, 7
  %v2456 = vsub.s32 1, %v2455
  %v2457 = vrot.slane %v91, %v2456
  %2458 = vmatprep.subr.mxu0 0.0
  %2459 = vmatpush1.msra.mxu0 %v2438
  %2460 = vmatprep.subr.mxu0 0.0
  %2461 = vmatpush1.msra.mxu0 %v2439
  %2462 = vmatprep.subr.mxu0 0.0
  %2463 = vmatpush1.msra.mxu0 %v2440
  %2464 = vmatprep.subr.mxu0 0.0
  %2465 = vmatpush1.msra.mxu0 %v2441
  %2466 = vmatprep.subr.mxu0 0.0
  %2467 = vmatpush1.msra.mxu0 %v2442
  %2468 = vmatprep.subr.mxu0 0.0
  %2469 = vmatpush1.msra.mxu0 %v2443
  %2470 = vmatprep.subr.mxu0 0.0
  %2471 = vmatpush1.msra.mxu0 %v2444
  %2472 = vmatprep.subr.mxu0 0.0
  %2473 = vmatpush1.msra.mxu0 %v2445
  %2474 = vmatprep.subr.mxu0 0.0
  %2475 = vmatpush1.msra.mxu0 %v2446
  %2476 = vmatprep.subr.mxu0 0.0
  %2477 = vmatpush1.msra.mxu0 %v2447
  %2478 = vmatprep.subr.mxu0 0.0
  %2479 = vmatpush1.msra.mxu0 %v2448
  %2480 = vmatprep.subr.mxu0 0.0
  %2481 = vmatpush1.msra.mxu0 %v2449
  %2482 = vmatprep.subr.mxu0 0.0
  %2483 = vmatpush1.msra.mxu0 %v2450
  %2484 = vmatprep.subr.mxu0 0.0
  %2485 = vmatpush1.msra.mxu0 %v2451
  %2486 = vmatprep.subr.mxu0 0.0
  %2487 = vmatpush1.msra.mxu0 %v2452
  %2488 = vmatprep.subr.mxu0 0.0
  %2489 = vmatpush1.msra.mxu0 %v2453
  %2490 = vmatprep.subr.mxu0 0.0
  %2491 = vmatpush1.msra.mxu0 0.0
  %2492 = vmatprep.subr.mxu0 0.0
  %2493 = vmatpush1.msra.mxu0 0.0
  %2494 = vmatprep.subr.mxu0 0.0
  %2495 = vmatpush1.msra.mxu0 0.0
  %2496 = vmatprep.subr.mxu0 0.0
  %2497 = vmatpush1.msra.mxu0 0.0
  %2498 = vmatprep.subr.mxu0 0.0
  %2499 = vmatpush1.msra.mxu0 0.0
  %2500 = vmatprep.subr.mxu0 0.0
  %2501 = vmatpush1.msra.mxu0 0.0
  %2502 = vmatprep.subr.mxu0 0.0
  %2503 = vmatpush1.msra.mxu0 0.0
  %2504 = vmatprep.subr.mxu0 0.0
  %2505 = vmatpush1.msra.mxu0 0.0
  %2506 = vmatprep.subr.mxu0 0.0
  %2507 = vmatpush1.msra.mxu0 0.0
  %2508 = vmatprep.subr.mxu0 0.0
  %2509 = vmatpush1.msra.mxu0 0.0
  %2510 = vmatprep.subr.mxu0 0.0
  %2511 = vmatpush1.msra.mxu0 0.0
  %2512 = vmatprep.subr.mxu0 0.0
  %2513 = vmatpush1.msra.mxu0 0.0
  %2514 = vmatprep.subr.mxu0 0.0
  %2515 = vmatpush1.msra.mxu0 0.0
  %2516 = vmatprep.subr.mxu0 0.0
  %2517 = vmatpush1.msra.mxu0 0.0
  %2518 = vmatprep.subr.mxu0 0.0
  %2519 = vmatpush1.msra.mxu0 0.0
  %2520 = vmatprep.subr.mxu0 0.0
  %2521 = vmatpush1.msra.mxu0 0.0
  %2522 = vmatprep.mubr.f32.mxu0 0.0
  %2523 = vmatmul.mubr.f32.gmra.mrb[0].mxu0 %v2434
  %v2524 = vpop.f32.mrb[0].mxu0
  %v2525 = vadd.f32 %v2457, %v2524
  %v2526 = vpop.f32.mrb[0].mxu0
  %2527 = vmatprep.mubr.f32.mxu0 0.0
  %2528 = vmatmul.mubr.f32.gmra.mrb[0].mxu0 %v2435
  %v2529 = vpop.f32.mrb[0].mxu0
  %v2530 = vadd.f32 %v2457, %v2529
  %v2531 = vpop.f32.mrb[0].mxu0
  %2532 = vmatprep.mubr.f32.mxu0 0.0
  %2533 = vmatmul.mubr.f32.gmra.mrb[0].mxu0 %v2436
  %v2534 = vpop.f32.mrb[0].mxu0
  %v2535 = vadd.f32 %v2457, %v2534
  %v2536 = vpop.f32.mrb[0].mxu0
  %2537 = vmatprep.mubr.f32.mxu0 0.0
  %2538 = vmatmul.mubr.f32.gmra.mrb[0].mxu0 %v2437
  %v2539 = vpop.f32.mrb[0].mxu0
  %v2540 = vadd.f32 %v2457, %v2539
  %v2541 = vpop.f32.mrb[0].mxu0
  %2542 = vdwg.mxu0
  %v2543 = vlaneseq
  %v2544 = vshrl.u32 %v2543, 7
  %v2545 = vsub.s32 2, %v2544
  %v2546 = vrot.slane %v91, %v2545
  %v2547 = vmul.f32 %v2546, %v2525
  %v2548 = vmul.f32 %v2546, %v2530
  %v2549 = vmul.f32 %v2546, %v2535
  %v2550 = vmul.f32 %v2546, %v2540
  %v2551 = vadd.f32 %v2228, %v2547
  %v2552 = vadd.f32 %v2229, %v2548
  %v2553 = vadd.f32 %v2230, %v2549
  %v2554 = vadd.f32 %v2231, %v2550
  %v2555 = vld [vmem:[%s8] sm:$0xff]
  %v2556 = vld [vmem:[%s8 + $0x8] sm:$0xff]
  %v2557 = vld [vmem:[%s8 + $0x10] sm:$0xff]
  %v2558 = vld [vmem:[%s8 + $0x18] sm:$0xff]
  %v2559 = vld [vmem:[%s9] sm:$0x1]
  %v2561 = vlaneseq
  %v2562 = vshrl.u32 %v2561, 7
  %v2563 = vsub.s32 0, %v2562
  %v2564 = vrot.slane %v2559, %v2563
  %v2567 = vsel %vm102, %v2551, 0
  %v2570 = vsel %vm102, %v2552, 0
  %v2573 = vsel %vm102, %v2553, 0
  %v2576 = vsel %vm102, %v2554, 0
  %2578 = vmatprep.subr.mxu0 0.0
  %2579 = vmatpush1.msra.mxu0 %v2555
  %2580 = vmatprep.subr.mxu0 0.0
  %2581 = vmatpush1.msra.mxu0 %v2556
  %2582 = vmatprep.subr.mxu0 0.0
  %2583 = vmatpush1.msra.mxu0 %v2557
  %2584 = vmatprep.subr.mxu0 0.0
  %2585 = vmatpush1.msra.mxu0 %v2558
  %2586 = vmatprep.subr.mxu0 0.0
  %2587 = vmatpush1.msra.mxu0 0.0
  %2588 = vmatprep.subr.mxu0 0.0
  %2589 = vmatpush1.msra.mxu0 0.0
  %2590 = vmatprep.subr.mxu0 0.0
  %2591 = vmatpush1.msra.mxu0 0.0
  %2592 = vmatprep.subr.mxu0 0.0
  %2593 = vmatpush1.msra.mxu0 0.0
  %2594 = vmatprep.subr.mxu0 0.0
  %2595 = vmatpush1.msra.mxu0 0.0
  %2596 = vmatprep.subr.mxu0 0.0
  %2597 = vmatpush1.msra.mxu0 0.0
  %2598 = vmatprep.subr.mxu0 0.0
  %2599 = vmatpush1.msra.mxu0 0.0
  %2600 = vmatprep.subr.mxu0 0.0
  %2601 = vmatpush1.msra.mxu0 0.0
  %2602 = vmatprep.subr.mxu0 0.0
  %2603 = vmatpush1.msra.mxu0 0.0
  %2604 = vmatprep.subr.mxu0 0.0
  %2605 = vmatpush1.msra.mxu0 0.0
  %2606 = vmatprep.subr.mxu0 0.0
  %2607 = vmatpush1.msra.mxu0 0.0
  %2608 = vmatprep.subr.mxu0 0.0
  %2609 = vmatpush1.msra.mxu0 0.0
  %2610 = vmatprep.subr.mxu0 0.0
  %2611 = vmatpush1.msra.mxu0 0.0
  %2612 = vmatprep.subr.mxu0 0.0
  %2613 = vmatpush1.msra.mxu0 0.0
  %2614 = vmatprep.subr.mxu0 0.0
  %2615 = vmatpush1.msra.mxu0 0.0
  %2616 = vmatprep.subr.mxu0 0.0
  %2617 = vmatpush1.msra.mxu0 0.0
  %2618 = vmatprep.subr.mxu0 0.0
  %2619 = vmatpush1.msra.mxu0 0.0
  %2620 = vmatprep.subr.mxu0 0.0
  %2621 = vmatpush1.msra.mxu0 0.0
  %2622 = vmatprep.subr.mxu0 0.0
  %2623 = vmatpush1.msra.mxu0 0.0
  %2624 = vmatprep.subr.mxu0 0.0
  %2625 = vmatpush1.msra.mxu0 0.0
  %2626 = vmatprep.subr.mxu0 0.0
  %2627 = vmatpush1.msra.mxu0 0.0
  %2628 = vmatprep.subr.mxu0 0.0
  %2629 = vmatpush1.msra.mxu0 0.0
  %2630 = vmatprep.subr.mxu0 0.0
  %2631 = vmatpush1.msra.mxu0 0.0
  %2632 = vmatprep.subr.mxu0 0.0
  %2633 = vmatpush1.msra.mxu0 0.0
  %2634 = vmatprep.subr.mxu0 0.0
  %2635 = vmatpush1.msra.mxu0 0.0
  %2636 = vmatprep.subr.mxu0 0.0
  %2637 = vmatpush1.msra.mxu0 0.0
  %2638 = vmatprep.subr.mxu0 0.0
  %2639 = vmatpush1.msra.mxu0 0.0
  %2640 = vmatprep.subr.mxu0 0.0
  %2641 = vmatpush1.msra.mxu0 0.0
  %2642 = vmatprep.mubr.f32.mxu0 0.0
  %2643 = vmatmul.mubr.f32.gmra.mrb[0].mxu0 %v2567
  %v2644 = vpop.f32.mrb[0].mxu0
  %v2645 = vadd.f32 %v2564, %v2644
  %v2646 = vpop.f32.mrb[0].mxu0
  %2647 = vmatprep.mubr.f32.mxu0 0.0
  %2648 = vmatmul.mubr.f32.gmra.mrb[0].mxu0 %v2570
  %v2649 = vpop.f32.mrb[0].mxu0
  %v2650 = vadd.f32 %v2564, %v2649
  %v2651 = vpop.f32.mrb[0].mxu0
  %2652 = vmatprep.mubr.f32.mxu0 0.0
  %2653 = vmatmul.mubr.f32.gmra.mrb[0].mxu0 %v2573
  %v2654 = vpop.f32.mrb[0].mxu0
  %v2655 = vadd.f32 %v2564, %v2654
  %v2656 = vpop.f32.mrb[0].mxu0
  %2657 = vmatprep.mubr.f32.mxu0 0.0
  %2658 = vmatmul.mubr.f32.gmra.mrb[0].mxu0 %v2576
  %v2659 = vpop.f32.mrb[0].mxu0
  %v2660 = vadd.f32 %v2564, %v2659
  %v2661 = vpop.f32.mrb[0].mxu0
  %2662 = vdwg.mxu0
  %2663 = vst [vmem:[%s11] sm:$0xff] %v2645
  %2664 = vst [vmem:[%s11 + $0x8] sm:$0xff] %v2650
  %2665 = vst [vmem:[%s11 + $0x10] sm:$0xff] %v2655
  %2666 = vst [vmem:[%s11 + $0x18] sm:$0xff] %v2660
  %s2667 = scalar_lea.vmem %s4, 40
  %v2668 = vld [vmem:[%s2667] sm:$0xff]
  %v2669 = vld [vmem:[%s2667 + $0x8] sm:$0xff]
  %v2670 = vld [vmem:[%s2667 + $0x10] sm:$0xff]
  %v2671 = vld [vmem:[%s2667 + $0x18] sm:$0xff]
  %v2672 = vld [vmem:[%s2667 + $0x20] sm:$0x1f]
  %s2673 = scalar_lea.vmem %s5, 64
  %v2674 = vld [vmem:[%s2673] sm:$0xff]
  %v2675 = vld [vmem:[%s2673 + $0x8] sm:$0xff]
  %v2676 = vld [vmem:[%s2673 + $0x10] sm:$0xff]
  %v2677 = vld [vmem:[%s2673 + $0x18] sm:$0xff]
  %v2678 = vld [vmem:[%s2673 + $0x20] sm:$0xff]
  %v2679 = vld [vmem:[%s2673 + $0x28] sm:$0xff]
  %v2680 = vld [vmem:[%s2673 + $0x30] sm:$0xff]
  %v2681 = vld [vmem:[%s2673 + $0x38] sm:$0xff]
  %v2682 = vsel %vm102, %v2551, 0.0
  %2683 = vadd.xlane.f32.xlu0 %v2682
  %v2684 = vpop.xlane.xlu0 %2683
  %v2685 = vsel %vm102, %v2552, 0.0
  %2686 = vadd.xlane.f32.xlu0 %v2685
  %v2687 = vpop.xlane.xlu0 %2686
  %v2688 = vsel %vm102, %v2553, 0.0
  %2689 = vadd.xlane.f32.xlu0 %v2688
  %v2690 = vpop.xlane.xlu0 %2689
  %v2691 = vsel %vm102, %v2554, 0.0
  %2692 = vadd.xlane.f32.xlu0 %v2691
  %v2693 = vpop.xlane.xlu0 %2692
  %v2694 = vmul.f32 %v2684, %v115
  %v2695 = vmul.f32 %v2687, %v115
  %v2696 = vmul.f32 %v2690, %v115
  %v2697 = vmul.f32 %v2693, %v115
  %v2698 = vsub.f32 %v2551, %v2694
  %v2699 = vsub.f32 %v2552, %v2695
  %v2700 = vsub.f32 %v2553, %v2696
  %v2701 = vsub.f32 %v2554, %v2697
  %v2702 = vmul.f32 %v2698, %v2698
  %v2703 = vmul.f32 %v2699, %v2699
  %v2704 = vmul.f32 %v2700, %v2700
  %v2705 = vmul.f32 %v2701, %v2701
  %v2706 = vsel %vm102, %v2702, 0.0
  %2707 = vadd.xlane.f32.xlu0 %v2706
  %v2708 = vpop.xlane.xlu0 %2707
  %v2709 = vsel %vm102, %v2703, 0.0
  %2710 = vadd.xlane.f32.xlu0 %v2709
  %v2711 = vpop.xlane.xlu0 %2710
  %v2712 = vsel %vm102, %v2704, 0.0
  %2713 = vadd.xlane.f32.xlu0 %v2712
  %v2714 = vpop.xlane.xlu0 %2713
  %v2715 = vsel %vm102, %v2705, 0.0
  %2716 = vadd.xlane.f32.xlu0 %v2715
  %v2717 = vpop.xlane.xlu0 %2716
  %v2718 = vmul.f32 %v2708, %v115
  %v2719 = vmul.f32 %v2711, %v115
  %v2720 = vmul.f32 %v2714, %v115
  %v2721 = vmul.f32 %v2717, %v115
  %v2722 = vadd.f32 %v2718, 1e-06
  %v2723 = vadd.f32 %v2719, 1e-06
  %v2724 = vadd.f32 %v2720, 1e-06
  %v2725 = vadd.f32 %v2721, 1e-06
  %v2726 = vrsqrt.pop %v2722
  %v2727 = vrsqrt.pop %v2723
  %v2728 = vrsqrt.pop %v2724
  %v2729 = vrsqrt.pop %v2725
  %v2730 = vmul.f32 %v2698, %v2726
  %v2731 = vmul.f32 %v2699, %v2727
  %v2732 = vmul.f32 %v2700, %v2728
  %v2733 = vmul.f32 %v2701, %v2729
  %v2734 = vlaneseq
  %v2735 = vshrl.u32 %v2734, 7
  %v2736 = vsub.s32 0, %v2735
  %v2737 = vrot.slane %v2668, %v2736
  %v2738 = vmul.f32 %v2730, %v2737
  %v2739 = vmul.f32 %v2731, %v2737
  %v2740 = vmul.f32 %v2732, %v2737
  %v2741 = vmul.f32 %v2733, %v2737
  %v2742 = vlaneseq
  %v2743 = vshrl.u32 %v2742, 7
  %v2744 = vsub.s32 1, %v2743
  %v2745 = vrot.slane %v2668, %v2744
  %v2746 = vadd.f32 %v2738, %v2745
  %v2747 = vadd.f32 %v2739, %v2745
  %v2748 = vadd.f32 %v2740, %v2745
  %v2749 = vadd.f32 %v2741, %v2745
  %v2751 = vsel %vm102, %v2746, 0
  %v2754 = vsel %vm102, %v2747, 0
  %v2757 = vsel %vm102, %v2748, 0
  %v2760 = vsel %vm102, %v2749, 0
  %2762 = vmatprep.subr.mxu0 0.0
  %2763 = vmatpush1.msra.mxu0 %v2674
  %2764 = vmatprep.subr.mxu0 0.0
  %2765 = vmatpush1.msra.mxu0 %v2676
  %2766 = vmatprep.subr.mxu0 0.0
  %2767 = vmatpush1.msra.mxu0 %v2678
  %2768 = vmatprep.subr.mxu0 0.0
  %2769 = vmatpush1.msra.mxu0 %v2680
  %2770 = vmatprep.subr.mxu0 0.0
  %2771 = vmatpush1.msra.mxu0 0.0
  %2772 = vmatprep.subr.mxu0 0.0
  %2773 = vmatpush1.msra.mxu0 0.0
  %2774 = vmatprep.subr.mxu0 0.0
  %2775 = vmatpush1.msra.mxu0 0.0
  %2776 = vmatprep.subr.mxu0 0.0
  %2777 = vmatpush1.msra.mxu0 0.0
  %2778 = vmatprep.subr.mxu0 0.0
  %2779 = vmatpush1.msra.mxu0 0.0
  %2780 = vmatprep.subr.mxu0 0.0
  %2781 = vmatpush1.msra.mxu0 0.0
  %2782 = vmatprep.subr.mxu0 0.0
  %2783 = vmatpush1.msra.mxu0 0.0
  %2784 = vmatprep.subr.mxu0 0.0
  %2785 = vmatpush1.msra.mxu0 0.0
  %2786 = vmatprep.subr.mxu0 0.0
  %2787 = vmatpush1.msra.mxu0 0.0
  %2788 = vmatprep.subr.mxu0 0.0
  %2789 = vmatpush1.msra.mxu0 0.0
  %2790 = vmatprep.subr.mxu0 0.0
  %2791 = vmatpush1.msra.mxu0 0.0
  %2792 = vmatprep.subr.mxu0 0.0
  %2793 = vmatpush1.msra.mxu0 0.0
  %2794 = vmatprep.subr.mxu0 0.0
  %2795 = vmatpush1.msra.mxu0 0.0
  %2796 = vmatprep.subr.mxu0 0.0
  %2797 = vmatpush1.msra.mxu0 0.0
  %2798 = vmatprep.subr.mxu0 0.0
  %2799 = vmatpush1.msra.mxu0 0.0
  %2800 = vmatprep.subr.mxu0 0.0
  %2801 = vmatpush1.msra.mxu0 0.0
  %2802 = vmatprep.subr.mxu0 0.0
  %2803 = vmatpush1.msra.mxu0 0.0
  %2804 = vmatprep.subr.mxu0 0.0
  %2805 = vmatpush1.msra.mxu0 0.0
  %2806 = vmatprep.subr.mxu0 0.0
  %2807 = vmatpush1.msra.mxu0 0.0
  %2808 = vmatprep.subr.mxu0 0.0
  %2809 = vmatpush1.msra.mxu0 0.0
  %2810 = vmatprep.subr.mxu0 0.0
  %2811 = vmatpush1.msra.mxu0 0.0
  %2812 = vmatprep.subr.mxu0 0.0
  %2813 = vmatpush1.msra.mxu0 0.0
  %2814 = vmatprep.subr.mxu0 0.0
  %2815 = vmatpush1.msra.mxu0 0.0
  %2816 = vmatprep.subr.mxu0 0.0
  %2817 = vmatpush1.msra.mxu0 0.0
  %2818 = vmatprep.subr.mxu0 0.0
  %2819 = vmatpush1.msra.mxu0 0.0
  %2820 = vmatprep.subr.mxu0 0.0
  %2821 = vmatpush1.msra.mxu0 0.0
  %2822 = vmatprep.subr.mxu0 0.0
  %2823 = vmatpush1.msra.mxu0 0.0
  %2824 = vmatprep.subr.mxu0 0.0
  %2825 = vmatpush1.msra.mxu0 0.0
  %2826 = vmatprep.mubr.f32.mxu0 0.0
  %2827 = vmatmul.mubr.f32.gmra.mrb[0].mxu0 %v2751
  %v2828 = vpop.f32.mrb[0].mxu0
  %v2829 = vadd.f32 0.0, %v2828
  %v2830 = vpop.f32.mrb[0].mxu0
  %2831 = vmatprep.mubr.f32.mxu0 0.0
  %2832 = vmatmul.mubr.f32.gmra.mrb[0].mxu0 %v2754
  %v2833 = vpop.f32.mrb[0].mxu0
  %v2834 = vadd.f32 0.0, %v2833
  %v2835 = vpop.f32.mrb[0].mxu0
  %2836 = vmatprep.mubr.f32.mxu0 0.0
  %2837 = vmatmul.mubr.f32.gmra.mrb[0].mxu0 %v2757
  %v2838 = vpop.f32.mrb[0].mxu0
  %v2839 = vadd.f32 0.0, %v2838
  %v2840 = vpop.f32.mrb[0].mxu0
  %2841 = vmatprep.mubr.f32.mxu0 0.0
  %2842 = vmatmul.mubr.f32.gmra.mrb[0].mxu0 %v2760
  %v2843 = vpop.f32.mrb[0].mxu0
  %v2844 = vadd.f32 0.0, %v2843
  %v2845 = vpop.f32.mrb[0].mxu0
  %2846 = vdwg.mxu0
  %v2847 = vlaneseq
  %v2848 = vshrl.u32 %v2847, 7
  %v2849 = vsub.s32 2, %v2848
  %v2850 = vrot.slane %v2668, %v2849
  %v2851 = vadd.f32 %v2829, %v2850
  %v2852 = vadd.f32 %v2834, %v2850
  %v2853 = vadd.f32 %v2839, %v2850
  %v2854 = vadd.f32 %v2844, %v2850
  %v2855 = vlaneseq
  %v2856 = vshrl.u32 %v2855, 7
  %v2857 = vsub.s32 3, %v2856
  %v2858 = vrot.slane %v2668, %v2857
  %2860 = vrot.lane.b32.xlu0 %v2858, 32
  %v2861 = vpop.permute.xlu0 %2860
  %v2863 = vadd.f32 %v2829, %v2861
  %v2864 = vadd.f32 %v2834, %v2861
  %v2865 = vadd.f32 %v2839, %v2861
  %v2866 = vadd.f32 %v2844, %v2861
  %v2867 = vlaneseq
  %v2868 = vshrl.u32 %v2867, 7
  %v2869 = vsub.s32 4, %v2868
  %v2870 = vrot.slane %v2668, %v2869
  %2872 = vrot.lane.b32.xlu0 %v2870, 64
  %v2873 = vpop.permute.xlu0 %2872
  %v2875 = vadd.f32 %v2829, %v2873
  %v2876 = vadd.f32 %v2834, %v2873
  %v2877 = vadd.f32 %v2839, %v2873
  %v2878 = vadd.f32 %v2844, %v2873
  %v2879 = vmul.f32 %v2851, %v2851
  %v2880 = vmul.f32 %v2852, %v2852
  %v2881 = vsel %vm102, %v2879, 0.0
  %v2882 = vsel %vm102, %v2880, 0.0
  %v2883 = vadd.f32 %v2881, %v2882
  %v2884 = vrot.slane %v2883, 4
  %v2885 = vadd.f32 %v2883, %v2884
  %v2886 = vrot.slane %v2885, 2
  %v2887 = vadd.f32 %v2885, %v2886
  %v2888 = vrot.slane %v2887, 1
  %v2889 = vadd.f32 %v2887, %v2888
  %v2890 = vmax.f32 %v2889, 1e-24
  %v2891 = vrsqrt.pop %v2890
  %v2892 = vmul.f32 %v2851, %v2891
  %v2893 = vmul.f32 %v2852, %v2891
  %v2894 = vmul.f32 %v2863, %v2863
  %v2895 = vmul.f32 %v2864, %v2864
  %v2896 = vsel %vm318, %v2894, 0.0
  %v2897 = vsel %vm318, %v2895, 0.0
  %v2898 = vadd.f32 %v2896, %v2897
  %v2899 = vrot.slane %v2898, 4
  %v2900 = vadd.f32 %v2898, %v2899
  %v2901 = vrot.slane %v2900, 2
  %v2902 = vadd.f32 %v2900, %v2901
  %v2903 = vrot.slane %v2902, 1
  %v2904 = vadd.f32 %v2902, %v2903
  %v2905 = vmax.f32 %v2904, 1e-24
  %v2906 = vrsqrt.pop %v2905
  %v2907 = vmul.f32 %v2863, %v2906
  %v2908 = vmul.f32 %v2864, %v2906
  %v2909 = vlaneseq
  %v2910 = vshrl.u32 %v2909, 7
  %v2911 = vsub.s32 5, %v2910
  %v2912 = vrot.slane %v2668, %v2911
  %v2913 = vmul.f32 %v2892, %v2912
  %v2914 = vmul.f32 %v2893, %v2912
  %2915 = vxpose.xlu0.b32.start [1/16] %v2913, 128
  %2916 = vxpose.xlu0.b32.cont [2/16] %v2914, 128
  %2917 = vxpose.xlu0.b32.cont [3/16] 0.0, 128
  %2918 = vxpose.xlu0.b32.cont [4/16] 0.0, 128
  %2919 = vxpose.xlu0.b32.cont [5/16] 0.0, 128
  %2920 = vxpose.xlu0.b32.cont [6/16] 0.0, 128
  %2921 = vxpose.xlu0.b32.cont [7/16] 0.0, 128
  %2922 = vxpose.xlu0.b32.cont [8/16] 0.0, 128
  %2923 = vxpose.xlu0.b32.cont [9/16] 0.0, 128
  %2924 = vxpose.xlu0.b32.cont [10/16] 0.0, 128
  %2925 = vxpose.xlu0.b32.cont [11/16] 0.0, 128
  %2926 = vxpose.xlu0.b32.cont [12/16] 0.0, 128
  %2927 = vxpose.xlu0.b32.cont [13/16] 0.0, 128
  %2928 = vxpose.xlu0.b32.cont [14/16] 0.0, 128
  %2929 = vxpose.xlu0.b32.cont [15/16] 0.0, 128
  %2930 = vxpose.xlu0.b32.end [16/16] 0.0, 128
  %v2931 = vpop.trf.xlu0
  %v2932 = vpop.trf.xlu0
  %v2933 = vpop.trf.xlu0
  %v2934 = vpop.trf.xlu0
  %v2935 = vpop.trf.xlu0
  %v2936 = vpop.trf.xlu0
  %v2937 = vpop.trf.xlu0
  %v2938 = vpop.trf.xlu0
  %v2939 = vpop.trf.xlu0
  %v2940 = vpop.trf.xlu0
  %v2941 = vpop.trf.xlu0
  %v2942 = vpop.trf.xlu0
  %v2943 = vpop.trf.xlu0
  %v2944 = vpop.trf.xlu0
  %v2945 = vpop.trf.xlu0
  %v2946 = vpop.trf.xlu0
  %2949 = vrot.lane.b32.xlu0 %v2907, 96
  %v2950 = vpop.permute.xlu0 %2949
  %2951 = vrot.lane.b32.xlu0 %v2908, 96
  %v2952 = vpop.permute.xlu0 %2951
  %v2956 = vsel %vm378, %v2931, 0
  %v2959 = vsel %vm378, %v2932, 0
  %v2962 = vsel %vm378, %v2933, 0
  %v2965 = vsel %vm378, %v2934, 0
  %2967 = vmatprep.subr.mxu0 0.0
  %2968 = vmatpush1.msra.mxu0 %v2950
  %2969 = vmatprep.subr.mxu0 0.0
  %2970 = vmatpush1.msra.mxu0 %v2952
  %2971 = vmatprep.subr.mxu0 0.0
  %2972 = vmatpush1.msra.mxu0 0.0
  %2973 = vmatprep.subr.mxu0 0.0
  %2974 = vmatpush1.msra.mxu0 0.0
  %2975 = vmatprep.subr.mxu0 0.0
  %2976 = vmatpush1.msra.mxu0 0.0
  %2977 = vmatprep.subr.mxu0 0.0
  %2978 = vmatpush1.msra.mxu0 0.0
  %2979 = vmatprep.subr.mxu0 0.0
  %2980 = vmatpush1.msra.mxu0 0.0
  %2981 = vmatprep.subr.mxu0 0.0
  %2982 = vmatpush1.msra.mxu0 0.0
  %2983 = vmatprep.subr.mxu0 0.0
  %2984 = vmatpush1.msra.mxu0 0.0
  %2985 = vmatprep.subr.mxu0 0.0
  %2986 = vmatpush1.msra.mxu0 0.0
  %2987 = vmatprep.subr.mxu0 0.0
  %2988 = vmatpush1.msra.mxu0 0.0
  %2989 = vmatprep.subr.mxu0 0.0
  %2990 = vmatpush1.msra.mxu0 0.0
  %2991 = vmatprep.subr.mxu0 0.0
  %2992 = vmatpush1.msra.mxu0 0.0
  %2993 = vmatprep.subr.mxu0 0.0
  %2994 = vmatpush1.msra.mxu0 0.0
  %2995 = vmatprep.subr.mxu0 0.0
  %2996 = vmatpush1.msra.mxu0 0.0
  %2997 = vmatprep.subr.mxu0 0.0
  %2998 = vmatpush1.msra.mxu0 0.0
  %2999 = vmatprep.subr.mxu0 0.0
  %3000 = vmatpush1.msra.mxu0 0.0
  %3001 = vmatprep.subr.mxu0 0.0
  %3002 = vmatpush1.msra.mxu0 0.0
  %3003 = vmatprep.subr.mxu0 0.0
  %3004 = vmatpush1.msra.mxu0 0.0
  %3005 = vmatprep.subr.mxu0 0.0
  %3006 = vmatpush1.msra.mxu0 0.0
  %3007 = vmatprep.subr.mxu0 0.0
  %3008 = vmatpush1.msra.mxu0 0.0
  %3009 = vmatprep.subr.mxu0 0.0
  %3010 = vmatpush1.msra.mxu0 0.0
  %3011 = vmatprep.subr.mxu0 0.0
  %3012 = vmatpush1.msra.mxu0 0.0
  %3013 = vmatprep.subr.mxu0 0.0
  %3014 = vmatpush1.msra.mxu0 0.0
  %3015 = vmatprep.subr.mxu0 0.0
  %3016 = vmatpush1.msra.mxu0 0.0
  %3017 = vmatprep.subr.mxu0 0.0
  %3018 = vmatpush1.msra.mxu0 0.0
  %3019 = vmatprep.subr.mxu0 0.0
  %3020 = vmatpush1.msra.mxu0 0.0
  %3021 = vmatprep.subr.mxu0 0.0
  %3022 = vmatpush1.msra.mxu0 0.0
  %3023 = vmatprep.subr.mxu0 0.0
  %3024 = vmatpush1.msra.mxu0 0.0
  %3025 = vmatprep.subr.mxu0 0.0
  %3026 = vmatpush1.msra.mxu0 0.0
  %3027 = vmatprep.subr.mxu0 0.0
  %3028 = vmatpush1.msra.mxu0 0.0
  %3029 = vmatprep.subr.mxu0 0.0
  %3030 = vmatpush1.msra.mxu0 0.0
  %3031 = vmatprep.mubr.f32.mxu0 0.0
  %3032 = vmatmul.mubr.f32.gmra.mrb[0].mxu0 %v2956
  %v3033 = vpop.f32.mrb[0].mxu0
  %v3034 = vadd.f32 %v49, %v3033
  %v3035 = vpop.f32.mrb[0].mxu0
  %3036 = vmatprep.mubr.f32.mxu0 0.0
  %3037 = vmatmul.mubr.f32.gmra.mrb[0].mxu0 %v2959
  %v3038 = vpop.f32.mrb[0].mxu0
  %v3039 = vadd.f32 %v50, %v3038
  %v3040 = vpop.f32.mrb[0].mxu0
  %3041 = vmatprep.mubr.f32.mxu0 0.0
  %3042 = vmatmul.mubr.f32.gmra.mrb[0].mxu0 %v2962
  %v3043 = vpop.f32.mrb[0].mxu0
  %v3044 = vadd.f32 %v51, %v3043
  %v3045 = vpop.f32.mrb[0].mxu0
  %3046 = vmatprep.mubr.f32.mxu0 0.0
  %3047 = vmatmul.mubr.f32.gmra.mrb[0].mxu0 %v2965
  %v3048 = vpop.f32.mrb[0].mxu0
  %v3049 = vadd.f32 %v52, %v3048
  %v3050 = vpop.f32.mrb[0].mxu0
  %3051 = vdwg.mxu0
  %v3052 = vsel %vm102, %v3034, -inf
  %3053 = vmax.xlane.f32.xlu0 %v3052
  %v3054 = vpop.xlane.xlu0 %3053
  %v3055 = vsel %vm102, %v3039, -inf
  %3056 = vmax.xlane.f32.xlu0 %v3055
  %v3057 = vpop.xlane.xlu0 %3056
  %v3058 = vsel %vm102, %v3044, -inf
  %3059 = vmax.xlane.f32.xlu0 %v3058
  %v3060 = vpop.xlane.xlu0 %3059
  %v3061 = vsel %vm102, %v3049, -inf
  %3062 = vmax.xlane.f32.xlu0 %v3061
  %v3063 = vpop.xlane.xlu0 %3062
  %v3064 = vsub.f32 %v3034, %v3054
  %v3065 = vsub.f32 %v3039, %v3057
  %v3066 = vsub.f32 %v3044, %v3060
  %v3067 = vsub.f32 %v3049, %v3063
  %v3068 = vmul.f32 %v3064, 1.442695
  %v3069 = vpow.pop %v3068
  %v3070 = vmul.f32 %v3065, 1.442695
  %v3071 = vpow.pop %v3070
  %v3072 = vmul.f32 %v3066, 1.442695
  %v3073 = vpow.pop %v3072
  %v3074 = vmul.f32 %v3067, 1.442695
  %v3075 = vpow.pop %v3074
  %v3076 = vsel %vm102, %v3069, 0.0
  %3077 = vadd.xlane.f32.xlu0 %v3076
  %v3078 = vpop.xlane.xlu0 %3077
  %v3079 = vsel %vm102, %v3071, 0.0
  %3080 = vadd.xlane.f32.xlu0 %v3079
  %v3081 = vpop.xlane.xlu0 %3080
  %v3082 = vsel %vm102, %v3073, 0.0
  %3083 = vadd.xlane.f32.xlu0 %v3082
  %v3084 = vpop.xlane.xlu0 %3083
  %v3085 = vsel %vm102, %v3075, 0.0
  %3086 = vadd.xlane.f32.xlu0 %v3085
  %v3087 = vpop.xlane.xlu0 %3086
  %v3088 = vrcp.pop %v3078
  %v3089 = vmul.f32 %v3069, %v3088
  %v3090 = vrcp.pop %v3081
  %v3091 = vmul.f32 %v3071, %v3090
  %v3092 = vrcp.pop %v3084
  %v3093 = vmul.f32 %v3073, %v3092
  %v3094 = vrcp.pop %v3087
  %v3095 = vmul.f32 %v3075, %v3094
  %3098 = vrot.lane.b32.xlu0 %v2875, 64
  %v3099 = vpop.permute.xlu0 %3098
  %3100 = vrot.lane.b32.xlu0 %v2876, 64
  %v3101 = vpop.permute.xlu0 %3100
  %v3102 = vsel %vm102, %v3099, 0
  %v3104 = vsel %vm102, %v3101, 0
  %v3107 = vsel %vm102, %v3089, 0
  %v3110 = vsel %vm102, %v3091, 0
  %v3113 = vsel %vm102, %v3093, 0
  %v3116 = vsel %vm102, %v3095, 0
  %3118 = vmatprep.subr.mxu0 0.0
  %3119 = vmatpush1.xpose.msra.mxu0 %v3107
  %3120 = vmatprep.subr.mxu0 0.0
  %3121 = vmatpush1.xpose.msra.mxu0 %v3110
  %3122 = vmatprep.subr.mxu0 0.0
  %3123 = vmatpush1.xpose.msra.mxu0 %v3113
  %3124 = vmatprep.subr.mxu0 0.0
  %3125 = vmatpush1.xpose.msra.mxu0 %v3116
  %3126 = vmatprep.subr.mxu0 0.0
  %3127 = vmatpush1.xpose.msra.mxu0 0.0
  %3128 = vmatprep.subr.mxu0 0.0
  %3129 = vmatpush1.xpose.msra.mxu0 0.0
  %3130 = vmatprep.subr.mxu0 0.0
  %3131 = vmatpush1.xpose.msra.mxu0 0.0
  %3132 = vmatprep.subr.mxu0 0.0
  %3133 = vmatpush1.xpose.msra.mxu0 0.0
  %3134 = vmatprep.subr.mxu0 0.0
  %3135 = vmatpush1.xpose.msra.mxu0 0.0
  %3136 = vmatprep.subr.mxu0 0.0
  %3137 = vmatpush1.xpose.msra.mxu0 0.0
  %3138 = vmatprep.subr.mxu0 0.0
  %3139 = vmatpush1.xpose.msra.mxu0 0.0
  %3140 = vmatprep.subr.mxu0 0.0
  %3141 = vmatpush1.xpose.msra.mxu0 0.0
  %3142 = vmatprep.subr.mxu0 0.0
  %3143 = vmatpush1.xpose.msra.mxu0 0.0
  %3144 = vmatprep.subr.mxu0 0.0
  %3145 = vmatpush1.xpose.msra.mxu0 0.0
  %3146 = vmatprep.subr.mxu0 0.0
  %3147 = vmatpush1.xpose.msra.mxu0 0.0
  %3148 = vmatprep.subr.mxu0 0.0
  %3149 = vmatpush1.xpose.msra.mxu0 0.0
  %3150 = vmatprep.subr.mxu0 0.0
  %3151 = vmatpush1.xpose.msra.mxu0 0.0
  %3152 = vmatprep.subr.mxu0 0.0
  %3153 = vmatpush1.xpose.msra.mxu0 0.0
  %3154 = vmatprep.subr.mxu0 0.0
  %3155 = vmatpush1.xpose.msra.mxu0 0.0
  %3156 = vmatprep.subr.mxu0 0.0
  %3157 = vmatpush1.xpose.msra.mxu0 0.0
  %3158 = vmatprep.subr.mxu0 0.0
  %3159 = vmatpush1.xpose.msra.mxu0 0.0
  %3160 = vmatprep.subr.mxu0 0.0
  %3161 = vmatpush1.xpose.msra.mxu0 0.0
  %3162 = vmatprep.subr.mxu0 0.0
  %3163 = vmatpush1.xpose.msra.mxu0 0.0
  %3164 = vmatprep.subr.mxu0 0.0
  %3165 = vmatpush1.xpose.msra.mxu0 0.0
  %3166 = vmatprep.subr.mxu0 0.0
  %3167 = vmatpush1.xpose.msra.mxu0 0.0
  %3168 = vmatprep.subr.mxu0 0.0
  %3169 = vmatpush1.xpose.msra.mxu0 0.0
  %3170 = vmatprep.subr.mxu0 0.0
  %3171 = vmatpush1.xpose.msra.mxu0 0.0
  %3172 = vmatprep.subr.mxu0 0.0
  %3173 = vmatpush1.xpose.msra.mxu0 0.0
  %3174 = vmatprep.subr.mxu0 0.0
  %3175 = vmatpush1.xpose.msra.mxu0 0.0
  %3176 = vmatprep.subr.mxu0 0.0
  %3177 = vmatpush1.xpose.msra.mxu0 0.0
  %3178 = vmatprep.subr.mxu0 0.0
  %3179 = vmatpush1.xpose.msra.mxu0 0.0
  %3180 = vmatprep.subr.mxu0 0.0
  %3181 = vmatpush1.xpose.msra.mxu0 0.0
  %3182 = vmatprep.mubr.f32.mxu0 0.0
  %3183 = vmatmul.mubr.f32.gmra.mrb[0].mxu0 %v3102
  %v3184 = vpop.f32.mrb[0].mxu0
  %v3185 = vadd.f32 0.0, %v3184
  %v3186 = vpop.f32.mrb[0].mxu0
  %3187 = vmatprep.mubr.f32.mxu0 0.0
  %3188 = vmatmul.mubr.f32.gmra.mrb[0].mxu0 %v3104
  %v3189 = vpop.f32.mrb[0].mxu0
  %v3190 = vadd.f32 0.0, %v3189
  %v3191 = vpop.f32.mrb[0].mxu0
  %3192 = vdwg.mxu0
  %v3193 = vmul.f32 %v2853, %v2853
  %v3194 = vmul.f32 %v2854, %v2854
  %v3195 = vsel %vm102, %v3193, 0.0
  %v3196 = vsel %vm102, %v3194, 0.0
  %v3197 = vadd.f32 %v3195, %v3196
  %v3198 = vrot.slane %v3197, 4
  %v3199 = vadd.f32 %v3197, %v3198
  %v3200 = vrot.slane %v3199, 2
  %v3201 = vadd.f32 %v3199, %v3200
  %v3202 = vrot.slane %v3201, 1
  %v3203 = vadd.f32 %v3201, %v3202
  %v3204 = vmax.f32 %v3203, 1e-24
  %v3205 = vrsqrt.pop %v3204
  %v3206 = vmul.f32 %v2853, %v3205
  %v3207 = vmul.f32 %v2854, %v3205
  %v3208 = vmul.f32 %v2865, %v2865
  %v3209 = vmul.f32 %v2866, %v2866
  %v3210 = vsel %vm318, %v3208, 0.0
  %v3211 = vsel %vm318, %v3209, 0.0
  %v3212 = vadd.f32 %v3210, %v3211
  %v3213 = vrot.slane %v3212, 4
  %v3214 = vadd.f32 %v3212, %v3213
  %v3215 = vrot.slane %v3214, 2
  %v3216 = vadd.f32 %v3214, %v3215
  %v3217 = vrot.slane %v3216, 1
  %v3218 = vadd.f32 %v3216, %v3217
  %v3219 = vmax.f32 %v3218, 1e-24
  %v3220 = vrsqrt.pop %v3219
  %v3221 = vmul.f32 %v2865, %v3220
  %v3222 = vmul.f32 %v2866, %v3220
  %v3223 = vmul.f32 %v3206, %v2912
  %v3224 = vmul.f32 %v3207, %v2912
  %3225 = vxpose.xlu0.b32.start [1/16] %v3223, 128
  %3226 = vxpose.xlu0.b32.cont [2/16] %v3224, 128
  %3227 = vxpose.xlu0.b32.cont [3/16] 0.0, 128
  %3228 = vxpose.xlu0.b32.cont [4/16] 0.0, 128
  %3229 = vxpose.xlu0.b32.cont [5/16] 0.0, 128
  %3230 = vxpose.xlu0.b32.cont [6/16] 0.0, 128
  %3231 = vxpose.xlu0.b32.cont [7/16] 0.0, 128
  %3232 = vxpose.xlu0.b32.cont [8/16] 0.0, 128
  %3233 = vxpose.xlu0.b32.cont [9/16] 0.0, 128
  %3234 = vxpose.xlu0.b32.cont [10/16] 0.0, 128
  %3235 = vxpose.xlu0.b32.cont [11/16] 0.0, 128
  %3236 = vxpose.xlu0.b32.cont [12/16] 0.0, 128
  %3237 = vxpose.xlu0.b32.cont [13/16] 0.0, 128
  %3238 = vxpose.xlu0.b32.cont [14/16] 0.0, 128
  %3239 = vxpose.xlu0.b32.cont [15/16] 0.0, 128
  %3240 = vxpose.xlu0.b32.end [16/16] 0.0, 128
  %v3241 = vpop.trf.xlu0
  %v3242 = vpop.trf.xlu0
  %v3243 = vpop.trf.xlu0
  %v3244 = vpop.trf.xlu0
  %v3245 = vpop.trf.xlu0
  %v3246 = vpop.trf.xlu0
  %v3247 = vpop.trf.xlu0
  %v3248 = vpop.trf.xlu0
  %v3249 = vpop.trf.xlu0
  %v3250 = vpop.trf.xlu0
  %v3251 = vpop.trf.xlu0
  %v3252 = vpop.trf.xlu0
  %v3253 = vpop.trf.xlu0
  %v3254 = vpop.trf.xlu0
  %v3255 = vpop.trf.xlu0
  %v3256 = vpop.trf.xlu0
  %3259 = vrot.lane.b32.xlu0 %v3221, 96
  %v3260 = vpop.permute.xlu0 %3259
  %3261 = vrot.lane.b32.xlu0 %v3222, 96
  %v3262 = vpop.permute.xlu0 %3261
  %v3266 = vsel %vm378, %v3241, 0
  %v3269 = vsel %vm378, %v3242, 0
  %v3272 = vsel %vm378, %v3243, 0
  %v3275 = vsel %vm378, %v3244, 0
  %3277 = vmatprep.subr.mxu0 0.0
  %3278 = vmatpush1.msra.mxu0 %v3260
  %3279 = vmatprep.subr.mxu0 0.0
  %3280 = vmatpush1.msra.mxu0 %v3262
  %3281 = vmatprep.subr.mxu0 0.0
  %3282 = vmatpush1.msra.mxu0 0.0
  %3283 = vmatprep.subr.mxu0 0.0
  %3284 = vmatpush1.msra.mxu0 0.0
  %3285 = vmatprep.subr.mxu0 0.0
  %3286 = vmatpush1.msra.mxu0 0.0
  %3287 = vmatprep.subr.mxu0 0.0
  %3288 = vmatpush1.msra.mxu0 0.0
  %3289 = vmatprep.subr.mxu0 0.0
  %3290 = vmatpush1.msra.mxu0 0.0
  %3291 = vmatprep.subr.mxu0 0.0
  %3292 = vmatpush1.msra.mxu0 0.0
  %3293 = vmatprep.subr.mxu0 0.0
  %3294 = vmatpush1.msra.mxu0 0.0
  %3295 = vmatprep.subr.mxu0 0.0
  %3296 = vmatpush1.msra.mxu0 0.0
  %3297 = vmatprep.subr.mxu0 0.0
  %3298 = vmatpush1.msra.mxu0 0.0
  %3299 = vmatprep.subr.mxu0 0.0
  %3300 = vmatpush1.msra.mxu0 0.0
  %3301 = vmatprep.subr.mxu0 0.0
  %3302 = vmatpush1.msra.mxu0 0.0
  %3303 = vmatprep.subr.mxu0 0.0
  %3304 = vmatpush1.msra.mxu0 0.0
  %3305 = vmatprep.subr.mxu0 0.0
  %3306 = vmatpush1.msra.mxu0 0.0
  %3307 = vmatprep.subr.mxu0 0.0
  %3308 = vmatpush1.msra.mxu0 0.0
  %3309 = vmatprep.subr.mxu0 0.0
  %3310 = vmatpush1.msra.mxu0 0.0
  %3311 = vmatprep.subr.mxu0 0.0
  %3312 = vmatpush1.msra.mxu0 0.0
  %3313 = vmatprep.subr.mxu0 0.0
  %3314 = vmatpush1.msra.mxu0 0.0
  %3315 = vmatprep.subr.mxu0 0.0
  %3316 = vmatpush1.msra.mxu0 0.0
  %3317 = vmatprep.subr.mxu0 0.0
  %3318 = vmatpush1.msra.mxu0 0.0
  %3319 = vmatprep.subr.mxu0 0.0
  %3320 = vmatpush1.msra.mxu0 0.0
  %3321 = vmatprep.subr.mxu0 0.0
  %3322 = vmatpush1.msra.mxu0 0.0
  %3323 = vmatprep.subr.mxu0 0.0
  %3324 = vmatpush1.msra.mxu0 0.0
  %3325 = vmatprep.subr.mxu0 0.0
  %3326 = vmatpush1.msra.mxu0 0.0
  %3327 = vmatprep.subr.mxu0 0.0
  %3328 = vmatpush1.msra.mxu0 0.0
  %3329 = vmatprep.subr.mxu0 0.0
  %3330 = vmatpush1.msra.mxu0 0.0
  %3331 = vmatprep.subr.mxu0 0.0
  %3332 = vmatpush1.msra.mxu0 0.0
  %3333 = vmatprep.subr.mxu0 0.0
  %3334 = vmatpush1.msra.mxu0 0.0
  %3335 = vmatprep.subr.mxu0 0.0
  %3336 = vmatpush1.msra.mxu0 0.0
  %3337 = vmatprep.subr.mxu0 0.0
  %3338 = vmatpush1.msra.mxu0 0.0
  %3339 = vmatprep.subr.mxu0 0.0
  %3340 = vmatpush1.msra.mxu0 0.0
  %3341 = vmatprep.mubr.f32.mxu0 0.0
  %3342 = vmatmul.mubr.f32.gmra.mrb[0].mxu0 %v3266
  %v3343 = vpop.f32.mrb[0].mxu0
  %v3344 = vadd.f32 %v49, %v3343
  %v3345 = vpop.f32.mrb[0].mxu0
  %3346 = vmatprep.mubr.f32.mxu0 0.0
  %3347 = vmatmul.mubr.f32.gmra.mrb[0].mxu0 %v3269
  %v3348 = vpop.f32.mrb[0].mxu0
  %v3349 = vadd.f32 %v50, %v3348
  %v3350 = vpop.f32.mrb[0].mxu0
  %3351 = vmatprep.mubr.f32.mxu0 0.0
  %3352 = vmatmul.mubr.f32.gmra.mrb[0].mxu0 %v3272
  %v3353 = vpop.f32.mrb[0].mxu0
  %v3354 = vadd.f32 %v51, %v3353
  %v3355 = vpop.f32.mrb[0].mxu0
  %3356 = vmatprep.mubr.f32.mxu0 0.0
  %3357 = vmatmul.mubr.f32.gmra.mrb[0].mxu0 %v3275
  %v3358 = vpop.f32.mrb[0].mxu0
  %v3359 = vadd.f32 %v52, %v3358
  %v3360 = vpop.f32.mrb[0].mxu0
  %3361 = vdwg.mxu0
  %v3362 = vsel %vm102, %v3344, -inf
  %3363 = vmax.xlane.f32.xlu0 %v3362
  %v3364 = vpop.xlane.xlu0 %3363
  %v3365 = vsel %vm102, %v3349, -inf
  %3366 = vmax.xlane.f32.xlu0 %v3365
  %v3367 = vpop.xlane.xlu0 %3366
  %v3368 = vsel %vm102, %v3354, -inf
  %3369 = vmax.xlane.f32.xlu0 %v3368
  %v3370 = vpop.xlane.xlu0 %3369
  %v3371 = vsel %vm102, %v3359, -inf
  %3372 = vmax.xlane.f32.xlu0 %v3371
  %v3373 = vpop.xlane.xlu0 %3372
  %v3374 = vsub.f32 %v3344, %v3364
  %v3375 = vsub.f32 %v3349, %v3367
  %v3376 = vsub.f32 %v3354, %v3370
  %v3377 = vsub.f32 %v3359, %v3373
  %v3378 = vmul.f32 %v3374, 1.442695
  %v3379 = vpow.pop %v3378
  %v3380 = vmul.f32 %v3375, 1.442695
  %v3381 = vpow.pop %v3380
  %v3382 = vmul.f32 %v3376, 1.442695
  %v3383 = vpow.pop %v3382
  %v3384 = vmul.f32 %v3377, 1.442695
  %v3385 = vpow.pop %v3384
  %v3386 = vsel %vm102, %v3379, 0.0
  %3387 = vadd.xlane.f32.xlu0 %v3386
  %v3388 = vpop.xlane.xlu0 %3387
  %v3389 = vsel %vm102, %v3381, 0.0
  %3390 = vadd.xlane.f32.xlu0 %v3389
  %v3391 = vpop.xlane.xlu0 %3390
  %v3392 = vsel %vm102, %v3383, 0.0
  %3393 = vadd.xlane.f32.xlu0 %v3392
  %v3394 = vpop.xlane.xlu0 %3393
  %v3395 = vsel %vm102, %v3385, 0.0
  %3396 = vadd.xlane.f32.xlu0 %v3395
  %v3397 = vpop.xlane.xlu0 %3396
  %v3398 = vrcp.pop %v3388
  %v3399 = vmul.f32 %v3379, %v3398
  %v3400 = vrcp.pop %v3391
  %v3401 = vmul.f32 %v3381, %v3400
  %v3402 = vrcp.pop %v3394
  %v3403 = vmul.f32 %v3383, %v3402
  %v3404 = vrcp.pop %v3397
  %v3405 = vmul.f32 %v3385, %v3404
  %3408 = vrot.lane.b32.xlu0 %v2877, 64
  %v3409 = vpop.permute.xlu0 %3408
  %3410 = vrot.lane.b32.xlu0 %v2878, 64
  %v3411 = vpop.permute.xlu0 %3410
  %v3412 = vsel %vm102, %v3409, 0
  %v3414 = vsel %vm102, %v3411, 0
  %v3417 = vsel %vm102, %v3399, 0
  %v3420 = vsel %vm102, %v3401, 0
  %v3423 = vsel %vm102, %v3403, 0
  %v3426 = vsel %vm102, %v3405, 0
  %3428 = vmatprep.subr.mxu0 0.0
  %3429 = vmatpush1.xpose.msra.mxu0 %v3417
  %3430 = vmatprep.subr.mxu0 0.0
  %3431 = vmatpush1.xpose.msra.mxu0 %v3420
  %3432 = vmatprep.subr.mxu0 0.0
  %3433 = vmatpush1.xpose.msra.mxu0 %v3423
  %3434 = vmatprep.subr.mxu0 0.0
  %3435 = vmatpush1.xpose.msra.mxu0 %v3426
  %3436 = vmatprep.subr.mxu0 0.0
  %3437 = vmatpush1.xpose.msra.mxu0 0.0
  %3438 = vmatprep.subr.mxu0 0.0
  %3439 = vmatpush1.xpose.msra.mxu0 0.0
  %3440 = vmatprep.subr.mxu0 0.0
  %3441 = vmatpush1.xpose.msra.mxu0 0.0
  %3442 = vmatprep.subr.mxu0 0.0
  %3443 = vmatpush1.xpose.msra.mxu0 0.0
  %3444 = vmatprep.subr.mxu0 0.0
  %3445 = vmatpush1.xpose.msra.mxu0 0.0
  %3446 = vmatprep.subr.mxu0 0.0
  %3447 = vmatpush1.xpose.msra.mxu0 0.0
  %3448 = vmatprep.subr.mxu0 0.0
  %3449 = vmatpush1.xpose.msra.mxu0 0.0
  %3450 = vmatprep.subr.mxu0 0.0
  %3451 = vmatpush1.xpose.msra.mxu0 0.0
  %3452 = vmatprep.subr.mxu0 0.0
  %3453 = vmatpush1.xpose.msra.mxu0 0.0
  %3454 = vmatprep.subr.mxu0 0.0
  %3455 = vmatpush1.xpose.msra.mxu0 0.0
  %3456 = vmatprep.subr.mxu0 0.0
  %3457 = vmatpush1.xpose.msra.mxu0 0.0
  %3458 = vmatprep.subr.mxu0 0.0
  %3459 = vmatpush1.xpose.msra.mxu0 0.0
  %3460 = vmatprep.subr.mxu0 0.0
  %3461 = vmatpush1.xpose.msra.mxu0 0.0
  %3462 = vmatprep.subr.mxu0 0.0
  %3463 = vmatpush1.xpose.msra.mxu0 0.0
  %3464 = vmatprep.subr.mxu0 0.0
  %3465 = vmatpush1.xpose.msra.mxu0 0.0
  %3466 = vmatprep.subr.mxu0 0.0
  %3467 = vmatpush1.xpose.msra.mxu0 0.0
  %3468 = vmatprep.subr.mxu0 0.0
  %3469 = vmatpush1.xpose.msra.mxu0 0.0
  %3470 = vmatprep.subr.mxu0 0.0
  %3471 = vmatpush1.xpose.msra.mxu0 0.0
  %3472 = vmatprep.subr.mxu0 0.0
  %3473 = vmatpush1.xpose.msra.mxu0 0.0
  %3474 = vmatprep.subr.mxu0 0.0
  %3475 = vmatpush1.xpose.msra.mxu0 0.0
  %3476 = vmatprep.subr.mxu0 0.0
  %3477 = vmatpush1.xpose.msra.mxu0 0.0
  %3478 = vmatprep.subr.mxu0 0.0
  %3479 = vmatpush1.xpose.msra.mxu0 0.0
  %3480 = vmatprep.subr.mxu0 0.0
  %3481 = vmatpush1.xpose.msra.mxu0 0.0
  %3482 = vmatprep.subr.mxu0 0.0
  %3483 = vmatpush1.xpose.msra.mxu0 0.0
  %3484 = vmatprep.subr.mxu0 0.0
  %3485 = vmatpush1.xpose.msra.mxu0 0.0
  %3486 = vmatprep.subr.mxu0 0.0
  %3487 = vmatpush1.xpose.msra.mxu0 0.0
  %3488 = vmatprep.subr.mxu0 0.0
  %3489 = vmatpush1.xpose.msra.mxu0 0.0
  %3490 = vmatprep.subr.mxu0 0.0
  %3491 = vmatpush1.xpose.msra.mxu0 0.0
  %3492 = vmatprep.mubr.f32.mxu0 0.0
  %3493 = vmatmul.mubr.f32.gmra.mrb[0].mxu0 %v3412
  %v3494 = vpop.f32.mrb[0].mxu0
  %v3495 = vadd.f32 0.0, %v3494
  %v3496 = vpop.f32.mrb[0].mxu0
  %3497 = vmatprep.mubr.f32.mxu0 0.0
  %3498 = vmatmul.mubr.f32.gmra.mrb[0].mxu0 %v3414
  %v3499 = vpop.f32.mrb[0].mxu0
  %v3500 = vadd.f32 0.0, %v3499
  %v3501 = vpop.f32.mrb[0].mxu0
  %3502 = vdwg.mxu0
  %v3503 = vlaneseq
  %v3504 = vshrl.u32 %v3503, 7
  %v3505 = vsub.s32 6, %v3504
  %v3506 = vrot.slane %v2668, %v3505
  %3511 = vrot.lane.b32.xlu0 %v2674, 32
  %v3512 = vpop.permute.xlu0 %3511
  %3513 = vrot.lane.b32.xlu0 %v2676, 32
  %v3514 = vpop.permute.xlu0 %3513
  %3515 = vrot.lane.b32.xlu0 %v2678, 32
  %v3516 = vpop.permute.xlu0 %3515
  %3517 = vrot.lane.b32.xlu0 %v2680, 32
  %v3518 = vpop.permute.xlu0 %3517
  %v3524 = vsel %vm102, %v3185, 0
  %v3527 = vsel %vm102, %v3190, 0
  %v3530 = vsel %vm102, %v3495, 0
  %v3533 = vsel %vm102, %v3500, 0
  %3535 = vmatprep.subr.mxu0 0.0
  %3536 = vmatpush1.msra.mxu0 %v3512
  %3537 = vmatprep.subr.mxu0 0.0
  %3538 = vmatpush1.msra.mxu0 %v3514
  %3539 = vmatprep.subr.mxu0 0.0
  %3540 = vmatpush1.msra.mxu0 %v3516
  %3541 = vmatprep.subr.mxu0 0.0
  %3542 = vmatpush1.msra.mxu0 %v3518
  %3543 = vmatprep.subr.mxu0 0.0
  %3544 = vmatpush1.msra.mxu0 0.0
  %3545 = vmatprep.subr.mxu0 0.0
  %3546 = vmatpush1.msra.mxu0 0.0
  %3547 = vmatprep.subr.mxu0 0.0
  %3548 = vmatpush1.msra.mxu0 0.0
  %3549 = vmatprep.subr.mxu0 0.0
  %3550 = vmatpush1.msra.mxu0 0.0
  %3551 = vmatprep.subr.mxu0 0.0
  %3552 = vmatpush1.msra.mxu0 0.0
  %3553 = vmatprep.subr.mxu0 0.0
  %3554 = vmatpush1.msra.mxu0 0.0
  %3555 = vmatprep.subr.mxu0 0.0
  %3556 = vmatpush1.msra.mxu0 0.0
  %3557 = vmatprep.subr.mxu0 0.0
  %3558 = vmatpush1.msra.mxu0 0.0
  %3559 = vmatprep.subr.mxu0 0.0
  %3560 = vmatpush1.msra.mxu0 0.0
  %3561 = vmatprep.subr.mxu0 0.0
  %3562 = vmatpush1.msra.mxu0 0.0
  %3563 = vmatprep.subr.mxu0 0.0
  %3564 = vmatpush1.msra.mxu0 0.0
  %3565 = vmatprep.subr.mxu0 0.0
  %3566 = vmatpush1.msra.mxu0 0.0
  %3567 = vmatprep.subr.mxu0 0.0
  %3568 = vmatpush1.msra.mxu0 0.0
  %3569 = vmatprep.subr.mxu0 0.0
  %3570 = vmatpush1.msra.mxu0 0.0
  %3571 = vmatprep.subr.mxu0 0.0
  %3572 = vmatpush1.msra.mxu0 0.0
  %3573 = vmatprep.subr.mxu0 0.0
  %3574 = vmatpush1.msra.mxu0 0.0
  %3575 = vmatprep.subr.mxu0 0.0
  %3576 = vmatpush1.msra.mxu0 0.0
  %3577 = vmatprep.subr.mxu0 0.0
  %3578 = vmatpush1.msra.mxu0 0.0
  %3579 = vmatprep.subr.mxu0 0.0
  %3580 = vmatpush1.msra.mxu0 0.0
  %3581 = vmatprep.subr.mxu0 0.0
  %3582 = vmatpush1.msra.mxu0 0.0
  %3583 = vmatprep.subr.mxu0 0.0
  %3584 = vmatpush1.msra.mxu0 0.0
  %3585 = vmatprep.subr.mxu0 0.0
  %3586 = vmatpush1.msra.mxu0 0.0
  %3587 = vmatprep.subr.mxu0 0.0
  %3588 = vmatpush1.msra.mxu0 0.0
  %3589 = vmatprep.subr.mxu0 0.0
  %3590 = vmatpush1.msra.mxu0 0.0
  %3591 = vmatprep.subr.mxu0 0.0
  %3592 = vmatpush1.msra.mxu0 0.0
  %3593 = vmatprep.subr.mxu0 0.0
  %3594 = vmatpush1.msra.mxu0 0.0
  %3595 = vmatprep.subr.mxu0 0.0
  %3596 = vmatpush1.msra.mxu0 0.0
  %3597 = vmatprep.subr.mxu0 0.0
  %3598 = vmatpush1.msra.mxu0 0.0
  %3599 = vmatprep.mubr.f32.mxu0 0.0
  %3600 = vmatmul.mubr.f32.gmra.mrb[0].mxu0 %v3524
  %v3601 = vpop.f32.mrb[0].mxu0
  %v3602 = vadd.f32 %v3506, %v3601
  %v3603 = vpop.f32.mrb[0].mxu0
  %3604 = vmatprep.mubr.f32.mxu0 0.0
  %3605 = vmatmul.mubr.f32.gmra.mrb[0].mxu0 %v3527
  %v3606 = vpop.f32.mrb[0].mxu0
  %v3607 = vadd.f32 %v3506, %v3606
  %v3608 = vpop.f32.mrb[0].mxu0
  %3609 = vmatprep.mubr.f32.mxu0 0.0
  %3610 = vmatmul.mubr.f32.gmra.mrb[0].mxu0 %v3530
  %v3611 = vpop.f32.mrb[0].mxu0
  %v3612 = vadd.f32 %v3506, %v3611
  %v3613 = vpop.f32.mrb[0].mxu0
  %3614 = vmatprep.mubr.f32.mxu0 0.0
  %3615 = vmatmul.mubr.f32.gmra.mrb[0].mxu0 %v3533
  %v3616 = vpop.f32.mrb[0].mxu0
  %v3617 = vadd.f32 %v3506, %v3616
  %v3618 = vpop.f32.mrb[0].mxu0
  %3619 = vdwg.mxu0
  %v3620 = vlaneseq
  %v3621 = vshrl.u32 %v3620, 7
  %v3622 = vsub.s32 7, %v3621
  %v3623 = vrot.slane %v2668, %v3622
  %v3624 = vmul.f32 %v3623, %v3602
  %v3625 = vmul.f32 %v3623, %v3607
  %v3626 = vmul.f32 %v3623, %v3612
  %v3627 = vmul.f32 %v3623, %v3617
  %v3628 = vadd.f32 %v2551, %v3624
  %v3629 = vadd.f32 %v2552, %v3625
  %v3630 = vadd.f32 %v2553, %v3626
  %v3631 = vadd.f32 %v2554, %v3627
  %v3632 = vsel %vm102, %v3628, 0.0
  %3633 = vadd.xlane.f32.xlu0 %v3632
  %v3634 = vpop.xlane.xlu0 %3633
  %v3635 = vsel %vm102, %v3629, 0.0
  %3636 = vadd.xlane.f32.xlu0 %v3635
  %v3637 = vpop.xlane.xlu0 %3636
  %v3638 = vsel %vm102, %v3630, 0.0
  %3639 = vadd.xlane.f32.xlu0 %v3638
  %v3640 = vpop.xlane.xlu0 %3639
  %v3641 = vsel %vm102, %v3631, 0.0
  %3642 = vadd.xlane.f32.xlu0 %v3641
  %v3643 = vpop.xlane.xlu0 %3642
  %v3644 = vmul.f32 %v3634, %v115
  %v3645 = vmul.f32 %v3637, %v115
  %v3646 = vmul.f32 %v3640, %v115
  %v3647 = vmul.f32 %v3643, %v115
  %v3648 = vsub.f32 %v3628, %v3644
  %v3649 = vsub.f32 %v3629, %v3645
  %v3650 = vsub.f32 %v3630, %v3646
  %v3651 = vsub.f32 %v3631, %v3647
  %v3652 = vmul.f32 %v3648, %v3648
  %v3653 = vmul.f32 %v3649, %v3649
  %v3654 = vmul.f32 %v3650, %v3650
  %v3655 = vmul.f32 %v3651, %v3651
  %v3656 = vsel %vm102, %v3652, 0.0
  %3657 = vadd.xlane.f32.xlu0 %v3656
  %v3658 = vpop.xlane.xlu0 %3657
  %v3659 = vsel %vm102, %v3653, 0.0
  %3660 = vadd.xlane.f32.xlu0 %v3659
  %v3661 = vpop.xlane.xlu0 %3660
  %v3662 = vsel %vm102, %v3654, 0.0
  %3663 = vadd.xlane.f32.xlu0 %v3662
  %v3664 = vpop.xlane.xlu0 %3663
  %v3665 = vsel %vm102, %v3655, 0.0
  %3666 = vadd.xlane.f32.xlu0 %v3665
  %v3667 = vpop.xlane.xlu0 %3666
  %v3668 = vmul.f32 %v3658, %v115
  %v3669 = vmul.f32 %v3661, %v115
  %v3670 = vmul.f32 %v3664, %v115
  %v3671 = vmul.f32 %v3667, %v115
  %v3672 = vadd.f32 %v3668, 1e-06
  %v3673 = vadd.f32 %v3669, 1e-06
  %v3674 = vadd.f32 %v3670, 1e-06
  %v3675 = vadd.f32 %v3671, 1e-06
  %v3676 = vrsqrt.pop %v3672
  %v3677 = vrsqrt.pop %v3673
  %v3678 = vrsqrt.pop %v3674
  %v3679 = vrsqrt.pop %v3675
  %v3680 = vmul.f32 %v3648, %v3676
  %v3681 = vmul.f32 %v3649, %v3677
  %v3682 = vmul.f32 %v3650, %v3678
  %v3683 = vmul.f32 %v3651, %v3679
  %v3684 = vlaneseq
  %v3685 = vshrl.u32 %v3684, 7
  %v3686 = vsub.s32 0, %v3685
  %v3687 = vrot.slane %v2669, %v3686
  %v3688 = vmul.f32 %v3680, %v3687
  %v3689 = vmul.f32 %v3681, %v3687
  %v3690 = vmul.f32 %v3682, %v3687
  %v3691 = vmul.f32 %v3683, %v3687
  %v3692 = vlaneseq
  %v3693 = vshrl.u32 %v3692, 7
  %v3694 = vsub.s32 1, %v3693
  %v3695 = vrot.slane %v2669, %v3694
  %v3696 = vadd.f32 %v3688, %v3695
  %v3697 = vadd.f32 %v3689, %v3695
  %v3698 = vadd.f32 %v3690, %v3695
  %v3699 = vadd.f32 %v3691, %v3695
  %3700 = vmatprep.subr.mxu0 0.0
  %3701 = vmatpush1.msra.mxu0 %v3696
  %3702 = vmatprep.subr.mxu0 0.0
  %3703 = vmatpush1.msra.mxu0 %v3697
  %3704 = vmatprep.subr.mxu0 0.0
  %3705 = vmatpush1.msra.mxu0 %v3698
  %3706 = vmatprep.subr.mxu0 0.0
  %3707 = vmatpush1.msra.mxu0 %v3699
  %3708 = vmatprep.subr.mxu0 0.0
  %3709 = vmatpush1.msra.mxu0 0.0
  %3710 = vmatprep.subr.mxu0 0.0
  %3711 = vmatpush1.msra.mxu0 0.0
  %3712 = vmatprep.subr.mxu0 0.0
  %3713 = vmatpush1.msra.mxu0 0.0
  %3714 = vmatprep.subr.mxu0 0.0
  %3715 = vmatpush1.msra.mxu0 0.0
  %3716 = vmatprep.subr.mxu0 0.0
  %3717 = vmatpush1.msra.mxu0 0.0
  %3718 = vmatprep.subr.mxu0 0.0
  %3719 = vmatpush1.msra.mxu0 0.0
  %3720 = vmatprep.subr.mxu0 0.0
  %3721 = vmatpush1.msra.mxu0 0.0
  %3722 = vmatprep.subr.mxu0 0.0
  %3723 = vmatpush1.msra.mxu0 0.0
  %3724 = vmatprep.subr.mxu0 0.0
  %3725 = vmatpush1.msra.mxu0 0.0
  %3726 = vmatprep.subr.mxu0 0.0
  %3727 = vmatpush1.msra.mxu0 0.0
  %3728 = vmatprep.subr.mxu0 0.0
  %3729 = vmatpush1.msra.mxu0 0.0
  %3730 = vmatprep.subr.mxu0 0.0
  %3731 = vmatpush1.msra.mxu0 0.0
  %3732 = vmatprep.subr.mxu0 0.0
  %3733 = vmatpush1.msra.mxu0 0.0
  %3734 = vmatprep.subr.mxu0 0.0
  %3735 = vmatpush1.msra.mxu0 0.0
  %3736 = vmatprep.subr.mxu0 0.0
  %3737 = vmatpush1.msra.mxu0 0.0
  %3738 = vmatprep.subr.mxu0 0.0
  %3739 = vmatpush1.msra.mxu0 0.0
  %3740 = vmatprep.subr.mxu0 0.0
  %3741 = vmatpush1.msra.mxu0 0.0
  %3742 = vmatprep.subr.mxu0 0.0
  %3743 = vmatpush1.msra.mxu0 0.0
  %3744 = vmatprep.subr.mxu0 0.0
  %3745 = vmatpush1.msra.mxu0 0.0
  %3746 = vmatprep.subr.mxu0 0.0
  %3747 = vmatpush1.msra.mxu0 0.0
  %3748 = vmatprep.subr.mxu0 0.0
  %3749 = vmatpush1.msra.mxu0 0.0
  %3750 = vmatprep.subr.mxu0 0.0
  %3751 = vmatpush1.msra.mxu0 0.0
  %3752 = vmatprep.subr.mxu0 0.0
  %3753 = vmatpush1.msra.mxu0 0.0
  %3754 = vmatprep.subr.mxu0 0.0
  %3755 = vmatpush1.msra.mxu0 0.0
  %3756 = vmatprep.subr.mxu0 0.0
  %3757 = vmatpush1.msra.mxu0 0.0
  %3758 = vmatprep.subr.mxu0 0.0
  %3759 = vmatpush1.msra.mxu0 0.0
  %3760 = vmatprep.subr.mxu0 0.0
  %3761 = vmatpush1.msra.mxu0 0.0
  %3762 = vmatprep.subr.mxu0 0.0
  %3763 = vmatpush1.msra.mxu0 0.0
  %3764 = vmatprep.mubr.f32.mxu0 0.0
  %3765 = vmatmul.mubr.f32.gmra.mrb[0].mxu0 %v1125
  %v3766 = vpop.f32.mrb[0].mxu0
  %v3767 = vadd.f32 0.0, %v3766
  %v3768 = vpop.f32.mrb[0].mxu0
  %3769 = vmatprep.mubr.f32.mxu0 0.0
  %3770 = vmatmul.mubr.f32.gmra.mrb[0].mxu0 %v1128
  %v3771 = vpop.f32.mrb[0].mxu0
  %v3772 = vadd.f32 0.0, %v3771
  %v3773 = vpop.f32.mrb[0].mxu0
  %3774 = vmatprep.mubr.f32.mxu0 0.0
  %3775 = vmatmul.mubr.f32.gmra.mrb[0].mxu0 %v1131
  %v3776 = vpop.f32.mrb[0].mxu0
  %v3777 = vadd.f32 0.0, %v3776
  %v3778 = vpop.f32.mrb[0].mxu0
  %3779 = vmatprep.mubr.f32.mxu0 0.0
  %3780 = vmatmul.mubr.f32.gmra.mrb[0].mxu0 %v1134
  %v3781 = vpop.f32.mrb[0].mxu0
  %v3782 = vadd.f32 0.0, %v3781
  %v3783 = vpop.f32.mrb[0].mxu0
  %3784 = vmatprep.mubr.f32.mxu0 0.0
  %3785 = vmatmul.mubr.f32.gmra.mrb[0].mxu0 %v1137
  %v3786 = vpop.f32.mrb[0].mxu0
  %v3787 = vadd.f32 0.0, %v3786
  %v3788 = vpop.f32.mrb[0].mxu0
  %3789 = vmatprep.mubr.f32.mxu0 0.0
  %3790 = vmatmul.mubr.f32.gmra.mrb[0].mxu0 %v1140
  %v3791 = vpop.f32.mrb[0].mxu0
  %v3792 = vadd.f32 0.0, %v3791
  %v3793 = vpop.f32.mrb[0].mxu0
  %3794 = vmatprep.mubr.f32.mxu0 0.0
  %3795 = vmatmul.mubr.f32.gmra.mrb[0].mxu0 %v1143
  %v3796 = vpop.f32.mrb[0].mxu0
  %v3797 = vadd.f32 0.0, %v3796
  %v3798 = vpop.f32.mrb[0].mxu0
  %3799 = vmatprep.mubr.f32.mxu0 0.0
  %3800 = vmatmul.mubr.f32.gmra.mrb[0].mxu0 %v1146
  %v3801 = vpop.f32.mrb[0].mxu0
  %v3802 = vadd.f32 0.0, %v3801
  %v3803 = vpop.f32.mrb[0].mxu0
  %3804 = vmatprep.mubr.f32.mxu0 0.0
  %3805 = vmatmul.mubr.f32.gmra.mrb[0].mxu0 %v1149
  %v3806 = vpop.f32.mrb[0].mxu0
  %v3807 = vadd.f32 0.0, %v3806
  %v3808 = vpop.f32.mrb[0].mxu0
  %3809 = vmatprep.mubr.f32.mxu0 0.0
  %3810 = vmatmul.mubr.f32.gmra.mrb[0].mxu0 %v1152
  %v3811 = vpop.f32.mrb[0].mxu0
  %v3812 = vadd.f32 0.0, %v3811
  %v3813 = vpop.f32.mrb[0].mxu0
  %3814 = vmatprep.mubr.f32.mxu0 0.0
  %3815 = vmatmul.mubr.f32.gmra.mrb[0].mxu0 %v1155
  %v3816 = vpop.f32.mrb[0].mxu0
  %v3817 = vadd.f32 0.0, %v3816
  %v3818 = vpop.f32.mrb[0].mxu0
  %3819 = vmatprep.mubr.f32.mxu0 0.0
  %3820 = vmatmul.mubr.f32.gmra.mrb[0].mxu0 %v1158
  %v3821 = vpop.f32.mrb[0].mxu0
  %v3822 = vadd.f32 0.0, %v3821
  %v3823 = vpop.f32.mrb[0].mxu0
  %3824 = vmatprep.mubr.f32.mxu0 0.0
  %3825 = vmatmul.mubr.f32.gmra.mrb[0].mxu0 %v1161
  %v3826 = vpop.f32.mrb[0].mxu0
  %v3827 = vadd.f32 0.0, %v3826
  %v3828 = vpop.f32.mrb[0].mxu0
  %3829 = vmatprep.mubr.f32.mxu0 0.0
  %3830 = vmatmul.mubr.f32.gmra.mrb[0].mxu0 %v1164
  %v3831 = vpop.f32.mrb[0].mxu0
  %v3832 = vadd.f32 0.0, %v3831
  %v3833 = vpop.f32.mrb[0].mxu0
  %3834 = vmatprep.mubr.f32.mxu0 0.0
  %3835 = vmatmul.mubr.f32.gmra.mrb[0].mxu0 %v1167
  %v3836 = vpop.f32.mrb[0].mxu0
  %v3837 = vadd.f32 0.0, %v3836
  %v3838 = vpop.f32.mrb[0].mxu0
  %3839 = vmatprep.mubr.f32.mxu0 0.0
  %3840 = vmatmul.mubr.f32.gmra.mrb[0].mxu0 %v1170
  %v3841 = vpop.f32.mrb[0].mxu0
  %v3842 = vadd.f32 0.0, %v3841
  %v3843 = vpop.f32.mrb[0].mxu0
  %3844 = vmatprep.mubr.f32.mxu0 0.0
  %3845 = vmatmul.mubr.f32.gmra.mrb[0].mxu0 %v1173
  %v3846 = vpop.f32.mrb[0].mxu0
  %v3847 = vadd.f32 0.0, %v3846
  %v3848 = vpop.f32.mrb[0].mxu0
  %3849 = vmatprep.mubr.f32.mxu0 0.0
  %3850 = vmatmul.mubr.f32.gmra.mrb[0].mxu0 %v1176
  %v3851 = vpop.f32.mrb[0].mxu0
  %v3852 = vadd.f32 0.0, %v3851
  %v3853 = vpop.f32.mrb[0].mxu0
  %3854 = vmatprep.mubr.f32.mxu0 0.0
  %3855 = vmatmul.mubr.f32.gmra.mrb[0].mxu0 %v1179
  %v3856 = vpop.f32.mrb[0].mxu0
  %v3857 = vadd.f32 0.0, %v3856
  %v3858 = vpop.f32.mrb[0].mxu0
  %3859 = vmatprep.mubr.f32.mxu0 0.0
  %3860 = vmatmul.mubr.f32.gmra.mrb[0].mxu0 %v1182
  %v3861 = vpop.f32.mrb[0].mxu0
  %v3862 = vadd.f32 0.0, %v3861
  %v3863 = vpop.f32.mrb[0].mxu0
  %3864 = vmatprep.mubr.f32.mxu0 0.0
  %3865 = vmatmul.mubr.f32.gmra.mrb[0].mxu0 %v1185
  %v3866 = vpop.f32.mrb[0].mxu0
  %v3867 = vadd.f32 0.0, %v3866
  %v3868 = vpop.f32.mrb[0].mxu0
  %3869 = vmatprep.mubr.f32.mxu0 0.0
  %3870 = vmatmul.mubr.f32.gmra.mrb[0].mxu0 %v1188
  %v3871 = vpop.f32.mrb[0].mxu0
  %v3872 = vadd.f32 0.0, %v3871
  %v3873 = vpop.f32.mrb[0].mxu0
  %3874 = vmatprep.mubr.f32.mxu0 0.0
  %3875 = vmatmul.mubr.f32.gmra.mrb[0].mxu0 %v1191
  %v3876 = vpop.f32.mrb[0].mxu0
  %v3877 = vadd.f32 0.0, %v3876
  %v3878 = vpop.f32.mrb[0].mxu0
  %3879 = vmatprep.mubr.f32.mxu0 0.0
  %3880 = vmatmul.mubr.f32.gmra.mrb[0].mxu0 %v1194
  %v3881 = vpop.f32.mrb[0].mxu0
  %v3882 = vadd.f32 0.0, %v3881
  %v3883 = vpop.f32.mrb[0].mxu0
  %3884 = vmatprep.mubr.f32.mxu0 0.0
  %3885 = vmatmul.mubr.f32.gmra.mrb[0].mxu0 %v1197
  %v3886 = vpop.f32.mrb[0].mxu0
  %v3887 = vadd.f32 0.0, %v3886
  %v3888 = vpop.f32.mrb[0].mxu0
  %3889 = vmatprep.mubr.f32.mxu0 0.0
  %3890 = vmatmul.mubr.f32.gmra.mrb[0].mxu0 %v1200
  %v3891 = vpop.f32.mrb[0].mxu0
  %v3892 = vadd.f32 0.0, %v3891
  %v3893 = vpop.f32.mrb[0].mxu0
  %3894 = vmatprep.mubr.f32.mxu0 0.0
  %3895 = vmatmul.mubr.f32.gmra.mrb[0].mxu0 %v1203
  %v3896 = vpop.f32.mrb[0].mxu0
  %v3897 = vadd.f32 0.0, %v3896
  %v3898 = vpop.f32.mrb[0].mxu0
  %3899 = vmatprep.mubr.f32.mxu0 0.0
  %3900 = vmatmul.mubr.f32.gmra.mrb[0].mxu0 %v1206
  %v3901 = vpop.f32.mrb[0].mxu0
  %v3902 = vadd.f32 0.0, %v3901
  %v3903 = vpop.f32.mrb[0].mxu0
  %3904 = vmatprep.mubr.f32.mxu0 0.0
  %3905 = vmatmul.mubr.f32.gmra.mrb[0].mxu0 %v1209
  %v3906 = vpop.f32.mrb[0].mxu0
  %v3907 = vadd.f32 0.0, %v3906
  %v3908 = vpop.f32.mrb[0].mxu0
  %3909 = vmatprep.mubr.f32.mxu0 0.0
  %3910 = vmatmul.mubr.f32.gmra.mrb[0].mxu0 %v1212
  %v3911 = vpop.f32.mrb[0].mxu0
  %v3912 = vadd.f32 0.0, %v3911
  %v3913 = vpop.f32.mrb[0].mxu0
  %3914 = vmatprep.mubr.f32.mxu0 0.0
  %3915 = vmatmul.mubr.f32.gmra.mrb[0].mxu0 %v1215
  %v3916 = vpop.f32.mrb[0].mxu0
  %v3917 = vadd.f32 0.0, %v3916
  %v3918 = vpop.f32.mrb[0].mxu0
  %3919 = vmatprep.mubr.f32.mxu0 0.0
  %3920 = vmatmul.mubr.f32.gmra.mrb[0].mxu0 %v1218
  %v3921 = vpop.f32.mrb[0].mxu0
  %v3922 = vadd.f32 0.0, %v3921
  %v3923 = vpop.f32.mrb[0].mxu0
  %3924 = vmatprep.mubr.f32.mxu0 0.0
  %3925 = vmatmul.mubr.f32.gmra.mrb[0].mxu0 %v1221
  %v3926 = vpop.f32.mrb[0].mxu0
  %v3927 = vadd.f32 0.0, %v3926
  %v3928 = vpop.f32.mrb[0].mxu0
  %3929 = vmatprep.mubr.f32.mxu0 0.0
  %3930 = vmatmul.mubr.f32.gmra.mrb[0].mxu0 %v1224
  %v3931 = vpop.f32.mrb[0].mxu0
  %v3932 = vadd.f32 0.0, %v3931
  %v3933 = vpop.f32.mrb[0].mxu0
  %3934 = vmatprep.mubr.f32.mxu0 0.0
  %3935 = vmatmul.mubr.f32.gmra.mrb[0].mxu0 %v1227
  %v3936 = vpop.f32.mrb[0].mxu0
  %v3937 = vadd.f32 0.0, %v3936
  %v3938 = vpop.f32.mrb[0].mxu0
  %3939 = vmatprep.mubr.f32.mxu0 0.0
  %3940 = vmatmul.mubr.f32.gmra.mrb[0].mxu0 %v1230
  %v3941 = vpop.f32.mrb[0].mxu0
  %v3942 = vadd.f32 0.0, %v3941
  %v3943 = vpop.f32.mrb[0].mxu0
  %3944 = vdwg.mxu0
  %v3947 = vcombine.high %v2670, %v2670
  %v3949 = vunpack.c.l.s4 1966171168
  %v3950 = vunpack.c.0.s8 %v3949
  %v3951 = vlaneseq
  %v3952 = vshrl.u32 %v3951, 7
  %v3953 = vsub.s32 %v3950, %v3952
  %v3954 = vrot.slane %v2670, %v3953
  %v3956 = vunpack.c.l.s4 1966171168
  %v3957 = vunpack.c.0.s8 %v3956
  %v3958 = vlaneseq
  %v3959 = vshrl.u32 %v3958, 7
  %v3960 = vsub.s32 %v3957, %v3959
  %v3961 = vrot.slane %v3947, %v3960
  %v3962 = vcombine.high %v3954, %v3954
  %v3963 = vcombine.high %v3961, %v3961
  %v3965 = vunpack.c.l.s4 1966171168
  %v3966 = vunpack.c.0.s8 %v3965
  %v3967 = vlaneseq
  %v3968 = vshrl.u32 %v3967, 7
  %v3969 = vsub.s32 %v3966, %v3968
  %v3970 = vrot.slane %v3961, %v3969
  %v3972 = vunpack.c.l.s4 1966171168
  %v3973 = vunpack.c.0.s8 %v3972
  %v3974 = vlaneseq
  %v3975 = vshrl.u32 %v3974, 7
  %v3976 = vsub.s32 %v3973, %v3975
  %v3977 = vrot.slane %v3962, %v3976
  %v3979 = vunpack.c.l.s4 1966171168
  %v3980 = vunpack.c.0.s8 %v3979
  %v3981 = vlaneseq
  %v3982 = vshrl.u32 %v3981, 7
  %v3983 = vsub.s32 %v3980, %v3982
  %v3984 = vrot.slane %v3963, %v3983
  %v3985 = vcombine.high %v3970, %v3970
  %v3986 = vcombine.high %v3977, %v3977
  %v3987 = vcombine.high %v3984, %v3984
  %v3989 = vunpack.c.l.s4 1966171168
  %v3990 = vunpack.c.0.s8 %v3989
  %v3991 = vlaneseq
  %v3992 = vshrl.u32 %v3991, 7
  %v3993 = vsub.s32 %v3990, %v3992
  %v3994 = vrot.slane %v2671, %v3993
  %v3995 = vcombine.high %v3994, %v3994
  %v3997 = vunpack.c.l.s4 1966171168
  %v3998 = vunpack.c.0.s8 %v3997
  %v3999 = vlaneseq
  %v4000 = vshrl.u32 %v3999, 7
  %v4001 = vsub.s32 %v3998, %v4000
  %v4002 = vrot.slane %v3994, %v4001
  %v4004 = vunpack.c.l.s4 1966171168
  %v4005 = vunpack.c.0.s8 %v4004
  %v4006 = vlaneseq
  %v4007 = vshrl.u32 %v4006, 7
  %v4008 = vsub.s32 %v4005, %v4007
  %v4009 = vrot.slane %v3995, %v4008
  %v4010 = vcombine.high %v4002, %v4002
  %v4011 = vcombine.high %v4009, %v4009
  %v4012 = vlaneseq
  %v4013 = vshrl.u32 %v4012, 7
  %v4014 = vsub.s32 0, %v4013
  %v4015 = vrot.slane %v3986, %v4014
  %v4016 = vlaneseq
  %v4017 = vshrl.u32 %v4016, 7
  %v4018 = vsub.s32 0, %v4017
  %v4019 = vrot.slane %v3970, %v4018
  %v4020 = vlaneseq
  %v4021 = vshrl.u32 %v4020, 7
  %v4022 = vsub.s32 0, %v4021
  %v4023 = vrot.slane %v3984, %v4022
  %v4024 = vlaneseq
  %v4025 = vshrl.u32 %v4024, 7
  %v4026 = vsub.s32 0, %v4025
  %v4027 = vrot.slane %v3985, %v4026
  %v4028 = vlaneseq
  %v4029 = vshrl.u32 %v4028, 7
  %v4030 = vsub.s32 0, %v4029
  %v4031 = vrot.slane %v3987, %v4030
  %v4032 = vlaneseq
  %v4033 = vshrl.u32 %v4032, 7
  %v4034 = vsub.s32 0, %v4033
  %v4035 = vrot.slane %v4002, %v4034
  %v4036 = vlaneseq
  %v4037 = vshrl.u32 %v4036, 7
  %v4038 = vsub.s32 0, %v4037
  %v4039 = vrot.slane %v4009, %v4038
  %v4040 = vlaneseq
  %v4041 = vshrl.u32 %v4040, 7
  %v4042 = vsub.s32 0, %v4041
  %v4043 = vrot.slane %v4010, %v4042
  %v4044 = vlaneseq
  %v4045 = vshrl.u32 %v4044, 7
  %v4046 = vsub.s32 0, %v4045
  %v4047 = vrot.slane %v4011, %v4046
  %v4057 = vmul.f32 %v3767, %v4015
  %v4058 = vmul.f32 %v3772, %v4015
  %v4059 = vmul.f32 %v3777, %v4015
  %v4060 = vmul.f32 %v3782, %v4015
  %v4061 = vmul.f32 %v3787, %v4019
  %v4062 = vmul.f32 %v3792, %v4019
  %v4063 = vmul.f32 %v3797, %v4019
  %v4064 = vmul.f32 %v3802, %v4019
  %v4065 = vmul.f32 %v3807, %v4023
  %v4066 = vmul.f32 %v3812, %v4023
  %v4067 = vmul.f32 %v3817, %v4023
  %v4068 = vmul.f32 %v3822, %v4023
  %v4069 = vmul.f32 %v3827, %v4027
  %v4070 = vmul.f32 %v3832, %v4027
  %v4071 = vmul.f32 %v3837, %v4027
  %v4072 = vmul.f32 %v3842, %v4027
  %v4073 = vmul.f32 %v3847, %v4031
  %v4074 = vmul.f32 %v3852, %v4031
  %v4075 = vmul.f32 %v3857, %v4031
  %v4076 = vmul.f32 %v3862, %v4031
  %v4077 = vmul.f32 %v3867, %v4035
  %v4078 = vmul.f32 %v3872, %v4035
  %v4079 = vmul.f32 %v3877, %v4035
  %v4080 = vmul.f32 %v3882, %v4035
  %v4081 = vmul.f32 %v3887, %v4039
  %v4082 = vmul.f32 %v3892, %v4039
  %v4083 = vmul.f32 %v3897, %v4039
  %v4084 = vmul.f32 %v3902, %v4039
  %v4085 = vmul.f32 %v3907, %v4043
  %v4086 = vmul.f32 %v3912, %v4043
  %v4087 = vmul.f32 %v3917, %v4043
  %v4088 = vmul.f32 %v3922, %v4043
  %v4089 = vmul.f32 %v3927, %v4047
  %v4090 = vmul.f32 %v3932, %v4047
  %v4091 = vmul.f32 %v3937, %v4047
  %v4092 = vmul.f32 %v3942, %v4047
  %v4093 = vsel %vm102, %v4057, 0.0
  %v4094 = vsel %vm102, %v4061, 0.0
  %v4095 = vadd.f32 %v4093, %v4094
  %v4096 = vsel %vm102, %v4065, 0.0
  %v4097 = vadd.f32 %v4095, %v4096
  %v4098 = vsel %vm102, %v4069, 0.0
  %v4099 = vadd.f32 %v4097, %v4098
  %v4100 = vsel %vm102, %v4073, 0.0
  %v4101 = vadd.f32 %v4099, %v4100
  %v4102 = vsel %vm102, %v4077, 0.0
  %v4103 = vadd.f32 %v4101, %v4102
  %v4104 = vsel %vm102, %v4081, 0.0
  %v4105 = vadd.f32 %v4103, %v4104
  %v4106 = vsel %vm102, %v4085, 0.0
  %v4107 = vadd.f32 %v4105, %v4106
  %v4108 = vsel %vm102, %v4089, 0.0
  %v4109 = vadd.f32 %v4107, %v4108
  %v4110 = vsel %vm102, %v4058, 0.0
  %v4111 = vsel %vm102, %v4062, 0.0
  %v4112 = vadd.f32 %v4110, %v4111
  %v4113 = vsel %vm102, %v4066, 0.0
  %v4114 = vadd.f32 %v4112, %v4113
  %v4115 = vsel %vm102, %v4070, 0.0
  %v4116 = vadd.f32 %v4114, %v4115
  %v4117 = vsel %vm102, %v4074, 0.0
  %v4118 = vadd.f32 %v4116, %v4117
  %v4119 = vsel %vm102, %v4078, 0.0
  %v4120 = vadd.f32 %v4118, %v4119
  %v4121 = vsel %vm102, %v4082, 0.0
  %v4122 = vadd.f32 %v4120, %v4121
  %v4123 = vsel %vm102, %v4086, 0.0
  %v4124 = vadd.f32 %v4122, %v4123
  %v4125 = vsel %vm102, %v4090, 0.0
  %v4126 = vadd.f32 %v4124, %v4125
  %v4127 = vsel %vm102, %v4059, 0.0
  %v4128 = vsel %vm102, %v4063, 0.0
  %v4129 = vadd.f32 %v4127, %v4128
  %v4130 = vsel %vm102, %v4067, 0.0
  %v4131 = vadd.f32 %v4129, %v4130
  %v4132 = vsel %vm102, %v4071, 0.0
  %v4133 = vadd.f32 %v4131, %v4132
  %v4134 = vsel %vm102, %v4075, 0.0
  %v4135 = vadd.f32 %v4133, %v4134
  %v4136 = vsel %vm102, %v4079, 0.0
  %v4137 = vadd.f32 %v4135, %v4136
  %v4138 = vsel %vm102, %v4083, 0.0
  %v4139 = vadd.f32 %v4137, %v4138
  %v4140 = vsel %vm102, %v4087, 0.0
  %v4141 = vadd.f32 %v4139, %v4140
  %v4142 = vsel %vm102, %v4091, 0.0
  %v4143 = vadd.f32 %v4141, %v4142
  %v4144 = vsel %vm102, %v4060, 0.0
  %v4145 = vsel %vm102, %v4064, 0.0
  %v4146 = vadd.f32 %v4144, %v4145
  %v4147 = vsel %vm102, %v4068, 0.0
  %v4148 = vadd.f32 %v4146, %v4147
  %v4149 = vsel %vm102, %v4072, 0.0
  %v4150 = vadd.f32 %v4148, %v4149
  %v4151 = vsel %vm102, %v4076, 0.0
  %v4152 = vadd.f32 %v4150, %v4151
  %v4153 = vsel %vm102, %v4080, 0.0
  %v4154 = vadd.f32 %v4152, %v4153
  %v4155 = vsel %vm102, %v4084, 0.0
  %v4156 = vadd.f32 %v4154, %v4155
  %v4157 = vsel %vm102, %v4088, 0.0
  %v4158 = vadd.f32 %v4156, %v4157
  %v4159 = vsel %vm102, %v4092, 0.0
  %v4160 = vadd.f32 %v4158, %v4159
  %v4161 = vlaneseq
  %v4162 = vshrl.u32 %v4161, 7
  %v4163 = vsub.s32 2, %v4162
  %v4164 = vrot.slane %v2669, %v4163
  %v4165 = vadd.f32 %v4109, %v4164
  %v4166 = vadd.f32 %v4126, %v4164
  %v4167 = vadd.f32 %v4143, %v4164
  %v4168 = vadd.f32 %v4160, %v4164
  %v4169 = vmul.f32 %v4165, 0.5
  %v4170 = vmul.f32 %v4166, 0.5
  %v4171 = vmul.f32 %v4167, 0.5
  %v4172 = vmul.f32 %v4168, 0.5
  %v4173 = vmul.f32 %v4165, 0.044715
  %v4174 = vmul.f32 %v4166, 0.044715
  %v4175 = vmul.f32 %v4167, 0.044715
  %v4176 = vmul.f32 %v4168, 0.044715
  %v4177 = vmul.f32 %v4173, %v4165
  %v4178 = vmul.f32 %v4174, %v4166
  %v4179 = vmul.f32 %v4175, %v4167
  %v4180 = vmul.f32 %v4176, %v4168
  %v4181 = vmul.f32 %v4177, %v4165
  %v4182 = vmul.f32 %v4178, %v4166
  %v4183 = vmul.f32 %v4179, %v4167
  %v4184 = vmul.f32 %v4180, %v4168
  %v4185 = vadd.f32 %v4165, %v4181
  %v4186 = vadd.f32 %v4166, %v4182
  %v4187 = vadd.f32 %v4167, %v4183
  %v4188 = vadd.f32 %v4168, %v4184
  %v4189 = vmul.f32 %v4185, 0.7978846
  %v4190 = vmul.f32 %v4186, 0.7978846
  %v4191 = vmul.f32 %v4187, 0.7978846
  %v4192 = vmul.f32 %v4188, 0.7978846
  %v4193 = vtanh.pop %v4189
  %v4194 = vtanh.pop %v4190
  %v4195 = vtanh.pop %v4191
  %v4196 = vtanh.pop %v4192
  %v4197 = vadd.f32 %v4193, 1.0
  %v4198 = vadd.f32 %v4194, 1.0
  %v4199 = vadd.f32 %v4195, 1.0
  %v4200 = vadd.f32 %v4196, 1.0
  %v4201 = vmul.f32 %v4169, %v4197
  %v4202 = vmul.f32 %v4170, %v4198
  %v4203 = vmul.f32 %v4171, %v4199
  %v4204 = vmul.f32 %v4172, %v4200
  %v4205 = vlaneseq
  %v4206 = vshrl.u32 %v4205, 7
  %v4207 = vsub.s32 3, %v4206
  %v4208 = vrot.slane %v2669, %v4207
  %v4209 = vmul.f32 %v4201, %v4208
  %v4210 = vmul.f32 %v4202, %v4208
  %v4211 = vmul.f32 %v4203, %v4208
  %v4212 = vmul.f32 %v4204, %v4208
  %v4213 = vlaneseq
  %v4214 = vshrl.u32 %v4213, 7
  %v4215 = vsub.s32 4, %v4214
  %v4216 = vrot.slane %v2669, %v4215
  %v4217 = vadd.f32 %v4209, %v4216
  %v4218 = vadd.f32 %v4210, %v4216
  %v4219 = vadd.f32 %v4211, %v4216
  %v4220 = vadd.f32 %v4212, %v4216
  %4221 = vmatprep.subr.mxu0 0.0
  %4222 = vmatpush1.msra.mxu0 %v4217
  %4223 = vmatprep.subr.mxu0 0.0
  %4224 = vmatpush1.msra.mxu0 %v4218
  %4225 = vmatprep.subr.mxu0 0.0
  %4226 = vmatpush1.msra.mxu0 %v4219
  %4227 = vmatprep.subr.mxu0 0.0
  %4228 = vmatpush1.msra.mxu0 %v4220
  %4229 = vmatprep.subr.mxu0 0.0
  %4230 = vmatpush1.msra.mxu0 0.0
  %4231 = vmatprep.subr.mxu0 0.0
  %4232 = vmatpush1.msra.mxu0 0.0
  %4233 = vmatprep.subr.mxu0 0.0
  %4234 = vmatpush1.msra.mxu0 0.0
  %4235 = vmatprep.subr.mxu0 0.0
  %4236 = vmatpush1.msra.mxu0 0.0
  %4237 = vmatprep.subr.mxu0 0.0
  %4238 = vmatpush1.msra.mxu0 0.0
  %4239 = vmatprep.subr.mxu0 0.0
  %4240 = vmatpush1.msra.mxu0 0.0
  %4241 = vmatprep.subr.mxu0 0.0
  %4242 = vmatpush1.msra.mxu0 0.0
  %4243 = vmatprep.subr.mxu0 0.0
  %4244 = vmatpush1.msra.mxu0 0.0
  %4245 = vmatprep.subr.mxu0 0.0
  %4246 = vmatpush1.msra.mxu0 0.0
  %4247 = vmatprep.subr.mxu0 0.0
  %4248 = vmatpush1.msra.mxu0 0.0
  %4249 = vmatprep.subr.mxu0 0.0
  %4250 = vmatpush1.msra.mxu0 0.0
  %4251 = vmatprep.subr.mxu0 0.0
  %4252 = vmatpush1.msra.mxu0 0.0
  %4253 = vmatprep.subr.mxu0 0.0
  %4254 = vmatpush1.msra.mxu0 0.0
  %4255 = vmatprep.subr.mxu0 0.0
  %4256 = vmatpush1.msra.mxu0 0.0
  %4257 = vmatprep.subr.mxu0 0.0
  %4258 = vmatpush1.msra.mxu0 0.0
  %4259 = vmatprep.subr.mxu0 0.0
  %4260 = vmatpush1.msra.mxu0 0.0
  %4261 = vmatprep.subr.mxu0 0.0
  %4262 = vmatpush1.msra.mxu0 0.0
  %4263 = vmatprep.subr.mxu0 0.0
  %4264 = vmatpush1.msra.mxu0 0.0
  %4265 = vmatprep.subr.mxu0 0.0
  %4266 = vmatpush1.msra.mxu0 0.0
  %4267 = vmatprep.subr.mxu0 0.0
  %4268 = vmatpush1.msra.mxu0 0.0
  %4269 = vmatprep.subr.mxu0 0.0
  %4270 = vmatpush1.msra.mxu0 0.0
  %4271 = vmatprep.subr.mxu0 0.0
  %4272 = vmatpush1.msra.mxu0 0.0
  %4273 = vmatprep.subr.mxu0 0.0
  %4274 = vmatpush1.msra.mxu0 0.0
  %4275 = vmatprep.subr.mxu0 0.0
  %4276 = vmatpush1.msra.mxu0 0.0
  %4277 = vmatprep.subr.mxu0 0.0
  %4278 = vmatpush1.msra.mxu0 0.0
  %4279 = vmatprep.subr.mxu0 0.0
  %4280 = vmatpush1.msra.mxu0 0.0
  %4281 = vmatprep.subr.mxu0 0.0
  %4282 = vmatpush1.msra.mxu0 0.0
  %4283 = vmatprep.subr.mxu0 0.0
  %4284 = vmatpush1.msra.mxu0 0.0
  %4285 = vmatprep.mubr.f32.mxu0 0.0
  %4286 = vmatmul.mubr.f32.gmra.mrb[0].mxu0 %v1125
  %v4287 = vpop.f32.mrb[0].mxu0
  %v4288 = vadd.f32 0.0, %v4287
  %v4289 = vpop.f32.mrb[0].mxu0
  %4290 = vmatprep.mubr.f32.mxu0 0.0
  %4291 = vmatmul.mubr.f32.gmra.mrb[0].mxu0 %v1128
  %v4292 = vpop.f32.mrb[0].mxu0
  %v4293 = vadd.f32 0.0, %v4292
  %v4294 = vpop.f32.mrb[0].mxu0
  %4295 = vmatprep.mubr.f32.mxu0 0.0
  %4296 = vmatmul.mubr.f32.gmra.mrb[0].mxu0 %v1131
  %v4297 = vpop.f32.mrb[0].mxu0
  %v4298 = vadd.f32 0.0, %v4297
  %v4299 = vpop.f32.mrb[0].mxu0
  %4300 = vmatprep.mubr.f32.mxu0 0.0
  %4301 = vmatmul.mubr.f32.gmra.mrb[0].mxu0 %v1134
  %v4302 = vpop.f32.mrb[0].mxu0
  %v4303 = vadd.f32 0.0, %v4302
  %v4304 = vpop.f32.mrb[0].mxu0
  %4305 = vmatprep.mubr.f32.mxu0 0.0
  %4306 = vmatmul.mubr.f32.gmra.mrb[0].mxu0 %v1137
  %v4307 = vpop.f32.mrb[0].mxu0
  %v4308 = vadd.f32 0.0, %v4307
  %v4309 = vpop.f32.mrb[0].mxu0
  %4310 = vmatprep.mubr.f32.mxu0 0.0
  %4311 = vmatmul.mubr.f32.gmra.mrb[0].mxu0 %v1140
  %v4312 = vpop.f32.mrb[0].mxu0
  %v4313 = vadd.f32 0.0, %v4312
  %v4314 = vpop.f32.mrb[0].mxu0
  %4315 = vmatprep.mubr.f32.mxu0 0.0
  %4316 = vmatmul.mubr.f32.gmra.mrb[0].mxu0 %v1143
  %v4317 = vpop.f32.mrb[0].mxu0
  %v4318 = vadd.f32 0.0, %v4317
  %v4319 = vpop.f32.mrb[0].mxu0
  %4320 = vmatprep.mubr.f32.mxu0 0.0
  %4321 = vmatmul.mubr.f32.gmra.mrb[0].mxu0 %v1146
  %v4322 = vpop.f32.mrb[0].mxu0
  %v4323 = vadd.f32 0.0, %v4322
  %v4324 = vpop.f32.mrb[0].mxu0
  %4325 = vmatprep.mubr.f32.mxu0 0.0
  %4326 = vmatmul.mubr.f32.gmra.mrb[0].mxu0 %v1149
  %v4327 = vpop.f32.mrb[0].mxu0
  %v4328 = vadd.f32 0.0, %v4327
  %v4329 = vpop.f32.mrb[0].mxu0
  %4330 = vmatprep.mubr.f32.mxu0 0.0
  %4331 = vmatmul.mubr.f32.gmra.mrb[0].mxu0 %v1152
  %v4332 = vpop.f32.mrb[0].mxu0
  %v4333 = vadd.f32 0.0, %v4332
  %v4334 = vpop.f32.mrb[0].mxu0
  %4335 = vmatprep.mubr.f32.mxu0 0.0
  %4336 = vmatmul.mubr.f32.gmra.mrb[0].mxu0 %v1155
  %v4337 = vpop.f32.mrb[0].mxu0
  %v4338 = vadd.f32 0.0, %v4337
  %v4339 = vpop.f32.mrb[0].mxu0
  %4340 = vmatprep.mubr.f32.mxu0 0.0
  %4341 = vmatmul.mubr.f32.gmra.mrb[0].mxu0 %v1158
  %v4342 = vpop.f32.mrb[0].mxu0
  %v4343 = vadd.f32 0.0, %v4342
  %v4344 = vpop.f32.mrb[0].mxu0
  %4345 = vmatprep.mubr.f32.mxu0 0.0
  %4346 = vmatmul.mubr.f32.gmra.mrb[0].mxu0 %v1161
  %v4347 = vpop.f32.mrb[0].mxu0
  %v4348 = vadd.f32 0.0, %v4347
  %v4349 = vpop.f32.mrb[0].mxu0
  %4350 = vmatprep.mubr.f32.mxu0 0.0
  %4351 = vmatmul.mubr.f32.gmra.mrb[0].mxu0 %v1164
  %v4352 = vpop.f32.mrb[0].mxu0
  %v4353 = vadd.f32 0.0, %v4352
  %v4354 = vpop.f32.mrb[0].mxu0
  %4355 = vmatprep.mubr.f32.mxu0 0.0
  %4356 = vmatmul.mubr.f32.gmra.mrb[0].mxu0 %v1167
  %v4357 = vpop.f32.mrb[0].mxu0
  %v4358 = vadd.f32 0.0, %v4357
  %v4359 = vpop.f32.mrb[0].mxu0
  %4360 = vmatprep.mubr.f32.mxu0 0.0
  %4361 = vmatmul.mubr.f32.gmra.mrb[0].mxu0 %v1170
  %v4362 = vpop.f32.mrb[0].mxu0
  %v4363 = vadd.f32 0.0, %v4362
  %v4364 = vpop.f32.mrb[0].mxu0
  %4365 = vmatprep.mubr.f32.mxu0 0.0
  %4366 = vmatmul.mubr.f32.gmra.mrb[0].mxu0 %v1173
  %v4367 = vpop.f32.mrb[0].mxu0
  %v4368 = vadd.f32 0.0, %v4367
  %v4369 = vpop.f32.mrb[0].mxu0
  %4370 = vmatprep.mubr.f32.mxu0 0.0
  %4371 = vmatmul.mubr.f32.gmra.mrb[0].mxu0 %v1176
  %v4372 = vpop.f32.mrb[0].mxu0
  %v4373 = vadd.f32 0.0, %v4372
  %v4374 = vpop.f32.mrb[0].mxu0
  %4375 = vmatprep.mubr.f32.mxu0 0.0
  %4376 = vmatmul.mubr.f32.gmra.mrb[0].mxu0 %v1179
  %v4377 = vpop.f32.mrb[0].mxu0
  %v4378 = vadd.f32 0.0, %v4377
  %v4379 = vpop.f32.mrb[0].mxu0
  %4380 = vmatprep.mubr.f32.mxu0 0.0
  %4381 = vmatmul.mubr.f32.gmra.mrb[0].mxu0 %v1182
  %v4382 = vpop.f32.mrb[0].mxu0
  %v4383 = vadd.f32 0.0, %v4382
  %v4384 = vpop.f32.mrb[0].mxu0
  %4385 = vmatprep.mubr.f32.mxu0 0.0
  %4386 = vmatmul.mubr.f32.gmra.mrb[0].mxu0 %v1185
  %v4387 = vpop.f32.mrb[0].mxu0
  %v4388 = vadd.f32 0.0, %v4387
  %v4389 = vpop.f32.mrb[0].mxu0
  %4390 = vmatprep.mubr.f32.mxu0 0.0
  %4391 = vmatmul.mubr.f32.gmra.mrb[0].mxu0 %v1188
  %v4392 = vpop.f32.mrb[0].mxu0
  %v4393 = vadd.f32 0.0, %v4392
  %v4394 = vpop.f32.mrb[0].mxu0
  %4395 = vmatprep.mubr.f32.mxu0 0.0
  %4396 = vmatmul.mubr.f32.gmra.mrb[0].mxu0 %v1191
  %v4397 = vpop.f32.mrb[0].mxu0
  %v4398 = vadd.f32 0.0, %v4397
  %v4399 = vpop.f32.mrb[0].mxu0
  %4400 = vmatprep.mubr.f32.mxu0 0.0
  %4401 = vmatmul.mubr.f32.gmra.mrb[0].mxu0 %v1194
  %v4402 = vpop.f32.mrb[0].mxu0
  %v4403 = vadd.f32 0.0, %v4402
  %v4404 = vpop.f32.mrb[0].mxu0
  %4405 = vmatprep.mubr.f32.mxu0 0.0
  %4406 = vmatmul.mubr.f32.gmra.mrb[0].mxu0 %v1197
  %v4407 = vpop.f32.mrb[0].mxu0
  %v4408 = vadd.f32 0.0, %v4407
  %v4409 = vpop.f32.mrb[0].mxu0
  %4410 = vmatprep.mubr.f32.mxu0 0.0
  %4411 = vmatmul.mubr.f32.gmra.mrb[0].mxu0 %v1200
  %v4412 = vpop.f32.mrb[0].mxu0
  %v4413 = vadd.f32 0.0, %v4412
  %v4414 = vpop.f32.mrb[0].mxu0
  %4415 = vmatprep.mubr.f32.mxu0 0.0
  %4416 = vmatmul.mubr.f32.gmra.mrb[0].mxu0 %v1203
  %v4417 = vpop.f32.mrb[0].mxu0
  %v4418 = vadd.f32 0.0, %v4417
  %v4419 = vpop.f32.mrb[0].mxu0
  %4420 = vmatprep.mubr.f32.mxu0 0.0
  %4421 = vmatmul.mubr.f32.gmra.mrb[0].mxu0 %v1206
  %v4422 = vpop.f32.mrb[0].mxu0
  %v4423 = vadd.f32 0.0, %v4422
  %v4424 = vpop.f32.mrb[0].mxu0
  %4425 = vmatprep.mubr.f32.mxu0 0.0
  %4426 = vmatmul.mubr.f32.gmra.mrb[0].mxu0 %v1209
  %v4427 = vpop.f32.mrb[0].mxu0
  %v4428 = vadd.f32 0.0, %v4427
  %v4429 = vpop.f32.mrb[0].mxu0
  %4430 = vmatprep.mubr.f32.mxu0 0.0
  %4431 = vmatmul.mubr.f32.gmra.mrb[0].mxu0 %v1212
  %v4432 = vpop.f32.mrb[0].mxu0
  %v4433 = vadd.f32 0.0, %v4432
  %v4434 = vpop.f32.mrb[0].mxu0
  %4435 = vmatprep.mubr.f32.mxu0 0.0
  %4436 = vmatmul.mubr.f32.gmra.mrb[0].mxu0 %v1215
  %v4437 = vpop.f32.mrb[0].mxu0
  %v4438 = vadd.f32 0.0, %v4437
  %v4439 = vpop.f32.mrb[0].mxu0
  %4440 = vmatprep.mubr.f32.mxu0 0.0
  %4441 = vmatmul.mubr.f32.gmra.mrb[0].mxu0 %v1218
  %v4442 = vpop.f32.mrb[0].mxu0
  %v4443 = vadd.f32 0.0, %v4442
  %v4444 = vpop.f32.mrb[0].mxu0
  %4445 = vmatprep.mubr.f32.mxu0 0.0
  %4446 = vmatmul.mubr.f32.gmra.mrb[0].mxu0 %v1221
  %v4447 = vpop.f32.mrb[0].mxu0
  %v4448 = vadd.f32 0.0, %v4447
  %v4449 = vpop.f32.mrb[0].mxu0
  %4450 = vmatprep.mubr.f32.mxu0 0.0
  %4451 = vmatmul.mubr.f32.gmra.mrb[0].mxu0 %v1224
  %v4452 = vpop.f32.mrb[0].mxu0
  %v4453 = vadd.f32 0.0, %v4452
  %v4454 = vpop.f32.mrb[0].mxu0
  %4455 = vmatprep.mubr.f32.mxu0 0.0
  %4456 = vmatmul.mubr.f32.gmra.mrb[0].mxu0 %v1227
  %v4457 = vpop.f32.mrb[0].mxu0
  %v4458 = vadd.f32 0.0, %v4457
  %v4459 = vpop.f32.mrb[0].mxu0
  %4460 = vmatprep.mubr.f32.mxu0 0.0
  %4461 = vmatmul.mubr.f32.gmra.mrb[0].mxu0 %v1230
  %v4462 = vpop.f32.mrb[0].mxu0
  %v4463 = vadd.f32 0.0, %v4462
  %v4464 = vpop.f32.mrb[0].mxu0
  %4465 = vdwg.mxu0
  %v4467 = vcombine.high %v2671, %v2671
  %v4469 = vunpack.c.l.s4 1966171168
  %v4470 = vunpack.c.0.s8 %v4469
  %v4471 = vlaneseq
  %v4472 = vshrl.u32 %v4471, 7
  %v4473 = vsub.s32 %v4470, %v4472
  %v4474 = vrot.slane %v4467, %v4473
  %v4475 = vcombine.high %v4474, %v4474
  %v4477 = vunpack.c.l.s4 1966171168
  %v4478 = vunpack.c.0.s8 %v4477
  %v4479 = vlaneseq
  %v4480 = vshrl.u32 %v4479, 7
  %v4481 = vsub.s32 %v4478, %v4480
  %v4482 = vrot.slane %v4474, %v4481
  %v4484 = vunpack.c.l.s4 1966171168
  %v4485 = vunpack.c.0.s8 %v4484
  %v4486 = vlaneseq
  %v4487 = vshrl.u32 %v4486, 7
  %v4488 = vsub.s32 %v4485, %v4487
  %v4489 = vrot.slane %v4475, %v4488
  %v4490 = vcombine.high %v4482, %v4482
  %v4491 = vcombine.high %v4489, %v4489
  %v4492 = vcombine.high %v2672, %v2672
  %v4494 = vunpack.c.l.s4 1966171168
  %v4495 = vunpack.c.0.s8 %v4494
  %v4496 = vlaneseq
  %v4497 = vshrl.u32 %v4496, 7
  %v4498 = vsub.s32 %v4495, %v4497
  %v4499 = vrot.slane %v2672, %v4498
  %v4501 = vunpack.c.l.s4 1966171168
  %v4502 = vunpack.c.0.s8 %v4501
  %v4503 = vlaneseq
  %v4504 = vshrl.u32 %v4503, 7
  %v4505 = vsub.s32 %v4502, %v4504
  %v4506 = vrot.slane %v4492, %v4505
  %v4507 = vcombine.high %v4499, %v4499
  %v4509 = vunpack.c.l.s4 1966171168
  %v4510 = vunpack.c.0.s8 %v4509
  %v4511 = vlaneseq
  %v4512 = vshrl.u32 %v4511, 7
  %v4513 = vsub.s32 %v4510, %v4512
  %v4514 = vrot.slane %v4499, %v4513
  %v4516 = vunpack.c.l.s4 1966171168
  %v4517 = vunpack.c.0.s8 %v4516
  %v4518 = vlaneseq
  %v4519 = vshrl.u32 %v4518, 7
  %v4520 = vsub.s32 %v4517, %v4519
  %v4521 = vrot.slane %v4506, %v4520
  %v4523 = vunpack.c.l.s4 1966171168
  %v4524 = vunpack.c.0.s8 %v4523
  %v4525 = vlaneseq
  %v4526 = vshrl.u32 %v4525, 7
  %v4527 = vsub.s32 %v4524, %v4526
  %v4528 = vrot.slane %v4507, %v4527
  %v4529 = vcombine.high %v4514, %v4514
  %v4530 = vcombine.high %v4528, %v4528
  %v4531 = vlaneseq
  %v4532 = vshrl.u32 %v4531, 7
  %v4533 = vsub.s32 0, %v4532
  %v4534 = vrot.slane %v4482, %v4533
  %v4535 = vlaneseq
  %v4536 = vshrl.u32 %v4535, 7
  %v4537 = vsub.s32 0, %v4536
  %v4538 = vrot.slane %v4489, %v4537
  %v4539 = vlaneseq
  %v4540 = vshrl.u32 %v4539, 7
  %v4541 = vsub.s32 0, %v4540
  %v4542 = vrot.slane %v4490, %v4541
  %v4543 = vlaneseq
  %v4544 = vshrl.u32 %v4543, 7
  %v4545 = vsub.s32 0, %v4544
  %v4546 = vrot.slane %v4491, %v4545
  %v4547 = vlaneseq
  %v4548 = vshrl.u32 %v4547, 7
  %v4549 = vsub.s32 0, %v4548
  %v4550 = vrot.slane %v4514, %v4549
  %v4551 = vlaneseq
  %v4552 = vshrl.u32 %v4551, 7
  %v4553 = vsub.s32 0, %v4552
  %v4554 = vrot.slane %v4528, %v4553
  %v4555 = vlaneseq
  %v4556 = vshrl.u32 %v4555, 7
  %v4557 = vsub.s32 0, %v4556
  %v4558 = vrot.slane %v4529, %v4557
  %v4559 = vlaneseq
  %v4560 = vshrl.u32 %v4559, 7
  %v4561 = vsub.s32 0, %v4560
  %v4562 = vrot.slane %v4530, %v4561
  %v4563 = vlaneseq
  %v4564 = vshrl.u32 %v4563, 7
  %v4565 = vsub.s32 0, %v4564
  %v4566 = vrot.slane %v4521, %v4565
  %v4576 = vmul.f32 %v4288, %v4534
  %v4577 = vmul.f32 %v4293, %v4534
  %v4578 = vmul.f32 %v4298, %v4534
  %v4579 = vmul.f32 %v4303, %v4534
  %v4580 = vmul.f32 %v4308, %v4538
  %v4581 = vmul.f32 %v4313, %v4538
  %v4582 = vmul.f32 %v4318, %v4538
  %v4583 = vmul.f32 %v4323, %v4538
  %v4584 = vmul.f32 %v4328, %v4542
  %v4585 = vmul.f32 %v4333, %v4542
  %v4586 = vmul.f32 %v4338, %v4542
  %v4587 = vmul.f32 %v4343, %v4542
  %v4588 = vmul.f32 %v4348, %v4546
  %v4589 = vmul.f32 %v4353, %v4546
  %v4590 = vmul.f32 %v4358, %v4546
  %v4591 = vmul.f32 %v4363, %v4546
  %v4592 = vmul.f32 %v4368, %v4550
  %v4593 = vmul.f32 %v4373, %v4550
  %v4594 = vmul.f32 %v4378, %v4550
  %v4595 = vmul.f32 %v4383, %v4550
  %v4596 = vmul.f32 %v4388, %v4554
  %v4597 = vmul.f32 %v4393, %v4554
  %v4598 = vmul.f32 %v4398, %v4554
  %v4599 = vmul.f32 %v4403, %v4554
  %v4600 = vmul.f32 %v4408, %v4558
  %v4601 = vmul.f32 %v4413, %v4558
  %v4602 = vmul.f32 %v4418, %v4558
  %v4603 = vmul.f32 %v4423, %v4558
  %v4604 = vmul.f32 %v4428, %v4562
  %v4605 = vmul.f32 %v4433, %v4562
  %v4606 = vmul.f32 %v4438, %v4562
  %v4607 = vmul.f32 %v4443, %v4562
  %v4608 = vmul.f32 %v4448, %v4566
  %v4609 = vmul.f32 %v4453, %v4566
  %v4610 = vmul.f32 %v4458, %v4566
  %v4611 = vmul.f32 %v4463, %v4566
  %v4612 = vsel %vm102, %v4576, 0.0
  %v4613 = vsel %vm102, %v4580, 0.0
  %v4614 = vadd.f32 %v4612, %v4613
  %v4615 = vsel %vm102, %v4584, 0.0
  %v4616 = vadd.f32 %v4614, %v4615
  %v4617 = vsel %vm102, %v4588, 0.0
  %v4618 = vadd.f32 %v4616, %v4617
  %v4619 = vsel %vm102, %v4592, 0.0
  %v4620 = vadd.f32 %v4618, %v4619
  %v4621 = vsel %vm102, %v4596, 0.0
  %v4622 = vadd.f32 %v4620, %v4621
  %v4623 = vsel %vm102, %v4600, 0.0
  %v4624 = vadd.f32 %v4622, %v4623
  %v4625 = vsel %vm102, %v4604, 0.0
  %v4626 = vadd.f32 %v4624, %v4625
  %v4627 = vsel %vm102, %v4608, 0.0
  %v4628 = vadd.f32 %v4626, %v4627
  %v4629 = vsel %vm102, %v4577, 0.0
  %v4630 = vsel %vm102, %v4581, 0.0
  %v4631 = vadd.f32 %v4629, %v4630
  %v4632 = vsel %vm102, %v4585, 0.0
  %v4633 = vadd.f32 %v4631, %v4632
  %v4634 = vsel %vm102, %v4589, 0.0
  %v4635 = vadd.f32 %v4633, %v4634
  %v4636 = vsel %vm102, %v4593, 0.0
  %v4637 = vadd.f32 %v4635, %v4636
  %v4638 = vsel %vm102, %v4597, 0.0
  %v4639 = vadd.f32 %v4637, %v4638
  %v4640 = vsel %vm102, %v4601, 0.0
  %v4641 = vadd.f32 %v4639, %v4640
  %v4642 = vsel %vm102, %v4605, 0.0
  %v4643 = vadd.f32 %v4641, %v4642
  %v4644 = vsel %vm102, %v4609, 0.0
  %v4645 = vadd.f32 %v4643, %v4644
  %v4646 = vsel %vm102, %v4578, 0.0
  %v4647 = vsel %vm102, %v4582, 0.0
  %v4648 = vadd.f32 %v4646, %v4647
  %v4649 = vsel %vm102, %v4586, 0.0
  %v4650 = vadd.f32 %v4648, %v4649
  %v4651 = vsel %vm102, %v4590, 0.0
  %v4652 = vadd.f32 %v4650, %v4651
  %v4653 = vsel %vm102, %v4594, 0.0
  %v4654 = vadd.f32 %v4652, %v4653
  %v4655 = vsel %vm102, %v4598, 0.0
  %v4656 = vadd.f32 %v4654, %v4655
  %v4657 = vsel %vm102, %v4602, 0.0
  %v4658 = vadd.f32 %v4656, %v4657
  %v4659 = vsel %vm102, %v4606, 0.0
  %v4660 = vadd.f32 %v4658, %v4659
  %v4661 = vsel %vm102, %v4610, 0.0
  %v4662 = vadd.f32 %v4660, %v4661
  %v4663 = vsel %vm102, %v4579, 0.0
  %v4664 = vsel %vm102, %v4583, 0.0
  %v4665 = vadd.f32 %v4663, %v4664
  %v4666 = vsel %vm102, %v4587, 0.0
  %v4667 = vadd.f32 %v4665, %v4666
  %v4668 = vsel %vm102, %v4591, 0.0
  %v4669 = vadd.f32 %v4667, %v4668
  %v4670 = vsel %vm102, %v4595, 0.0
  %v4671 = vadd.f32 %v4669, %v4670
  %v4672 = vsel %vm102, %v4599, 0.0
  %v4673 = vadd.f32 %v4671, %v4672
  %v4674 = vsel %vm102, %v4603, 0.0
  %v4675 = vadd.f32 %v4673, %v4674
  %v4676 = vsel %vm102, %v4607, 0.0
  %v4677 = vadd.f32 %v4675, %v4676
  %v4678 = vsel %vm102, %v4611, 0.0
  %v4679 = vadd.f32 %v4677, %v4678
  %v4680 = vlaneseq
  %v4681 = vshrl.u32 %v4680, 7
  %v4682 = vsub.s32 5, %v4681
  %v4683 = vrot.slane %v2669, %v4682
  %v4684 = vadd.f32 %v4628, %v4683
  %v4685 = vadd.f32 %v4645, %v4683
  %v4686 = vadd.f32 %v4662, %v4683
  %v4687 = vadd.f32 %v4679, %v4683
  %v4688 = vlaneseq
  %v4689 = vshrl.u32 %v4688, 7
  %v4690 = vsub.s32 6, %v4689
  %v4691 = vrot.slane %v2669, %v4690
  %v4692 = vmul.f32 %v4691, %v4684
  %v4693 = vmul.f32 %v4691, %v4685
  %v4694 = vmul.f32 %v4691, %v4686
  %v4695 = vmul.f32 %v4691, %v4687
  %v4696 = vadd.f32 %v3628, %v4692
  %v4697 = vadd.f32 %v3629, %v4693
  %v4698 = vadd.f32 %v3630, %v4694
  %v4699 = vadd.f32 %v3631, %v4695
  %v4700 = vsel %vm102, %v4696, 0.0
  %4701 = vadd.xlane.f32.xlu0 %v4700
  %v4702 = vpop.xlane.xlu0 %4701
  %v4703 = vsel %vm102, %v4697, 0.0
  %4704 = vadd.xlane.f32.xlu0 %v4703
  %v4705 = vpop.xlane.xlu0 %4704
  %v4706 = vsel %vm102, %v4698, 0.0
  %4707 = vadd.xlane.f32.xlu0 %v4706
  %v4708 = vpop.xlane.xlu0 %4707
  %v4709 = vsel %vm102, %v4699, 0.0
  %4710 = vadd.xlane.f32.xlu0 %v4709
  %v4711 = vpop.xlane.xlu0 %4710
  %v4712 = vmul.f32 %v4702, %v115
  %v4713 = vmul.f32 %v4705, %v115
  %v4714 = vmul.f32 %v4708, %v115
  %v4715 = vmul.f32 %v4711, %v115
  %v4716 = vsub.f32 %v4696, %v4712
  %v4717 = vsub.f32 %v4697, %v4713
  %v4718 = vsub.f32 %v4698, %v4714
  %v4719 = vsub.f32 %v4699, %v4715
  %v4720 = vmul.f32 %v4716, %v4716
  %v4721 = vmul.f32 %v4717, %v4717
  %v4722 = vmul.f32 %v4718, %v4718
  %v4723 = vmul.f32 %v4719, %v4719
  %v4724 = vsel %vm102, %v4720, 0.0
  %4725 = vadd.xlane.f32.xlu0 %v4724
  %v4726 = vpop.xlane.xlu0 %4725
  %v4727 = vsel %vm102, %v4721, 0.0
  %4728 = vadd.xlane.f32.xlu0 %v4727
  %v4729 = vpop.xlane.xlu0 %4728
  %v4730 = vsel %vm102, %v4722, 0.0
  %4731 = vadd.xlane.f32.xlu0 %v4730
  %v4732 = vpop.xlane.xlu0 %4731
  %v4733 = vsel %vm102, %v4723, 0.0
  %4734 = vadd.xlane.f32.xlu0 %v4733
  %v4735 = vpop.xlane.xlu0 %4734
  %v4736 = vmul.f32 %v4726, %v115
  %v4737 = vmul.f32 %v4729, %v115
  %v4738 = vmul.f32 %v4732, %v115
  %v4739 = vmul.f32 %v4735, %v115
  %v4740 = vadd.f32 %v4736, 1e-06
  %v4741 = vadd.f32 %v4737, 1e-06
  %v4742 = vadd.f32 %v4738, 1e-06
  %v4743 = vadd.f32 %v4739, 1e-06
  %v4744 = vrsqrt.pop %v4740
  %v4745 = vrsqrt.pop %v4741
  %v4746 = vrsqrt.pop %v4742
  %v4747 = vrsqrt.pop %v4743
  %v4748 = vmul.f32 %v4716, %v4744
  %v4749 = vmul.f32 %v4717, %v4745
  %v4750 = vmul.f32 %v4718, %v4746
  %v4751 = vmul.f32 %v4719, %v4747
  %v4752 = vlaneseq
  %v4753 = vshrl.u32 %v4752, 7
  %v4754 = vsub.s32 7, %v4753
  %v4755 = vrot.slane %v2669, %v4754
  %v4756 = vmul.f32 %v4748, %v4755
  %v4757 = vmul.f32 %v4749, %v4755
  %v4758 = vmul.f32 %v4750, %v4755
  %v4759 = vmul.f32 %v4751, %v4755
  %v4760 = vlaneseq
  %v4761 = vshrl.u32 %v4760, 7
  %v4762 = vsub.s32 0, %v4761
  %v4763 = vrot.slane %v2670, %v4762
  %v4764 = vadd.f32 %v4756, %v4763
  %v4765 = vadd.f32 %v4757, %v4763
  %v4766 = vadd.f32 %v4758, %v4763
  %v4767 = vadd.f32 %v4759, %v4763
  %v4768 = vld [vmem:[%s7 + $0x1] sm:$0x1]
  %v4769 = vlaneseq
  %v4770 = vshrl.u32 %v4769, 7
  %v4771 = vsub.s32 0, %v4770
  %v4772 = vrot.slane %v4768, %v4771
  %v4774 = vsel %vm102, %v4764, 0
  %v4777 = vsel %vm102, %v4765, 0
  %v4780 = vsel %vm102, %v4766, 0
  %v4783 = vsel %vm102, %v4767, 0
  %4785 = vmatprep.subr.mxu0 0.0
  %4786 = vmatpush1.msra.mxu0 %v2675
  %4787 = vmatprep.subr.mxu0 0.0
  %4788 = vmatpush1.msra.mxu0 %v2677
  %4789 = vmatprep.subr.mxu0 0.0
  %4790 = vmatpush1.msra.mxu0 %v2679
  %4791 = vmatprep.subr.mxu0 0.0
  %4792 = vmatpush1.msra.mxu0 %v2681
  %4793 = vmatprep.subr.mxu0 0.0
  %4794 = vmatpush1.msra.mxu0 0.0
  %4795 = vmatprep.subr.mxu0 0.0
  %4796 = vmatpush1.msra.mxu0 0.0
  %4797 = vmatprep.subr.mxu0 0.0
  %4798 = vmatpush1.msra.mxu0 0.0
  %4799 = vmatprep.subr.mxu0 0.0
  %4800 = vmatpush1.msra.mxu0 0.0
  %4801 = vmatprep.subr.mxu0 0.0
  %4802 = vmatpush1.msra.mxu0 0.0
  %4803 = vmatprep.subr.mxu0 0.0
  %4804 = vmatpush1.msra.mxu0 0.0
  %4805 = vmatprep.subr.mxu0 0.0
  %4806 = vmatpush1.msra.mxu0 0.0
  %4807 = vmatprep.subr.mxu0 0.0
  %4808 = vmatpush1.msra.mxu0 0.0
  %4809 = vmatprep.subr.mxu0 0.0
  %4810 = vmatpush1.msra.mxu0 0.0
  %4811 = vmatprep.subr.mxu0 0.0
  %4812 = vmatpush1.msra.mxu0 0.0
  %4813 = vmatprep.subr.mxu0 0.0
  %4814 = vmatpush1.msra.mxu0 0.0
  %4815 = vmatprep.subr.mxu0 0.0
  %4816 = vmatpush1.msra.mxu0 0.0
  %4817 = vmatprep.subr.mxu0 0.0
  %4818 = vmatpush1.msra.mxu0 0.0
  %4819 = vmatprep.subr.mxu0 0.0
  %4820 = vmatpush1.msra.mxu0 0.0
  %4821 = vmatprep.subr.mxu0 0.0
  %4822 = vmatpush1.msra.mxu0 0.0
  %4823 = vmatprep.subr.mxu0 0.0
  %4824 = vmatpush1.msra.mxu0 0.0
  %4825 = vmatprep.subr.mxu0 0.0
  %4826 = vmatpush1.msra.mxu0 0.0
  %4827 = vmatprep.subr.mxu0 0.0
  %4828 = vmatpush1.msra.mxu0 0.0
  %4829 = vmatprep.subr.mxu0 0.0
  %4830 = vmatpush1.msra.mxu0 0.0
  %4831 = vmatprep.subr.mxu0 0.0
  %4832 = vmatpush1.msra.mxu0 0.0
  %4833 = vmatprep.subr.mxu0 0.0
  %4834 = vmatpush1.msra.mxu0 0.0
  %4835 = vmatprep.subr.mxu0 0.0
  %4836 = vmatpush1.msra.mxu0 0.0
  %4837 = vmatprep.subr.mxu0 0.0
  %4838 = vmatpush1.msra.mxu0 0.0
  %4839 = vmatprep.subr.mxu0 0.0
  %4840 = vmatpush1.msra.mxu0 0.0
  %4841 = vmatprep.subr.mxu0 0.0
  %4842 = vmatpush1.msra.mxu0 0.0
  %4843 = vmatprep.subr.mxu0 0.0
  %4844 = vmatpush1.msra.mxu0 0.0
  %4845 = vmatprep.subr.mxu0 0.0
  %4846 = vmatpush1.msra.mxu0 0.0
  %4847 = vmatprep.subr.mxu0 0.0
  %4848 = vmatpush1.msra.mxu0 0.0
  %4849 = vmatprep.mubr.f32.mxu0 0.0
  %4850 = vmatmul.mubr.f32.gmra.mrb[0].mxu0 %v4774
  %v4851 = vpop.f32.mrb[0].mxu0
  %v4852 = vadd.f32 %v4772, %v4851
  %v4853 = vpop.f32.mrb[0].mxu0
  %4854 = vmatprep.mubr.f32.mxu0 0.0
  %4855 = vmatmul.mubr.f32.gmra.mrb[0].mxu0 %v4777
  %v4856 = vpop.f32.mrb[0].mxu0
  %v4857 = vadd.f32 %v4772, %v4856
  %v4858 = vpop.f32.mrb[0].mxu0
  %4859 = vmatprep.mubr.f32.mxu0 0.0
  %4860 = vmatmul.mubr.f32.gmra.mrb[0].mxu0 %v4780
  %v4861 = vpop.f32.mrb[0].mxu0
  %v4862 = vadd.f32 %v4772, %v4861
  %v4863 = vpop.f32.mrb[0].mxu0
  %4864 = vmatprep.mubr.f32.mxu0 0.0
  %4865 = vmatmul.mubr.f32.gmra.mrb[0].mxu0 %v4783
  %v4866 = vpop.f32.mrb[0].mxu0
  %v4867 = vadd.f32 %v4772, %v4866
  %v4868 = vpop.f32.mrb[0].mxu0
  %4869 = vdwg.mxu0
  %v4870 = vmul.f32 %v4852, 0.5
  %v4871 = vmul.f32 %v4857, 0.5
  %v4872 = vmul.f32 %v4862, 0.5
  %v4873 = vmul.f32 %v4867, 0.5
  %v4874 = vmul.f32 %v4852, 0.044715
  %v4875 = vmul.f32 %v4857, 0.044715
  %v4876 = vmul.f32 %v4862, 0.044715
  %v4877 = vmul.f32 %v4867, 0.044715
  %v4878 = vmul.f32 %v4874, %v4852
  %v4879 = vmul.f32 %v4875, %v4857
  %v4880 = vmul.f32 %v4876, %v4862
  %v4881 = vmul.f32 %v4877, %v4867
  %v4882 = vmul.f32 %v4878, %v4852
  %v4883 = vmul.f32 %v4879, %v4857
  %v4884 = vmul.f32 %v4880, %v4862
  %v4885 = vmul.f32 %v4881, %v4867
  %v4886 = vadd.f32 %v4852, %v4882
  %v4887 = vadd.f32 %v4857, %v4883
  %v4888 = vadd.f32 %v4862, %v4884
  %v4889 = vadd.f32 %v4867, %v4885
  %v4890 = vmul.f32 %v4886, 0.7978846
  %v4891 = vmul.f32 %v4887, 0.7978846
  %v4892 = vmul.f32 %v4888, 0.7978846
  %v4893 = vmul.f32 %v4889, 0.7978846
  %v4894 = vtanh.pop %v4890
  %v4895 = vtanh.pop %v4891
  %v4896 = vtanh.pop %v4892
  %v4897 = vtanh.pop %v4893
  %v4898 = vadd.f32 %v4894, 1.0
  %v4899 = vadd.f32 %v4895, 1.0
  %v4900 = vadd.f32 %v4896, 1.0
  %v4901 = vadd.f32 %v4897, 1.0
  %v4902 = vmul.f32 %v4870, %v4898
  %v4903 = vmul.f32 %v4871, %v4899
  %v4904 = vmul.f32 %v4872, %v4900
  %v4905 = vmul.f32 %v4873, %v4901
  %s4906 = scalar_lea.vmem %s6, 128
  %v4907 = vld [vmem:[%s4906] sm:$0xff]
  %v4908 = vld [vmem:[%s4906 + $0x8] sm:$0xff]
  %v4909 = vld [vmem:[%s4906 + $0x10] sm:$0xff]
  %v4910 = vld [vmem:[%s4906 + $0x18] sm:$0xff]
  %v4911 = vld [vmem:[%s4906 + $0x20] sm:$0xff]
  %v4912 = vld [vmem:[%s4906 + $0x28] sm:$0xff]
  %v4913 = vld [vmem:[%s4906 + $0x30] sm:$0xff]
  %v4914 = vld [vmem:[%s4906 + $0x38] sm:$0xff]
  %v4915 = vld [vmem:[%s4906 + $0x40] sm:$0xff]
  %v4916 = vld [vmem:[%s4906 + $0x48] sm:$0xff]
  %v4917 = vld [vmem:[%s4906 + $0x50] sm:$0xff]
  %v4918 = vld [vmem:[%s4906 + $0x58] sm:$0xff]
  %v4919 = vld [vmem:[%s4906 + $0x60] sm:$0xff]
  %v4920 = vld [vmem:[%s4906 + $0x68] sm:$0xff]
  %v4921 = vld [vmem:[%s4906 + $0x70] sm:$0xff]
  %v4922 = vld [vmem:[%s4906 + $0x78] sm:$0xff]
  %v4923 = vlaneseq
  %v4924 = vshrl.u32 %v4923, 7
  %v4925 = vsub.s32 1, %v4924
  %v4926 = vrot.slane %v2670, %v4925
  %4927 = vmatprep.subr.mxu0 0.0
  %4928 = vmatpush1.msra.mxu0 %v4907
  %4929 = vmatprep.subr.mxu0 0.0
  %4930 = vmatpush1.msra.mxu0 %v4908
  %4931 = vmatprep.subr.mxu0 0.0
  %4932 = vmatpush1.msra.mxu0 %v4909
  %4933 = vmatprep.subr.mxu0 0.0
  %4934 = vmatpush1.msra.mxu0 %v4910
  %4935 = vmatprep.subr.mxu0 0.0
  %4936 = vmatpush1.msra.mxu0 %v4911
  %4937 = vmatprep.subr.mxu0 0.0
  %4938 = vmatpush1.msra.mxu0 %v4912
  %4939 = vmatprep.subr.mxu0 0.0
  %4940 = vmatpush1.msra.mxu0 %v4913
  %4941 = vmatprep.subr.mxu0 0.0
  %4942 = vmatpush1.msra.mxu0 %v4914
  %4943 = vmatprep.subr.mxu0 0.0
  %4944 = vmatpush1.msra.mxu0 %v4915
  %4945 = vmatprep.subr.mxu0 0.0
  %4946 = vmatpush1.msra.mxu0 %v4916
  %4947 = vmatprep.subr.mxu0 0.0
  %4948 = vmatpush1.msra.mxu0 %v4917
  %4949 = vmatprep.subr.mxu0 0.0
  %4950 = vmatpush1.msra.mxu0 %v4918
  %4951 = vmatprep.subr.mxu0 0.0
  %4952 = vmatpush1.msra.mxu0 %v4919
  %4953 = vmatprep.subr.mxu0 0.0
  %4954 = vmatpush1.msra.mxu0 %v4920
  %4955 = vmatprep.subr.mxu0 0.0
  %4956 = vmatpush1.msra.mxu0 %v4921
  %4957 = vmatprep.subr.mxu0 0.0
  %4958 = vmatpush1.msra.mxu0 %v4922
  %4959 = vmatprep.subr.mxu0 0.0
  %4960 = vmatpush1.msra.mxu0 0.0
  %4961 = vmatprep.subr.mxu0 0.0
  %4962 = vmatpush1.msra.mxu0 0.0
  %4963 = vmatprep.subr.mxu0 0.0
  %4964 = vmatpush1.msra.mxu0 0.0
  %4965 = vmatprep.subr.mxu0 0.0
  %4966 = vmatpush1.msra.mxu0 0.0
  %4967 = vmatprep.subr.mxu0 0.0
  %4968 = vmatpush1.msra.mxu0 0.0
  %4969 = vmatprep.subr.mxu0 0.0
  %4970 = vmatpush1.msra.mxu0 0.0
  %4971 = vmatprep.subr.mxu0 0.0
  %4972 = vmatpush1.msra.mxu0 0.0
  %4973 = vmatprep.subr.mxu0 0.0
  %4974 = vmatpush1.msra.mxu0 0.0
  %4975 = vmatprep.subr.mxu0 0.0
  %4976 = vmatpush1.msra.mxu0 0.0
  %4977 = vmatprep.subr.mxu0 0.0
  %4978 = vmatpush1.msra.mxu0 0.0
  %4979 = vmatprep.subr.mxu0 0.0
  %4980 = vmatpush1.msra.mxu0 0.0
  %4981 = vmatprep.subr.mxu0 0.0
  %4982 = vmatpush1.msra.mxu0 0.0
  %4983 = vmatprep.subr.mxu0 0.0
  %4984 = vmatpush1.msra.mxu0 0.0
  %4985 = vmatprep.subr.mxu0 0.0
  %4986 = vmatpush1.msra.mxu0 0.0
  %4987 = vmatprep.subr.mxu0 0.0
  %4988 = vmatpush1.msra.mxu0 0.0
  %4989 = vmatprep.subr.mxu0 0.0
  %4990 = vmatpush1.msra.mxu0 0.0
  %4991 = vmatprep.mubr.f32.mxu0 0.0
  %4992 = vmatmul.mubr.f32.gmra.mrb[0].mxu0 %v4902
  %v4993 = vpop.f32.mrb[0].mxu0
  %v4994 = vadd.f32 %v4926, %v4993
  %v4995 = vpop.f32.mrb[0].mxu0
  %4996 = vmatprep.mubr.f32.mxu0 0.0
  %4997 = vmatmul.mubr.f32.gmra.mrb[0].mxu0 %v4903
  %v4998 = vpop.f32.mrb[0].mxu0
  %v4999 = vadd.f32 %v4926, %v4998
  %v5000 = vpop.f32.mrb[0].mxu0
  %5001 = vmatprep.mubr.f32.mxu0 0.0
  %5002 = vmatmul.mubr.f32.gmra.mrb[0].mxu0 %v4904
  %v5003 = vpop.f32.mrb[0].mxu0
  %v5004 = vadd.f32 %v4926, %v5003
  %v5005 = vpop.f32.mrb[0].mxu0
  %5006 = vmatprep.mubr.f32.mxu0 0.0
  %5007 = vmatmul.mubr.f32.gmra.mrb[0].mxu0 %v4905
  %v5008 = vpop.f32.mrb[0].mxu0
  %v5009 = vadd.f32 %v4926, %v5008
  %v5010 = vpop.f32.mrb[0].mxu0
  %5011 = vdwg.mxu0
  %v5012 = vlaneseq
  %v5013 = vshrl.u32 %v5012, 7
  %v5014 = vsub.s32 2, %v5013
  %v5015 = vrot.slane %v2670, %v5014
  %v5016 = vmul.f32 %v5015, %v4994
  %v5017 = vmul.f32 %v5015, %v4999
  %v5018 = vmul.f32 %v5015, %v5004
  %v5019 = vmul.f32 %v5015, %v5009
  %v5020 = vadd.f32 %v4696, %v5016
  %v5021 = vadd.f32 %v4697, %v5017
  %v5022 = vadd.f32 %v4698, %v5018
  %v5023 = vadd.f32 %v4699, %v5019
  %s5024 = scalar_lea.vmem %s4, 80
  %v5025 = vld [vmem:[%s5024] sm:$0xff]
  %v5026 = vld [vmem:[%s5024 + $0x8] sm:$0xff]
  %v5027 = vld [vmem:[%s5024 + $0x10] sm:$0xff]
  %v5028 = vld [vmem:[%s5024 + $0x18] sm:$0xff]
  %v5029 = vld [vmem:[%s5024 + $0x20] sm:$0x1f]
  %s5030 = scalar_lea.vmem %s5, 128
  %v5031 = vld [vmem:[%s5030] sm:$0xff]
  %v5032 = vld [vmem:[%s5030 + $0x8] sm:$0xff]
  %v5033 = vld [vmem:[%s5030 + $0x10] sm:$0xff]
  %v5034 = vld [vmem:[%s5030 + $0x18] sm:$0xff]
  %v5035 = vld [vmem:[%s5030 + $0x20] sm:$0xff]
  %v5036 = vld [vmem:[%s5030 + $0x28] sm:$0xff]
  %v5037 = vld [vmem:[%s5030 + $0x30] sm:$0xff]
  %v5038 = vld [vmem:[%s5030 + $0x38] sm:$0xff]
  %v5039 = vsel %vm102, %v5020, 0.0
  %5040 = vadd.xlane.f32.xlu0 %v5039
  %v5041 = vpop.xlane.xlu0 %5040
  %v5042 = vsel %vm102, %v5021, 0.0
  %5043 = vadd.xlane.f32.xlu0 %v5042
  %v5044 = vpop.xlane.xlu0 %5043
  %v5045 = vsel %vm102, %v5022, 0.0
  %5046 = vadd.xlane.f32.xlu0 %v5045
  %v5047 = vpop.xlane.xlu0 %5046
  %v5048 = vsel %vm102, %v5023, 0.0
  %5049 = vadd.xlane.f32.xlu0 %v5048
  %v5050 = vpop.xlane.xlu0 %5049
  %v5051 = vmul.f32 %v5041, %v115
  %v5052 = vmul.f32 %v5044, %v115
  %v5053 = vmul.f32 %v5047, %v115
  %v5054 = vmul.f32 %v5050, %v115
  %v5055 = vsub.f32 %v5020, %v5051
  %v5056 = vsub.f32 %v5021, %v5052
  %v5057 = vsub.f32 %v5022, %v5053
  %v5058 = vsub.f32 %v5023, %v5054
  %v5059 = vmul.f32 %v5055, %v5055
  %v5060 = vmul.f32 %v5056, %v5056
  %v5061 = vmul.f32 %v5057, %v5057
  %v5062 = vmul.f32 %v5058, %v5058
  %v5063 = vsel %vm102, %v5059, 0.0
  %5064 = vadd.xlane.f32.xlu0 %v5063
  %v5065 = vpop.xlane.xlu0 %5064
  %v5066 = vsel %vm102, %v5060, 0.0
  %5067 = vadd.xlane.f32.xlu0 %v5066
  %v5068 = vpop.xlane.xlu0 %5067
  %v5069 = vsel %vm102, %v5061, 0.0
  %5070 = vadd.xlane.f32.xlu0 %v5069
  %v5071 = vpop.xlane.xlu0 %5070
  %v5072 = vsel %vm102, %v5062, 0.0
  %5073 = vadd.xlane.f32.xlu0 %v5072
  %v5074 = vpop.xlane.xlu0 %5073
  %v5075 = vmul.f32 %v5065, %v115
  %v5076 = vmul.f32 %v5068, %v115
  %v5077 = vmul.f32 %v5071, %v115
  %v5078 = vmul.f32 %v5074, %v115
  %v5079 = vadd.f32 %v5075, 1e-06
  %v5080 = vadd.f32 %v5076, 1e-06
  %v5081 = vadd.f32 %v5077, 1e-06
  %v5082 = vadd.f32 %v5078, 1e-06
  %v5083 = vrsqrt.pop %v5079
  %v5084 = vrsqrt.pop %v5080
  %v5085 = vrsqrt.pop %v5081
  %v5086 = vrsqrt.pop %v5082
  %v5087 = vmul.f32 %v5055, %v5083
  %v5088 = vmul.f32 %v5056, %v5084
  %v5089 = vmul.f32 %v5057, %v5085
  %v5090 = vmul.f32 %v5058, %v5086
  %v5091 = vlaneseq
  %v5092 = vshrl.u32 %v5091, 7
  %v5093 = vsub.s32 0, %v5092
  %v5094 = vrot.slane %v5025, %v5093
  %v5095 = vmul.f32 %v5087, %v5094
  %v5096 = vmul.f32 %v5088, %v5094
  %v5097 = vmul.f32 %v5089, %v5094
  %v5098 = vmul.f32 %v5090, %v5094
  %v5099 = vlaneseq
  %v5100 = vshrl.u32 %v5099, 7
  %v5101 = vsub.s32 1, %v5100
  %v5102 = vrot.slane %v5025, %v5101
  %v5103 = vadd.f32 %v5095, %v5102
  %v5104 = vadd.f32 %v5096, %v5102
  %v5105 = vadd.f32 %v5097, %v5102
  %v5106 = vadd.f32 %v5098, %v5102
  %v5108 = vsel %vm102, %v5103, 0
  %v5111 = vsel %vm102, %v5104, 0
  %v5114 = vsel %vm102, %v5105, 0
  %v5117 = vsel %vm102, %v5106, 0
  %5119 = vmatprep.subr.mxu0 0.0
  %5120 = vmatpush1.msra.mxu0 %v5031
  %5121 = vmatprep.subr.mxu0 0.0
  %5122 = vmatpush1.msra.mxu0 %v5033
  %5123 = vmatprep.subr.mxu0 0.0
  %5124 = vmatpush1.msra.mxu0 %v5035
  %5125 = vmatprep.subr.mxu0 0.0
  %5126 = vmatpush1.msra.mxu0 %v5037
  %5127 = vmatprep.subr.mxu0 0.0
  %5128 = vmatpush1.msra.mxu0 0.0
  %5129 = vmatprep.subr.mxu0 0.0
  %5130 = vmatpush1.msra.mxu0 0.0
  %5131 = vmatprep.subr.mxu0 0.0
  %5132 = vmatpush1.msra.mxu0 0.0
  %5133 = vmatprep.subr.mxu0 0.0
  %5134 = vmatpush1.msra.mxu0 0.0
  %5135 = vmatprep.subr.mxu0 0.0
  %5136 = vmatpush1.msra.mxu0 0.0
  %5137 = vmatprep.subr.mxu0 0.0
  %5138 = vmatpush1.msra.mxu0 0.0
  %5139 = vmatprep.subr.mxu0 0.0
  %5140 = vmatpush1.msra.mxu0 0.0
  %5141 = vmatprep.subr.mxu0 0.0
  %5142 = vmatpush1.msra.mxu0 0.0
  %5143 = vmatprep.subr.mxu0 0.0
  %5144 = vmatpush1.msra.mxu0 0.0
  %5145 = vmatprep.subr.mxu0 0.0
  %5146 = vmatpush1.msra.mxu0 0.0
  %5147 = vmatprep.subr.mxu0 0.0
  %5148 = vmatpush1.msra.mxu0 0.0
  %5149 = vmatprep.subr.mxu0 0.0
  %5150 = vmatpush1.msra.mxu0 0.0
  %5151 = vmatprep.subr.mxu0 0.0
  %5152 = vmatpush1.msra.mxu0 0.0
  %5153 = vmatprep.subr.mxu0 0.0
  %5154 = vmatpush1.msra.mxu0 0.0
  %5155 = vmatprep.subr.mxu0 0.0
  %5156 = vmatpush1.msra.mxu0 0.0
  %5157 = vmatprep.subr.mxu0 0.0
  %5158 = vmatpush1.msra.mxu0 0.0
  %5159 = vmatprep.subr.mxu0 0.0
  %5160 = vmatpush1.msra.mxu0 0.0
  %5161 = vmatprep.subr.mxu0 0.0
  %5162 = vmatpush1.msra.mxu0 0.0
  %5163 = vmatprep.subr.mxu0 0.0
  %5164 = vmatpush1.msra.mxu0 0.0
  %5165 = vmatprep.subr.mxu0 0.0
  %5166 = vmatpush1.msra.mxu0 0.0
  %5167 = vmatprep.subr.mxu0 0.0
  %5168 = vmatpush1.msra.mxu0 0.0
  %5169 = vmatprep.subr.mxu0 0.0
  %5170 = vmatpush1.msra.mxu0 0.0
  %5171 = vmatprep.subr.mxu0 0.0
  %5172 = vmatpush1.msra.mxu0 0.0
  %5173 = vmatprep.subr.mxu0 0.0
  %5174 = vmatpush1.msra.mxu0 0.0
  %5175 = vmatprep.subr.mxu0 0.0
  %5176 = vmatpush1.msra.mxu0 0.0
  %5177 = vmatprep.subr.mxu0 0.0
  %5178 = vmatpush1.msra.mxu0 0.0
  %5179 = vmatprep.subr.mxu0 0.0
  %5180 = vmatpush1.msra.mxu0 0.0
  %5181 = vmatprep.subr.mxu0 0.0
  %5182 = vmatpush1.msra.mxu0 0.0
  %5183 = vmatprep.mubr.f32.mxu0 0.0
  %5184 = vmatmul.mubr.f32.gmra.mrb[0].mxu0 %v5108
  %v5185 = vpop.f32.mrb[0].mxu0
  %v5186 = vadd.f32 0.0, %v5185
  %v5187 = vpop.f32.mrb[0].mxu0
  %5188 = vmatprep.mubr.f32.mxu0 0.0
  %5189 = vmatmul.mubr.f32.gmra.mrb[0].mxu0 %v5111
  %v5190 = vpop.f32.mrb[0].mxu0
  %v5191 = vadd.f32 0.0, %v5190
  %v5192 = vpop.f32.mrb[0].mxu0
  %5193 = vmatprep.mubr.f32.mxu0 0.0
  %5194 = vmatmul.mubr.f32.gmra.mrb[0].mxu0 %v5114
  %v5195 = vpop.f32.mrb[0].mxu0
  %v5196 = vadd.f32 0.0, %v5195
  %v5197 = vpop.f32.mrb[0].mxu0
  %5198 = vmatprep.mubr.f32.mxu0 0.0
  %5199 = vmatmul.mubr.f32.gmra.mrb[0].mxu0 %v5117
  %v5200 = vpop.f32.mrb[0].mxu0
  %v5201 = vadd.f32 0.0, %v5200
  %v5202 = vpop.f32.mrb[0].mxu0
  %5203 = vdwg.mxu0
  %v5204 = vlaneseq
  %v5205 = vshrl.u32 %v5204, 7
  %v5206 = vsub.s32 2, %v5205
  %v5207 = vrot.slane %v5025, %v5206
  %v5208 = vadd.f32 %v5186, %v5207
  %v5209 = vadd.f32 %v5191, %v5207
  %v5210 = vadd.f32 %v5196, %v5207
  %v5211 = vadd.f32 %v5201, %v5207
  %v5212 = vlaneseq
  %v5213 = vshrl.u32 %v5212, 7
  %v5214 = vsub.s32 3, %v5213
  %v5215 = vrot.slane %v5025, %v5214
  %5217 = vrot.lane.b32.xlu0 %v5215, 32
  %v5218 = vpop.permute.xlu0 %5217
  %v5220 = vadd.f32 %v5186, %v5218
  %v5221 = vadd.f32 %v5191, %v5218
  %v5222 = vadd.f32 %v5196, %v5218
  %v5223 = vadd.f32 %v5201, %v5218
  %v5224 = vlaneseq
  %v5225 = vshrl.u32 %v5224, 7
  %v5226 = vsub.s32 4, %v5225
  %v5227 = vrot.slane %v5025, %v5226
  %5229 = vrot.lane.b32.xlu0 %v5227, 64
  %v5230 = vpop.permute.xlu0 %5229
  %v5232 = vadd.f32 %v5186, %v5230
  %v5233 = vadd.f32 %v5191, %v5230
  %v5234 = vadd.f32 %v5196, %v5230
  %v5235 = vadd.f32 %v5201, %v5230
  %v5236 = vmul.f32 %v5208, %v5208
  %v5237 = vmul.f32 %v5209, %v5209
  %v5238 = vsel %vm102, %v5236, 0.0
  %v5239 = vsel %vm102, %v5237, 0.0
  %v5240 = vadd.f32 %v5238, %v5239
  %v5241 = vrot.slane %v5240, 4
  %v5242 = vadd.f32 %v5240, %v5241
  %v5243 = vrot.slane %v5242, 2
  %v5244 = vadd.f32 %v5242, %v5243
  %v5245 = vrot.slane %v5244, 1
  %v5246 = vadd.f32 %v5244, %v5245
  %v5247 = vmax.f32 %v5246, 1e-24
  %v5248 = vrsqrt.pop %v5247
  %v5249 = vmul.f32 %v5208, %v5248
  %v5250 = vmul.f32 %v5209, %v5248
  %v5251 = vmul.f32 %v5220, %v5220
  %v5252 = vmul.f32 %v5221, %v5221
  %v5253 = vsel %vm318, %v5251, 0.0
  %v5254 = vsel %vm318, %v5252, 0.0
  %v5255 = vadd.f32 %v5253, %v5254
  %v5256 = vrot.slane %v5255, 4
  %v5257 = vadd.f32 %v5255, %v5256
  %v5258 = vrot.slane %v5257, 2
  %v5259 = vadd.f32 %v5257, %v5258
  %v5260 = vrot.slane %v5259, 1
  %v5261 = vadd.f32 %v5259, %v5260
  %v5262 = vmax.f32 %v5261, 1e-24
  %v5263 = vrsqrt.pop %v5262
  %v5264 = vmul.f32 %v5220, %v5263
  %v5265 = vmul.f32 %v5221, %v5263
  %v5266 = vlaneseq
  %v5267 = vshrl.u32 %v5266, 7
  %v5268 = vsub.s32 5, %v5267
  %v5269 = vrot.slane %v5025, %v5268
  %v5270 = vmul.f32 %v5249, %v5269
  %v5271 = vmul.f32 %v5250, %v5269
  %5272 = vxpose.xlu0.b32.start [1/16] %v5270, 128
  %5273 = vxpose.xlu0.b32.cont [2/16] %v5271, 128
  %5274 = vxpose.xlu0.b32.cont [3/16] 0.0, 128
  %5275 = vxpose.xlu0.b32.cont [4/16] 0.0, 128
  %5276 = vxpose.xlu0.b32.cont [5/16] 0.0, 128
  %5277 = vxpose.xlu0.b32.cont [6/16] 0.0, 128
  %5278 = vxpose.xlu0.b32.cont [7/16] 0.0, 128
  %5279 = vxpose.xlu0.b32.cont [8/16] 0.0, 128
  %5280 = vxpose.xlu0.b32.cont [9/16] 0.0, 128
  %5281 = vxpose.xlu0.b32.cont [10/16] 0.0, 128
  %5282 = vxpose.xlu0.b32.cont [11/16] 0.0, 128
  %5283 = vxpose.xlu0.b32.cont [12/16] 0.0, 128
  %5284 = vxpose.xlu0.b32.cont [13/16] 0.0, 128
  %5285 = vxpose.xlu0.b32.cont [14/16] 0.0, 128
  %5286 = vxpose.xlu0.b32.cont [15/16] 0.0, 128
  %5287 = vxpose.xlu0.b32.end [16/16] 0.0, 128
  %v5288 = vpop.trf.xlu0
  %v5289 = vpop.trf.xlu0
  %v5290 = vpop.trf.xlu0
  %v5291 = vpop.trf.xlu0
  %v5292 = vpop.trf.xlu0
  %v5293 = vpop.trf.xlu0
  %v5294 = vpop.trf.xlu0
  %v5295 = vpop.trf.xlu0
  %v5296 = vpop.trf.xlu0
  %v5297 = vpop.trf.xlu0
  %v5298 = vpop.trf.xlu0
  %v5299 = vpop.trf.xlu0
  %v5300 = vpop.trf.xlu0
  %v5301 = vpop.trf.xlu0
  %v5302 = vpop.trf.xlu0
  %v5303 = vpop.trf.xlu0
  %5306 = vrot.lane.b32.xlu0 %v5264, 96
  %v5307 = vpop.permute.xlu0 %5306
  %5308 = vrot.lane.b32.xlu0 %v5265, 96
  %v5309 = vpop.permute.xlu0 %5308
  %v5313 = vsel %vm378, %v5288, 0
  %v5316 = vsel %vm378, %v5289, 0
  %v5319 = vsel %vm378, %v5290, 0
  %v5322 = vsel %vm378, %v5291, 0
  %5324 = vmatprep.subr.mxu0 0.0
  %5325 = vmatpush1.msra.mxu0 %v5307
  %5326 = vmatprep.subr.mxu0 0.0
  %5327 = vmatpush1.msra.mxu0 %v5309
  %5328 = vmatprep.subr.mxu0 0.0
  %5329 = vmatpush1.msra.mxu0 0.0
  %5330 = vmatprep.subr.mxu0 0.0
  %5331 = vmatpush1.msra.mxu0 0.0
  %5332 = vmatprep.subr.mxu0 0.0
  %5333 = vmatpush1.msra.mxu0 0.0
  %5334 = vmatprep.subr.mxu0 0.0
  %5335 = vmatpush1.msra.mxu0 0.0
  %5336 = vmatprep.subr.mxu0 0.0
  %5337 = vmatpush1.msra.mxu0 0.0
  %5338 = vmatprep.subr.mxu0 0.0
  %5339 = vmatpush1.msra.mxu0 0.0
  %5340 = vmatprep.subr.mxu0 0.0
  %5341 = vmatpush1.msra.mxu0 0.0
  %5342 = vmatprep.subr.mxu0 0.0
  %5343 = vmatpush1.msra.mxu0 0.0
  %5344 = vmatprep.subr.mxu0 0.0
  %5345 = vmatpush1.msra.mxu0 0.0
  %5346 = vmatprep.subr.mxu0 0.0
  %5347 = vmatpush1.msra.mxu0 0.0
  %5348 = vmatprep.subr.mxu0 0.0
  %5349 = vmatpush1.msra.mxu0 0.0
  %5350 = vmatprep.subr.mxu0 0.0
  %5351 = vmatpush1.msra.mxu0 0.0
  %5352 = vmatprep.subr.mxu0 0.0
  %5353 = vmatpush1.msra.mxu0 0.0
  %5354 = vmatprep.subr.mxu0 0.0
  %5355 = vmatpush1.msra.mxu0 0.0
  %5356 = vmatprep.subr.mxu0 0.0
  %5357 = vmatpush1.msra.mxu0 0.0
  %5358 = vmatprep.subr.mxu0 0.0
  %5359 = vmatpush1.msra.mxu0 0.0
  %5360 = vmatprep.subr.mxu0 0.0
  %5361 = vmatpush1.msra.mxu0 0.0
  %5362 = vmatprep.subr.mxu0 0.0
  %5363 = vmatpush1.msra.mxu0 0.0
  %5364 = vmatprep.subr.mxu0 0.0
  %5365 = vmatpush1.msra.mxu0 0.0
  %5366 = vmatprep.subr.mxu0 0.0
  %5367 = vmatpush1.msra.mxu0 0.0
  %5368 = vmatprep.subr.mxu0 0.0
  %5369 = vmatpush1.msra.mxu0 0.0
  %5370 = vmatprep.subr.mxu0 0.0
  %5371 = vmatpush1.msra.mxu0 0.0
  %5372 = vmatprep.subr.mxu0 0.0
  %5373 = vmatpush1.msra.mxu0 0.0
  %5374 = vmatprep.subr.mxu0 0.0
  %5375 = vmatpush1.msra.mxu0 0.0
  %5376 = vmatprep.subr.mxu0 0.0
  %5377 = vmatpush1.msra.mxu0 0.0
  %5378 = vmatprep.subr.mxu0 0.0
  %5379 = vmatpush1.msra.mxu0 0.0
  %5380 = vmatprep.subr.mxu0 0.0
  %5381 = vmatpush1.msra.mxu0 0.0
  %5382 = vmatprep.subr.mxu0 0.0
  %5383 = vmatpush1.msra.mxu0 0.0
  %5384 = vmatprep.subr.mxu0 0.0
  %5385 = vmatpush1.msra.mxu0 0.0
  %5386 = vmatprep.subr.mxu0 0.0
  %5387 = vmatpush1.msra.mxu0 0.0
  %5388 = vmatprep.mubr.f32.mxu0 0.0
  %5389 = vmatmul.mubr.f32.gmra.mrb[0].mxu0 %v5313
  %v5390 = vpop.f32.mrb[0].mxu0
  %v5391 = vadd.f32 %v49, %v5390
  %v5392 = vpop.f32.mrb[0].mxu0
  %5393 = vmatprep.mubr.f32.mxu0 0.0
  %5394 = vmatmul.mubr.f32.gmra.mrb[0].mxu0 %v5316
  %v5395 = vpop.f32.mrb[0].mxu0
  %v5396 = vadd.f32 %v50, %v5395
  %v5397 = vpop.f32.mrb[0].mxu0
  %5398 = vmatprep.mubr.f32.mxu0 0.0
  %5399 = vmatmul.mubr.f32.gmra.mrb[0].mxu0 %v5319
  %v5400 = vpop.f32.mrb[0].mxu0
  %v5401 = vadd.f32 %v51, %v5400
  %v5402 = vpop.f32.mrb[0].mxu0
  %5403 = vmatprep.mubr.f32.mxu0 0.0
  %5404 = vmatmul.mubr.f32.gmra.mrb[0].mxu0 %v5322
  %v5405 = vpop.f32.mrb[0].mxu0
  %v5406 = vadd.f32 %v52, %v5405
  %v5407 = vpop.f32.mrb[0].mxu0
  %5408 = vdwg.mxu0
  %v5409 = vsel %vm102, %v5391, -inf
  %5410 = vmax.xlane.f32.xlu0 %v5409
  %v5411 = vpop.xlane.xlu0 %5410
  %v5412 = vsel %vm102, %v5396, -inf
  %5413 = vmax.xlane.f32.xlu0 %v5412
  %v5414 = vpop.xlane.xlu0 %5413
  %v5415 = vsel %vm102, %v5401, -inf
  %5416 = vmax.xlane.f32.xlu0 %v5415
  %v5417 = vpop.xlane.xlu0 %5416
  %v5418 = vsel %vm102, %v5406, -inf
  %5419 = vmax.xlane.f32.xlu0 %v5418
  %v5420 = vpop.xlane.xlu0 %5419
  %v5421 = vsub.f32 %v5391, %v5411
  %v5422 = vsub.f32 %v5396, %v5414
  %v5423 = vsub.f32 %v5401, %v5417
  %v5424 = vsub.f32 %v5406, %v5420
  %v5425 = vmul.f32 %v5421, 1.442695
  %v5426 = vpow.pop %v5425
  %v5427 = vmul.f32 %v5422, 1.442695
  %v5428 = vpow.pop %v5427
  %v5429 = vmul.f32 %v5423, 1.442695
  %v5430 = vpow.pop %v5429
  %v5431 = vmul.f32 %v5424, 1.442695
  %v5432 = vpow.pop %v5431
  %v5433 = vsel %vm102, %v5426, 0.0
  %5434 = vadd.xlane.f32.xlu0 %v5433
  %v5435 = vpop.xlane.xlu0 %5434
  %v5436 = vsel %vm102, %v5428, 0.0
  %5437 = vadd.xlane.f32.xlu0 %v5436
  %v5438 = vpop.xlane.xlu0 %5437
  %v5439 = vsel %vm102, %v5430, 0.0
  %5440 = vadd.xlane.f32.xlu0 %v5439
  %v5441 = vpop.xlane.xlu0 %5440
  %v5442 = vsel %vm102, %v5432, 0.0
  %5443 = vadd.xlane.f32.xlu0 %v5442
  %v5444 = vpop.xlane.xlu0 %5443
  %v5445 = vrcp.pop %v5435
  %v5446 = vmul.f32 %v5426, %v5445
  %v5447 = vrcp.pop %v5438
  %v5448 = vmul.f32 %v5428, %v5447
  %v5449 = vrcp.pop %v5441
  %v5450 = vmul.f32 %v5430, %v5449
  %v5451 = vrcp.pop %v5444
  %v5452 = vmul.f32 %v5432, %v5451
  %5455 = vrot.lane.b32.xlu0 %v5232, 64
  %v5456 = vpop.permute.xlu0 %5455
  %5457 = vrot.lane.b32.xlu0 %v5233, 64
  %v5458 = vpop.permute.xlu0 %5457
  %v5459 = vsel %vm102, %v5456, 0
  %v5461 = vsel %vm102, %v5458, 0
  %v5464 = vsel %vm102, %v5446, 0
  %v5467 = vsel %vm102, %v5448, 0
  %v5470 = vsel %vm102, %v5450, 0
  %v5473 = vsel %vm102, %v5452, 0
  %5475 = vmatprep.subr.mxu0 0.0
  %5476 = vmatpush1.xpose.msra.mxu0 %v5464
  %5477 = vmatprep.subr.mxu0 0.0
  %5478 = vmatpush1.xpose.msra.mxu0 %v5467
  %5479 = vmatprep.subr.mxu0 0.0
  %5480 = vmatpush1.xpose.msra.mxu0 %v5470
  %5481 = vmatprep.subr.mxu0 0.0
  %5482 = vmatpush1.xpose.msra.mxu0 %v5473
  %5483 = vmatprep.subr.mxu0 0.0
  %5484 = vmatpush1.xpose.msra.mxu0 0.0
  %5485 = vmatprep.subr.mxu0 0.0
  %5486 = vmatpush1.xpose.msra.mxu0 0.0
  %5487 = vmatprep.subr.mxu0 0.0
  %5488 = vmatpush1.xpose.msra.mxu0 0.0
  %5489 = vmatprep.subr.mxu0 0.0
  %5490 = vmatpush1.xpose.msra.mxu0 0.0
  %5491 = vmatprep.subr.mxu0 0.0
  %5492 = vmatpush1.xpose.msra.mxu0 0.0
  %5493 = vmatprep.subr.mxu0 0.0
  %5494 = vmatpush1.xpose.msra.mxu0 0.0
  %5495 = vmatprep.subr.mxu0 0.0
  %5496 = vmatpush1.xpose.msra.mxu0 0.0
  %5497 = vmatprep.subr.mxu0 0.0
  %5498 = vmatpush1.xpose.msra.mxu0 0.0
  %5499 = vmatprep.subr.mxu0 0.0
  %5500 = vmatpush1.xpose.msra.mxu0 0.0
  %5501 = vmatprep.subr.mxu0 0.0
  %5502 = vmatpush1.xpose.msra.mxu0 0.0
  %5503 = vmatprep.subr.mxu0 0.0
  %5504 = vmatpush1.xpose.msra.mxu0 0.0
  %5505 = vmatprep.subr.mxu0 0.0
  %5506 = vmatpush1.xpose.msra.mxu0 0.0
  %5507 = vmatprep.subr.mxu0 0.0
  %5508 = vmatpush1.xpose.msra.mxu0 0.0
  %5509 = vmatprep.subr.mxu0 0.0
  %5510 = vmatpush1.xpose.msra.mxu0 0.0
  %5511 = vmatprep.subr.mxu0 0.0
  %5512 = vmatpush1.xpose.msra.mxu0 0.0
  %5513 = vmatprep.subr.mxu0 0.0
  %5514 = vmatpush1.xpose.msra.mxu0 0.0
  %5515 = vmatprep.subr.mxu0 0.0
  %5516 = vmatpush1.xpose.msra.mxu0 0.0
  %5517 = vmatprep.subr.mxu0 0.0
  %5518 = vmatpush1.xpose.msra.mxu0 0.0
  %5519 = vmatprep.subr.mxu0 0.0
  %5520 = vmatpush1.xpose.msra.mxu0 0.0
  %5521 = vmatprep.subr.mxu0 0.0
  %5522 = vmatpush1.xpose.msra.mxu0 0.0
  %5523 = vmatprep.subr.mxu0 0.0
  %5524 = vmatpush1.xpose.msra.mxu0 0.0
  %5525 = vmatprep.subr.mxu0 0.0
  %5526 = vmatpush1.xpose.msra.mxu0 0.0
  %5527 = vmatprep.subr.mxu0 0.0
  %5528 = vmatpush1.xpose.msra.mxu0 0.0
  %5529 = vmatprep.subr.mxu0 0.0
  %5530 = vmatpush1.xpose.msra.mxu0 0.0
  %5531 = vmatprep.subr.mxu0 0.0
  %5532 = vmatpush1.xpose.msra.mxu0 0.0
  %5533 = vmatprep.subr.mxu0 0.0
  %5534 = vmatpush1.xpose.msra.mxu0 0.0
  %5535 = vmatprep.subr.mxu0 0.0
  %5536 = vmatpush1.xpose.msra.mxu0 0.0
  %5537 = vmatprep.subr.mxu0 0.0
  %5538 = vmatpush1.xpose.msra.mxu0 0.0
  %5539 = vmatprep.mubr.f32.mxu0 0.0
  %5540 = vmatmul.mubr.f32.gmra.mrb[0].mxu0 %v5459
  %v5541 = vpop.f32.mrb[0].mxu0
  %v5542 = vadd.f32 0.0, %v5541
  %v5543 = vpop.f32.mrb[0].mxu0
  %5544 = vmatprep.mubr.f32.mxu0 0.0
  %5545 = vmatmul.mubr.f32.gmra.mrb[0].mxu0 %v5461
  %v5546 = vpop.f32.mrb[0].mxu0
  %v5547 = vadd.f32 0.0, %v5546
  %v5548 = vpop.f32.mrb[0].mxu0
  %5549 = vdwg.mxu0
  %v5550 = vmul.f32 %v5210, %v5210
  %v5551 = vmul.f32 %v5211, %v5211
  %v5552 = vsel %vm102, %v5550, 0.0
  %v5553 = vsel %vm102, %v5551, 0.0
  %v5554 = vadd.f32 %v5552, %v5553
  %v5555 = vrot.slane %v5554, 4
  %v5556 = vadd.f32 %v5554, %v5555
  %v5557 = vrot.slane %v5556, 2
  %v5558 = vadd.f32 %v5556, %v5557
  %v5559 = vrot.slane %v5558, 1
  %v5560 = vadd.f32 %v5558, %v5559
  %v5561 = vmax.f32 %v5560, 1e-24
  %v5562 = vrsqrt.pop %v5561
  %v5563 = vmul.f32 %v5210, %v5562
  %v5564 = vmul.f32 %v5211, %v5562
  %v5565 = vmul.f32 %v5222, %v5222
  %v5566 = vmul.f32 %v5223, %v5223
  %v5567 = vsel %vm318, %v5565, 0.0
  %v5568 = vsel %vm318, %v5566, 0.0
  %v5569 = vadd.f32 %v5567, %v5568
  %v5570 = vrot.slane %v5569, 4
  %v5571 = vadd.f32 %v5569, %v5570
  %v5572 = vrot.slane %v5571, 2
  %v5573 = vadd.f32 %v5571, %v5572
  %v5574 = vrot.slane %v5573, 1
  %v5575 = vadd.f32 %v5573, %v5574
  %v5576 = vmax.f32 %v5575, 1e-24
  %v5577 = vrsqrt.pop %v5576
  %v5578 = vmul.f32 %v5222, %v5577
  %v5579 = vmul.f32 %v5223, %v5577
  %v5580 = vmul.f32 %v5563, %v5269
  %v5581 = vmul.f32 %v5564, %v5269
  %5582 = vxpose.xlu0.b32.start [1/16] %v5580, 128
  %5583 = vxpose.xlu0.b32.cont [2/16] %v5581, 128
  %5584 = vxpose.xlu0.b32.cont [3/16] 0.0, 128
  %5585 = vxpose.xlu0.b32.cont [4/16] 0.0, 128
  %5586 = vxpose.xlu0.b32.cont [5/16] 0.0, 128
  %5587 = vxpose.xlu0.b32.cont [6/16] 0.0, 128
  %5588 = vxpose.xlu0.b32.cont [7/16] 0.0, 128
  %5589 = vxpose.xlu0.b32.cont [8/16] 0.0, 128
  %5590 = vxpose.xlu0.b32.cont [9/16] 0.0, 128
  %5591 = vxpose.xlu0.b32.cont [10/16] 0.0, 128
  %5592 = vxpose.xlu0.b32.cont [11/16] 0.0, 128
  %5593 = vxpose.xlu0.b32.cont [12/16] 0.0, 128
  %5594 = vxpose.xlu0.b32.cont [13/16] 0.0, 128
  %5595 = vxpose.xlu0.b32.cont [14/16] 0.0, 128
  %5596 = vxpose.xlu0.b32.cont [15/16] 0.0, 128
  %5597 = vxpose.xlu0.b32.end [16/16] 0.0, 128
  %v5598 = vpop.trf.xlu0
  %v5599 = vpop.trf.xlu0
  %v5600 = vpop.trf.xlu0
  %v5601 = vpop.trf.xlu0
  %v5602 = vpop.trf.xlu0
  %v5603 = vpop.trf.xlu0
  %v5604 = vpop.trf.xlu0
  %v5605 = vpop.trf.xlu0
  %v5606 = vpop.trf.xlu0
  %v5607 = vpop.trf.xlu0
  %v5608 = vpop.trf.xlu0
  %v5609 = vpop.trf.xlu0
  %v5610 = vpop.trf.xlu0
  %v5611 = vpop.trf.xlu0
  %v5612 = vpop.trf.xlu0
  %v5613 = vpop.trf.xlu0
  %5616 = vrot.lane.b32.xlu0 %v5578, 96
  %v5617 = vpop.permute.xlu0 %5616
  %5618 = vrot.lane.b32.xlu0 %v5579, 96
  %v5619 = vpop.permute.xlu0 %5618
  %v5623 = vsel %vm378, %v5598, 0
  %v5626 = vsel %vm378, %v5599, 0
  %v5629 = vsel %vm378, %v5600, 0
  %v5632 = vsel %vm378, %v5601, 0
  %5634 = vmatprep.subr.mxu0 0.0
  %5635 = vmatpush1.msra.mxu0 %v5617
  %5636 = vmatprep.subr.mxu0 0.0
  %5637 = vmatpush1.msra.mxu0 %v5619
  %5638 = vmatprep.subr.mxu0 0.0
  %5639 = vmatpush1.msra.mxu0 0.0
  %5640 = vmatprep.subr.mxu0 0.0
  %5641 = vmatpush1.msra.mxu0 0.0
  %5642 = vmatprep.subr.mxu0 0.0
  %5643 = vmatpush1.msra.mxu0 0.0
  %5644 = vmatprep.subr.mxu0 0.0
  %5645 = vmatpush1.msra.mxu0 0.0
  %5646 = vmatprep.subr.mxu0 0.0
  %5647 = vmatpush1.msra.mxu0 0.0
  %5648 = vmatprep.subr.mxu0 0.0
  %5649 = vmatpush1.msra.mxu0 0.0
  %5650 = vmatprep.subr.mxu0 0.0
  %5651 = vmatpush1.msra.mxu0 0.0
  %5652 = vmatprep.subr.mxu0 0.0
  %5653 = vmatpush1.msra.mxu0 0.0
  %5654 = vmatprep.subr.mxu0 0.0
  %5655 = vmatpush1.msra.mxu0 0.0
  %5656 = vmatprep.subr.mxu0 0.0
  %5657 = vmatpush1.msra.mxu0 0.0
  %5658 = vmatprep.subr.mxu0 0.0
  %5659 = vmatpush1.msra.mxu0 0.0
  %5660 = vmatprep.subr.mxu0 0.0
  %5661 = vmatpush1.msra.mxu0 0.0
  %5662 = vmatprep.subr.mxu0 0.0
  %5663 = vmatpush1.msra.mxu0 0.0
  %5664 = vmatprep.subr.mxu0 0.0
  %5665 = vmatpush1.msra.mxu0 0.0
  %5666 = vmatprep.subr.mxu0 0.0
  %5667 = vmatpush1.msra.mxu0 0.0
  %5668 = vmatprep.subr.mxu0 0.0
  %5669 = vmatpush1.msra.mxu0 0.0
  %5670 = vmatprep.subr.mxu0 0.0
  %5671 = vmatpush1.msra.mxu0 0.0
  %5672 = vmatprep.subr.mxu0 0.0
  %5673 = vmatpush1.msra.mxu0 0.0
  %5674 = vmatprep.subr.mxu0 0.0
  %5675 = vmatpush1.msra.mxu0 0.0
  %5676 = vmatprep.subr.mxu0 0.0
  %5677 = vmatpush1.msra.mxu0 0.0
  %5678 = vmatprep.subr.mxu0 0.0
  %5679 = vmatpush1.msra.mxu0 0.0
  %5680 = vmatprep.subr.mxu0 0.0
  %5681 = vmatpush1.msra.mxu0 0.0
  %5682 = vmatprep.subr.mxu0 0.0
  %5683 = vmatpush1.msra.mxu0 0.0
  %5684 = vmatprep.subr.mxu0 0.0
  %5685 = vmatpush1.msra.mxu0 0.0
  %5686 = vmatprep.subr.mxu0 0.0
  %5687 = vmatpush1.msra.mxu0 0.0
  %5688 = vmatprep.subr.mxu0 0.0
  %5689 = vmatpush1.msra.mxu0 0.0
  %5690 = vmatprep.subr.mxu0 0.0
  %5691 = vmatpush1.msra.mxu0 0.0
  %5692 = vmatprep.subr.mxu0 0.0
  %5693 = vmatpush1.msra.mxu0 0.0
  %5694 = vmatprep.subr.mxu0 0.0
  %5695 = vmatpush1.msra.mxu0 0.0
  %5696 = vmatprep.subr.mxu0 0.0
  %5697 = vmatpush1.msra.mxu0 0.0
  %5698 = vmatprep.mubr.f32.mxu0 0.0
  %5699 = vmatmul.mubr.f32.gmra.mrb[0].mxu0 %v5623
  %v5700 = vpop.f32.mrb[0].mxu0
  %v5701 = vadd.f32 %v49, %v5700
  %v5702 = vpop.f32.mrb[0].mxu0
  %5703 = vmatprep.mubr.f32.mxu0 0.0
  %5704 = vmatmul.mubr.f32.gmra.mrb[0].mxu0 %v5626
  %v5705 = vpop.f32.mrb[0].mxu0
  %v5706 = vadd.f32 %v50, %v5705
  %v5707 = vpop.f32.mrb[0].mxu0
  %5708 = vmatprep.mubr.f32.mxu0 0.0
  %5709 = vmatmul.mubr.f32.gmra.mrb[0].mxu0 %v5629
  %v5710 = vpop.f32.mrb[0].mxu0
  %v5711 = vadd.f32 %v51, %v5710
  %v5712 = vpop.f32.mrb[0].mxu0
  %5713 = vmatprep.mubr.f32.mxu0 0.0
  %5714 = vmatmul.mubr.f32.gmra.mrb[0].mxu0 %v5632
  %v5715 = vpop.f32.mrb[0].mxu0
  %v5716 = vadd.f32 %v52, %v5715
  %v5717 = vpop.f32.mrb[0].mxu0
  %5718 = vdwg.mxu0
  %v5719 = vsel %vm102, %v5701, -inf
  %5720 = vmax.xlane.f32.xlu0 %v5719
  %v5721 = vpop.xlane.xlu0 %5720
  %v5722 = vsel %vm102, %v5706, -inf
  %5723 = vmax.xlane.f32.xlu0 %v5722
  %v5724 = vpop.xlane.xlu0 %5723
  %v5725 = vsel %vm102, %v5711, -inf
  %5726 = vmax.xlane.f32.xlu0 %v5725
  %v5727 = vpop.xlane.xlu0 %5726
  %v5728 = vsel %vm102, %v5716, -inf
  %5729 = vmax.xlane.f32.xlu0 %v5728
  %v5730 = vpop.xlane.xlu0 %5729
  %v5731 = vsub.f32 %v5701, %v5721
  %v5732 = vsub.f32 %v5706, %v5724
  %v5733 = vsub.f32 %v5711, %v5727
  %v5734 = vsub.f32 %v5716, %v5730
  %v5735 = vmul.f32 %v5731, 1.442695
  %v5736 = vpow.pop %v5735
  %v5737 = vmul.f32 %v5732, 1.442695
  %v5738 = vpow.pop %v5737
  %v5739 = vmul.f32 %v5733, 1.442695
  %v5740 = vpow.pop %v5739
  %v5741 = vmul.f32 %v5734, 1.442695
  %v5742 = vpow.pop %v5741
  %v5743 = vsel %vm102, %v5736, 0.0
  %5744 = vadd.xlane.f32.xlu0 %v5743
  %v5745 = vpop.xlane.xlu0 %5744
  %v5746 = vsel %vm102, %v5738, 0.0
  %5747 = vadd.xlane.f32.xlu0 %v5746
  %v5748 = vpop.xlane.xlu0 %5747
  %v5749 = vsel %vm102, %v5740, 0.0
  %5750 = vadd.xlane.f32.xlu0 %v5749
  %v5751 = vpop.xlane.xlu0 %5750
  %v5752 = vsel %vm102, %v5742, 0.0
  %5753 = vadd.xlane.f32.xlu0 %v5752
  %v5754 = vpop.xlane.xlu0 %5753
  %v5755 = vrcp.pop %v5745
  %v5756 = vmul.f32 %v5736, %v5755
  %v5757 = vrcp.pop %v5748
  %v5758 = vmul.f32 %v5738, %v5757
  %v5759 = vrcp.pop %v5751
  %v5760 = vmul.f32 %v5740, %v5759
  %v5761 = vrcp.pop %v5754
  %v5762 = vmul.f32 %v5742, %v5761
  %5765 = vrot.lane.b32.xlu0 %v5234, 64
  %v5766 = vpop.permute.xlu0 %5765
  %5767 = vrot.lane.b32.xlu0 %v5235, 64
  %v5768 = vpop.permute.xlu0 %5767
  %v5769 = vsel %vm102, %v5766, 0
  %v5771 = vsel %vm102, %v5768, 0
  %v5774 = vsel %vm102, %v5756, 0
  %v5777 = vsel %vm102, %v5758, 0
  %v5780 = vsel %vm102, %v5760, 0
  %v5783 = vsel %vm102, %v5762, 0
  %5785 = vmatprep.subr.mxu0 0.0
  %5786 = vmatpush1.xpose.msra.mxu0 %v5774
  %5787 = vmatprep.subr.mxu0 0.0
  %5788 = vmatpush1.xpose.msra.mxu0 %v5777
  %5789 = vmatprep.subr.mxu0 0.0
  %5790 = vmatpush1.xpose.msra.mxu0 %v5780
  %5791 = vmatprep.subr.mxu0 0.0
  %5792 = vmatpush1.xpose.msra.mxu0 %v5783
  %5793 = vmatprep.subr.mxu0 0.0
  %5794 = vmatpush1.xpose.msra.mxu0 0.0
  %5795 = vmatprep.subr.mxu0 0.0
  %5796 = vmatpush1.xpose.msra.mxu0 0.0
  %5797 = vmatprep.subr.mxu0 0.0
  %5798 = vmatpush1.xpose.msra.mxu0 0.0
  %5799 = vmatprep.subr.mxu0 0.0
  %5800 = vmatpush1.xpose.msra.mxu0 0.0
  %5801 = vmatprep.subr.mxu0 0.0
  %5802 = vmatpush1.xpose.msra.mxu0 0.0
  %5803 = vmatprep.subr.mxu0 0.0
  %5804 = vmatpush1.xpose.msra.mxu0 0.0
  %5805 = vmatprep.subr.mxu0 0.0
  %5806 = vmatpush1.xpose.msra.mxu0 0.0
  %5807 = vmatprep.subr.mxu0 0.0
  %5808 = vmatpush1.xpose.msra.mxu0 0.0
  %5809 = vmatprep.subr.mxu0 0.0
  %5810 = vmatpush1.xpose.msra.mxu0 0.0
  %5811 = vmatprep.subr.mxu0 0.0
  %5812 = vmatpush1.xpose.msra.mxu0 0.0
  %5813 = vmatprep.subr.mxu0 0.0
  %5814 = vmatpush1.xpose.msra.mxu0 0.0
  %5815 = vmatprep.subr.mxu0 0.0
  %5816 = vmatpush1.xpose.msra.mxu0 0.0
  %5817 = vmatprep.subr.mxu0 0.0
  %5818 = vmatpush1.xpose.msra.mxu0 0.0
  %5819 = vmatprep.subr.mxu0 0.0
  %5820 = vmatpush1.xpose.msra.mxu0 0.0
  %5821 = vmatprep.subr.mxu0 0.0
  %5822 = vmatpush1.xpose.msra.mxu0 0.0
  %5823 = vmatprep.subr.mxu0 0.0
  %5824 = vmatpush1.xpose.msra.mxu0 0.0
  %5825 = vmatprep.subr.mxu0 0.0
  %5826 = vmatpush1.xpose.msra.mxu0 0.0
  %5827 = vmatprep.subr.mxu0 0.0
  %5828 = vmatpush1.xpose.msra.mxu0 0.0
  %5829 = vmatprep.subr.mxu0 0.0
  %5830 = vmatpush1.xpose.msra.mxu0 0.0
  %5831 = vmatprep.subr.mxu0 0.0
  %5832 = vmatpush1.xpose.msra.mxu0 0.0
  %5833 = vmatprep.subr.mxu0 0.0
  %5834 = vmatpush1.xpose.msra.mxu0 0.0
  %5835 = vmatprep.subr.mxu0 0.0
  %5836 = vmatpush1.xpose.msra.mxu0 0.0
  %5837 = vmatprep.subr.mxu0 0.0
  %5838 = vmatpush1.xpose.msra.mxu0 0.0
  %5839 = vmatprep.subr.mxu0 0.0
  %5840 = vmatpush1.xpose.msra.mxu0 0.0
  %5841 = vmatprep.subr.mxu0 0.0
  %5842 = vmatpush1.xpose.msra.mxu0 0.0
  %5843 = vmatprep.subr.mxu0 0.0
  %5844 = vmatpush1.xpose.msra.mxu0 0.0
  %5845 = vmatprep.subr.mxu0 0.0
  %5846 = vmatpush1.xpose.msra.mxu0 0.0
  %5847 = vmatprep.subr.mxu0 0.0
  %5848 = vmatpush1.xpose.msra.mxu0 0.0
  %5849 = vmatprep.mubr.f32.mxu0 0.0
  %5850 = vmatmul.mubr.f32.gmra.mrb[0].mxu0 %v5769
  %v5851 = vpop.f32.mrb[0].mxu0
  %v5852 = vadd.f32 0.0, %v5851
  %v5853 = vpop.f32.mrb[0].mxu0
  %5854 = vmatprep.mubr.f32.mxu0 0.0
  %5855 = vmatmul.mubr.f32.gmra.mrb[0].mxu0 %v5771
  %v5856 = vpop.f32.mrb[0].mxu0
  %v5857 = vadd.f32 0.0, %v5856
  %v5858 = vpop.f32.mrb[0].mxu0
  %5859 = vdwg.mxu0
  %v5860 = vlaneseq
  %v5861 = vshrl.u32 %v5860, 7
  %v5862 = vsub.s32 6, %v5861
  %v5863 = vrot.slane %v5025, %v5862
  %5868 = vrot.lane.b32.xlu0 %v5031, 32
  %v5869 = vpop.permute.xlu0 %5868
  %5870 = vrot.lane.b32.xlu0 %v5033, 32
  %v5871 = vpop.permute.xlu0 %5870
  %5872 = vrot.lane.b32.xlu0 %v5035, 32
  %v5873 = vpop.permute.xlu0 %5872
  %5874 = vrot.lane.b32.xlu0 %v5037, 32
  %v5875 = vpop.permute.xlu0 %5874
  %v5881 = vsel %vm102, %v5542, 0
  %v5884 = vsel %vm102, %v5547, 0
  %v5887 = vsel %vm102, %v5852, 0
  %v5890 = vsel %vm102, %v5857, 0
  %5892 = vmatprep.subr.mxu0 0.0
  %5893 = vmatpush1.msra.mxu0 %v5869
  %5894 = vmatprep.subr.mxu0 0.0
  %5895 = vmatpush1.msra.mxu0 %v5871
  %5896 = vmatprep.subr.mxu0 0.0
  %5897 = vmatpush1.msra.mxu0 %v5873
  %5898 = vmatprep.subr.mxu0 0.0
  %5899 = vmatpush1.msra.mxu0 %v5875
  %5900 = vmatprep.subr.mxu0 0.0
  %5901 = vmatpush1.msra.mxu0 0.0
  %5902 = vmatprep.subr.mxu0 0.0
  %5903 = vmatpush1.msra.mxu0 0.0
  %5904 = vmatprep.subr.mxu0 0.0
  %5905 = vmatpush1.msra.mxu0 0.0
  %5906 = vmatprep.subr.mxu0 0.0
  %5907 = vmatpush1.msra.mxu0 0.0
  %5908 = vmatprep.subr.mxu0 0.0
  %5909 = vmatpush1.msra.mxu0 0.0
  %5910 = vmatprep.subr.mxu0 0.0
  %5911 = vmatpush1.msra.mxu0 0.0
  %5912 = vmatprep.subr.mxu0 0.0
  %5913 = vmatpush1.msra.mxu0 0.0
  %5914 = vmatprep.subr.mxu0 0.0
  %5915 = vmatpush1.msra.mxu0 0.0
  %5916 = vmatprep.subr.mxu0 0.0
  %5917 = vmatpush1.msra.mxu0 0.0
  %5918 = vmatprep.subr.mxu0 0.0
  %5919 = vmatpush1.msra.mxu0 0.0
  %5920 = vmatprep.subr.mxu0 0.0
  %5921 = vmatpush1.msra.mxu0 0.0
  %5922 = vmatprep.subr.mxu0 0.0
  %5923 = vmatpush1.msra.mxu0 0.0
  %5924 = vmatprep.subr.mxu0 0.0
  %5925 = vmatpush1.msra.mxu0 0.0
  %5926 = vmatprep.subr.mxu0 0.0
  %5927 = vmatpush1.msra.mxu0 0.0
  %5928 = vmatprep.subr.mxu0 0.0
  %5929 = vmatpush1.msra.mxu0 0.0
  %5930 = vmatprep.subr.mxu0 0.0
  %5931 = vmatpush1.msra.mxu0 0.0
  %5932 = vmatprep.subr.mxu0 0.0
  %5933 = vmatpush1.msra.mxu0 0.0
  %5934 = vmatprep.subr.mxu0 0.0
  %5935 = vmatpush1.msra.mxu0 0.0
  %5936 = vmatprep.subr.mxu0 0.0
  %5937 = vmatpush1.msra.mxu0 0.0
  %5938 = vmatprep.subr.mxu0 0.0
  %5939 = vmatpush1.msra.mxu0 0.0
  %5940 = vmatprep.subr.mxu0 0.0
  %5941 = vmatpush1.msra.mxu0 0.0
  %5942 = vmatprep.subr.mxu0 0.0
  %5943 = vmatpush1.msra.mxu0 0.0
  %5944 = vmatprep.subr.mxu0 0.0
  %5945 = vmatpush1.msra.mxu0 0.0
  %5946 = vmatprep.subr.mxu0 0.0
  %5947 = vmatpush1.msra.mxu0 0.0
  %5948 = vmatprep.subr.mxu0 0.0
  %5949 = vmatpush1.msra.mxu0 0.0
  %5950 = vmatprep.subr.mxu0 0.0
  %5951 = vmatpush1.msra.mxu0 0.0
  %5952 = vmatprep.subr.mxu0 0.0
  %5953 = vmatpush1.msra.mxu0 0.0
  %5954 = vmatprep.subr.mxu0 0.0
  %5955 = vmatpush1.msra.mxu0 0.0
  %5956 = vmatprep.mubr.f32.mxu0 0.0
  %5957 = vmatmul.mubr.f32.gmra.mrb[0].mxu0 %v5881
  %v5958 = vpop.f32.mrb[0].mxu0
  %v5959 = vadd.f32 %v5863, %v5958
  %v5960 = vpop.f32.mrb[0].mxu0
  %5961 = vmatprep.mubr.f32.mxu0 0.0
  %5962 = vmatmul.mubr.f32.gmra.mrb[0].mxu0 %v5884
  %v5963 = vpop.f32.mrb[0].mxu0
  %v5964 = vadd.f32 %v5863, %v5963
  %v5965 = vpop.f32.mrb[0].mxu0
  %5966 = vmatprep.mubr.f32.mxu0 0.0
  %5967 = vmatmul.mubr.f32.gmra.mrb[0].mxu0 %v5887
  %v5968 = vpop.f32.mrb[0].mxu0
  %v5969 = vadd.f32 %v5863, %v5968
  %v5970 = vpop.f32.mrb[0].mxu0
  %5971 = vmatprep.mubr.f32.mxu0 0.0
  %5972 = vmatmul.mubr.f32.gmra.mrb[0].mxu0 %v5890
  %v5973 = vpop.f32.mrb[0].mxu0
  %v5974 = vadd.f32 %v5863, %v5973
  %v5975 = vpop.f32.mrb[0].mxu0
  %5976 = vdwg.mxu0
  %v5977 = vlaneseq
  %v5978 = vshrl.u32 %v5977, 7
  %v5979 = vsub.s32 7, %v5978
  %v5980 = vrot.slane %v5025, %v5979
  %v5981 = vmul.f32 %v5980, %v5959
  %v5982 = vmul.f32 %v5980, %v5964
  %v5983 = vmul.f32 %v5980, %v5969
  %v5984 = vmul.f32 %v5980, %v5974
  %v5985 = vadd.f32 %v5020, %v5981
  %v5986 = vadd.f32 %v5021, %v5982
  %v5987 = vadd.f32 %v5022, %v5983
  %v5988 = vadd.f32 %v5023, %v5984
  %v5989 = vsel %vm102, %v5985, 0.0
  %5990 = vadd.xlane.f32.xlu0 %v5989
  %v5991 = vpop.xlane.xlu0 %5990
  %v5992 = vsel %vm102, %v5986, 0.0
  %5993 = vadd.xlane.f32.xlu0 %v5992
  %v5994 = vpop.xlane.xlu0 %5993
  %v5995 = vsel %vm102, %v5987, 0.0
  %5996 = vadd.xlane.f32.xlu0 %v5995
  %v5997 = vpop.xlane.xlu0 %5996
  %v5998 = vsel %vm102, %v5988, 0.0
  %5999 = vadd.xlane.f32.xlu0 %v5998
  %v6000 = vpop.xlane.xlu0 %5999
  %v6001 = vmul.f32 %v5991, %v115
  %v6002 = vmul.f32 %v5994, %v115
  %v6003 = vmul.f32 %v5997, %v115
  %v6004 = vmul.f32 %v6000, %v115
  %v6005 = vsub.f32 %v5985, %v6001
  %v6006 = vsub.f32 %v5986, %v6002
  %v6007 = vsub.f32 %v5987, %v6003
  %v6008 = vsub.f32 %v5988, %v6004
  %v6009 = vmul.f32 %v6005, %v6005
  %v6010 = vmul.f32 %v6006, %v6006
  %v6011 = vmul.f32 %v6007, %v6007
  %v6012 = vmul.f32 %v6008, %v6008
  %v6013 = vsel %vm102, %v6009, 0.0
  %6014 = vadd.xlane.f32.xlu0 %v6013
  %v6015 = vpop.xlane.xlu0 %6014
  %v6016 = vsel %vm102, %v6010, 0.0
  %6017 = vadd.xlane.f32.xlu0 %v6016
  %v6018 = vpop.xlane.xlu0 %6017
  %v6019 = vsel %vm102, %v6011, 0.0
  %6020 = vadd.xlane.f32.xlu0 %v6019
  %v6021 = vpop.xlane.xlu0 %6020
  %v6022 = vsel %vm102, %v6012, 0.0
  %6023 = vadd.xlane.f32.xlu0 %v6022
  %v6024 = vpop.xlane.xlu0 %6023
  %v6025 = vmul.f32 %v6015, %v115
  %v6026 = vmul.f32 %v6018, %v115
  %v6027 = vmul.f32 %v6021, %v115
  %v6028 = vmul.f32 %v6024, %v115
  %v6029 = vadd.f32 %v6025, 1e-06
  %v6030 = vadd.f32 %v6026, 1e-06
  %v6031 = vadd.f32 %v6027, 1e-06
  %v6032 = vadd.f32 %v6028, 1e-06
  %v6033 = vrsqrt.pop %v6029
  %v6034 = vrsqrt.pop %v6030
  %v6035 = vrsqrt.pop %v6031
  %v6036 = vrsqrt.pop %v6032
  %v6037 = vmul.f32 %v6005, %v6033
  %v6038 = vmul.f32 %v6006, %v6034
  %v6039 = vmul.f32 %v6007, %v6035
  %v6040 = vmul.f32 %v6008, %v6036
  %v6041 = vlaneseq
  %v6042 = vshrl.u32 %v6041, 7
  %v6043 = vsub.s32 0, %v6042
  %v6044 = vrot.slane %v5026, %v6043
  %v6045 = vmul.f32 %v6037, %v6044
  %v6046 = vmul.f32 %v6038, %v6044
  %v6047 = vmul.f32 %v6039, %v6044
  %v6048 = vmul.f32 %v6040, %v6044
  %v6049 = vlaneseq
  %v6050 = vshrl.u32 %v6049, 7
  %v6051 = vsub.s32 1, %v6050
  %v6052 = vrot.slane %v5026, %v6051
  %v6053 = vadd.f32 %v6045, %v6052
  %v6054 = vadd.f32 %v6046, %v6052
  %v6055 = vadd.f32 %v6047, %v6052
  %v6056 = vadd.f32 %v6048, %v6052
  %6057 = vmatprep.subr.mxu0 0.0
  %6058 = vmatpush1.msra.mxu0 %v6053
  %6059 = vmatprep.subr.mxu0 0.0
  %6060 = vmatpush1.msra.mxu0 %v6054
  %6061 = vmatprep.subr.mxu0 0.0
  %6062 = vmatpush1.msra.mxu0 %v6055
  %6063 = vmatprep.subr.mxu0 0.0
  %6064 = vmatpush1.msra.mxu0 %v6056
  %6065 = vmatprep.subr.mxu0 0.0
  %6066 = vmatpush1.msra.mxu0 0.0
  %6067 = vmatprep.subr.mxu0 0.0
  %6068 = vmatpush1.msra.mxu0 0.0
  %6069 = vmatprep.subr.mxu0 0.0
  %6070 = vmatpush1.msra.mxu0 0.0
  %6071 = vmatprep.subr.mxu0 0.0
  %6072 = vmatpush1.msra.mxu0 0.0
  %6073 = vmatprep.subr.mxu0 0.0
  %6074 = vmatpush1.msra.mxu0 0.0
  %6075 = vmatprep.subr.mxu0 0.0
  %6076 = vmatpush1.msra.mxu0 0.0
  %6077 = vmatprep.subr.mxu0 0.0
  %6078 = vmatpush1.msra.mxu0 0.0
  %6079 = vmatprep.subr.mxu0 0.0
  %6080 = vmatpush1.msra.mxu0 0.0
  %6081 = vmatprep.subr.mxu0 0.0
  %6082 = vmatpush1.msra.mxu0 0.0
  %6083 = vmatprep.subr.mxu0 0.0
  %6084 = vmatpush1.msra.mxu0 0.0
  %6085 = vmatprep.subr.mxu0 0.0
  %6086 = vmatpush1.msra.mxu0 0.0
  %6087 = vmatprep.subr.mxu0 0.0
  %6088 = vmatpush1.msra.mxu0 0.0
  %6089 = vmatprep.subr.mxu0 0.0
  %6090 = vmatpush1.msra.mxu0 0.0
  %6091 = vmatprep.subr.mxu0 0.0
  %6092 = vmatpush1.msra.mxu0 0.0
  %6093 = vmatprep.subr.mxu0 0.0
  %6094 = vmatpush1.msra.mxu0 0.0
  %6095 = vmatprep.subr.mxu0 0.0
  %6096 = vmatpush1.msra.mxu0 0.0
  %6097 = vmatprep.subr.mxu0 0.0
  %6098 = vmatpush1.msra.mxu0 0.0
  %6099 = vmatprep.subr.mxu0 0.0
  %6100 = vmatpush1.msra.mxu0 0.0
  %6101 = vmatprep.subr.mxu0 0.0
  %6102 = vmatpush1.msra.mxu0 0.0
  %6103 = vmatprep.subr.mxu0 0.0
  %6104 = vmatpush1.msra.mxu0 0.0
  %6105 = vmatprep.subr.mxu0 0.0
  %6106 = vmatpush1.msra.mxu0 0.0
  %6107 = vmatprep.subr.mxu0 0.0
  %6108 = vmatpush1.msra.mxu0 0.0
  %6109 = vmatprep.subr.mxu0 0.0
  %6110 = vmatpush1.msra.mxu0 0.0
  %6111 = vmatprep.subr.mxu0 0.0
  %6112 = vmatpush1.msra.mxu0 0.0
  %6113 = vmatprep.subr.mxu0 0.0
  %6114 = vmatpush1.msra.mxu0 0.0
  %6115 = vmatprep.subr.mxu0 0.0
  %6116 = vmatpush1.msra.mxu0 0.0
  %6117 = vmatprep.subr.mxu0 0.0
  %6118 = vmatpush1.msra.mxu0 0.0
  %6119 = vmatprep.subr.mxu0 0.0
  %6120 = vmatpush1.msra.mxu0 0.0
  %6121 = vmatprep.mubr.f32.mxu0 0.0
  %6122 = vmatmul.mubr.f32.gmra.mrb[0].mxu0 %v1125
  %v6123 = vpop.f32.mrb[0].mxu0
  %v6124 = vadd.f32 0.0, %v6123
  %v6125 = vpop.f32.mrb[0].mxu0
  %6126 = vmatprep.mubr.f32.mxu0 0.0
  %6127 = vmatmul.mubr.f32.gmra.mrb[0].mxu0 %v1128
  %v6128 = vpop.f32.mrb[0].mxu0
  %v6129 = vadd.f32 0.0, %v6128
  %v6130 = vpop.f32.mrb[0].mxu0
  %6131 = vmatprep.mubr.f32.mxu0 0.0
  %6132 = vmatmul.mubr.f32.gmra.mrb[0].mxu0 %v1131
  %v6133 = vpop.f32.mrb[0].mxu0
  %v6134 = vadd.f32 0.0, %v6133
  %v6135 = vpop.f32.mrb[0].mxu0
  %6136 = vmatprep.mubr.f32.mxu0 0.0
  %6137 = vmatmul.mubr.f32.gmra.mrb[0].mxu0 %v1134
  %v6138 = vpop.f32.mrb[0].mxu0
  %v6139 = vadd.f32 0.0, %v6138
  %v6140 = vpop.f32.mrb[0].mxu0
  %6141 = vmatprep.mubr.f32.mxu0 0.0
  %6142 = vmatmul.mubr.f32.gmra.mrb[0].mxu0 %v1137
  %v6143 = vpop.f32.mrb[0].mxu0
  %v6144 = vadd.f32 0.0, %v6143
  %v6145 = vpop.f32.mrb[0].mxu0
  %6146 = vmatprep.mubr.f32.mxu0 0.0
  %6147 = vmatmul.mubr.f32.gmra.mrb[0].mxu0 %v1140
  %v6148 = vpop.f32.mrb[0].mxu0
  %v6149 = vadd.f32 0.0, %v6148
  %v6150 = vpop.f32.mrb[0].mxu0
  %6151 = vmatprep.mubr.f32.mxu0 0.0
  %6152 = vmatmul.mubr.f32.gmra.mrb[0].mxu0 %v1143
  %v6153 = vpop.f32.mrb[0].mxu0
  %v6154 = vadd.f32 0.0, %v6153
  %v6155 = vpop.f32.mrb[0].mxu0
  %6156 = vmatprep.mubr.f32.mxu0 0.0
  %6157 = vmatmul.mubr.f32.gmra.mrb[0].mxu0 %v1146
  %v6158 = vpop.f32.mrb[0].mxu0
  %v6159 = vadd.f32 0.0, %v6158
  %v6160 = vpop.f32.mrb[0].mxu0
  %6161 = vmatprep.mubr.f32.mxu0 0.0
  %6162 = vmatmul.mubr.f32.gmra.mrb[0].mxu0 %v1149
  %v6163 = vpop.f32.mrb[0].mxu0
  %v6164 = vadd.f32 0.0, %v6163
  %v6165 = vpop.f32.mrb[0].mxu0
  %6166 = vmatprep.mubr.f32.mxu0 0.0
  %6167 = vmatmul.mubr.f32.gmra.mrb[0].mxu0 %v1152
  %v6168 = vpop.f32.mrb[0].mxu0
  %v6169 = vadd.f32 0.0, %v6168
  %v6170 = vpop.f32.mrb[0].mxu0
  %6171 = vmatprep.mubr.f32.mxu0 0.0
  %6172 = vmatmul.mubr.f32.gmra.mrb[0].mxu0 %v1155
  %v6173 = vpop.f32.mrb[0].mxu0
  %v6174 = vadd.f32 0.0, %v6173
  %v6175 = vpop.f32.mrb[0].mxu0
  %6176 = vmatprep.mubr.f32.mxu0 0.0
  %6177 = vmatmul.mubr.f32.gmra.mrb[0].mxu0 %v1158
  %v6178 = vpop.f32.mrb[0].mxu0
  %v6179 = vadd.f32 0.0, %v6178
  %v6180 = vpop.f32.mrb[0].mxu0
  %6181 = vmatprep.mubr.f32.mxu0 0.0
  %6182 = vmatmul.mubr.f32.gmra.mrb[0].mxu0 %v1161
  %v6183 = vpop.f32.mrb[0].mxu0
  %v6184 = vadd.f32 0.0, %v6183
  %v6185 = vpop.f32.mrb[0].mxu0
  %6186 = vmatprep.mubr.f32.mxu0 0.0
  %6187 = vmatmul.mubr.f32.gmra.mrb[0].mxu0 %v1164
  %v6188 = vpop.f32.mrb[0].mxu0
  %v6189 = vadd.f32 0.0, %v6188
  %v6190 = vpop.f32.mrb[0].mxu0
  %6191 = vmatprep.mubr.f32.mxu0 0.0
  %6192 = vmatmul.mubr.f32.gmra.mrb[0].mxu0 %v1167
  %v6193 = vpop.f32.mrb[0].mxu0
  %v6194 = vadd.f32 0.0, %v6193
  %v6195 = vpop.f32.mrb[0].mxu0
  %6196 = vmatprep.mubr.f32.mxu0 0.0
  %6197 = vmatmul.mubr.f32.gmra.mrb[0].mxu0 %v1170
  %v6198 = vpop.f32.mrb[0].mxu0
  %v6199 = vadd.f32 0.0, %v6198
  %v6200 = vpop.f32.mrb[0].mxu0
  %6201 = vmatprep.mubr.f32.mxu0 0.0
  %6202 = vmatmul.mubr.f32.gmra.mrb[0].mxu0 %v1173
  %v6203 = vpop.f32.mrb[0].mxu0
  %v6204 = vadd.f32 0.0, %v6203
  %v6205 = vpop.f32.mrb[0].mxu0
  %6206 = vmatprep.mubr.f32.mxu0 0.0
  %6207 = vmatmul.mubr.f32.gmra.mrb[0].mxu0 %v1176
  %v6208 = vpop.f32.mrb[0].mxu0
  %v6209 = vadd.f32 0.0, %v6208
  %v6210 = vpop.f32.mrb[0].mxu0
  %6211 = vmatprep.mubr.f32.mxu0 0.0
  %6212 = vmatmul.mubr.f32.gmra.mrb[0].mxu0 %v1179
  %v6213 = vpop.f32.mrb[0].mxu0
  %v6214 = vadd.f32 0.0, %v6213
  %v6215 = vpop.f32.mrb[0].mxu0
  %6216 = vmatprep.mubr.f32.mxu0 0.0
  %6217 = vmatmul.mubr.f32.gmra.mrb[0].mxu0 %v1182
  %v6218 = vpop.f32.mrb[0].mxu0
  %v6219 = vadd.f32 0.0, %v6218
  %v6220 = vpop.f32.mrb[0].mxu0
  %6221 = vmatprep.mubr.f32.mxu0 0.0
  %6222 = vmatmul.mubr.f32.gmra.mrb[0].mxu0 %v1185
  %v6223 = vpop.f32.mrb[0].mxu0
  %v6224 = vadd.f32 0.0, %v6223
  %v6225 = vpop.f32.mrb[0].mxu0
  %6226 = vmatprep.mubr.f32.mxu0 0.0
  %6227 = vmatmul.mubr.f32.gmra.mrb[0].mxu0 %v1188
  %v6228 = vpop.f32.mrb[0].mxu0
  %v6229 = vadd.f32 0.0, %v6228
  %v6230 = vpop.f32.mrb[0].mxu0
  %6231 = vmatprep.mubr.f32.mxu0 0.0
  %6232 = vmatmul.mubr.f32.gmra.mrb[0].mxu0 %v1191
  %v6233 = vpop.f32.mrb[0].mxu0
  %v6234 = vadd.f32 0.0, %v6233
  %v6235 = vpop.f32.mrb[0].mxu0
  %6236 = vmatprep.mubr.f32.mxu0 0.0
  %6237 = vmatmul.mubr.f32.gmra.mrb[0].mxu0 %v1194
  %v6238 = vpop.f32.mrb[0].mxu0
  %v6239 = vadd.f32 0.0, %v6238
  %v6240 = vpop.f32.mrb[0].mxu0
  %6241 = vmatprep.mubr.f32.mxu0 0.0
  %6242 = vmatmul.mubr.f32.gmra.mrb[0].mxu0 %v1197
  %v6243 = vpop.f32.mrb[0].mxu0
  %v6244 = vadd.f32 0.0, %v6243
  %v6245 = vpop.f32.mrb[0].mxu0
  %6246 = vmatprep.mubr.f32.mxu0 0.0
  %6247 = vmatmul.mubr.f32.gmra.mrb[0].mxu0 %v1200
  %v6248 = vpop.f32.mrb[0].mxu0
  %v6249 = vadd.f32 0.0, %v6248
  %v6250 = vpop.f32.mrb[0].mxu0
  %6251 = vmatprep.mubr.f32.mxu0 0.0
  %6252 = vmatmul.mubr.f32.gmra.mrb[0].mxu0 %v1203
  %v6253 = vpop.f32.mrb[0].mxu0
  %v6254 = vadd.f32 0.0, %v6253
  %v6255 = vpop.f32.mrb[0].mxu0
  %6256 = vmatprep.mubr.f32.mxu0 0.0
  %6257 = vmatmul.mubr.f32.gmra.mrb[0].mxu0 %v1206
  %v6258 = vpop.f32.mrb[0].mxu0
  %v6259 = vadd.f32 0.0, %v6258
  %v6260 = vpop.f32.mrb[0].mxu0
  %6261 = vmatprep.mubr.f32.mxu0 0.0
  %6262 = vmatmul.mubr.f32.gmra.mrb[0].mxu0 %v1209
  %v6263 = vpop.f32.mrb[0].mxu0
  %v6264 = vadd.f32 0.0, %v6263
  %v6265 = vpop.f32.mrb[0].mxu0
  %6266 = vmatprep.mubr.f32.mxu0 0.0
  %6267 = vmatmul.mubr.f32.gmra.mrb[0].mxu0 %v1212
  %v6268 = vpop.f32.mrb[0].mxu0
  %v6269 = vadd.f32 0.0, %v6268
  %v6270 = vpop.f32.mrb[0].mxu0
  %6271 = vmatprep.mubr.f32.mxu0 0.0
  %6272 = vmatmul.mubr.f32.gmra.mrb[0].mxu0 %v1215
  %v6273 = vpop.f32.mrb[0].mxu0
  %v6274 = vadd.f32 0.0, %v6273
  %v6275 = vpop.f32.mrb[0].mxu0
  %6276 = vmatprep.mubr.f32.mxu0 0.0
  %6277 = vmatmul.mubr.f32.gmra.mrb[0].mxu0 %v1218
  %v6278 = vpop.f32.mrb[0].mxu0
  %v6279 = vadd.f32 0.0, %v6278
  %v6280 = vpop.f32.mrb[0].mxu0
  %6281 = vmatprep.mubr.f32.mxu0 0.0
  %6282 = vmatmul.mubr.f32.gmra.mrb[0].mxu0 %v1221
  %v6283 = vpop.f32.mrb[0].mxu0
  %v6284 = vadd.f32 0.0, %v6283
  %v6285 = vpop.f32.mrb[0].mxu0
  %6286 = vmatprep.mubr.f32.mxu0 0.0
  %6287 = vmatmul.mubr.f32.gmra.mrb[0].mxu0 %v1224
  %v6288 = vpop.f32.mrb[0].mxu0
  %v6289 = vadd.f32 0.0, %v6288
  %v6290 = vpop.f32.mrb[0].mxu0
  %6291 = vmatprep.mubr.f32.mxu0 0.0
  %6292 = vmatmul.mubr.f32.gmra.mrb[0].mxu0 %v1227
  %v6293 = vpop.f32.mrb[0].mxu0
  %v6294 = vadd.f32 0.0, %v6293
  %v6295 = vpop.f32.mrb[0].mxu0
  %6296 = vmatprep.mubr.f32.mxu0 0.0
  %6297 = vmatmul.mubr.f32.gmra.mrb[0].mxu0 %v1230
  %v6298 = vpop.f32.mrb[0].mxu0
  %v6299 = vadd.f32 0.0, %v6298
  %v6300 = vpop.f32.mrb[0].mxu0
  %6301 = vdwg.mxu0
  %v6304 = vcombine.high %v5027, %v5027
  %v6306 = vunpack.c.l.s4 1966171168
  %v6307 = vunpack.c.0.s8 %v6306
  %v6308 = vlaneseq
  %v6309 = vshrl.u32 %v6308, 7
  %v6310 = vsub.s32 %v6307, %v6309
  %v6311 = vrot.slane %v5027, %v6310
  %v6313 = vunpack.c.l.s4 1966171168
  %v6314 = vunpack.c.0.s8 %v6313
  %v6315 = vlaneseq
  %v6316 = vshrl.u32 %v6315, 7
  %v6317 = vsub.s32 %v6314, %v6316
  %v6318 = vrot.slane %v6304, %v6317
  %v6319 = vcombine.high %v6311, %v6311
  %v6320 = vcombine.high %v6318, %v6318
  %v6322 = vunpack.c.l.s4 1966171168
  %v6323 = vunpack.c.0.s8 %v6322
  %v6324 = vlaneseq
  %v6325 = vshrl.u32 %v6324, 7
  %v6326 = vsub.s32 %v6323, %v6325
  %v6327 = vrot.slane %v6318, %v6326
  %v6329 = vunpack.c.l.s4 1966171168
  %v6330 = vunpack.c.0.s8 %v6329
  %v6331 = vlaneseq
  %v6332 = vshrl.u32 %v6331, 7
  %v6333 = vsub.s32 %v6330, %v6332
  %v6334 = vrot.slane %v6319, %v6333
  %v6336 = vunpack.c.l.s4 1966171168
  %v6337 = vunpack.c.0.s8 %v6336
  %v6338 = vlaneseq
  %v6339 = vshrl.u32 %v6338, 7
  %v6340 = vsub.s32 %v6337, %v6339
  %v6341 = vrot.slane %v6320, %v6340
  %v6342 = vcombine.high %v6327, %v6327
  %v6343 = vcombine.high %v6334, %v6334
  %v6344 = vcombine.high %v6341, %v6341
  %v6346 = vunpack.c.l.s4 1966171168
  %v6347 = vunpack.c.0.s8 %v6346
  %v6348 = vlaneseq
  %v6349 = vshrl.u32 %v6348, 7
  %v6350 = vsub.s32 %v6347, %v6349
  %v6351 = vrot.slane %v5028, %v6350
  %v6352 = vcombine.high %v6351, %v6351
  %v6354 = vunpack.c.l.s4 1966171168
  %v6355 = vunpack.c.0.s8 %v6354
  %v6356 = vlaneseq
  %v6357 = vshrl.u32 %v6356, 7
  %v6358 = vsub.s32 %v6355, %v6357
  %v6359 = vrot.slane %v6351, %v6358
  %v6361 = vunpack.c.l.s4 1966171168
  %v6362 = vunpack.c.0.s8 %v6361
  %v6363 = vlaneseq
  %v6364 = vshrl.u32 %v6363, 7
  %v6365 = vsub.s32 %v6362, %v6364
  %v6366 = vrot.slane %v6352, %v6365
  %v6367 = vcombine.high %v6359, %v6359
  %v6368 = vcombine.high %v6366, %v6366
  %v6369 = vlaneseq
  %v6370 = vshrl.u32 %v6369, 7
  %v6371 = vsub.s32 0, %v6370
  %v6372 = vrot.slane %v6343, %v6371
  %v6373 = vlaneseq
  %v6374 = vshrl.u32 %v6373, 7
  %v6375 = vsub.s32 0, %v6374
  %v6376 = vrot.slane %v6327, %v6375
  %v6377 = vlaneseq
  %v6378 = vshrl.u32 %v6377, 7
  %v6379 = vsub.s32 0, %v6378
  %v6380 = vrot.slane %v6341, %v6379
  %v6381 = vlaneseq
  %v6382 = vshrl.u32 %v6381, 7
  %v6383 = vsub.s32 0, %v6382
  %v6384 = vrot.slane %v6342, %v6383
  %v6385 = vlaneseq
  %v6386 = vshrl.u32 %v6385, 7
  %v6387 = vsub.s32 0, %v6386
  %v6388 = vrot.slane %v6344, %v6387
  %v6389 = vlaneseq
  %v6390 = vshrl.u32 %v6389, 7
  %v6391 = vsub.s32 0, %v6390
  %v6392 = vrot.slane %v6359, %v6391
  %v6393 = vlaneseq
  %v6394 = vshrl.u32 %v6393, 7
  %v6395 = vsub.s32 0, %v6394
  %v6396 = vrot.slane %v6366, %v6395
  %v6397 = vlaneseq
  %v6398 = vshrl.u32 %v6397, 7
  %v6399 = vsub.s32 0, %v6398
  %v6400 = vrot.slane %v6367, %v6399
  %v6401 = vlaneseq
  %v6402 = vshrl.u32 %v6401, 7
  %v6403 = vsub.s32 0, %v6402
  %v6404 = vrot.slane %v6368, %v6403
  %v6414 = vmul.f32 %v6124, %v6372
  %v6415 = vmul.f32 %v6129, %v6372
  %v6416 = vmul.f32 %v6134, %v6372
  %v6417 = vmul.f32 %v6139, %v6372
  %v6418 = vmul.f32 %v6144, %v6376
  %v6419 = vmul.f32 %v6149, %v6376
  %v6420 = vmul.f32 %v6154, %v6376
  %v6421 = vmul.f32 %v6159, %v6376
  %v6422 = vmul.f32 %v6164, %v6380
  %v6423 = vmul.f32 %v6169, %v6380
  %v6424 = vmul.f32 %v6174, %v6380
  %v6425 = vmul.f32 %v6179, %v6380
  %v6426 = vmul.f32 %v6184, %v6384
  %v6427 = vmul.f32 %v6189, %v6384
  %v6428 = vmul.f32 %v6194, %v6384
  %v6429 = vmul.f32 %v6199, %v6384
  %v6430 = vmul.f32 %v6204, %v6388
  %v6431 = vmul.f32 %v6209, %v6388
  %v6432 = vmul.f32 %v6214, %v6388
  %v6433 = vmul.f32 %v6219, %v6388
  %v6434 = vmul.f32 %v6224, %v6392
  %v6435 = vmul.f32 %v6229, %v6392
  %v6436 = vmul.f32 %v6234, %v6392
  %v6437 = vmul.f32 %v6239, %v6392
  %v6438 = vmul.f32 %v6244, %v6396
  %v6439 = vmul.f32 %v6249, %v6396
  %v6440 = vmul.f32 %v6254, %v6396
  %v6441 = vmul.f32 %v6259, %v6396
  %v6442 = vmul.f32 %v6264, %v6400
  %v6443 = vmul.f32 %v6269, %v6400
  %v6444 = vmul.f32 %v6274, %v6400
  %v6445 = vmul.f32 %v6279, %v6400
  %v6446 = vmul.f32 %v6284, %v6404
  %v6447 = vmul.f32 %v6289, %v6404
  %v6448 = vmul.f32 %v6294, %v6404
  %v6449 = vmul.f32 %v6299, %v6404
  %v6450 = vsel %vm102, %v6414, 0.0
  %v6451 = vsel %vm102, %v6418, 0.0
  %v6452 = vadd.f32 %v6450, %v6451
  %v6453 = vsel %vm102, %v6422, 0.0
  %v6454 = vadd.f32 %v6452, %v6453
  %v6455 = vsel %vm102, %v6426, 0.0
  %v6456 = vadd.f32 %v6454, %v6455
  %v6457 = vsel %vm102, %v6430, 0.0
  %v6458 = vadd.f32 %v6456, %v6457
  %v6459 = vsel %vm102, %v6434, 0.0
  %v6460 = vadd.f32 %v6458, %v6459
  %v6461 = vsel %vm102, %v6438, 0.0
  %v6462 = vadd.f32 %v6460, %v6461
  %v6463 = vsel %vm102, %v6442, 0.0
  %v6464 = vadd.f32 %v6462, %v6463
  %v6465 = vsel %vm102, %v6446, 0.0
  %v6466 = vadd.f32 %v6464, %v6465
  %v6467 = vsel %vm102, %v6415, 0.0
  %v6468 = vsel %vm102, %v6419, 0.0
  %v6469 = vadd.f32 %v6467, %v6468
  %v6470 = vsel %vm102, %v6423, 0.0
  %v6471 = vadd.f32 %v6469, %v6470
  %v6472 = vsel %vm102, %v6427, 0.0
  %v6473 = vadd.f32 %v6471, %v6472
  %v6474 = vsel %vm102, %v6431, 0.0
  %v6475 = vadd.f32 %v6473, %v6474
  %v6476 = vsel %vm102, %v6435, 0.0
  %v6477 = vadd.f32 %v6475, %v6476
  %v6478 = vsel %vm102, %v6439, 0.0
  %v6479 = vadd.f32 %v6477, %v6478
  %v6480 = vsel %vm102, %v6443, 0.0
  %v6481 = vadd.f32 %v6479, %v6480
  %v6482 = vsel %vm102, %v6447, 0.0
  %v6483 = vadd.f32 %v6481, %v6482
  %v6484 = vsel %vm102, %v6416, 0.0
  %v6485 = vsel %vm102, %v6420, 0.0
  %v6486 = vadd.f32 %v6484, %v6485
  %v6487 = vsel %vm102, %v6424, 0.0
  %v6488 = vadd.f32 %v6486, %v6487
  %v6489 = vsel %vm102, %v6428, 0.0
  %v6490 = vadd.f32 %v6488, %v6489
  %v6491 = vsel %vm102, %v6432, 0.0
  %v6492 = vadd.f32 %v6490, %v6491
  %v6493 = vsel %vm102, %v6436, 0.0
  %v6494 = vadd.f32 %v6492, %v6493
  %v6495 = vsel %vm102, %v6440, 0.0
  %v6496 = vadd.f32 %v6494, %v6495
  %v6497 = vsel %vm102, %v6444, 0.0
  %v6498 = vadd.f32 %v6496, %v6497
  %v6499 = vsel %vm102, %v6448, 0.0
  %v6500 = vadd.f32 %v6498, %v6499
  %v6501 = vsel %vm102, %v6417, 0.0
  %v6502 = vsel %vm102, %v6421, 0.0
  %v6503 = vadd.f32 %v6501, %v6502
  %v6504 = vsel %vm102, %v6425, 0.0
  %v6505 = vadd.f32 %v6503, %v6504
  %v6506 = vsel %vm102, %v6429, 0.0
  %v6507 = vadd.f32 %v6505, %v6506
  %v6508 = vsel %vm102, %v6433, 0.0
  %v6509 = vadd.f32 %v6507, %v6508
  %v6510 = vsel %vm102, %v6437, 0.0
  %v6511 = vadd.f32 %v6509, %v6510
  %v6512 = vsel %vm102, %v6441, 0.0
  %v6513 = vadd.f32 %v6511, %v6512
  %v6514 = vsel %vm102, %v6445, 0.0
  %v6515 = vadd.f32 %v6513, %v6514
  %v6516 = vsel %vm102, %v6449, 0.0
  %v6517 = vadd.f32 %v6515, %v6516
  %v6518 = vlaneseq
  %v6519 = vshrl.u32 %v6518, 7
  %v6520 = vsub.s32 2, %v6519
  %v6521 = vrot.slane %v5026, %v6520
  %v6522 = vadd.f32 %v6466, %v6521
  %v6523 = vadd.f32 %v6483, %v6521
  %v6524 = vadd.f32 %v6500, %v6521
  %v6525 = vadd.f32 %v6517, %v6521
  %v6526 = vmul.f32 %v6522, 0.5
  %v6527 = vmul.f32 %v6523, 0.5
  %v6528 = vmul.f32 %v6524, 0.5
  %v6529 = vmul.f32 %v6525, 0.5
  %v6530 = vmul.f32 %v6522, 0.044715
  %v6531 = vmul.f32 %v6523, 0.044715
  %v6532 = vmul.f32 %v6524, 0.044715
  %v6533 = vmul.f32 %v6525, 0.044715
  %v6534 = vmul.f32 %v6530, %v6522
  %v6535 = vmul.f32 %v6531, %v6523
  %v6536 = vmul.f32 %v6532, %v6524
  %v6537 = vmul.f32 %v6533, %v6525
  %v6538 = vmul.f32 %v6534, %v6522
  %v6539 = vmul.f32 %v6535, %v6523
  %v6540 = vmul.f32 %v6536, %v6524
  %v6541 = vmul.f32 %v6537, %v6525
  %v6542 = vadd.f32 %v6522, %v6538
  %v6543 = vadd.f32 %v6523, %v6539
  %v6544 = vadd.f32 %v6524, %v6540
  %v6545 = vadd.f32 %v6525, %v6541
  %v6546 = vmul.f32 %v6542, 0.7978846
  %v6547 = vmul.f32 %v6543, 0.7978846
  %v6548 = vmul.f32 %v6544, 0.7978846
  %v6549 = vmul.f32 %v6545, 0.7978846
  %v6550 = vtanh.pop %v6546
  %v6551 = vtanh.pop %v6547
  %v6552 = vtanh.pop %v6548
  %v6553 = vtanh.pop %v6549
  %v6554 = vadd.f32 %v6550, 1.0
  %v6555 = vadd.f32 %v6551, 1.0
  %v6556 = vadd.f32 %v6552, 1.0
  %v6557 = vadd.f32 %v6553, 1.0
  %v6558 = vmul.f32 %v6526, %v6554
  %v6559 = vmul.f32 %v6527, %v6555
  %v6560 = vmul.f32 %v6528, %v6556
  %v6561 = vmul.f32 %v6529, %v6557
  %v6562 = vlaneseq
  %v6563 = vshrl.u32 %v6562, 7
  %v6564 = vsub.s32 3, %v6563
  %v6565 = vrot.slane %v5026, %v6564
  %v6566 = vmul.f32 %v6558, %v6565
  %v6567 = vmul.f32 %v6559, %v6565
  %v6568 = vmul.f32 %v6560, %v6565
  %v6569 = vmul.f32 %v6561, %v6565
  %v6570 = vlaneseq
  %v6571 = vshrl.u32 %v6570, 7
  %v6572 = vsub.s32 4, %v6571
  %v6573 = vrot.slane %v5026, %v6572
  %v6574 = vadd.f32 %v6566, %v6573
  %v6575 = vadd.f32 %v6567, %v6573
  %v6576 = vadd.f32 %v6568, %v6573
  %v6577 = vadd.f32 %v6569, %v6573
  %6578 = vmatprep.subr.mxu0 0.0
  %6579 = vmatpush1.msra.mxu0 %v6574
  %6580 = vmatprep.subr.mxu0 0.0
  %6581 = vmatpush1.msra.mxu0 %v6575
  %6582 = vmatprep.subr.mxu0 0.0
  %6583 = vmatpush1.msra.mxu0 %v6576
  %6584 = vmatprep.subr.mxu0 0.0
  %6585 = vmatpush1.msra.mxu0 %v6577
  %6586 = vmatprep.subr.mxu0 0.0
  %6587 = vmatpush1.msra.mxu0 0.0
  %6588 = vmatprep.subr.mxu0 0.0
  %6589 = vmatpush1.msra.mxu0 0.0
  %6590 = vmatprep.subr.mxu0 0.0
  %6591 = vmatpush1.msra.mxu0 0.0
  %6592 = vmatprep.subr.mxu0 0.0
  %6593 = vmatpush1.msra.mxu0 0.0
  %6594 = vmatprep.subr.mxu0 0.0
  %6595 = vmatpush1.msra.mxu0 0.0
  %6596 = vmatprep.subr.mxu0 0.0
  %6597 = vmatpush1.msra.mxu0 0.0
  %6598 = vmatprep.subr.mxu0 0.0
  %6599 = vmatpush1.msra.mxu0 0.0
  %6600 = vmatprep.subr.mxu0 0.0
  %6601 = vmatpush1.msra.mxu0 0.0
  %6602 = vmatprep.subr.mxu0 0.0
  %6603 = vmatpush1.msra.mxu0 0.0
  %6604 = vmatprep.subr.mxu0 0.0
  %6605 = vmatpush1.msra.mxu0 0.0
  %6606 = vmatprep.subr.mxu0 0.0
  %6607 = vmatpush1.msra.mxu0 0.0
  %6608 = vmatprep.subr.mxu0 0.0
  %6609 = vmatpush1.msra.mxu0 0.0
  %6610 = vmatprep.subr.mxu0 0.0
  %6611 = vmatpush1.msra.mxu0 0.0
  %6612 = vmatprep.subr.mxu0 0.0
  %6613 = vmatpush1.msra.mxu0 0.0
  %6614 = vmatprep.subr.mxu0 0.0
  %6615 = vmatpush1.msra.mxu0 0.0
  %6616 = vmatprep.subr.mxu0 0.0
  %6617 = vmatpush1.msra.mxu0 0.0
  %6618 = vmatprep.subr.mxu0 0.0
  %6619 = vmatpush1.msra.mxu0 0.0
  %6620 = vmatprep.subr.mxu0 0.0
  %6621 = vmatpush1.msra.mxu0 0.0
  %6622 = vmatprep.subr.mxu0 0.0
  %6623 = vmatpush1.msra.mxu0 0.0
  %6624 = vmatprep.subr.mxu0 0.0
  %6625 = vmatpush1.msra.mxu0 0.0
  %6626 = vmatprep.subr.mxu0 0.0
  %6627 = vmatpush1.msra.mxu0 0.0
  %6628 = vmatprep.subr.mxu0 0.0
  %6629 = vmatpush1.msra.mxu0 0.0
  %6630 = vmatprep.subr.mxu0 0.0
  %6631 = vmatpush1.msra.mxu0 0.0
  %6632 = vmatprep.subr.mxu0 0.0
  %6633 = vmatpush1.msra.mxu0 0.0
  %6634 = vmatprep.subr.mxu0 0.0
  %6635 = vmatpush1.msra.mxu0 0.0
  %6636 = vmatprep.subr.mxu0 0.0
  %6637 = vmatpush1.msra.mxu0 0.0
  %6638 = vmatprep.subr.mxu0 0.0
  %6639 = vmatpush1.msra.mxu0 0.0
  %6640 = vmatprep.subr.mxu0 0.0
  %6641 = vmatpush1.msra.mxu0 0.0
  %6642 = vmatprep.mubr.f32.mxu0 0.0
  %6643 = vmatmul.mubr.f32.gmra.mrb[0].mxu0 %v1125
  %v6644 = vpop.f32.mrb[0].mxu0
  %v6645 = vadd.f32 0.0, %v6644
  %v6646 = vpop.f32.mrb[0].mxu0
  %6647 = vmatprep.mubr.f32.mxu0 0.0
  %6648 = vmatmul.mubr.f32.gmra.mrb[0].mxu0 %v1128
  %v6649 = vpop.f32.mrb[0].mxu0
  %v6650 = vadd.f32 0.0, %v6649
  %v6651 = vpop.f32.mrb[0].mxu0
  %6652 = vmatprep.mubr.f32.mxu0 0.0
  %6653 = vmatmul.mubr.f32.gmra.mrb[0].mxu0 %v1131
  %v6654 = vpop.f32.mrb[0].mxu0
  %v6655 = vadd.f32 0.0, %v6654
  %v6656 = vpop.f32.mrb[0].mxu0
  %6657 = vmatprep.mubr.f32.mxu0 0.0
  %6658 = vmatmul.mubr.f32.gmra.mrb[0].mxu0 %v1134
  %v6659 = vpop.f32.mrb[0].mxu0
  %v6660 = vadd.f32 0.0, %v6659
  %v6661 = vpop.f32.mrb[0].mxu0
  %6662 = vmatprep.mubr.f32.mxu0 0.0
  %6663 = vmatmul.mubr.f32.gmra.mrb[0].mxu0 %v1137
  %v6664 = vpop.f32.mrb[0].mxu0
  %v6665 = vadd.f32 0.0, %v6664
  %v6666 = vpop.f32.mrb[0].mxu0
  %6667 = vmatprep.mubr.f32.mxu0 0.0
  %6668 = vmatmul.mubr.f32.gmra.mrb[0].mxu0 %v1140
  %v6669 = vpop.f32.mrb[0].mxu0
  %v6670 = vadd.f32 0.0, %v6669
  %v6671 = vpop.f32.mrb[0].mxu0
  %6672 = vmatprep.mubr.f32.mxu0 0.0
  %6673 = vmatmul.mubr.f32.gmra.mrb[0].mxu0 %v1143
  %v6674 = vpop.f32.mrb[0].mxu0
  %v6675 = vadd.f32 0.0, %v6674
  %v6676 = vpop.f32.mrb[0].mxu0
  %6677 = vmatprep.mubr.f32.mxu0 0.0
  %6678 = vmatmul.mubr.f32.gmra.mrb[0].mxu0 %v1146
  %v6679 = vpop.f32.mrb[0].mxu0
  %v6680 = vadd.f32 0.0, %v6679
  %v6681 = vpop.f32.mrb[0].mxu0
  %6682 = vmatprep.mubr.f32.mxu0 0.0
  %6683 = vmatmul.mubr.f32.gmra.mrb[0].mxu0 %v1149
  %v6684 = vpop.f32.mrb[0].mxu0
  %v6685 = vadd.f32 0.0, %v6684
  %v6686 = vpop.f32.mrb[0].mxu0
  %6687 = vmatprep.mubr.f32.mxu0 0.0
  %6688 = vmatmul.mubr.f32.gmra.mrb[0].mxu0 %v1152
  %v6689 = vpop.f32.mrb[0].mxu0
  %v6690 = vadd.f32 0.0, %v6689
  %v6691 = vpop.f32.mrb[0].mxu0
  %6692 = vmatprep.mubr.f32.mxu0 0.0
  %6693 = vmatmul.mubr.f32.gmra.mrb[0].mxu0 %v1155
  %v6694 = vpop.f32.mrb[0].mxu0
  %v6695 = vadd.f32 0.0, %v6694
  %v6696 = vpop.f32.mrb[0].mxu0
  %6697 = vmatprep.mubr.f32.mxu0 0.0
  %6698 = vmatmul.mubr.f32.gmra.mrb[0].mxu0 %v1158
  %v6699 = vpop.f32.mrb[0].mxu0
  %v6700 = vadd.f32 0.0, %v6699
  %v6701 = vpop.f32.mrb[0].mxu0
  %6702 = vmatprep.mubr.f32.mxu0 0.0
  %6703 = vmatmul.mubr.f32.gmra.mrb[0].mxu0 %v1161
  %v6704 = vpop.f32.mrb[0].mxu0
  %v6705 = vadd.f32 0.0, %v6704
  %v6706 = vpop.f32.mrb[0].mxu0
  %6707 = vmatprep.mubr.f32.mxu0 0.0
  %6708 = vmatmul.mubr.f32.gmra.mrb[0].mxu0 %v1164
  %v6709 = vpop.f32.mrb[0].mxu0
  %v6710 = vadd.f32 0.0, %v6709
  %v6711 = vpop.f32.mrb[0].mxu0
  %6712 = vmatprep.mubr.f32.mxu0 0.0
  %6713 = vmatmul.mubr.f32.gmra.mrb[0].mxu0 %v1167
  %v6714 = vpop.f32.mrb[0].mxu0
  %v6715 = vadd.f32 0.0, %v6714
  %v6716 = vpop.f32.mrb[0].mxu0
  %6717 = vmatprep.mubr.f32.mxu0 0.0
  %6718 = vmatmul.mubr.f32.gmra.mrb[0].mxu0 %v1170
  %v6719 = vpop.f32.mrb[0].mxu0
  %v6720 = vadd.f32 0.0, %v6719
  %v6721 = vpop.f32.mrb[0].mxu0
  %6722 = vmatprep.mubr.f32.mxu0 0.0
  %6723 = vmatmul.mubr.f32.gmra.mrb[0].mxu0 %v1173
  %v6724 = vpop.f32.mrb[0].mxu0
  %v6725 = vadd.f32 0.0, %v6724
  %v6726 = vpop.f32.mrb[0].mxu0
  %6727 = vmatprep.mubr.f32.mxu0 0.0
  %6728 = vmatmul.mubr.f32.gmra.mrb[0].mxu0 %v1176
  %v6729 = vpop.f32.mrb[0].mxu0
  %v6730 = vadd.f32 0.0, %v6729
  %v6731 = vpop.f32.mrb[0].mxu0
  %6732 = vmatprep.mubr.f32.mxu0 0.0
  %6733 = vmatmul.mubr.f32.gmra.mrb[0].mxu0 %v1179
  %v6734 = vpop.f32.mrb[0].mxu0
  %v6735 = vadd.f32 0.0, %v6734
  %v6736 = vpop.f32.mrb[0].mxu0
  %6737 = vmatprep.mubr.f32.mxu0 0.0
  %6738 = vmatmul.mubr.f32.gmra.mrb[0].mxu0 %v1182
  %v6739 = vpop.f32.mrb[0].mxu0
  %v6740 = vadd.f32 0.0, %v6739
  %v6741 = vpop.f32.mrb[0].mxu0
  %6742 = vmatprep.mubr.f32.mxu0 0.0
  %6743 = vmatmul.mubr.f32.gmra.mrb[0].mxu0 %v1185
  %v6744 = vpop.f32.mrb[0].mxu0
  %v6745 = vadd.f32 0.0, %v6744
  %v6746 = vpop.f32.mrb[0].mxu0
  %6747 = vmatprep.mubr.f32.mxu0 0.0
  %6748 = vmatmul.mubr.f32.gmra.mrb[0].mxu0 %v1188
  %v6749 = vpop.f32.mrb[0].mxu0
  %v6750 = vadd.f32 0.0, %v6749
  %v6751 = vpop.f32.mrb[0].mxu0
  %6752 = vmatprep.mubr.f32.mxu0 0.0
  %6753 = vmatmul.mubr.f32.gmra.mrb[0].mxu0 %v1191
  %v6754 = vpop.f32.mrb[0].mxu0
  %v6755 = vadd.f32 0.0, %v6754
  %v6756 = vpop.f32.mrb[0].mxu0
  %6757 = vmatprep.mubr.f32.mxu0 0.0
  %6758 = vmatmul.mubr.f32.gmra.mrb[0].mxu0 %v1194
  %v6759 = vpop.f32.mrb[0].mxu0
  %v6760 = vadd.f32 0.0, %v6759
  %v6761 = vpop.f32.mrb[0].mxu0
  %6762 = vmatprep.mubr.f32.mxu0 0.0
  %6763 = vmatmul.mubr.f32.gmra.mrb[0].mxu0 %v1197
  %v6764 = vpop.f32.mrb[0].mxu0
  %v6765 = vadd.f32 0.0, %v6764
  %v6766 = vpop.f32.mrb[0].mxu0
  %6767 = vmatprep.mubr.f32.mxu0 0.0
  %6768 = vmatmul.mubr.f32.gmra.mrb[0].mxu0 %v1200
  %v6769 = vpop.f32.mrb[0].mxu0
  %v6770 = vadd.f32 0.0, %v6769
  %v6771 = vpop.f32.mrb[0].mxu0
  %6772 = vmatprep.mubr.f32.mxu0 0.0
  %6773 = vmatmul.mubr.f32.gmra.mrb[0].mxu0 %v1203
  %v6774 = vpop.f32.mrb[0].mxu0
  %v6775 = vadd.f32 0.0, %v6774
  %v6776 = vpop.f32.mrb[0].mxu0
  %6777 = vmatprep.mubr.f32.mxu0 0.0
  %6778 = vmatmul.mubr.f32.gmra.mrb[0].mxu0 %v1206
  %v6779 = vpop.f32.mrb[0].mxu0
  %v6780 = vadd.f32 0.0, %v6779
  %v6781 = vpop.f32.mrb[0].mxu0
  %6782 = vmatprep.mubr.f32.mxu0 0.0
  %6783 = vmatmul.mubr.f32.gmra.mrb[0].mxu0 %v1209
  %v6784 = vpop.f32.mrb[0].mxu0
  %v6785 = vadd.f32 0.0, %v6784
  %v6786 = vpop.f32.mrb[0].mxu0
  %6787 = vmatprep.mubr.f32.mxu0 0.0
  %6788 = vmatmul.mubr.f32.gmra.mrb[0].mxu0 %v1212
  %v6789 = vpop.f32.mrb[0].mxu0
  %v6790 = vadd.f32 0.0, %v6789
  %v6791 = vpop.f32.mrb[0].mxu0
  %6792 = vmatprep.mubr.f32.mxu0 0.0
  %6793 = vmatmul.mubr.f32.gmra.mrb[0].mxu0 %v1215
  %v6794 = vpop.f32.mrb[0].mxu0
  %v6795 = vadd.f32 0.0, %v6794
  %v6796 = vpop.f32.mrb[0].mxu0
  %6797 = vmatprep.mubr.f32.mxu0 0.0
  %6798 = vmatmul.mubr.f32.gmra.mrb[0].mxu0 %v1218
  %v6799 = vpop.f32.mrb[0].mxu0
  %v6800 = vadd.f32 0.0, %v6799
  %v6801 = vpop.f32.mrb[0].mxu0
  %6802 = vmatprep.mubr.f32.mxu0 0.0
  %6803 = vmatmul.mubr.f32.gmra.mrb[0].mxu0 %v1221
  %v6804 = vpop.f32.mrb[0].mxu0
  %v6805 = vadd.f32 0.0, %v6804
  %v6806 = vpop.f32.mrb[0].mxu0
  %6807 = vmatprep.mubr.f32.mxu0 0.0
  %6808 = vmatmul.mubr.f32.gmra.mrb[0].mxu0 %v1224
  %v6809 = vpop.f32.mrb[0].mxu0
  %v6810 = vadd.f32 0.0, %v6809
  %v6811 = vpop.f32.mrb[0].mxu0
  %6812 = vmatprep.mubr.f32.mxu0 0.0
  %6813 = vmatmul.mubr.f32.gmra.mrb[0].mxu0 %v1227
  %v6814 = vpop.f32.mrb[0].mxu0
  %v6815 = vadd.f32 0.0, %v6814
  %v6816 = vpop.f32.mrb[0].mxu0
  %6817 = vmatprep.mubr.f32.mxu0 0.0
  %6818 = vmatmul.mubr.f32.gmra.mrb[0].mxu0 %v1230
  %v6819 = vpop.f32.mrb[0].mxu0
  %v6820 = vadd.f32 0.0, %v6819
  %v6821 = vpop.f32.mrb[0].mxu0
  %6822 = vdwg.mxu0
  %v6824 = vcombine.high %v5028, %v5028
  %v6826 = vunpack.c.l.s4 1966171168
  %v6827 = vunpack.c.0.s8 %v6826
  %v6828 = vlaneseq
  %v6829 = vshrl.u32 %v6828, 7
  %v6830 = vsub.s32 %v6827, %v6829
  %v6831 = vrot.slane %v6824, %v6830
  %v6832 = vcombine.high %v6831, %v6831
  %v6834 = vunpack.c.l.s4 1966171168
  %v6835 = vunpack.c.0.s8 %v6834
  %v6836 = vlaneseq
  %v6837 = vshrl.u32 %v6836, 7
  %v6838 = vsub.s32 %v6835, %v6837
  %v6839 = vrot.slane %v6831, %v6838
  %v6841 = vunpack.c.l.s4 1966171168
  %v6842 = vunpack.c.0.s8 %v6841
  %v6843 = vlaneseq
  %v6844 = vshrl.u32 %v6843, 7
  %v6845 = vsub.s32 %v6842, %v6844
  %v6846 = vrot.slane %v6832, %v6845
  %v6847 = vcombine.high %v6839, %v6839
  %v6848 = vcombine.high %v6846, %v6846
  %v6849 = vcombine.high %v5029, %v5029
  %v6851 = vunpack.c.l.s4 1966171168
  %v6852 = vunpack.c.0.s8 %v6851
  %v6853 = vlaneseq
  %v6854 = vshrl.u32 %v6853, 7
  %v6855 = vsub.s32 %v6852, %v6854
  %v6856 = vrot.slane %v5029, %v6855
  %v6858 = vunpack.c.l.s4 1966171168
  %v6859 = vunpack.c.0.s8 %v6858
  %v6860 = vlaneseq
  %v6861 = vshrl.u32 %v6860, 7
  %v6862 = vsub.s32 %v6859, %v6861
  %v6863 = vrot.slane %v6849, %v6862
  %v6864 = vcombine.high %v6856, %v6856
  %v6866 = vunpack.c.l.s4 1966171168
  %v6867 = vunpack.c.0.s8 %v6866
  %v6868 = vlaneseq
  %v6869 = vshrl.u32 %v6868, 7
  %v6870 = vsub.s32 %v6867, %v6869
  %v6871 = vrot.slane %v6856, %v6870
  %v6873 = vunpack.c.l.s4 1966171168
  %v6874 = vunpack.c.0.s8 %v6873
  %v6875 = vlaneseq
  %v6876 = vshrl.u32 %v6875, 7
  %v6877 = vsub.s32 %v6874, %v6876
  %v6878 = vrot.slane %v6863, %v6877
  %v6880 = vunpack.c.l.s4 1966171168
  %v6881 = vunpack.c.0.s8 %v6880
  %v6882 = vlaneseq
  %v6883 = vshrl.u32 %v6882, 7
  %v6884 = vsub.s32 %v6881, %v6883
  %v6885 = vrot.slane %v6864, %v6884
  %v6886 = vcombine.high %v6871, %v6871
  %v6887 = vcombine.high %v6885, %v6885
  %v6888 = vlaneseq
  %v6889 = vshrl.u32 %v6888, 7
  %v6890 = vsub.s32 0, %v6889
  %v6891 = vrot.slane %v6839, %v6890
  %v6892 = vlaneseq
  %v6893 = vshrl.u32 %v6892, 7
  %v6894 = vsub.s32 0, %v6893
  %v6895 = vrot.slane %v6846, %v6894
  %v6896 = vlaneseq
  %v6897 = vshrl.u32 %v6896, 7
  %v6898 = vsub.s32 0, %v6897
  %v6899 = vrot.slane %v6847, %v6898
  %v6900 = vlaneseq
  %v6901 = vshrl.u32 %v6900, 7
  %v6902 = vsub.s32 0, %v6901
  %v6903 = vrot.slane %v6848, %v6902
  %v6904 = vlaneseq
  %v6905 = vshrl.u32 %v6904, 7
  %v6906 = vsub.s32 0, %v6905
  %v6907 = vrot.slane %v6871, %v6906
  %v6908 = vlaneseq
  %v6909 = vshrl.u32 %v6908, 7
  %v6910 = vsub.s32 0, %v6909
  %v6911 = vrot.slane %v6885, %v6910
  %v6912 = vlaneseq
  %v6913 = vshrl.u32 %v6912, 7
  %v6914 = vsub.s32 0, %v6913
  %v6915 = vrot.slane %v6886, %v6914
  %v6916 = vlaneseq
  %v6917 = vshrl.u32 %v6916, 7
  %v6918 = vsub.s32 0, %v6917
  %v6919 = vrot.slane %v6887, %v6918
  %v6920 = vlaneseq
  %v6921 = vshrl.u32 %v6920, 7
  %v6922 = vsub.s32 0, %v6921
  %v6923 = vrot.slane %v6878, %v6922
  %v6933 = vmul.f32 %v6645, %v6891
  %v6934 = vmul.f32 %v6650, %v6891
  %v6935 = vmul.f32 %v6655, %v6891
  %v6936 = vmul.f32 %v6660, %v6891
  %v6937 = vmul.f32 %v6665, %v6895
  %v6938 = vmul.f32 %v6670, %v6895
  %v6939 = vmul.f32 %v6675, %v6895
  %v6940 = vmul.f32 %v6680, %v6895
  %v6941 = vmul.f32 %v6685, %v6899
  %v6942 = vmul.f32 %v6690, %v6899
  %v6943 = vmul.f32 %v6695, %v6899
  %v6944 = vmul.f32 %v6700, %v6899
  %v6945 = vmul.f32 %v6705, %v6903
  %v6946 = vmul.f32 %v6710, %v6903
  %v6947 = vmul.f32 %v6715, %v6903
  %v6948 = vmul.f32 %v6720, %v6903
  %v6949 = vmul.f32 %v6725, %v6907
  %v6950 = vmul.f32 %v6730, %v6907
  %v6951 = vmul.f32 %v6735, %v6907
  %v6952 = vmul.f32 %v6740, %v6907
  %v6953 = vmul.f32 %v6745, %v6911
  %v6954 = vmul.f32 %v6750, %v6911
  %v6955 = vmul.f32 %v6755, %v6911
  %v6956 = vmul.f32 %v6760, %v6911
  %v6957 = vmul.f32 %v6765, %v6915
  %v6958 = vmul.f32 %v6770, %v6915
  %v6959 = vmul.f32 %v6775, %v6915
  %v6960 = vmul.f32 %v6780, %v6915
  %v6961 = vmul.f32 %v6785, %v6919
  %v6962 = vmul.f32 %v6790, %v6919
  %v6963 = vmul.f32 %v6795, %v6919
  %v6964 = vmul.f32 %v6800, %v6919
  %v6965 = vmul.f32 %v6805, %v6923
  %v6966 = vmul.f32 %v6810, %v6923
  %v6967 = vmul.f32 %v6815, %v6923
  %v6968 = vmul.f32 %v6820, %v6923
  %v6969 = vsel %vm102, %v6933, 0.0
  %v6970 = vsel %vm102, %v6937, 0.0
  %v6971 = vadd.f32 %v6969, %v6970
  %v6972 = vsel %vm102, %v6941, 0.0
  %v6973 = vadd.f32 %v6971, %v6972
  %v6974 = vsel %vm102, %v6945, 0.0
  %v6975 = vadd.f32 %v6973, %v6974
  %v6976 = vsel %vm102, %v6949, 0.0
  %v6977 = vadd.f32 %v6975, %v6976
  %v6978 = vsel %vm102, %v6953, 0.0
  %v6979 = vadd.f32 %v6977, %v6978
  %v6980 = vsel %vm102, %v6957, 0.0
  %v6981 = vadd.f32 %v6979, %v6980
  %v6982 = vsel %vm102, %v6961, 0.0
  %v6983 = vadd.f32 %v6981, %v6982
  %v6984 = vsel %vm102, %v6965, 0.0
  %v6985 = vadd.f32 %v6983, %v6984
  %v6986 = vsel %vm102, %v6934, 0.0
  %v6987 = vsel %vm102, %v6938, 0.0
  %v6988 = vadd.f32 %v6986, %v6987
  %v6989 = vsel %vm102, %v6942, 0.0
  %v6990 = vadd.f32 %v6988, %v6989
  %v6991 = vsel %vm102, %v6946, 0.0
  %v6992 = vadd.f32 %v6990, %v6991
  %v6993 = vsel %vm102, %v6950, 0.0
  %v6994 = vadd.f32 %v6992, %v6993
  %v6995 = vsel %vm102, %v6954, 0.0
  %v6996 = vadd.f32 %v6994, %v6995
  %v6997 = vsel %vm102, %v6958, 0.0
  %v6998 = vadd.f32 %v6996, %v6997
  %v6999 = vsel %vm102, %v6962, 0.0
  %v7000 = vadd.f32 %v6998, %v6999
  %v7001 = vsel %vm102, %v6966, 0.0
  %v7002 = vadd.f32 %v7000, %v7001
  %v7003 = vsel %vm102, %v6935, 0.0
  %v7004 = vsel %vm102, %v6939, 0.0
  %v7005 = vadd.f32 %v7003, %v7004
  %v7006 = vsel %vm102, %v6943, 0.0
  %v7007 = vadd.f32 %v7005, %v7006
  %v7008 = vsel %vm102, %v6947, 0.0
  %v7009 = vadd.f32 %v7007, %v7008
  %v7010 = vsel %vm102, %v6951, 0.0
  %v7011 = vadd.f32 %v7009, %v7010
  %v7012 = vsel %vm102, %v6955, 0.0
  %v7013 = vadd.f32 %v7011, %v7012
  %v7014 = vsel %vm102, %v6959, 0.0
  %v7015 = vadd.f32 %v7013, %v7014
  %v7016 = vsel %vm102, %v6963, 0.0
  %v7017 = vadd.f32 %v7015, %v7016
  %v7018 = vsel %vm102, %v6967, 0.0
  %v7019 = vadd.f32 %v7017, %v7018
  %v7020 = vsel %vm102, %v6936, 0.0
  %v7021 = vsel %vm102, %v6940, 0.0
  %v7022 = vadd.f32 %v7020, %v7021
  %v7023 = vsel %vm102, %v6944, 0.0
  %v7024 = vadd.f32 %v7022, %v7023
  %v7025 = vsel %vm102, %v6948, 0.0
  %v7026 = vadd.f32 %v7024, %v7025
  %v7027 = vsel %vm102, %v6952, 0.0
  %v7028 = vadd.f32 %v7026, %v7027
  %v7029 = vsel %vm102, %v6956, 0.0
  %v7030 = vadd.f32 %v7028, %v7029
  %v7031 = vsel %vm102, %v6960, 0.0
  %v7032 = vadd.f32 %v7030, %v7031
  %v7033 = vsel %vm102, %v6964, 0.0
  %v7034 = vadd.f32 %v7032, %v7033
  %v7035 = vsel %vm102, %v6968, 0.0
  %v7036 = vadd.f32 %v7034, %v7035
  %v7037 = vlaneseq
  %v7038 = vshrl.u32 %v7037, 7
  %v7039 = vsub.s32 5, %v7038
  %v7040 = vrot.slane %v5026, %v7039
  %v7041 = vadd.f32 %v6985, %v7040
  %v7042 = vadd.f32 %v7002, %v7040
  %v7043 = vadd.f32 %v7019, %v7040
  %v7044 = vadd.f32 %v7036, %v7040
  %v7045 = vlaneseq
  %v7046 = vshrl.u32 %v7045, 7
  %v7047 = vsub.s32 6, %v7046
  %v7048 = vrot.slane %v5026, %v7047
  %v7049 = vmul.f32 %v7048, %v7041
  %v7050 = vmul.f32 %v7048, %v7042
  %v7051 = vmul.f32 %v7048, %v7043
  %v7052 = vmul.f32 %v7048, %v7044
  %v7053 = vadd.f32 %v5985, %v7049
  %v7054 = vadd.f32 %v5986, %v7050
  %v7055 = vadd.f32 %v5987, %v7051
  %v7056 = vadd.f32 %v5988, %v7052
  %v7057 = vsel %vm102, %v7053, 0.0
  %7058 = vadd.xlane.f32.xlu0 %v7057
  %v7059 = vpop.xlane.xlu0 %7058
  %v7060 = vsel %vm102, %v7054, 0.0
  %7061 = vadd.xlane.f32.xlu0 %v7060
  %v7062 = vpop.xlane.xlu0 %7061
  %v7063 = vsel %vm102, %v7055, 0.0
  %7064 = vadd.xlane.f32.xlu0 %v7063
  %v7065 = vpop.xlane.xlu0 %7064
  %v7066 = vsel %vm102, %v7056, 0.0
  %7067 = vadd.xlane.f32.xlu0 %v7066
  %v7068 = vpop.xlane.xlu0 %7067
  %v7069 = vmul.f32 %v7059, %v115
  %v7070 = vmul.f32 %v7062, %v115
  %v7071 = vmul.f32 %v7065, %v115
  %v7072 = vmul.f32 %v7068, %v115
  %v7073 = vsub.f32 %v7053, %v7069
  %v7074 = vsub.f32 %v7054, %v7070
  %v7075 = vsub.f32 %v7055, %v7071
  %v7076 = vsub.f32 %v7056, %v7072
  %v7077 = vmul.f32 %v7073, %v7073
  %v7078 = vmul.f32 %v7074, %v7074
  %v7079 = vmul.f32 %v7075, %v7075
  %v7080 = vmul.f32 %v7076, %v7076
  %v7081 = vsel %vm102, %v7077, 0.0
  %7082 = vadd.xlane.f32.xlu0 %v7081
  %v7083 = vpop.xlane.xlu0 %7082
  %v7084 = vsel %vm102, %v7078, 0.0
  %7085 = vadd.xlane.f32.xlu0 %v7084
  %v7086 = vpop.xlane.xlu0 %7085
  %v7087 = vsel %vm102, %v7079, 0.0
  %7088 = vadd.xlane.f32.xlu0 %v7087
  %v7089 = vpop.xlane.xlu0 %7088
  %v7090 = vsel %vm102, %v7080, 0.0
  %7091 = vadd.xlane.f32.xlu0 %v7090
  %v7092 = vpop.xlane.xlu0 %7091
  %v7093 = vmul.f32 %v7083, %v115
  %v7094 = vmul.f32 %v7086, %v115
  %v7095 = vmul.f32 %v7089, %v115
  %v7096 = vmul.f32 %v7092, %v115
  %v7097 = vadd.f32 %v7093, 1e-06
  %v7098 = vadd.f32 %v7094, 1e-06
  %v7099 = vadd.f32 %v7095, 1e-06
  %v7100 = vadd.f32 %v7096, 1e-06
  %v7101 = vrsqrt.pop %v7097
  %v7102 = vrsqrt.pop %v7098
  %v7103 = vrsqrt.pop %v7099
  %v7104 = vrsqrt.pop %v7100
  %v7105 = vmul.f32 %v7073, %v7101
  %v7106 = vmul.f32 %v7074, %v7102
  %v7107 = vmul.f32 %v7075, %v7103
  %v7108 = vmul.f32 %v7076, %v7104
  %v7109 = vlaneseq
  %v7110 = vshrl.u32 %v7109, 7
  %v7111 = vsub.s32 7, %v7110
  %v7112 = vrot.slane %v5026, %v7111
  %v7113 = vmul.f32 %v7105, %v7112
  %v7114 = vmul.f32 %v7106, %v7112
  %v7115 = vmul.f32 %v7107, %v7112
  %v7116 = vmul.f32 %v7108, %v7112
  %v7117 = vlaneseq
  %v7118 = vshrl.u32 %v7117, 7
  %v7119 = vsub.s32 0, %v7118
  %v7120 = vrot.slane %v5027, %v7119
  %v7121 = vadd.f32 %v7113, %v7120
  %v7122 = vadd.f32 %v7114, %v7120
  %v7123 = vadd.f32 %v7115, %v7120
  %v7124 = vadd.f32 %v7116, %v7120
  %v7125 = vld [vmem:[%s7 + $0x2] sm:$0x1]
  %v7126 = vlaneseq
  %v7127 = vshrl.u32 %v7126, 7
  %v7128 = vsub.s32 0, %v7127
  %v7129 = vrot.slane %v7125, %v7128
  %v7131 = vsel %vm102, %v7121, 0
  %v7134 = vsel %vm102, %v7122, 0
  %v7137 = vsel %vm102, %v7123, 0
  %v7140 = vsel %vm102, %v7124, 0
  %7142 = vmatprep.subr.mxu0 0.0
  %7143 = vmatpush1.msra.mxu0 %v5032
  %7144 = vmatprep.subr.mxu0 0.0
  %7145 = vmatpush1.msra.mxu0 %v5034
  %7146 = vmatprep.subr.mxu0 0.0
  %7147 = vmatpush1.msra.mxu0 %v5036
  %7148 = vmatprep.subr.mxu0 0.0
  %7149 = vmatpush1.msra.mxu0 %v5038
  %7150 = vmatprep.subr.mxu0 0.0
  %7151 = vmatpush1.msra.mxu0 0.0
  %7152 = vmatprep.subr.mxu0 0.0
  %7153 = vmatpush1.msra.mxu0 0.0
  %7154 = vmatprep.subr.mxu0 0.0
  %7155 = vmatpush1.msra.mxu0 0.0
  %7156 = vmatprep.subr.mxu0 0.0
  %7157 = vmatpush1.msra.mxu0 0.0
  %7158 = vmatprep.subr.mxu0 0.0
  %7159 = vmatpush1.msra.mxu0 0.0
  %7160 = vmatprep.subr.mxu0 0.0
  %7161 = vmatpush1.msra.mxu0 0.0
  %7162 = vmatprep.subr.mxu0 0.0
  %7163 = vmatpush1.msra.mxu0 0.0
  %7164 = vmatprep.subr.mxu0 0.0
  %7165 = vmatpush1.msra.mxu0 0.0
  %7166 = vmatprep.subr.mxu0 0.0
  %7167 = vmatpush1.msra.mxu0 0.0
  %7168 = vmatprep.subr.mxu0 0.0
  %7169 = vmatpush1.msra.mxu0 0.0
  %7170 = vmatprep.subr.mxu0 0.0
  %7171 = vmatpush1.msra.mxu0 0.0
  %7172 = vmatprep.subr.mxu0 0.0
  %7173 = vmatpush1.msra.mxu0 0.0
  %7174 = vmatprep.subr.mxu0 0.0
  %7175 = vmatpush1.msra.mxu0 0.0
  %7176 = vmatprep.subr.mxu0 0.0
  %7177 = vmatpush1.msra.mxu0 0.0
  %7178 = vmatprep.subr.mxu0 0.0
  %7179 = vmatpush1.msra.mxu0 0.0
  %7180 = vmatprep.subr.mxu0 0.0
  %7181 = vmatpush1.msra.mxu0 0.0
  %7182 = vmatprep.subr.mxu0 0.0
  %7183 = vmatpush1.msra.mxu0 0.0
  %7184 = vmatprep.subr.mxu0 0.0
  %7185 = vmatpush1.msra.mxu0 0.0
  %7186 = vmatprep.subr.mxu0 0.0
  %7187 = vmatpush1.msra.mxu0 0.0
  %7188 = vmatprep.subr.mxu0 0.0
  %7189 = vmatpush1.msra.mxu0 0.0
  %7190 = vmatprep.subr.mxu0 0.0
  %7191 = vmatpush1.msra.mxu0 0.0
  %7192 = vmatprep.subr.mxu0 0.0
  %7193 = vmatpush1.msra.mxu0 0.0
  %7194 = vmatprep.subr.mxu0 0.0
  %7195 = vmatpush1.msra.mxu0 0.0
  %7196 = vmatprep.subr.mxu0 0.0
  %7197 = vmatpush1.msra.mxu0 0.0
  %7198 = vmatprep.subr.mxu0 0.0
  %7199 = vmatpush1.msra.mxu0 0.0
  %7200 = vmatprep.subr.mxu0 0.0
  %7201 = vmatpush1.msra.mxu0 0.0
  %7202 = vmatprep.subr.mxu0 0.0
  %7203 = vmatpush1.msra.mxu0 0.0
  %7204 = vmatprep.subr.mxu0 0.0
  %7205 = vmatpush1.msra.mxu0 0.0
  %7206 = vmatprep.mubr.f32.mxu0 0.0
  %7207 = vmatmul.mubr.f32.gmra.mrb[0].mxu0 %v7131
  %v7208 = vpop.f32.mrb[0].mxu0
  %v7209 = vadd.f32 %v7129, %v7208
  %v7210 = vpop.f32.mrb[0].mxu0
  %7211 = vmatprep.mubr.f32.mxu0 0.0
  %7212 = vmatmul.mubr.f32.gmra.mrb[0].mxu0 %v7134
  %v7213 = vpop.f32.mrb[0].mxu0
  %v7214 = vadd.f32 %v7129, %v7213
  %v7215 = vpop.f32.mrb[0].mxu0
  %7216 = vmatprep.mubr.f32.mxu0 0.0
  %7217 = vmatmul.mubr.f32.gmra.mrb[0].mxu0 %v7137
  %v7218 = vpop.f32.mrb[0].mxu0
  %v7219 = vadd.f32 %v7129, %v7218
  %v7220 = vpop.f32.mrb[0].mxu0
  %7221 = vmatprep.mubr.f32.mxu0 0.0
  %7222 = vmatmul.mubr.f32.gmra.mrb[0].mxu0 %v7140
  %v7223 = vpop.f32.mrb[0].mxu0
  %v7224 = vadd.f32 %v7129, %v7223
  %v7225 = vpop.f32.mrb[0].mxu0
  %7226 = vdwg.mxu0
  %v7227 = vmul.f32 %v7209, 0.5
  %v7228 = vmul.f32 %v7214, 0.5
  %v7229 = vmul.f32 %v7219, 0.5
  %v7230 = vmul.f32 %v7224, 0.5
  %v7231 = vmul.f32 %v7209, 0.044715
  %v7232 = vmul.f32 %v7214, 0.044715
  %v7233 = vmul.f32 %v7219, 0.044715
  %v7234 = vmul.f32 %v7224, 0.044715
  %v7235 = vmul.f32 %v7231, %v7209
  %v7236 = vmul.f32 %v7232, %v7214
  %v7237 = vmul.f32 %v7233, %v7219
  %v7238 = vmul.f32 %v7234, %v7224
  %v7239 = vmul.f32 %v7235, %v7209
  %v7240 = vmul.f32 %v7236, %v7214
  %v7241 = vmul.f32 %v7237, %v7219
  %v7242 = vmul.f32 %v7238, %v7224
  %v7243 = vadd.f32 %v7209, %v7239
  %v7244 = vadd.f32 %v7214, %v7240
  %v7245 = vadd.f32 %v7219, %v7241
  %v7246 = vadd.f32 %v7224, %v7242
  %v7247 = vmul.f32 %v7243, 0.7978846
  %v7248 = vmul.f32 %v7244, 0.7978846
  %v7249 = vmul.f32 %v7245, 0.7978846
  %v7250 = vmul.f32 %v7246, 0.7978846
  %v7251 = vtanh.pop %v7247
  %v7252 = vtanh.pop %v7248
  %v7253 = vtanh.pop %v7249
  %v7254 = vtanh.pop %v7250
  %v7255 = vadd.f32 %v7251, 1.0
  %v7256 = vadd.f32 %v7252, 1.0
  %v7257 = vadd.f32 %v7253, 1.0
  %v7258 = vadd.f32 %v7254, 1.0
  %v7259 = vmul.f32 %v7227, %v7255
  %v7260 = vmul.f32 %v7228, %v7256
  %v7261 = vmul.f32 %v7229, %v7257
  %v7262 = vmul.f32 %v7230, %v7258
  %s7263 = scalar_lea.vmem %s6, 256
  %v7264 = vld [vmem:[%s7263] sm:$0xff]
  %v7265 = vld [vmem:[%s7263 + $0x8] sm:$0xff]
  %v7266 = vld [vmem:[%s7263 + $0x10] sm:$0xff]
  %v7267 = vld [vmem:[%s7263 + $0x18] sm:$0xff]
  %v7268 = vld [vmem:[%s7263 + $0x20] sm:$0xff]
  %v7269 = vld [vmem:[%s7263 + $0x28] sm:$0xff]
  %v7270 = vld [vmem:[%s7263 + $0x30] sm:$0xff]
  %v7271 = vld [vmem:[%s7263 + $0x38] sm:$0xff]
  %v7272 = vld [vmem:[%s7263 + $0x40] sm:$0xff]
  %v7273 = vld [vmem:[%s7263 + $0x48] sm:$0xff]
  %v7274 = vld [vmem:[%s7263 + $0x50] sm:$0xff]
  %v7275 = vld [vmem:[%s7263 + $0x58] sm:$0xff]
  %v7276 = vld [vmem:[%s7263 + $0x60] sm:$0xff]
  %v7277 = vld [vmem:[%s7263 + $0x68] sm:$0xff]
  %v7278 = vld [vmem:[%s7263 + $0x70] sm:$0xff]
  %v7279 = vld [vmem:[%s7263 + $0x78] sm:$0xff]
  %v7280 = vlaneseq
  %v7281 = vshrl.u32 %v7280, 7
  %v7282 = vsub.s32 1, %v7281
  %v7283 = vrot.slane %v5027, %v7282
  %7284 = vmatprep.subr.mxu0 0.0
  %7285 = vmatpush1.msra.mxu0 %v7264
  %7286 = vmatprep.subr.mxu0 0.0
  %7287 = vmatpush1.msra.mxu0 %v7265
  %7288 = vmatprep.subr.mxu0 0.0
  %7289 = vmatpush1.msra.mxu0 %v7266
  %7290 = vmatprep.subr.mxu0 0.0
  %7291 = vmatpush1.msra.mxu0 %v7267
  %7292 = vmatprep.subr.mxu0 0.0
  %7293 = vmatpush1.msra.mxu0 %v7268
  %7294 = vmatprep.subr.mxu0 0.0
  %7295 = vmatpush1.msra.mxu0 %v7269
  %7296 = vmatprep.subr.mxu0 0.0
  %7297 = vmatpush1.msra.mxu0 %v7270
  %7298 = vmatprep.subr.mxu0 0.0
  %7299 = vmatpush1.msra.mxu0 %v7271
  %7300 = vmatprep.subr.mxu0 0.0
  %7301 = vmatpush1.msra.mxu0 %v7272
  %7302 = vmatprep.subr.mxu0 0.0
  %7303 = vmatpush1.msra.mxu0 %v7273
  %7304 = vmatprep.subr.mxu0 0.0
  %7305 = vmatpush1.msra.mxu0 %v7274
  %7306 = vmatprep.subr.mxu0 0.0
  %7307 = vmatpush1.msra.mxu0 %v7275
  %7308 = vmatprep.subr.mxu0 0.0
  %7309 = vmatpush1.msra.mxu0 %v7276
  %7310 = vmatprep.subr.mxu0 0.0
  %7311 = vmatpush1.msra.mxu0 %v7277
  %7312 = vmatprep.subr.mxu0 0.0
  %7313 = vmatpush1.msra.mxu0 %v7278
  %7314 = vmatprep.subr.mxu0 0.0
  %7315 = vmatpush1.msra.mxu0 %v7279
  %7316 = vmatprep.subr.mxu0 0.0
  %7317 = vmatpush1.msra.mxu0 0.0
  %7318 = vmatprep.subr.mxu0 0.0
  %7319 = vmatpush1.msra.mxu0 0.0
  %7320 = vmatprep.subr.mxu0 0.0
  %7321 = vmatpush1.msra.mxu0 0.0
  %7322 = vmatprep.subr.mxu0 0.0
  %7323 = vmatpush1.msra.mxu0 0.0
  %7324 = vmatprep.subr.mxu0 0.0
  %7325 = vmatpush1.msra.mxu0 0.0
  %7326 = vmatprep.subr.mxu0 0.0
  %7327 = vmatpush1.msra.mxu0 0.0
  %7328 = vmatprep.subr.mxu0 0.0
  %7329 = vmatpush1.msra.mxu0 0.0
  %7330 = vmatprep.subr.mxu0 0.0
  %7331 = vmatpush1.msra.mxu0 0.0
  %7332 = vmatprep.subr.mxu0 0.0
  %7333 = vmatpush1.msra.mxu0 0.0
  %7334 = vmatprep.subr.mxu0 0.0
  %7335 = vmatpush1.msra.mxu0 0.0
  %7336 = vmatprep.subr.mxu0 0.0
  %7337 = vmatpush1.msra.mxu0 0.0
  %7338 = vmatprep.subr.mxu0 0.0
  %7339 = vmatpush1.msra.mxu0 0.0
  %7340 = vmatprep.subr.mxu0 0.0
  %7341 = vmatpush1.msra.mxu0 0.0
  %7342 = vmatprep.subr.mxu0 0.0
  %7343 = vmatpush1.msra.mxu0 0.0
  %7344 = vmatprep.subr.mxu0 0.0
  %7345 = vmatpush1.msra.mxu0 0.0
  %7346 = vmatprep.subr.mxu0 0.0
  %7347 = vmatpush1.msra.mxu0 0.0
  %7348 = vmatprep.mubr.f32.mxu0 0.0
  %7349 = vmatmul.mubr.f32.gmra.mrb[0].mxu0 %v7259
  %v7350 = vpop.f32.mrb[0].mxu0
  %v7351 = vadd.f32 %v7283, %v7350
  %v7352 = vpop.f32.mrb[0].mxu0
  %7353 = vmatprep.mubr.f32.mxu0 0.0
  %7354 = vmatmul.mubr.f32.gmra.mrb[0].mxu0 %v7260
  %v7355 = vpop.f32.mrb[0].mxu0
  %v7356 = vadd.f32 %v7283, %v7355
  %v7357 = vpop.f32.mrb[0].mxu0
  %7358 = vmatprep.mubr.f32.mxu0 0.0
  %7359 = vmatmul.mubr.f32.gmra.mrb[0].mxu0 %v7261
  %v7360 = vpop.f32.mrb[0].mxu0
  %v7361 = vadd.f32 %v7283, %v7360
  %v7362 = vpop.f32.mrb[0].mxu0
  %7363 = vmatprep.mubr.f32.mxu0 0.0
  %7364 = vmatmul.mubr.f32.gmra.mrb[0].mxu0 %v7262
  %v7365 = vpop.f32.mrb[0].mxu0
  %v7366 = vadd.f32 %v7283, %v7365
  %v7367 = vpop.f32.mrb[0].mxu0
  %7368 = vdwg.mxu0
  %v7369 = vlaneseq
  %v7370 = vshrl.u32 %v7369, 7
  %v7371 = vsub.s32 2, %v7370
  %v7372 = vrot.slane %v5027, %v7371
  %v7373 = vmul.f32 %v7372, %v7351
  %v7374 = vmul.f32 %v7372, %v7356
  %v7375 = vmul.f32 %v7372, %v7361
  %v7376 = vmul.f32 %v7372, %v7366
  %v7377 = vadd.f32 %v7053, %v7373
  %v7378 = vadd.f32 %v7054, %v7374
  %v7379 = vadd.f32 %v7055, %v7375
  %v7380 = vadd.f32 %v7056, %v7376
  %s7381 = scalar_lea.vmem %s4, 120
  %v7382 = vld [vmem:[%s7381] sm:$0xff]
  %v7383 = vld [vmem:[%s7381 + $0x8] sm:$0xff]
  %v7384 = vld [vmem:[%s7381 + $0x10] sm:$0xff]
  %v7385 = vld [vmem:[%s7381 + $0x18] sm:$0xff]
  %v7386 = vld [vmem:[%s7381 + $0x20] sm:$0x1f]
  %s7387 = scalar_lea.vmem %s5, 192
  %v7388 = vld [vmem:[%s7387] sm:$0xff]
  %v7389 = vld [vmem:[%s7387 + $0x8] sm:$0xff]
  %v7390 = vld [vmem:[%s7387 + $0x10] sm:$0xff]
  %v7391 = vld [vmem:[%s7387 + $0x18] sm:$0xff]
  %v7392 = vld [vmem:[%s7387 + $0x20] sm:$0xff]
  %v7393 = vld [vmem:[%s7387 + $0x28] sm:$0xff]
  %v7394 = vld [vmem:[%s7387 + $0x30] sm:$0xff]
  %v7395 = vld [vmem:[%s7387 + $0x38] sm:$0xff]
  %v7396 = vsel %vm102, %v7377, 0.0
  %7397 = vadd.xlane.f32.xlu0 %v7396
  %v7398 = vpop.xlane.xlu0 %7397
  %v7399 = vsel %vm102, %v7378, 0.0
  %7400 = vadd.xlane.f32.xlu0 %v7399
  %v7401 = vpop.xlane.xlu0 %7400
  %v7402 = vsel %vm102, %v7379, 0.0
  %7403 = vadd.xlane.f32.xlu0 %v7402
  %v7404 = vpop.xlane.xlu0 %7403
  %v7405 = vsel %vm102, %v7380, 0.0
  %7406 = vadd.xlane.f32.xlu0 %v7405
  %v7407 = vpop.xlane.xlu0 %7406
  %v7408 = vmul.f32 %v7398, %v115
  %v7409 = vmul.f32 %v7401, %v115
  %v7410 = vmul.f32 %v7404, %v115
  %v7411 = vmul.f32 %v7407, %v115
  %v7412 = vsub.f32 %v7377, %v7408
  %v7413 = vsub.f32 %v7378, %v7409
  %v7414 = vsub.f32 %v7379, %v7410
  %v7415 = vsub.f32 %v7380, %v7411
  %v7416 = vmul.f32 %v7412, %v7412
  %v7417 = vmul.f32 %v7413, %v7413
  %v7418 = vmul.f32 %v7414, %v7414
  %v7419 = vmul.f32 %v7415, %v7415
  %v7420 = vsel %vm102, %v7416, 0.0
  %7421 = vadd.xlane.f32.xlu0 %v7420
  %v7422 = vpop.xlane.xlu0 %7421
  %v7423 = vsel %vm102, %v7417, 0.0
  %7424 = vadd.xlane.f32.xlu0 %v7423
  %v7425 = vpop.xlane.xlu0 %7424
  %v7426 = vsel %vm102, %v7418, 0.0
  %7427 = vadd.xlane.f32.xlu0 %v7426
  %v7428 = vpop.xlane.xlu0 %7427
  %v7429 = vsel %vm102, %v7419, 0.0
  %7430 = vadd.xlane.f32.xlu0 %v7429
  %v7431 = vpop.xlane.xlu0 %7430
  %v7432 = vmul.f32 %v7422, %v115
  %v7433 = vmul.f32 %v7425, %v115
  %v7434 = vmul.f32 %v7428, %v115
  %v7435 = vmul.f32 %v7431, %v115
  %v7436 = vadd.f32 %v7432, 1e-06
  %v7437 = vadd.f32 %v7433, 1e-06
  %v7438 = vadd.f32 %v7434, 1e-06
  %v7439 = vadd.f32 %v7435, 1e-06
  %v7440 = vrsqrt.pop %v7436
  %v7441 = vrsqrt.pop %v7437
  %v7442 = vrsqrt.pop %v7438
  %v7443 = vrsqrt.pop %v7439
  %v7444 = vmul.f32 %v7412, %v7440
  %v7445 = vmul.f32 %v7413, %v7441
  %v7446 = vmul.f32 %v7414, %v7442
  %v7447 = vmul.f32 %v7415, %v7443
  %v7448 = vlaneseq
  %v7449 = vshrl.u32 %v7448, 7
  %v7450 = vsub.s32 0, %v7449
  %v7451 = vrot.slane %v7382, %v7450
  %v7452 = vmul.f32 %v7444, %v7451
  %v7453 = vmul.f32 %v7445, %v7451
  %v7454 = vmul.f32 %v7446, %v7451
  %v7455 = vmul.f32 %v7447, %v7451
  %v7456 = vlaneseq
  %v7457 = vshrl.u32 %v7456, 7
  %v7458 = vsub.s32 1, %v7457
  %v7459 = vrot.slane %v7382, %v7458
  %v7460 = vadd.f32 %v7452, %v7459
  %v7461 = vadd.f32 %v7453, %v7459
  %v7462 = vadd.f32 %v7454, %v7459
  %v7463 = vadd.f32 %v7455, %v7459
  %v7465 = vsel %vm102, %v7460, 0
  %v7468 = vsel %vm102, %v7461, 0
  %v7471 = vsel %vm102, %v7462, 0
  %v7474 = vsel %vm102, %v7463, 0
  %7476 = vmatprep.subr.mxu0 0.0
  %7477 = vmatpush1.msra.mxu0 %v7388
  %7478 = vmatprep.subr.mxu0 0.0
  %7479 = vmatpush1.msra.mxu0 %v7390
  %7480 = vmatprep.subr.mxu0 0.0
  %7481 = vmatpush1.msra.mxu0 %v7392
  %7482 = vmatprep.subr.mxu0 0.0
  %7483 = vmatpush1.msra.mxu0 %v7394
  %7484 = vmatprep.subr.mxu0 0.0
  %7485 = vmatpush1.msra.mxu0 0.0
  %7486 = vmatprep.subr.mxu0 0.0
  %7487 = vmatpush1.msra.mxu0 0.0
  %7488 = vmatprep.subr.mxu0 0.0
  %7489 = vmatpush1.msra.mxu0 0.0
  %7490 = vmatprep.subr.mxu0 0.0
  %7491 = vmatpush1.msra.mxu0 0.0
  %7492 = vmatprep.subr.mxu0 0.0
  %7493 = vmatpush1.msra.mxu0 0.0
  %7494 = vmatprep.subr.mxu0 0.0
  %7495 = vmatpush1.msra.mxu0 0.0
  %7496 = vmatprep.subr.mxu0 0.0
  %7497 = vmatpush1.msra.mxu0 0.0
  %7498 = vmatprep.subr.mxu0 0.0
  %7499 = vmatpush1.msra.mxu0 0.0
  %7500 = vmatprep.subr.mxu0 0.0
  %7501 = vmatpush1.msra.mxu0 0.0
  %7502 = vmatprep.subr.mxu0 0.0
  %7503 = vmatpush1.msra.mxu0 0.0
  %7504 = vmatprep.subr.mxu0 0.0
  %7505 = vmatpush1.msra.mxu0 0.0
  %7506 = vmatprep.subr.mxu0 0.0
  %7507 = vmatpush1.msra.mxu0 0.0
  %7508 = vmatprep.subr.mxu0 0.0
  %7509 = vmatpush1.msra.mxu0 0.0
  %7510 = vmatprep.subr.mxu0 0.0
  %7511 = vmatpush1.msra.mxu0 0.0
  %7512 = vmatprep.subr.mxu0 0.0
  %7513 = vmatpush1.msra.mxu0 0.0
  %7514 = vmatprep.subr.mxu0 0.0
  %7515 = vmatpush1.msra.mxu0 0.0
  %7516 = vmatprep.subr.mxu0 0.0
  %7517 = vmatpush1.msra.mxu0 0.0
  %7518 = vmatprep.subr.mxu0 0.0
  %7519 = vmatpush1.msra.mxu0 0.0
  %7520 = vmatprep.subr.mxu0 0.0
  %7521 = vmatpush1.msra.mxu0 0.0
  %7522 = vmatprep.subr.mxu0 0.0
  %7523 = vmatpush1.msra.mxu0 0.0
  %7524 = vmatprep.subr.mxu0 0.0
  %7525 = vmatpush1.msra.mxu0 0.0
  %7526 = vmatprep.subr.mxu0 0.0
  %7527 = vmatpush1.msra.mxu0 0.0
  %7528 = vmatprep.subr.mxu0 0.0
  %7529 = vmatpush1.msra.mxu0 0.0
  %7530 = vmatprep.subr.mxu0 0.0
  %7531 = vmatpush1.msra.mxu0 0.0
  %7532 = vmatprep.subr.mxu0 0.0
  %7533 = vmatpush1.msra.mxu0 0.0
  %7534 = vmatprep.subr.mxu0 0.0
  %7535 = vmatpush1.msra.mxu0 0.0
  %7536 = vmatprep.subr.mxu0 0.0
  %7537 = vmatpush1.msra.mxu0 0.0
  %7538 = vmatprep.subr.mxu0 0.0
  %7539 = vmatpush1.msra.mxu0 0.0
  %7540 = vmatprep.mubr.f32.mxu0 0.0
  %7541 = vmatmul.mubr.f32.gmra.mrb[0].mxu0 %v7465
  %v7542 = vpop.f32.mrb[0].mxu0
  %v7543 = vadd.f32 0.0, %v7542
  %v7544 = vpop.f32.mrb[0].mxu0
  %7545 = vmatprep.mubr.f32.mxu0 0.0
  %7546 = vmatmul.mubr.f32.gmra.mrb[0].mxu0 %v7468
  %v7547 = vpop.f32.mrb[0].mxu0
  %v7548 = vadd.f32 0.0, %v7547
  %v7549 = vpop.f32.mrb[0].mxu0
  %7550 = vmatprep.mubr.f32.mxu0 0.0
  %7551 = vmatmul.mubr.f32.gmra.mrb[0].mxu0 %v7471
  %v7552 = vpop.f32.mrb[0].mxu0
  %v7553 = vadd.f32 0.0, %v7552
  %v7554 = vpop.f32.mrb[0].mxu0
  %7555 = vmatprep.mubr.f32.mxu0 0.0
  %7556 = vmatmul.mubr.f32.gmra.mrb[0].mxu0 %v7474
  %v7557 = vpop.f32.mrb[0].mxu0
  %v7558 = vadd.f32 0.0, %v7557
  %v7559 = vpop.f32.mrb[0].mxu0
  %7560 = vdwg.mxu0
  %v7561 = vlaneseq
  %v7562 = vshrl.u32 %v7561, 7
  %v7563 = vsub.s32 2, %v7562
  %v7564 = vrot.slane %v7382, %v7563
  %v7565 = vadd.f32 %v7543, %v7564
  %v7566 = vadd.f32 %v7548, %v7564
  %v7567 = vadd.f32 %v7553, %v7564
  %v7568 = vadd.f32 %v7558, %v7564
  %v7569 = vlaneseq
  %v7570 = vshrl.u32 %v7569, 7
  %v7571 = vsub.s32 3, %v7570
  %v7572 = vrot.slane %v7382, %v7571
  %7574 = vrot.lane.b32.xlu0 %v7572, 32
  %v7575 = vpop.permute.xlu0 %7574
  %v7577 = vadd.f32 %v7543, %v7575
  %v7578 = vadd.f32 %v7548, %v7575
  %v7579 = vadd.f32 %v7553, %v7575
  %v7580 = vadd.f32 %v7558, %v7575
  %v7581 = vlaneseq
  %v7582 = vshrl.u32 %v7581, 7
  %v7583 = vsub.s32 4, %v7582
  %v7584 = vrot.slane %v7382, %v7583
  %7586 = vrot.lane.b32.xlu0 %v7584, 64
  %v7587 = vpop.permute.xlu0 %7586
  %v7589 = vadd.f32 %v7543, %v7587
  %v7590 = vadd.f32 %v7548, %v7587
  %v7591 = vadd.f32 %v7553, %v7587
  %v7592 = vadd.f32 %v7558, %v7587
  %v7593 = vmul.f32 %v7565, %v7565
  %v7594 = vmul.f32 %v7566, %v7566
  %v7595 = vsel %vm102, %v7593, 0.0
  %v7596 = vsel %vm102, %v7594, 0.0
  %v7597 = vadd.f32 %v7595, %v7596
  %v7598 = vrot.slane %v7597, 4
  %v7599 = vadd.f32 %v7597, %v7598
  %v7600 = vrot.slane %v7599, 2
  %v7601 = vadd.f32 %v7599, %v7600
  %v7602 = vrot.slane %v7601, 1
  %v7603 = vadd.f32 %v7601, %v7602
  %v7604 = vmax.f32 %v7603, 1e-24
  %v7605 = vrsqrt.pop %v7604
  %v7606 = vmul.f32 %v7565, %v7605
  %v7607 = vmul.f32 %v7566, %v7605
  %v7608 = vmul.f32 %v7577, %v7577
  %v7609 = vmul.f32 %v7578, %v7578
  %v7610 = vsel %vm318, %v7608, 0.0
  %v7611 = vsel %vm318, %v7609, 0.0
  %v7612 = vadd.f32 %v7610, %v7611
  %v7613 = vrot.slane %v7612, 4
  %v7614 = vadd.f32 %v7612, %v7613
  %v7615 = vrot.slane %v7614, 2
  %v7616 = vadd.f32 %v7614, %v7615
  %v7617 = vrot.slane %v7616, 1
  %v7618 = vadd.f32 %v7616, %v7617
  %v7619 = vmax.f32 %v7618, 1e-24
  %v7620 = vrsqrt.pop %v7619
  %v7621 = vmul.f32 %v7577, %v7620
  %v7622 = vmul.f32 %v7578, %v7620
  %v7623 = vlaneseq
  %v7624 = vshrl.u32 %v7623, 7
  %v7625 = vsub.s32 5, %v7624
  %v7626 = vrot.slane %v7382, %v7625
  %v7627 = vmul.f32 %v7606, %v7626
  %v7628 = vmul.f32 %v7607, %v7626
  %7629 = vxpose.xlu0.b32.start [1/16] %v7627, 128
  %7630 = vxpose.xlu0.b32.cont [2/16] %v7628, 128
  %7631 = vxpose.xlu0.b32.cont [3/16] 0.0, 128
  %7632 = vxpose.xlu0.b32.cont [4/16] 0.0, 128
  %7633 = vxpose.xlu0.b32.cont [5/16] 0.0, 128
  %7634 = vxpose.xlu0.b32.cont [6/16] 0.0, 128
  %7635 = vxpose.xlu0.b32.cont [7/16] 0.0, 128
  %7636 = vxpose.xlu0.b32.cont [8/16] 0.0, 128
  %7637 = vxpose.xlu0.b32.cont [9/16] 0.0, 128
  %7638 = vxpose.xlu0.b32.cont [10/16] 0.0, 128
  %7639 = vxpose.xlu0.b32.cont [11/16] 0.0, 128
  %7640 = vxpose.xlu0.b32.cont [12/16] 0.0, 128
  %7641 = vxpose.xlu0.b32.cont [13/16] 0.0, 128
  %7642 = vxpose.xlu0.b32.cont [14/16] 0.0, 128
  %7643 = vxpose.xlu0.b32.cont [15/16] 0.0, 128
  %7644 = vxpose.xlu0.b32.end [16/16] 0.0, 128
  %v7645 = vpop.trf.xlu0
  %v7646 = vpop.trf.xlu0
  %v7647 = vpop.trf.xlu0
  %v7648 = vpop.trf.xlu0
  %v7649 = vpop.trf.xlu0
  %v7650 = vpop.trf.xlu0
  %v7651 = vpop.trf.xlu0
  %v7652 = vpop.trf.xlu0
  %v7653 = vpop.trf.xlu0
  %v7654 = vpop.trf.xlu0
  %v7655 = vpop.trf.xlu0
  %v7656 = vpop.trf.xlu0
  %v7657 = vpop.trf.xlu0
  %v7658 = vpop.trf.xlu0
  %v7659 = vpop.trf.xlu0
  %v7660 = vpop.trf.xlu0
  %7663 = vrot.lane.b32.xlu0 %v7621, 96
  %v7664 = vpop.permute.xlu0 %7663
  %7665 = vrot.lane.b32.xlu0 %v7622, 96
  %v7666 = vpop.permute.xlu0 %7665
  %v7670 = vsel %vm378, %v7645, 0
  %v7673 = vsel %vm378, %v7646, 0
  %v7676 = vsel %vm378, %v7647, 0
  %v7679 = vsel %vm378, %v7648, 0
  %7681 = vmatprep.subr.mxu0 0.0
  %7682 = vmatpush1.msra.mxu0 %v7664
  %7683 = vmatprep.subr.mxu0 0.0
  %7684 = vmatpush1.msra.mxu0 %v7666
  %7685 = vmatprep.subr.mxu0 0.0
  %7686 = vmatpush1.msra.mxu0 0.0
  %7687 = vmatprep.subr.mxu0 0.0
  %7688 = vmatpush1.msra.mxu0 0.0
  %7689 = vmatprep.subr.mxu0 0.0
  %7690 = vmatpush1.msra.mxu0 0.0
  %7691 = vmatprep.subr.mxu0 0.0
  %7692 = vmatpush1.msra.mxu0 0.0
  %7693 = vmatprep.subr.mxu0 0.0
  %7694 = vmatpush1.msra.mxu0 0.0
  %7695 = vmatprep.subr.mxu0 0.0
  %7696 = vmatpush1.msra.mxu0 0.0
  %7697 = vmatprep.subr.mxu0 0.0
  %7698 = vmatpush1.msra.mxu0 0.0
  %7699 = vmatprep.subr.mxu0 0.0
  %7700 = vmatpush1.msra.mxu0 0.0
  %7701 = vmatprep.subr.mxu0 0.0
  %7702 = vmatpush1.msra.mxu0 0.0
  %7703 = vmatprep.subr.mxu0 0.0
  %7704 = vmatpush1.msra.mxu0 0.0
  %7705 = vmatprep.subr.mxu0 0.0
  %7706 = vmatpush1.msra.mxu0 0.0
  %7707 = vmatprep.subr.mxu0 0.0
  %7708 = vmatpush1.msra.mxu0 0.0
  %7709 = vmatprep.subr.mxu0 0.0
  %7710 = vmatpush1.msra.mxu0 0.0
  %7711 = vmatprep.subr.mxu0 0.0
  %7712 = vmatpush1.msra.mxu0 0.0
  %7713 = vmatprep.subr.mxu0 0.0
  %7714 = vmatpush1.msra.mxu0 0.0
  %7715 = vmatprep.subr.mxu0 0.0
  %7716 = vmatpush1.msra.mxu0 0.0
  %7717 = vmatprep.subr.mxu0 0.0
  %7718 = vmatpush1.msra.mxu0 0.0
  %7719 = vmatprep.subr.mxu0 0.0
  %7720 = vmatpush1.msra.mxu0 0.0
  %7721 = vmatprep.subr.mxu0 0.0
  %7722 = vmatpush1.msra.mxu0 0.0
  %7723 = vmatprep.subr.mxu0 0.0
  %7724 = vmatpush1.msra.mxu0 0.0
  %7725 = vmatprep.subr.mxu0 0.0
  %7726 = vmatpush1.msra.mxu0 0.0
  %7727 = vmatprep.subr.mxu0 0.0
  %7728 = vmatpush1.msra.mxu0 0.0
  %7729 = vmatprep.subr.mxu0 0.0
  %7730 = vmatpush1.msra.mxu0 0.0
  %7731 = vmatprep.subr.mxu0 0.0
  %7732 = vmatpush1.msra.mxu0 0.0
  %7733 = vmatprep.subr.mxu0 0.0
  %7734 = vmatpush1.msra.mxu0 0.0
  %7735 = vmatprep.subr.mxu0 0.0
  %7736 = vmatpush1.msra.mxu0 0.0
  %7737 = vmatprep.subr.mxu0 0.0
  %7738 = vmatpush1.msra.mxu0 0.0
  %7739 = vmatprep.subr.mxu0 0.0
  %7740 = vmatpush1.msra.mxu0 0.0
  %7741 = vmatprep.subr.mxu0 0.0
  %7742 = vmatpush1.msra.mxu0 0.0
  %7743 = vmatprep.subr.mxu0 0.0
  %7744 = vmatpush1.msra.mxu0 0.0
  %7745 = vmatprep.mubr.f32.mxu0 0.0
  %7746 = vmatmul.mubr.f32.gmra.mrb[0].mxu0 %v7670
  %v7747 = vpop.f32.mrb[0].mxu0
  %v7748 = vadd.f32 %v49, %v7747
  %v7749 = vpop.f32.mrb[0].mxu0
  %7750 = vmatprep.mubr.f32.mxu0 0.0
  %7751 = vmatmul.mubr.f32.gmra.mrb[0].mxu0 %v7673
  %v7752 = vpop.f32.mrb[0].mxu0
  %v7753 = vadd.f32 %v50, %v7752
  %v7754 = vpop.f32.mrb[0].mxu0
  %7755 = vmatprep.mubr.f32.mxu0 0.0
  %7756 = vmatmul.mubr.f32.gmra.mrb[0].mxu0 %v7676
  %v7757 = vpop.f32.mrb[0].mxu0
  %v7758 = vadd.f32 %v51, %v7757
  %v7759 = vpop.f32.mrb[0].mxu0
  %7760 = vmatprep.mubr.f32.mxu0 0.0
  %7761 = vmatmul.mubr.f32.gmra.mrb[0].mxu0 %v7679
  %v7762 = vpop.f32.mrb[0].mxu0
  %v7763 = vadd.f32 %v52, %v7762
  %v7764 = vpop.f32.mrb[0].mxu0
  %7765 = vdwg.mxu0
  %v7766 = vsel %vm102, %v7748, -inf
  %7767 = vmax.xlane.f32.xlu0 %v7766
  %v7768 = vpop.xlane.xlu0 %7767
  %v7769 = vsel %vm102, %v7753, -inf
  %7770 = vmax.xlane.f32.xlu0 %v7769
  %v7771 = vpop.xlane.xlu0 %7770
  %v7772 = vsel %vm102, %v7758, -inf
  %7773 = vmax.xlane.f32.xlu0 %v7772
  %v7774 = vpop.xlane.xlu0 %7773
  %v7775 = vsel %vm102, %v7763, -inf
  %7776 = vmax.xlane.f32.xlu0 %v7775
  %v7777 = vpop.xlane.xlu0 %7776
  %v7778 = vsub.f32 %v7748, %v7768
  %v7779 = vsub.f32 %v7753, %v7771
  %v7780 = vsub.f32 %v7758, %v7774
  %v7781 = vsub.f32 %v7763, %v7777
  %v7782 = vmul.f32 %v7778, 1.442695
  %v7783 = vpow.pop %v7782
  %v7784 = vmul.f32 %v7779, 1.442695
  %v7785 = vpow.pop %v7784
  %v7786 = vmul.f32 %v7780, 1.442695
  %v7787 = vpow.pop %v7786
  %v7788 = vmul.f32 %v7781, 1.442695
  %v7789 = vpow.pop %v7788
  %v7790 = vsel %vm102, %v7783, 0.0
  %7791 = vadd.xlane.f32.xlu0 %v7790
  %v7792 = vpop.xlane.xlu0 %7791
  %v7793 = vsel %vm102, %v7785, 0.0
  %7794 = vadd.xlane.f32.xlu0 %v7793
  %v7795 = vpop.xlane.xlu0 %7794
  %v7796 = vsel %vm102, %v7787, 0.0
  %7797 = vadd.xlane.f32.xlu0 %v7796
  %v7798 = vpop.xlane.xlu0 %7797
  %v7799 = vsel %vm102, %v7789, 0.0
  %7800 = vadd.xlane.f32.xlu0 %v7799
  %v7801 = vpop.xlane.xlu0 %7800
  %v7802 = vrcp.pop %v7792
  %v7803 = vmul.f32 %v7783, %v7802
  %v7804 = vrcp.pop %v7795
  %v7805 = vmul.f32 %v7785, %v7804
  %v7806 = vrcp.pop %v7798
  %v7807 = vmul.f32 %v7787, %v7806
  %v7808 = vrcp.pop %v7801
  %v7809 = vmul.f32 %v7789, %v7808
  %7812 = vrot.lane.b32.xlu0 %v7589, 64
  %v7813 = vpop.permute.xlu0 %7812
  %7814 = vrot.lane.b32.xlu0 %v7590, 64
  %v7815 = vpop.permute.xlu0 %7814
  %v7816 = vsel %vm102, %v7813, 0
  %v7818 = vsel %vm102, %v7815, 0
  %v7821 = vsel %vm102, %v7803, 0
  %v7824 = vsel %vm102, %v7805, 0
  %v7827 = vsel %vm102, %v7807, 0
  %v7830 = vsel %vm102, %v7809, 0
  %7832 = vmatprep.subr.mxu0 0.0
  %7833 = vmatpush1.xpose.msra.mxu0 %v7821
  %7834 = vmatprep.subr.mxu0 0.0
  %7835 = vmatpush1.xpose.msra.mxu0 %v7824
  %7836 = vmatprep.subr.mxu0 0.0
  %7837 = vmatpush1.xpose.msra.mxu0 %v7827
  %7838 = vmatprep.subr.mxu0 0.0
  %7839 = vmatpush1.xpose.msra.mxu0 %v7830
  %7840 = vmatprep.subr.mxu0 0.0
  %7841 = vmatpush1.xpose.msra.mxu0 0.0
  %7842 = vmatprep.subr.mxu0 0.0
  %7843 = vmatpush1.xpose.msra.mxu0 0.0
  %7844 = vmatprep.subr.mxu0 0.0
  %7845 = vmatpush1.xpose.msra.mxu0 0.0
  %7846 = vmatprep.subr.mxu0 0.0
  %7847 = vmatpush1.xpose.msra.mxu0 0.0
  %7848 = vmatprep.subr.mxu0 0.0
  %7849 = vmatpush1.xpose.msra.mxu0 0.0
  %7850 = vmatprep.subr.mxu0 0.0
  %7851 = vmatpush1.xpose.msra.mxu0 0.0
  %7852 = vmatprep.subr.mxu0 0.0
  %7853 = vmatpush1.xpose.msra.mxu0 0.0
  %7854 = vmatprep.subr.mxu0 0.0
  %7855 = vmatpush1.xpose.msra.mxu0 0.0
  %7856 = vmatprep.subr.mxu0 0.0
  %7857 = vmatpush1.xpose.msra.mxu0 0.0
  %7858 = vmatprep.subr.mxu0 0.0
  %7859 = vmatpush1.xpose.msra.mxu0 0.0
  %7860 = vmatprep.subr.mxu0 0.0
  %7861 = vmatpush1.xpose.msra.mxu0 0.0
  %7862 = vmatprep.subr.mxu0 0.0
  %7863 = vmatpush1.xpose.msra.mxu0 0.0
  %7864 = vmatprep.subr.mxu0 0.0
  %7865 = vmatpush1.xpose.msra.mxu0 0.0
  %7866 = vmatprep.subr.mxu0 0.0
  %7867 = vmatpush1.xpose.msra.mxu0 0.0
  %7868 = vmatprep.subr.mxu0 0.0
  %7869 = vmatpush1.xpose.msra.mxu0 0.0
  %7870 = vmatprep.subr.mxu0 0.0
  %7871 = vmatpush1.xpose.msra.mxu0 0.0
  %7872 = vmatprep.subr.mxu0 0.0
  %7873 = vmatpush1.xpose.msra.mxu0 0.0
  %7874 = vmatprep.subr.mxu0 0.0
  %7875 = vmatpush1.xpose.msra.mxu0 0.0
  %7876 = vmatprep.subr.mxu0 0.0
  %7877 = vmatpush1.xpose.msra.mxu0 0.0
  %7878 = vmatprep.subr.mxu0 0.0
  %7879 = vmatpush1.xpose.msra.mxu0 0.0
  %7880 = vmatprep.subr.mxu0 0.0
  %7881 = vmatpush1.xpose.msra.mxu0 0.0
  %7882 = vmatprep.subr.mxu0 0.0
  %7883 = vmatpush1.xpose.msra.mxu0 0.0
  %7884 = vmatprep.subr.mxu0 0.0
  %7885 = vmatpush1.xpose.msra.mxu0 0.0
  %7886 = vmatprep.subr.mxu0 0.0
  %7887 = vmatpush1.xpose.msra.mxu0 0.0
  %7888 = vmatprep.subr.mxu0 0.0
  %7889 = vmatpush1.xpose.msra.mxu0 0.0
  %7890 = vmatprep.subr.mxu0 0.0
  %7891 = vmatpush1.xpose.msra.mxu0 0.0
  %7892 = vmatprep.subr.mxu0 0.0
  %7893 = vmatpush1.xpose.msra.mxu0 0.0
  %7894 = vmatprep.subr.mxu0 0.0
  %7895 = vmatpush1.xpose.msra.mxu0 0.0
  %7896 = vmatprep.mubr.f32.mxu0 0.0
  %7897 = vmatmul.mubr.f32.gmra.mrb[0].mxu0 %v7816
  %v7898 = vpop.f32.mrb[0].mxu0
  %v7899 = vadd.f32 0.0, %v7898
  %v7900 = vpop.f32.mrb[0].mxu0
  %7901 = vmatprep.mubr.f32.mxu0 0.0
  %7902 = vmatmul.mubr.f32.gmra.mrb[0].mxu0 %v7818
  %v7903 = vpop.f32.mrb[0].mxu0
  %v7904 = vadd.f32 0.0, %v7903
  %v7905 = vpop.f32.mrb[0].mxu0
  %7906 = vdwg.mxu0
  %v7907 = vmul.f32 %v7567, %v7567
  %v7908 = vmul.f32 %v7568, %v7568
  %v7909 = vsel %vm102, %v7907, 0.0
  %v7910 = vsel %vm102, %v7908, 0.0
  %v7911 = vadd.f32 %v7909, %v7910
  %v7912 = vrot.slane %v7911, 4
  %v7913 = vadd.f32 %v7911, %v7912
  %v7914 = vrot.slane %v7913, 2
  %v7915 = vadd.f32 %v7913, %v7914
  %v7916 = vrot.slane %v7915, 1
  %v7917 = vadd.f32 %v7915, %v7916
  %v7918 = vmax.f32 %v7917, 1e-24
  %v7919 = vrsqrt.pop %v7918
  %v7920 = vmul.f32 %v7567, %v7919
  %v7921 = vmul.f32 %v7568, %v7919
  %v7922 = vmul.f32 %v7579, %v7579
  %v7923 = vmul.f32 %v7580, %v7580
  %v7924 = vsel %vm318, %v7922, 0.0
  %v7925 = vsel %vm318, %v7923, 0.0
  %v7926 = vadd.f32 %v7924, %v7925
  %v7927 = vrot.slane %v7926, 4
  %v7928 = vadd.f32 %v7926, %v7927
  %v7929 = vrot.slane %v7928, 2
  %v7930 = vadd.f32 %v7928, %v7929
  %v7931 = vrot.slane %v7930, 1
  %v7932 = vadd.f32 %v7930, %v7931
  %v7933 = vmax.f32 %v7932, 1e-24
  %v7934 = vrsqrt.pop %v7933
  %v7935 = vmul.f32 %v7579, %v7934
  %v7936 = vmul.f32 %v7580, %v7934
  %v7937 = vmul.f32 %v7920, %v7626
  %v7938 = vmul.f32 %v7921, %v7626
  %7939 = vxpose.xlu0.b32.start [1/16] %v7937, 128
  %7940 = vxpose.xlu0.b32.cont [2/16] %v7938, 128
  %7941 = vxpose.xlu0.b32.cont [3/16] 0.0, 128
  %7942 = vxpose.xlu0.b32.cont [4/16] 0.0, 128
  %7943 = vxpose.xlu0.b32.cont [5/16] 0.0, 128
  %7944 = vxpose.xlu0.b32.cont [6/16] 0.0, 128
  %7945 = vxpose.xlu0.b32.cont [7/16] 0.0, 128
  %7946 = vxpose.xlu0.b32.cont [8/16] 0.0, 128
  %7947 = vxpose.xlu0.b32.cont [9/16] 0.0, 128
  %7948 = vxpose.xlu0.b32.cont [10/16] 0.0, 128
  %7949 = vxpose.xlu0.b32.cont [11/16] 0.0, 128
  %7950 = vxpose.xlu0.b32.cont [12/16] 0.0, 128
  %7951 = vxpose.xlu0.b32.cont [13/16] 0.0, 128
  %7952 = vxpose.xlu0.b32.cont [14/16] 0.0, 128
  %7953 = vxpose.xlu0.b32.cont [15/16] 0.0, 128
  %7954 = vxpose.xlu0.b32.end [16/16] 0.0, 128
  %v7955 = vpop.trf.xlu0
  %v7956 = vpop.trf.xlu0
  %v7957 = vpop.trf.xlu0
  %v7958 = vpop.trf.xlu0
  %v7959 = vpop.trf.xlu0
  %v7960 = vpop.trf.xlu0
  %v7961 = vpop.trf.xlu0
  %v7962 = vpop.trf.xlu0
  %v7963 = vpop.trf.xlu0
  %v7964 = vpop.trf.xlu0
  %v7965 = vpop.trf.xlu0
  %v7966 = vpop.trf.xlu0
  %v7967 = vpop.trf.xlu0
  %v7968 = vpop.trf.xlu0
  %v7969 = vpop.trf.xlu0
  %v7970 = vpop.trf.xlu0
  %7973 = vrot.lane.b32.xlu0 %v7935, 96
  %v7974 = vpop.permute.xlu0 %7973
  %7975 = vrot.lane.b32.xlu0 %v7936, 96
  %v7976 = vpop.permute.xlu0 %7975
  %v7980 = vsel %vm378, %v7955, 0
  %v7983 = vsel %vm378, %v7956, 0
  %v7986 = vsel %vm378, %v7957, 0
  %v7989 = vsel %vm378, %v7958, 0
  %7991 = vmatprep.subr.mxu0 0.0
  %7992 = vmatpush1.msra.mxu0 %v7974
  %7993 = vmatprep.subr.mxu0 0.0
  %7994 = vmatpush1.msra.mxu0 %v7976
  %7995 = vmatprep.subr.mxu0 0.0
  %7996 = vmatpush1.msra.mxu0 0.0
  %7997 = vmatprep.subr.mxu0 0.0
  %7998 = vmatpush1.msra.mxu0 0.0
  %7999 = vmatprep.subr.mxu0 0.0
  %8000 = vmatpush1.msra.mxu0 0.0
  %8001 = vmatprep.subr.mxu0 0.0
  %8002 = vmatpush1.msra.mxu0 0.0
  %8003 = vmatprep.subr.mxu0 0.0
  %8004 = vmatpush1.msra.mxu0 0.0
  %8005 = vmatprep.subr.mxu0 0.0
  %8006 = vmatpush1.msra.mxu0 0.0
  %8007 = vmatprep.subr.mxu0 0.0
  %8008 = vmatpush1.msra.mxu0 0.0
  %8009 = vmatprep.subr.mxu0 0.0
  %8010 = vmatpush1.msra.mxu0 0.0
  %8011 = vmatprep.subr.mxu0 0.0
  %8012 = vmatpush1.msra.mxu0 0.0
  %8013 = vmatprep.subr.mxu0 0.0
  %8014 = vmatpush1.msra.mxu0 0.0
  %8015 = vmatprep.subr.mxu0 0.0
  %8016 = vmatpush1.msra.mxu0 0.0
  %8017 = vmatprep.subr.mxu0 0.0
  %8018 = vmatpush1.msra.mxu0 0.0
  %8019 = vmatprep.subr.mxu0 0.0
  %8020 = vmatpush1.msra.mxu0 0.0
  %8021 = vmatprep.subr.mxu0 0.0
  %8022 = vmatpush1.msra.mxu0 0.0
  %8023 = vmatprep.subr.mxu0 0.0
  %8024 = vmatpush1.msra.mxu0 0.0
  %8025 = vmatprep.subr.mxu0 0.0
  %8026 = vmatpush1.msra.mxu0 0.0
  %8027 = vmatprep.subr.mxu0 0.0
  %8028 = vmatpush1.msra.mxu0 0.0
  %8029 = vmatprep.subr.mxu0 0.0
  %8030 = vmatpush1.msra.mxu0 0.0
  %8031 = vmatprep.subr.mxu0 0.0
  %8032 = vmatpush1.msra.mxu0 0.0
  %8033 = vmatprep.subr.mxu0 0.0
  %8034 = vmatpush1.msra.mxu0 0.0
  %8035 = vmatprep.subr.mxu0 0.0
  %8036 = vmatpush1.msra.mxu0 0.0
  %8037 = vmatprep.subr.mxu0 0.0
  %8038 = vmatpush1.msra.mxu0 0.0
  %8039 = vmatprep.subr.mxu0 0.0
  %8040 = vmatpush1.msra.mxu0 0.0
  %8041 = vmatprep.subr.mxu0 0.0
  %8042 = vmatpush1.msra.mxu0 0.0
  %8043 = vmatprep.subr.mxu0 0.0
  %8044 = vmatpush1.msra.mxu0 0.0
  %8045 = vmatprep.subr.mxu0 0.0
  %8046 = vmatpush1.msra.mxu0 0.0
  %8047 = vmatprep.subr.mxu0 0.0
  %8048 = vmatpush1.msra.mxu0 0.0
  %8049 = vmatprep.subr.mxu0 0.0
  %8050 = vmatpush1.msra.mxu0 0.0
  %8051 = vmatprep.subr.mxu0 0.0
  %8052 = vmatpush1.msra.mxu0 0.0
  %8053 = vmatprep.subr.mxu0 0.0
  %8054 = vmatpush1.msra.mxu0 0.0
  %8055 = vmatprep.mubr.f32.mxu0 0.0
  %8056 = vmatmul.mubr.f32.gmra.mrb[0].mxu0 %v7980
  %v8057 = vpop.f32.mrb[0].mxu0
  %v8058 = vadd.f32 %v49, %v8057
  %v8059 = vpop.f32.mrb[0].mxu0
  %8060 = vmatprep.mubr.f32.mxu0 0.0
  %8061 = vmatmul.mubr.f32.gmra.mrb[0].mxu0 %v7983
  %v8062 = vpop.f32.mrb[0].mxu0
  %v8063 = vadd.f32 %v50, %v8062
  %v8064 = vpop.f32.mrb[0].mxu0
  %8065 = vmatprep.mubr.f32.mxu0 0.0
  %8066 = vmatmul.mubr.f32.gmra.mrb[0].mxu0 %v7986
  %v8067 = vpop.f32.mrb[0].mxu0
  %v8068 = vadd.f32 %v51, %v8067
  %v8069 = vpop.f32.mrb[0].mxu0
  %8070 = vmatprep.mubr.f32.mxu0 0.0
  %8071 = vmatmul.mubr.f32.gmra.mrb[0].mxu0 %v7989
  %v8072 = vpop.f32.mrb[0].mxu0
  %v8073 = vadd.f32 %v52, %v8072
  %v8074 = vpop.f32.mrb[0].mxu0
  %8075 = vdwg.mxu0
  %v8076 = vsel %vm102, %v8058, -inf
  %8077 = vmax.xlane.f32.xlu0 %v8076
  %v8078 = vpop.xlane.xlu0 %8077
  %v8079 = vsel %vm102, %v8063, -inf
  %8080 = vmax.xlane.f32.xlu0 %v8079
  %v8081 = vpop.xlane.xlu0 %8080
  %v8082 = vsel %vm102, %v8068, -inf
  %8083 = vmax.xlane.f32.xlu0 %v8082
  %v8084 = vpop.xlane.xlu0 %8083
  %v8085 = vsel %vm102, %v8073, -inf
  %8086 = vmax.xlane.f32.xlu0 %v8085
  %v8087 = vpop.xlane.xlu0 %8086
  %v8088 = vsub.f32 %v8058, %v8078
  %v8089 = vsub.f32 %v8063, %v8081
  %v8090 = vsub.f32 %v8068, %v8084
  %v8091 = vsub.f32 %v8073, %v8087
  %v8092 = vmul.f32 %v8088, 1.442695
  %v8093 = vpow.pop %v8092
  %v8094 = vmul.f32 %v8089, 1.442695
  %v8095 = vpow.pop %v8094
  %v8096 = vmul.f32 %v8090, 1.442695
  %v8097 = vpow.pop %v8096
  %v8098 = vmul.f32 %v8091, 1.442695
  %v8099 = vpow.pop %v8098
  %v8100 = vsel %vm102, %v8093, 0.0
  %8101 = vadd.xlane.f32.xlu0 %v8100
  %v8102 = vpop.xlane.xlu0 %8101
  %v8103 = vsel %vm102, %v8095, 0.0
  %8104 = vadd.xlane.f32.xlu0 %v8103
  %v8105 = vpop.xlane.xlu0 %8104
  %v8106 = vsel %vm102, %v8097, 0.0
  %8107 = vadd.xlane.f32.xlu0 %v8106
  %v8108 = vpop.xlane.xlu0 %8107
  %v8109 = vsel %vm102, %v8099, 0.0
  %8110 = vadd.xlane.f32.xlu0 %v8109
  %v8111 = vpop.xlane.xlu0 %8110
  %v8112 = vrcp.pop %v8102
  %v8113 = vmul.f32 %v8093, %v8112
  %v8114 = vrcp.pop %v8105
  %v8115 = vmul.f32 %v8095, %v8114
  %v8116 = vrcp.pop %v8108
  %v8117 = vmul.f32 %v8097, %v8116
  %v8118 = vrcp.pop %v8111
  %v8119 = vmul.f32 %v8099, %v8118
  %8122 = vrot.lane.b32.xlu0 %v7591, 64
  %v8123 = vpop.permute.xlu0 %8122
  %8124 = vrot.lane.b32.xlu0 %v7592, 64
  %v8125 = vpop.permute.xlu0 %8124
  %v8126 = vsel %vm102, %v8123, 0
  %v8128 = vsel %vm102, %v8125, 0
  %v8131 = vsel %vm102, %v8113, 0
  %v8134 = vsel %vm102, %v8115, 0
  %v8137 = vsel %vm102, %v8117, 0
  %v8140 = vsel %vm102, %v8119, 0
  %8142 = vmatprep.subr.mxu0 0.0
  %8143 = vmatpush1.xpose.msra.mxu0 %v8131
  %8144 = vmatprep.subr.mxu0 0.0
  %8145 = vmatpush1.xpose.msra.mxu0 %v8134
  %8146 = vmatprep.subr.mxu0 0.0
  %8147 = vmatpush1.xpose.msra.mxu0 %v8137
  %8148 = vmatprep.subr.mxu0 0.0
  %8149 = vmatpush1.xpose.msra.mxu0 %v8140
  %8150 = vmatprep.subr.mxu0 0.0
  %8151 = vmatpush1.xpose.msra.mxu0 0.0
  %8152 = vmatprep.subr.mxu0 0.0
  %8153 = vmatpush1.xpose.msra.mxu0 0.0
  %8154 = vmatprep.subr.mxu0 0.0
  %8155 = vmatpush1.xpose.msra.mxu0 0.0
  %8156 = vmatprep.subr.mxu0 0.0
  %8157 = vmatpush1.xpose.msra.mxu0 0.0
  %8158 = vmatprep.subr.mxu0 0.0
  %8159 = vmatpush1.xpose.msra.mxu0 0.0
  %8160 = vmatprep.subr.mxu0 0.0
  %8161 = vmatpush1.xpose.msra.mxu0 0.0
  %8162 = vmatprep.subr.mxu0 0.0
  %8163 = vmatpush1.xpose.msra.mxu0 0.0
  %8164 = vmatprep.subr.mxu0 0.0
  %8165 = vmatpush1.xpose.msra.mxu0 0.0
  %8166 = vmatprep.subr.mxu0 0.0
  %8167 = vmatpush1.xpose.msra.mxu0 0.0
  %8168 = vmatprep.subr.mxu0 0.0
  %8169 = vmatpush1.xpose.msra.mxu0 0.0
  %8170 = vmatprep.subr.mxu0 0.0
  %8171 = vmatpush1.xpose.msra.mxu0 0.0
  %8172 = vmatprep.subr.mxu0 0.0
  %8173 = vmatpush1.xpose.msra.mxu0 0.0
  %8174 = vmatprep.subr.mxu0 0.0
  %8175 = vmatpush1.xpose.msra.mxu0 0.0
  %8176 = vmatprep.subr.mxu0 0.0
  %8177 = vmatpush1.xpose.msra.mxu0 0.0
  %8178 = vmatprep.subr.mxu0 0.0
  %8179 = vmatpush1.xpose.msra.mxu0 0.0
  %8180 = vmatprep.subr.mxu0 0.0
  %8181 = vmatpush1.xpose.msra.mxu0 0.0
  %8182 = vmatprep.subr.mxu0 0.0
  %8183 = vmatpush1.xpose.msra.mxu0 0.0
  %8184 = vmatprep.subr.mxu0 0.0
  %8185 = vmatpush1.xpose.msra.mxu0 0.0
  %8186 = vmatprep.subr.mxu0 0.0
  %8187 = vmatpush1.xpose.msra.mxu0 0.0
  %8188 = vmatprep.subr.mxu0 0.0
  %8189 = vmatpush1.xpose.msra.mxu0 0.0
  %8190 = vmatprep.subr.mxu0 0.0
  %8191 = vmatpush1.xpose.msra.mxu0 0.0
  %8192 = vmatprep.subr.mxu0 0.0
  %8193 = vmatpush1.xpose.msra.mxu0 0.0
  %8194 = vmatprep.subr.mxu0 0.0
  %8195 = vmatpush1.xpose.msra.mxu0 0.0
  %8196 = vmatprep.subr.mxu0 0.0
  %8197 = vmatpush1.xpose.msra.mxu0 0.0
  %8198 = vmatprep.subr.mxu0 0.0
  %8199 = vmatpush1.xpose.msra.mxu0 0.0
  %8200 = vmatprep.subr.mxu0 0.0
  %8201 = vmatpush1.xpose.msra.mxu0 0.0
  %8202 = vmatprep.subr.mxu0 0.0
  %8203 = vmatpush1.xpose.msra.mxu0 0.0
  %8204 = vmatprep.subr.mxu0 0.0
  %8205 = vmatpush1.xpose.msra.mxu0 0.0
  %8206 = vmatprep.mubr.f32.mxu0 0.0
  %8207 = vmatmul.mubr.f32.gmra.mrb[0].mxu0 %v8126
  %v8208 = vpop.f32.mrb[0].mxu0
  %v8209 = vadd.f32 0.0, %v8208
  %v8210 = vpop.f32.mrb[0].mxu0
  %8211 = vmatprep.mubr.f32.mxu0 0.0
  %8212 = vmatmul.mubr.f32.gmra.mrb[0].mxu0 %v8128
  %v8213 = vpop.f32.mrb[0].mxu0
  %v8214 = vadd.f32 0.0, %v8213
  %v8215 = vpop.f32.mrb[0].mxu0
  %8216 = vdwg.mxu0
  %v8217 = vlaneseq
  %v8218 = vshrl.u32 %v8217, 7
  %v8219 = vsub.s32 6, %v8218
  %v8220 = vrot.slane %v7382, %v8219
  %8225 = vrot.lane.b32.xlu0 %v7388, 32
  %v8226 = vpop.permute.xlu0 %8225
  %8227 = vrot.lane.b32.xlu0 %v7390, 32
  %v8228 = vpop.permute.xlu0 %8227
  %8229 = vrot.lane.b32.xlu0 %v7392, 32
  %v8230 = vpop.permute.xlu0 %8229
  %8231 = vrot.lane.b32.xlu0 %v7394, 32
  %v8232 = vpop.permute.xlu0 %8231
  %v8238 = vsel %vm102, %v7899, 0
  %v8241 = vsel %vm102, %v7904, 0
  %v8244 = vsel %vm102, %v8209, 0
  %v8247 = vsel %vm102, %v8214, 0
  %8249 = vmatprep.subr.mxu0 0.0
  %8250 = vmatpush1.msra.mxu0 %v8226
  %8251 = vmatprep.subr.mxu0 0.0
  %8252 = vmatpush1.msra.mxu0 %v8228
  %8253 = vmatprep.subr.mxu0 0.0
  %8254 = vmatpush1.msra.mxu0 %v8230
  %8255 = vmatprep.subr.mxu0 0.0
  %8256 = vmatpush1.msra.mxu0 %v8232
  %8257 = vmatprep.subr.mxu0 0.0
  %8258 = vmatpush1.msra.mxu0 0.0
  %8259 = vmatprep.subr.mxu0 0.0
  %8260 = vmatpush1.msra.mxu0 0.0
  %8261 = vmatprep.subr.mxu0 0.0
  %8262 = vmatpush1.msra.mxu0 0.0
  %8263 = vmatprep.subr.mxu0 0.0
  %8264 = vmatpush1.msra.mxu0 0.0
  %8265 = vmatprep.subr.mxu0 0.0
  %8266 = vmatpush1.msra.mxu0 0.0
  %8267 = vmatprep.subr.mxu0 0.0
  %8268 = vmatpush1.msra.mxu0 0.0
  %8269 = vmatprep.subr.mxu0 0.0
  %8270 = vmatpush1.msra.mxu0 0.0
  %8271 = vmatprep.subr.mxu0 0.0
  %8272 = vmatpush1.msra.mxu0 0.0
  %8273 = vmatprep.subr.mxu0 0.0
  %8274 = vmatpush1.msra.mxu0 0.0
  %8275 = vmatprep.subr.mxu0 0.0
  %8276 = vmatpush1.msra.mxu0 0.0
  %8277 = vmatprep.subr.mxu0 0.0
  %8278 = vmatpush1.msra.mxu0 0.0
  %8279 = vmatprep.subr.mxu0 0.0
  %8280 = vmatpush1.msra.mxu0 0.0
  %8281 = vmatprep.subr.mxu0 0.0
  %8282 = vmatpush1.msra.mxu0 0.0
  %8283 = vmatprep.subr.mxu0 0.0
  %8284 = vmatpush1.msra.mxu0 0.0
  %8285 = vmatprep.subr.mxu0 0.0
  %8286 = vmatpush1.msra.mxu0 0.0
  %8287 = vmatprep.subr.mxu0 0.0
  %8288 = vmatpush1.msra.mxu0 0.0
  %8289 = vmatprep.subr.mxu0 0.0
  %8290 = vmatpush1.msra.mxu0 0.0
  %8291 = vmatprep.subr.mxu0 0.0
  %8292 = vmatpush1.msra.mxu0 0.0
  %8293 = vmatprep.subr.mxu0 0.0
  %8294 = vmatpush1.msra.mxu0 0.0
  %8295 = vmatprep.subr.mxu0 0.0
  %8296 = vmatpush1.msra.mxu0 0.0
  %8297 = vmatprep.subr.mxu0 0.0
  %8298 = vmatpush1.msra.mxu0 0.0
  %8299 = vmatprep.subr.mxu0 0.0
  %8300 = vmatpush1.msra.mxu0 0.0
  %8301 = vmatprep.subr.mxu0 0.0
  %8302 = vmatpush1.msra.mxu0 0.0
  %8303 = vmatprep.subr.mxu0 0.0
  %8304 = vmatpush1.msra.mxu0 0.0
  %8305 = vmatprep.subr.mxu0 0.0
  %8306 = vmatpush1.msra.mxu0 0.0
  %8307 = vmatprep.subr.mxu0 0.0
  %8308 = vmatpush1.msra.mxu0 0.0
  %8309 = vmatprep.subr.mxu0 0.0
  %8310 = vmatpush1.msra.mxu0 0.0
  %8311 = vmatprep.subr.mxu0 0.0
  %8312 = vmatpush1.msra.mxu0 0.0
  %8313 = vmatprep.mubr.f32.mxu0 0.0
  %8314 = vmatmul.mubr.f32.gmra.mrb[0].mxu0 %v8238
  %v8315 = vpop.f32.mrb[0].mxu0
  %v8316 = vadd.f32 %v8220, %v8315
  %v8317 = vpop.f32.mrb[0].mxu0
  %8318 = vmatprep.mubr.f32.mxu0 0.0
  %8319 = vmatmul.mubr.f32.gmra.mrb[0].mxu0 %v8241
  %v8320 = vpop.f32.mrb[0].mxu0
  %v8321 = vadd.f32 %v8220, %v8320
  %v8322 = vpop.f32.mrb[0].mxu0
  %8323 = vmatprep.mubr.f32.mxu0 0.0
  %8324 = vmatmul.mubr.f32.gmra.mrb[0].mxu0 %v8244
  %v8325 = vpop.f32.mrb[0].mxu0
  %v8326 = vadd.f32 %v8220, %v8325
  %v8327 = vpop.f32.mrb[0].mxu0
  %8328 = vmatprep.mubr.f32.mxu0 0.0
  %8329 = vmatmul.mubr.f32.gmra.mrb[0].mxu0 %v8247
  %v8330 = vpop.f32.mrb[0].mxu0
  %v8331 = vadd.f32 %v8220, %v8330
  %v8332 = vpop.f32.mrb[0].mxu0
  %8333 = vdwg.mxu0
  %v8334 = vlaneseq
  %v8335 = vshrl.u32 %v8334, 7
  %v8336 = vsub.s32 7, %v8335
  %v8337 = vrot.slane %v7382, %v8336
  %v8338 = vmul.f32 %v8337, %v8316
  %v8339 = vmul.f32 %v8337, %v8321
  %v8340 = vmul.f32 %v8337, %v8326
  %v8341 = vmul.f32 %v8337, %v8331
  %v8342 = vadd.f32 %v7377, %v8338
  %v8343 = vadd.f32 %v7378, %v8339
  %v8344 = vadd.f32 %v7379, %v8340
  %v8345 = vadd.f32 %v7380, %v8341
  %v8346 = vsel %vm102, %v8342, 0.0
  %8347 = vadd.xlane.f32.xlu0 %v8346
  %v8348 = vpop.xlane.xlu0 %8347
  %v8349 = vsel %vm102, %v8343, 0.0
  %8350 = vadd.xlane.f32.xlu0 %v8349
  %v8351 = vpop.xlane.xlu0 %8350
  %v8352 = vsel %vm102, %v8344, 0.0
  %8353 = vadd.xlane.f32.xlu0 %v8352
  %v8354 = vpop.xlane.xlu0 %8353
  %v8355 = vsel %vm102, %v8345, 0.0
  %8356 = vadd.xlane.f32.xlu0 %v8355
  %v8357 = vpop.xlane.xlu0 %8356
  %v8358 = vmul.f32 %v8348, %v115
  %v8359 = vmul.f32 %v8351, %v115
  %v8360 = vmul.f32 %v8354, %v115
  %v8361 = vmul.f32 %v8357, %v115
  %v8362 = vsub.f32 %v8342, %v8358
  %v8363 = vsub.f32 %v8343, %v8359
  %v8364 = vsub.f32 %v8344, %v8360
  %v8365 = vsub.f32 %v8345, %v8361
  %v8366 = vmul.f32 %v8362, %v8362
  %v8367 = vmul.f32 %v8363, %v8363
  %v8368 = vmul.f32 %v8364, %v8364
  %v8369 = vmul.f32 %v8365, %v8365
  %v8370 = vsel %vm102, %v8366, 0.0
  %8371 = vadd.xlane.f32.xlu0 %v8370
  %v8372 = vpop.xlane.xlu0 %8371
  %v8373 = vsel %vm102, %v8367, 0.0
  %8374 = vadd.xlane.f32.xlu0 %v8373
  %v8375 = vpop.xlane.xlu0 %8374
  %v8376 = vsel %vm102, %v8368, 0.0
  %8377 = vadd.xlane.f32.xlu0 %v8376
  %v8378 = vpop.xlane.xlu0 %8377
  %v8379 = vsel %vm102, %v8369, 0.0
  %8380 = vadd.xlane.f32.xlu0 %v8379
  %v8381 = vpop.xlane.xlu0 %8380
  %v8382 = vmul.f32 %v8372, %v115
  %v8383 = vmul.f32 %v8375, %v115
  %v8384 = vmul.f32 %v8378, %v115
  %v8385 = vmul.f32 %v8381, %v115
  %v8386 = vadd.f32 %v8382, 1e-06
  %v8387 = vadd.f32 %v8383, 1e-06
  %v8388 = vadd.f32 %v8384, 1e-06
  %v8389 = vadd.f32 %v8385, 1e-06
  %v8390 = vrsqrt.pop %v8386
  %v8391 = vrsqrt.pop %v8387
  %v8392 = vrsqrt.pop %v8388
  %v8393 = vrsqrt.pop %v8389
  %v8394 = vmul.f32 %v8362, %v8390
  %v8395 = vmul.f32 %v8363, %v8391
  %v8396 = vmul.f32 %v8364, %v8392
  %v8397 = vmul.f32 %v8365, %v8393
  %v8398 = vlaneseq
  %v8399 = vshrl.u32 %v8398, 7
  %v8400 = vsub.s32 0, %v8399
  %v8401 = vrot.slane %v7383, %v8400
  %v8402 = vmul.f32 %v8394, %v8401
  %v8403 = vmul.f32 %v8395, %v8401
  %v8404 = vmul.f32 %v8396, %v8401
  %v8405 = vmul.f32 %v8397, %v8401
  %v8406 = vlaneseq
  %v8407 = vshrl.u32 %v8406, 7
  %v8408 = vsub.s32 1, %v8407
  %v8409 = vrot.slane %v7383, %v8408
  %v8410 = vadd.f32 %v8402, %v8409
  %v8411 = vadd.f32 %v8403, %v8409
  %v8412 = vadd.f32 %v8404, %v8409
  %v8413 = vadd.f32 %v8405, %v8409
  %8414 = vmatprep.subr.mxu0 0.0
  %8415 = vmatpush1.msra.mxu0 %v8410
  %8416 = vmatprep.subr.mxu0 0.0
  %8417 = vmatpush1.msra.mxu0 %v8411
  %8418 = vmatprep.subr.mxu0 0.0
  %8419 = vmatpush1.msra.mxu0 %v8412
  %8420 = vmatprep.subr.mxu0 0.0
  %8421 = vmatpush1.msra.mxu0 %v8413
  %8422 = vmatprep.subr.mxu0 0.0
  %8423 = vmatpush1.msra.mxu0 0.0
  %8424 = vmatprep.subr.mxu0 0.0
  %8425 = vmatpush1.msra.mxu0 0.0
  %8426 = vmatprep.subr.mxu0 0.0
  %8427 = vmatpush1.msra.mxu0 0.0
  %8428 = vmatprep.subr.mxu0 0.0
  %8429 = vmatpush1.msra.mxu0 0.0
  %8430 = vmatprep.subr.mxu0 0.0
  %8431 = vmatpush1.msra.mxu0 0.0
  %8432 = vmatprep.subr.mxu0 0.0
  %8433 = vmatpush1.msra.mxu0 0.0
  %8434 = vmatprep.subr.mxu0 0.0
  %8435 = vmatpush1.msra.mxu0 0.0
  %8436 = vmatprep.subr.mxu0 0.0
  %8437 = vmatpush1.msra.mxu0 0.0
  %8438 = vmatprep.subr.mxu0 0.0
  %8439 = vmatpush1.msra.mxu0 0.0
  %8440 = vmatprep.subr.mxu0 0.0
  %8441 = vmatpush1.msra.mxu0 0.0
  %8442 = vmatprep.subr.mxu0 0.0
  %8443 = vmatpush1.msra.mxu0 0.0
  %8444 = vmatprep.subr.mxu0 0.0
  %8445 = vmatpush1.msra.mxu0 0.0
  %8446 = vmatprep.subr.mxu0 0.0
  %8447 = vmatpush1.msra.mxu0 0.0
  %8448 = vmatprep.subr.mxu0 0.0
  %8449 = vmatpush1.msra.mxu0 0.0
  %8450 = vmatprep.subr.mxu0 0.0
  %8451 = vmatpush1.msra.mxu0 0.0
  %8452 = vmatprep.subr.mxu0 0.0
  %8453 = vmatpush1.msra.mxu0 0.0
  %8454 = vmatprep.subr.mxu0 0.0
  %8455 = vmatpush1.msra.mxu0 0.0
  %8456 = vmatprep.subr.mxu0 0.0
  %8457 = vmatpush1.msra.mxu0 0.0
  %8458 = vmatprep.subr.mxu0 0.0
  %8459 = vmatpush1.msra.mxu0 0.0
  %8460 = vmatprep.subr.mxu0 0.0
  %8461 = vmatpush1.msra.mxu0 0.0
  %8462 = vmatprep.subr.mxu0 0.0
  %8463 = vmatpush1.msra.mxu0 0.0
  %8464 = vmatprep.subr.mxu0 0.0
  %8465 = vmatpush1.msra.mxu0 0.0
  %8466 = vmatprep.subr.mxu0 0.0
  %8467 = vmatpush1.msra.mxu0 0.0
  %8468 = vmatprep.subr.mxu0 0.0
  %8469 = vmatpush1.msra.mxu0 0.0
  %8470 = vmatprep.subr.mxu0 0.0
  %8471 = vmatpush1.msra.mxu0 0.0
  %8472 = vmatprep.subr.mxu0 0.0
  %8473 = vmatpush1.msra.mxu0 0.0
  %8474 = vmatprep.subr.mxu0 0.0
  %8475 = vmatpush1.msra.mxu0 0.0
  %8476 = vmatprep.subr.mxu0 0.0
  %8477 = vmatpush1.msra.mxu0 0.0
  %8478 = vmatprep.mubr.f32.mxu0 0.0
  %8479 = vmatmul.mubr.f32.gmra.mrb[0].mxu0 %v1125
  %v8480 = vpop.f32.mrb[0].mxu0
  %v8481 = vadd.f32 0.0, %v8480
  %v8482 = vpop.f32.mrb[0].mxu0
  %8483 = vmatprep.mubr.f32.mxu0 0.0
  %8484 = vmatmul.mubr.f32.gmra.mrb[0].mxu0 %v1128
  %v8485 = vpop.f32.mrb[0].mxu0
  %v8486 = vadd.f32 0.0, %v8485
  %v8487 = vpop.f32.mrb[0].mxu0
  %8488 = vmatprep.mubr.f32.mxu0 0.0
  %8489 = vmatmul.mubr.f32.gmra.mrb[0].mxu0 %v1131
  %v8490 = vpop.f32.mrb[0].mxu0
  %v8491 = vadd.f32 0.0, %v8490
  %v8492 = vpop.f32.mrb[0].mxu0
  %8493 = vmatprep.mubr.f32.mxu0 0.0
  %8494 = vmatmul.mubr.f32.gmra.mrb[0].mxu0 %v1134
  %v8495 = vpop.f32.mrb[0].mxu0
  %v8496 = vadd.f32 0.0, %v8495
  %v8497 = vpop.f32.mrb[0].mxu0
  %8498 = vmatprep.mubr.f32.mxu0 0.0
  %8499 = vmatmul.mubr.f32.gmra.mrb[0].mxu0 %v1137
  %v8500 = vpop.f32.mrb[0].mxu0
  %v8501 = vadd.f32 0.0, %v8500
  %v8502 = vpop.f32.mrb[0].mxu0
  %8503 = vmatprep.mubr.f32.mxu0 0.0
  %8504 = vmatmul.mubr.f32.gmra.mrb[0].mxu0 %v1140
  %v8505 = vpop.f32.mrb[0].mxu0
  %v8506 = vadd.f32 0.0, %v8505
  %v8507 = vpop.f32.mrb[0].mxu0
  %8508 = vmatprep.mubr.f32.mxu0 0.0
  %8509 = vmatmul.mubr.f32.gmra.mrb[0].mxu0 %v1143
  %v8510 = vpop.f32.mrb[0].mxu0
  %v8511 = vadd.f32 0.0, %v8510
  %v8512 = vpop.f32.mrb[0].mxu0
  %8513 = vmatprep.mubr.f32.mxu0 0.0
  %8514 = vmatmul.mubr.f32.gmra.mrb[0].mxu0 %v1146
  %v8515 = vpop.f32.mrb[0].mxu0
  %v8516 = vadd.f32 0.0, %v8515
  %v8517 = vpop.f32.mrb[0].mxu0
  %8518 = vmatprep.mubr.f32.mxu0 0.0
  %8519 = vmatmul.mubr.f32.gmra.mrb[0].mxu0 %v1149
  %v8520 = vpop.f32.mrb[0].mxu0
  %v8521 = vadd.f32 0.0, %v8520
  %v8522 = vpop.f32.mrb[0].mxu0
  %8523 = vmatprep.mubr.f32.mxu0 0.0
  %8524 = vmatmul.mubr.f32.gmra.mrb[0].mxu0 %v1152
  %v8525 = vpop.f32.mrb[0].mxu0
  %v8526 = vadd.f32 0.0, %v8525
  %v8527 = vpop.f32.mrb[0].mxu0
  %8528 = vmatprep.mubr.f32.mxu0 0.0
  %8529 = vmatmul.mubr.f32.gmra.mrb[0].mxu0 %v1155
  %v8530 = vpop.f32.mrb[0].mxu0
  %v8531 = vadd.f32 0.0, %v8530
  %v8532 = vpop.f32.mrb[0].mxu0
  %8533 = vmatprep.mubr.f32.mxu0 0.0
  %8534 = vmatmul.mubr.f32.gmra.mrb[0].mxu0 %v1158
  %v8535 = vpop.f32.mrb[0].mxu0
  %v8536 = vadd.f32 0.0, %v8535
  %v8537 = vpop.f32.mrb[0].mxu0
  %8538 = vmatprep.mubr.f32.mxu0 0.0
  %8539 = vmatmul.mubr.f32.gmra.mrb[0].mxu0 %v1161
  %v8540 = vpop.f32.mrb[0].mxu0
  %v8541 = vadd.f32 0.0, %v8540
  %v8542 = vpop.f32.mrb[0].mxu0
  %8543 = vmatprep.mubr.f32.mxu0 0.0
  %8544 = vmatmul.mubr.f32.gmra.mrb[0].mxu0 %v1164
  %v8545 = vpop.f32.mrb[0].mxu0
  %v8546 = vadd.f32 0.0, %v8545
  %v8547 = vpop.f32.mrb[0].mxu0
  %8548 = vmatprep.mubr.f32.mxu0 0.0
  %8549 = vmatmul.mubr.f32.gmra.mrb[0].mxu0 %v1167
  %v8550 = vpop.f32.mrb[0].mxu0
  %v8551 = vadd.f32 0.0, %v8550
  %v8552 = vpop.f32.mrb[0].mxu0
  %8553 = vmatprep.mubr.f32.mxu0 0.0
  %8554 = vmatmul.mubr.f32.gmra.mrb[0].mxu0 %v1170
  %v8555 = vpop.f32.mrb[0].mxu0
  %v8556 = vadd.f32 0.0, %v8555
  %v8557 = vpop.f32.mrb[0].mxu0
  %8558 = vmatprep.mubr.f32.mxu0 0.0
  %8559 = vmatmul.mubr.f32.gmra.mrb[0].mxu0 %v1173
  %v8560 = vpop.f32.mrb[0].mxu0
  %v8561 = vadd.f32 0.0, %v8560
  %v8562 = vpop.f32.mrb[0].mxu0
  %8563 = vmatprep.mubr.f32.mxu0 0.0
  %8564 = vmatmul.mubr.f32.gmra.mrb[0].mxu0 %v1176
  %v8565 = vpop.f32.mrb[0].mxu0
  %v8566 = vadd.f32 0.0, %v8565
  %v8567 = vpop.f32.mrb[0].mxu0
  %8568 = vmatprep.mubr.f32.mxu0 0.0
  %8569 = vmatmul.mubr.f32.gmra.mrb[0].mxu0 %v1179
  %v8570 = vpop.f32.mrb[0].mxu0
  %v8571 = vadd.f32 0.0, %v8570
  %v8572 = vpop.f32.mrb[0].mxu0
  %8573 = vmatprep.mubr.f32.mxu0 0.0
  %8574 = vmatmul.mubr.f32.gmra.mrb[0].mxu0 %v1182
  %v8575 = vpop.f32.mrb[0].mxu0
  %v8576 = vadd.f32 0.0, %v8575
  %v8577 = vpop.f32.mrb[0].mxu0
  %8578 = vmatprep.mubr.f32.mxu0 0.0
  %8579 = vmatmul.mubr.f32.gmra.mrb[0].mxu0 %v1185
  %v8580 = vpop.f32.mrb[0].mxu0
  %v8581 = vadd.f32 0.0, %v8580
  %v8582 = vpop.f32.mrb[0].mxu0
  %8583 = vmatprep.mubr.f32.mxu0 0.0
  %8584 = vmatmul.mubr.f32.gmra.mrb[0].mxu0 %v1188
  %v8585 = vpop.f32.mrb[0].mxu0
  %v8586 = vadd.f32 0.0, %v8585
  %v8587 = vpop.f32.mrb[0].mxu0
  %8588 = vmatprep.mubr.f32.mxu0 0.0
  %8589 = vmatmul.mubr.f32.gmra.mrb[0].mxu0 %v1191
  %v8590 = vpop.f32.mrb[0].mxu0
  %v8591 = vadd.f32 0.0, %v8590
  %v8592 = vpop.f32.mrb[0].mxu0
  %8593 = vmatprep.mubr.f32.mxu0 0.0
  %8594 = vmatmul.mubr.f32.gmra.mrb[0].mxu0 %v1194
  %v8595 = vpop.f32.mrb[0].mxu0
  %v8596 = vadd.f32 0.0, %v8595
  %v8597 = vpop.f32.mrb[0].mxu0
  %8598 = vmatprep.mubr.f32.mxu0 0.0
  %8599 = vmatmul.mubr.f32.gmra.mrb[0].mxu0 %v1197
  %v8600 = vpop.f32.mrb[0].mxu0
  %v8601 = vadd.f32 0.0, %v8600
  %v8602 = vpop.f32.mrb[0].mxu0
  %8603 = vmatprep.mubr.f32.mxu0 0.0
  %8604 = vmatmul.mubr.f32.gmra.mrb[0].mxu0 %v1200
  %v8605 = vpop.f32.mrb[0].mxu0
  %v8606 = vadd.f32 0.0, %v8605
  %v8607 = vpop.f32.mrb[0].mxu0
  %8608 = vmatprep.mubr.f32.mxu0 0.0
  %8609 = vmatmul.mubr.f32.gmra.mrb[0].mxu0 %v1203
  %v8610 = vpop.f32.mrb[0].mxu0
  %v8611 = vadd.f32 0.0, %v8610
  %v8612 = vpop.f32.mrb[0].mxu0
  %8613 = vmatprep.mubr.f32.mxu0 0.0
  %8614 = vmatmul.mubr.f32.gmra.mrb[0].mxu0 %v1206
  %v8615 = vpop.f32.mrb[0].mxu0
  %v8616 = vadd.f32 0.0, %v8615
  %v8617 = vpop.f32.mrb[0].mxu0
  %8618 = vmatprep.mubr.f32.mxu0 0.0
  %8619 = vmatmul.mubr.f32.gmra.mrb[0].mxu0 %v1209
  %v8620 = vpop.f32.mrb[0].mxu0
  %v8621 = vadd.f32 0.0, %v8620
  %v8622 = vpop.f32.mrb[0].mxu0
  %8623 = vmatprep.mubr.f32.mxu0 0.0
  %8624 = vmatmul.mubr.f32.gmra.mrb[0].mxu0 %v1212
  %v8625 = vpop.f32.mrb[0].mxu0
  %v8626 = vadd.f32 0.0, %v8625
  %v8627 = vpop.f32.mrb[0].mxu0
  %8628 = vmatprep.mubr.f32.mxu0 0.0
  %8629 = vmatmul.mubr.f32.gmra.mrb[0].mxu0 %v1215
  %v8630 = vpop.f32.mrb[0].mxu0
  %v8631 = vadd.f32 0.0, %v8630
  %v8632 = vpop.f32.mrb[0].mxu0
  %8633 = vmatprep.mubr.f32.mxu0 0.0
  %8634 = vmatmul.mubr.f32.gmra.mrb[0].mxu0 %v1218
  %v8635 = vpop.f32.mrb[0].mxu0
  %v8636 = vadd.f32 0.0, %v8635
  %v8637 = vpop.f32.mrb[0].mxu0
  %8638 = vmatprep.mubr.f32.mxu0 0.0
  %8639 = vmatmul.mubr.f32.gmra.mrb[0].mxu0 %v1221
  %v8640 = vpop.f32.mrb[0].mxu0
  %v8641 = vadd.f32 0.0, %v8640
  %v8642 = vpop.f32.mrb[0].mxu0
  %8643 = vmatprep.mubr.f32.mxu0 0.0
  %8644 = vmatmul.mubr.f32.gmra.mrb[0].mxu0 %v1224
  %v8645 = vpop.f32.mrb[0].mxu0
  %v8646 = vadd.f32 0.0, %v8645
  %v8647 = vpop.f32.mrb[0].mxu0
  %8648 = vmatprep.mubr.f32.mxu0 0.0
  %8649 = vmatmul.mubr.f32.gmra.mrb[0].mxu0 %v1227
  %v8650 = vpop.f32.mrb[0].mxu0
  %v8651 = vadd.f32 0.0, %v8650
  %v8652 = vpop.f32.mrb[0].mxu0
  %8653 = vmatprep.mubr.f32.mxu0 0.0
  %8654 = vmatmul.mubr.f32.gmra.mrb[0].mxu0 %v1230
  %v8655 = vpop.f32.mrb[0].mxu0
  %v8656 = vadd.f32 0.0, %v8655
  %v8657 = vpop.f32.mrb[0].mxu0
  %8658 = vdwg.mxu0
  %v8661 = vcombine.high %v7384, %v7384
  %v8663 = vunpack.c.l.s4 1966171168
  %v8664 = vunpack.c.0.s8 %v8663
  %v8665 = vlaneseq
  %v8666 = vshrl.u32 %v8665, 7
  %v8667 = vsub.s32 %v8664, %v8666
  %v8668 = vrot.slane %v7384, %v8667
  %v8670 = vunpack.c.l.s4 1966171168
  %v8671 = vunpack.c.0.s8 %v8670
  %v8672 = vlaneseq
  %v8673 = vshrl.u32 %v8672, 7
  %v8674 = vsub.s32 %v8671, %v8673
  %v8675 = vrot.slane %v8661, %v8674
  %v8676 = vcombine.high %v8668, %v8668
  %v8677 = vcombine.high %v8675, %v8675
  %v8679 = vunpack.c.l.s4 1966171168
  %v8680 = vunpack.c.0.s8 %v8679
  %v8681 = vlaneseq
  %v8682 = vshrl.u32 %v8681, 7
  %v8683 = vsub.s32 %v8680, %v8682
  %v8684 = vrot.slane %v8675, %v8683
  %v8686 = vunpack.c.l.s4 1966171168
  %v8687 = vunpack.c.0.s8 %v8686
  %v8688 = vlaneseq
  %v8689 = vshrl.u32 %v8688, 7
  %v8690 = vsub.s32 %v8687, %v8689
  %v8691 = vrot.slane %v8676, %v8690
  %v8693 = vunpack.c.l.s4 1966171168
  %v8694 = vunpack.c.0.s8 %v8693
  %v8695 = vlaneseq
  %v8696 = vshrl.u32 %v8695, 7
  %v8697 = vsub.s32 %v8694, %v8696
  %v8698 = vrot.slane %v8677, %v8697
  %v8699 = vcombine.high %v8684, %v8684
  %v8700 = vcombine.high %v8691, %v8691
  %v8701 = vcombine.high %v8698, %v8698
  %v8703 = vunpack.c.l.s4 1966171168
  %v8704 = vunpack.c.0.s8 %v8703
  %v8705 = vlaneseq
  %v8706 = vshrl.u32 %v8705, 7
  %v8707 = vsub.s32 %v8704, %v8706
  %v8708 = vrot.slane %v7385, %v8707
  %v8709 = vcombine.high %v8708, %v8708
  %v8711 = vunpack.c.l.s4 1966171168
  %v8712 = vunpack.c.0.s8 %v8711
  %v8713 = vlaneseq
  %v8714 = vshrl.u32 %v8713, 7
  %v8715 = vsub.s32 %v8712, %v8714
  %v8716 = vrot.slane %v8708, %v8715
  %v8718 = vunpack.c.l.s4 1966171168
  %v8719 = vunpack.c.0.s8 %v8718
  %v8720 = vlaneseq
  %v8721 = vshrl.u32 %v8720, 7
  %v8722 = vsub.s32 %v8719, %v8721
  %v8723 = vrot.slane %v8709, %v8722
  %v8724 = vcombine.high %v8716, %v8716
  %v8725 = vcombine.high %v8723, %v8723
  %v8726 = vlaneseq
  %v8727 = vshrl.u32 %v8726, 7
  %v8728 = vsub.s32 0, %v8727
  %v8729 = vrot.slane %v8700, %v8728
  %v8730 = vlaneseq
  %v8731 = vshrl.u32 %v8730, 7
  %v8732 = vsub.s32 0, %v8731
  %v8733 = vrot.slane %v8684, %v8732
  %v8734 = vlaneseq
  %v8735 = vshrl.u32 %v8734, 7
  %v8736 = vsub.s32 0, %v8735
  %v8737 = vrot.slane %v8698, %v8736
  %v8738 = vlaneseq
  %v8739 = vshrl.u32 %v8738, 7
  %v8740 = vsub.s32 0, %v8739
  %v8741 = vrot.slane %v8699, %v8740
  %v8742 = vlaneseq
  %v8743 = vshrl.u32 %v8742, 7
  %v8744 = vsub.s32 0, %v8743
  %v8745 = vrot.slane %v8701, %v8744
  %v8746 = vlaneseq
  %v8747 = vshrl.u32 %v8746, 7
  %v8748 = vsub.s32 0, %v8747
  %v8749 = vrot.slane %v8716, %v8748
  %v8750 = vlaneseq
  %v8751 = vshrl.u32 %v8750, 7
  %v8752 = vsub.s32 0, %v8751
  %v8753 = vrot.slane %v8723, %v8752
  %v8754 = vlaneseq
  %v8755 = vshrl.u32 %v8754, 7
  %v8756 = vsub.s32 0, %v8755
  %v8757 = vrot.slane %v8724, %v8756
  %v8758 = vlaneseq
  %v8759 = vshrl.u32 %v8758, 7
  %v8760 = vsub.s32 0, %v8759
  %v8761 = vrot.slane %v8725, %v8760
  %v8771 = vmul.f32 %v8481, %v8729
  %v8772 = vmul.f32 %v8486, %v8729
  %v8773 = vmul.f32 %v8491, %v8729
  %v8774 = vmul.f32 %v8496, %v8729
  %v8775 = vmul.f32 %v8501, %v8733
  %v8776 = vmul.f32 %v8506, %v8733
  %v8777 = vmul.f32 %v8511, %v8733
  %v8778 = vmul.f32 %v8516, %v8733
  %v8779 = vmul.f32 %v8521, %v8737
  %v8780 = vmul.f32 %v8526, %v8737
  %v8781 = vmul.f32 %v8531, %v8737
  %v8782 = vmul.f32 %v8536, %v8737
  %v8783 = vmul.f32 %v8541, %v8741
  %v8784 = vmul.f32 %v8546, %v8741
  %v8785 = vmul.f32 %v8551, %v8741
  %v8786 = vmul.f32 %v8556, %v8741
  %v8787 = vmul.f32 %v8561, %v8745
  %v8788 = vmul.f32 %v8566, %v8745
  %v8789 = vmul.f32 %v8571, %v8745
  %v8790 = vmul.f32 %v8576, %v8745
  %v8791 = vmul.f32 %v8581, %v8749
  %v8792 = vmul.f32 %v8586, %v8749
  %v8793 = vmul.f32 %v8591, %v8749
  %v8794 = vmul.f32 %v8596, %v8749
  %v8795 = vmul.f32 %v8601, %v8753
  %v8796 = vmul.f32 %v8606, %v8753
  %v8797 = vmul.f32 %v8611, %v8753
  %v8798 = vmul.f32 %v8616, %v8753
  %v8799 = vmul.f32 %v8621, %v8757
  %v8800 = vmul.f32 %v8626, %v8757
  %v8801 = vmul.f32 %v8631, %v8757
  %v8802 = vmul.f32 %v8636, %v8757
  %v8803 = vmul.f32 %v8641, %v8761
  %v8804 = vmul.f32 %v8646, %v8761
  %v8805 = vmul.f32 %v8651, %v8761
  %v8806 = vmul.f32 %v8656, %v8761
  %v8807 = vsel %vm102, %v8771, 0.0
  %v8808 = vsel %vm102, %v8775, 0.0
  %v8809 = vadd.f32 %v8807, %v8808
  %v8810 = vsel %vm102, %v8779, 0.0
  %v8811 = vadd.f32 %v8809, %v8810
  %v8812 = vsel %vm102, %v8783, 0.0
  %v8813 = vadd.f32 %v8811, %v8812
  %v8814 = vsel %vm102, %v8787, 0.0
  %v8815 = vadd.f32 %v8813, %v8814
  %v8816 = vsel %vm102, %v8791, 0.0
  %v8817 = vadd.f32 %v8815, %v8816
  %v8818 = vsel %vm102, %v8795, 0.0
  %v8819 = vadd.f32 %v8817, %v8818
  %v8820 = vsel %vm102, %v8799, 0.0
  %v8821 = vadd.f32 %v8819, %v8820
  %v8822 = vsel %vm102, %v8803, 0.0
  %v8823 = vadd.f32 %v8821, %v8822
  %v8824 = vsel %vm102, %v8772, 0.0
  %v8825 = vsel %vm102, %v8776, 0.0
  %v8826 = vadd.f32 %v8824, %v8825
  %v8827 = vsel %vm102, %v8780, 0.0
  %v8828 = vadd.f32 %v8826, %v8827
  %v8829 = vsel %vm102, %v8784, 0.0
  %v8830 = vadd.f32 %v8828, %v8829
  %v8831 = vsel %vm102, %v8788, 0.0
  %v8832 = vadd.f32 %v8830, %v8831
  %v8833 = vsel %vm102, %v8792, 0.0
  %v8834 = vadd.f32 %v8832, %v8833
  %v8835 = vsel %vm102, %v8796, 0.0
  %v8836 = vadd.f32 %v8834, %v8835
  %v8837 = vsel %vm102, %v8800, 0.0
  %v8838 = vadd.f32 %v8836, %v8837
  %v8839 = vsel %vm102, %v8804, 0.0
  %v8840 = vadd.f32 %v8838, %v8839
  %v8841 = vsel %vm102, %v8773, 0.0
  %v8842 = vsel %vm102, %v8777, 0.0
  %v8843 = vadd.f32 %v8841, %v8842
  %v8844 = vsel %vm102, %v8781, 0.0
  %v8845 = vadd.f32 %v8843, %v8844
  %v8846 = vsel %vm102, %v8785, 0.0
  %v8847 = vadd.f32 %v8845, %v8846
  %v8848 = vsel %vm102, %v8789, 0.0
  %v8849 = vadd.f32 %v8847, %v8848
  %v8850 = vsel %vm102, %v8793, 0.0
  %v8851 = vadd.f32 %v8849, %v8850
  %v8852 = vsel %vm102, %v8797, 0.0
  %v8853 = vadd.f32 %v8851, %v8852
  %v8854 = vsel %vm102, %v8801, 0.0
  %v8855 = vadd.f32 %v8853, %v8854
  %v8856 = vsel %vm102, %v8805, 0.0
  %v8857 = vadd.f32 %v8855, %v8856
  %v8858 = vsel %vm102, %v8774, 0.0
  %v8859 = vsel %vm102, %v8778, 0.0
  %v8860 = vadd.f32 %v8858, %v8859
  %v8861 = vsel %vm102, %v8782, 0.0
  %v8862 = vadd.f32 %v8860, %v8861
  %v8863 = vsel %vm102, %v8786, 0.0
  %v8864 = vadd.f32 %v8862, %v8863
  %v8865 = vsel %vm102, %v8790, 0.0
  %v8866 = vadd.f32 %v8864, %v8865
  %v8867 = vsel %vm102, %v8794, 0.0
  %v8868 = vadd.f32 %v8866, %v8867
  %v8869 = vsel %vm102, %v8798, 0.0
  %v8870 = vadd.f32 %v8868, %v8869
  %v8871 = vsel %vm102, %v8802, 0.0
  %v8872 = vadd.f32 %v8870, %v8871
  %v8873 = vsel %vm102, %v8806, 0.0
  %v8874 = vadd.f32 %v8872, %v8873
  %v8875 = vlaneseq
  %v8876 = vshrl.u32 %v8875, 7
  %v8877 = vsub.s32 2, %v8876
  %v8878 = vrot.slane %v7383, %v8877
  %v8879 = vadd.f32 %v8823, %v8878
  %v8880 = vadd.f32 %v8840, %v8878
  %v8881 = vadd.f32 %v8857, %v8878
  %v8882 = vadd.f32 %v8874, %v8878
  %v8883 = vmul.f32 %v8879, 0.5
  %v8884 = vmul.f32 %v8880, 0.5
  %v8885 = vmul.f32 %v8881, 0.5
  %v8886 = vmul.f32 %v8882, 0.5
  %v8887 = vmul.f32 %v8879, 0.044715
  %v8888 = vmul.f32 %v8880, 0.044715
  %v8889 = vmul.f32 %v8881, 0.044715
  %v8890 = vmul.f32 %v8882, 0.044715
  %v8891 = vmul.f32 %v8887, %v8879
  %v8892 = vmul.f32 %v8888, %v8880
  %v8893 = vmul.f32 %v8889, %v8881
  %v8894 = vmul.f32 %v8890, %v8882
  %v8895 = vmul.f32 %v8891, %v8879
  %v8896 = vmul.f32 %v8892, %v8880
  %v8897 = vmul.f32 %v8893, %v8881
  %v8898 = vmul.f32 %v8894, %v8882
  %v8899 = vadd.f32 %v8879, %v8895
  %v8900 = vadd.f32 %v8880, %v8896
  %v8901 = vadd.f32 %v8881, %v8897
  %v8902 = vadd.f32 %v8882, %v8898
  %v8903 = vmul.f32 %v8899, 0.7978846
  %v8904 = vmul.f32 %v8900, 0.7978846
  %v8905 = vmul.f32 %v8901, 0.7978846
  %v8906 = vmul.f32 %v8902, 0.7978846
  %v8907 = vtanh.pop %v8903
  %v8908 = vtanh.pop %v8904
  %v8909 = vtanh.pop %v8905
  %v8910 = vtanh.pop %v8906
  %v8911 = vadd.f32 %v8907, 1.0
  %v8912 = vadd.f32 %v8908, 1.0
  %v8913 = vadd.f32 %v8909, 1.0
  %v8914 = vadd.f32 %v8910, 1.0
  %v8915 = vmul.f32 %v8883, %v8911
  %v8916 = vmul.f32 %v8884, %v8912
  %v8917 = vmul.f32 %v8885, %v8913
  %v8918 = vmul.f32 %v8886, %v8914
  %v8919 = vlaneseq
  %v8920 = vshrl.u32 %v8919, 7
  %v8921 = vsub.s32 3, %v8920
  %v8922 = vrot.slane %v7383, %v8921
  %v8923 = vmul.f32 %v8915, %v8922
  %v8924 = vmul.f32 %v8916, %v8922
  %v8925 = vmul.f32 %v8917, %v8922
  %v8926 = vmul.f32 %v8918, %v8922
  %v8927 = vlaneseq
  %v8928 = vshrl.u32 %v8927, 7
  %v8929 = vsub.s32 4, %v8928
  %v8930 = vrot.slane %v7383, %v8929
  %v8931 = vadd.f32 %v8923, %v8930
  %v8932 = vadd.f32 %v8924, %v8930
  %v8933 = vadd.f32 %v8925, %v8930
  %v8934 = vadd.f32 %v8926, %v8930
  %8935 = vmatprep.subr.mxu0 0.0
  %8936 = vmatpush1.msra.mxu0 %v8931
  %8937 = vmatprep.subr.mxu0 0.0
  %8938 = vmatpush1.msra.mxu0 %v8932
  %8939 = vmatprep.subr.mxu0 0.0
  %8940 = vmatpush1.msra.mxu0 %v8933
  %8941 = vmatprep.subr.mxu0 0.0
  %8942 = vmatpush1.msra.mxu0 %v8934
  %8943 = vmatprep.subr.mxu0 0.0
  %8944 = vmatpush1.msra.mxu0 0.0
  %8945 = vmatprep.subr.mxu0 0.0
  %8946 = vmatpush1.msra.mxu0 0.0
  %8947 = vmatprep.subr.mxu0 0.0
  %8948 = vmatpush1.msra.mxu0 0.0
  %8949 = vmatprep.subr.mxu0 0.0
  %8950 = vmatpush1.msra.mxu0 0.0
  %8951 = vmatprep.subr.mxu0 0.0
  %8952 = vmatpush1.msra.mxu0 0.0
  %8953 = vmatprep.subr.mxu0 0.0
  %8954 = vmatpush1.msra.mxu0 0.0
  %8955 = vmatprep.subr.mxu0 0.0
  %8956 = vmatpush1.msra.mxu0 0.0
  %8957 = vmatprep.subr.mxu0 0.0
  %8958 = vmatpush1.msra.mxu0 0.0
  %8959 = vmatprep.subr.mxu0 0.0
  %8960 = vmatpush1.msra.mxu0 0.0
  %8961 = vmatprep.subr.mxu0 0.0
  %8962 = vmatpush1.msra.mxu0 0.0
  %8963 = vmatprep.subr.mxu0 0.0
  %8964 = vmatpush1.msra.mxu0 0.0
  %8965 = vmatprep.subr.mxu0 0.0
  %8966 = vmatpush1.msra.mxu0 0.0
  %8967 = vmatprep.subr.mxu0 0.0
  %8968 = vmatpush1.msra.mxu0 0.0
  %8969 = vmatprep.subr.mxu0 0.0
  %8970 = vmatpush1.msra.mxu0 0.0
  %8971 = vmatprep.subr.mxu0 0.0
  %8972 = vmatpush1.msra.mxu0 0.0
  %8973 = vmatprep.subr.mxu0 0.0
  %8974 = vmatpush1.msra.mxu0 0.0
  %8975 = vmatprep.subr.mxu0 0.0
  %8976 = vmatpush1.msra.mxu0 0.0
  %8977 = vmatprep.subr.mxu0 0.0
  %8978 = vmatpush1.msra.mxu0 0.0
  %8979 = vmatprep.subr.mxu0 0.0
  %8980 = vmatpush1.msra.mxu0 0.0
  %8981 = vmatprep.subr.mxu0 0.0
  %8982 = vmatpush1.msra.mxu0 0.0
  %8983 = vmatprep.subr.mxu0 0.0
  %8984 = vmatpush1.msra.mxu0 0.0
  %8985 = vmatprep.subr.mxu0 0.0
  %8986 = vmatpush1.msra.mxu0 0.0
  %8987 = vmatprep.subr.mxu0 0.0
  %8988 = vmatpush1.msra.mxu0 0.0
  %8989 = vmatprep.subr.mxu0 0.0
  %8990 = vmatpush1.msra.mxu0 0.0
  %8991 = vmatprep.subr.mxu0 0.0
  %8992 = vmatpush1.msra.mxu0 0.0
  %8993 = vmatprep.subr.mxu0 0.0
  %8994 = vmatpush1.msra.mxu0 0.0
  %8995 = vmatprep.subr.mxu0 0.0
  %8996 = vmatpush1.msra.mxu0 0.0
  %8997 = vmatprep.subr.mxu0 0.0
  %8998 = vmatpush1.msra.mxu0 0.0
  %8999 = vmatprep.mubr.f32.mxu0 0.0
  %9000 = vmatmul.mubr.f32.gmra.mrb[0].mxu0 %v1125
  %v9001 = vpop.f32.mrb[0].mxu0
  %v9002 = vadd.f32 0.0, %v9001
  %v9003 = vpop.f32.mrb[0].mxu0
  %9004 = vmatprep.mubr.f32.mxu0 0.0
  %9005 = vmatmul.mubr.f32.gmra.mrb[0].mxu0 %v1128
  %v9006 = vpop.f32.mrb[0].mxu0
  %v9007 = vadd.f32 0.0, %v9006
  %v9008 = vpop.f32.mrb[0].mxu0
  %9009 = vmatprep.mubr.f32.mxu0 0.0
  %9010 = vmatmul.mubr.f32.gmra.mrb[0].mxu0 %v1131
  %v9011 = vpop.f32.mrb[0].mxu0
  %v9012 = vadd.f32 0.0, %v9011
  %v9013 = vpop.f32.mrb[0].mxu0
  %9014 = vmatprep.mubr.f32.mxu0 0.0
  %9015 = vmatmul.mubr.f32.gmra.mrb[0].mxu0 %v1134
  %v9016 = vpop.f32.mrb[0].mxu0
  %v9017 = vadd.f32 0.0, %v9016
  %v9018 = vpop.f32.mrb[0].mxu0
  %9019 = vmatprep.mubr.f32.mxu0 0.0
  %9020 = vmatmul.mubr.f32.gmra.mrb[0].mxu0 %v1137
  %v9021 = vpop.f32.mrb[0].mxu0
  %v9022 = vadd.f32 0.0, %v9021
  %v9023 = vpop.f32.mrb[0].mxu0
  %9024 = vmatprep.mubr.f32.mxu0 0.0
  %9025 = vmatmul.mubr.f32.gmra.mrb[0].mxu0 %v1140
  %v9026 = vpop.f32.mrb[0].mxu0
  %v9027 = vadd.f32 0.0, %v9026
  %v9028 = vpop.f32.mrb[0].mxu0
  %9029 = vmatprep.mubr.f32.mxu0 0.0
  %9030 = vmatmul.mubr.f32.gmra.mrb[0].mxu0 %v1143
  %v9031 = vpop.f32.mrb[0].mxu0
  %v9032 = vadd.f32 0.0, %v9031
  %v9033 = vpop.f32.mrb[0].mxu0
  %9034 = vmatprep.mubr.f32.mxu0 0.0
  %9035 = vmatmul.mubr.f32.gmra.mrb[0].mxu0 %v1146
  %v9036 = vpop.f32.mrb[0].mxu0
  %v9037 = vadd.f32 0.0, %v9036
  %v9038 = vpop.f32.mrb[0].mxu0
  %9039 = vmatprep.mubr.f32.mxu0 0.0
  %9040 = vmatmul.mubr.f32.gmra.mrb[0].mxu0 %v1149
  %v9041 = vpop.f32.mrb[0].mxu0
  %v9042 = vadd.f32 0.0, %v9041
  %v9043 = vpop.f32.mrb[0].mxu0
  %9044 = vmatprep.mubr.f32.mxu0 0.0
  %9045 = vmatmul.mubr.f32.gmra.mrb[0].mxu0 %v1152
  %v9046 = vpop.f32.mrb[0].mxu0
  %v9047 = vadd.f32 0.0, %v9046
  %v9048 = vpop.f32.mrb[0].mxu0
  %9049 = vmatprep.mubr.f32.mxu0 0.0
  %9050 = vmatmul.mubr.f32.gmra.mrb[0].mxu0 %v1155
  %v9051 = vpop.f32.mrb[0].mxu0
  %v9052 = vadd.f32 0.0, %v9051
  %v9053 = vpop.f32.mrb[0].mxu0
  %9054 = vmatprep.mubr.f32.mxu0 0.0
  %9055 = vmatmul.mubr.f32.gmra.mrb[0].mxu0 %v1158
  %v9056 = vpop.f32.mrb[0].mxu0
  %v9057 = vadd.f32 0.0, %v9056
  %v9058 = vpop.f32.mrb[0].mxu0
  %9059 = vmatprep.mubr.f32.mxu0 0.0
  %9060 = vmatmul.mubr.f32.gmra.mrb[0].mxu0 %v1161
  %v9061 = vpop.f32.mrb[0].mxu0
  %v9062 = vadd.f32 0.0, %v9061
  %v9063 = vpop.f32.mrb[0].mxu0
  %9064 = vmatprep.mubr.f32.mxu0 0.0
  %9065 = vmatmul.mubr.f32.gmra.mrb[0].mxu0 %v1164
  %v9066 = vpop.f32.mrb[0].mxu0
  %v9067 = vadd.f32 0.0, %v9066
  %v9068 = vpop.f32.mrb[0].mxu0
  %9069 = vmatprep.mubr.f32.mxu0 0.0
  %9070 = vmatmul.mubr.f32.gmra.mrb[0].mxu0 %v1167
  %v9071 = vpop.f32.mrb[0].mxu0
  %v9072 = vadd.f32 0.0, %v9071
  %v9073 = vpop.f32.mrb[0].mxu0
  %9074 = vmatprep.mubr.f32.mxu0 0.0
  %9075 = vmatmul.mubr.f32.gmra.mrb[0].mxu0 %v1170
  %v9076 = vpop.f32.mrb[0].mxu0
  %v9077 = vadd.f32 0.0, %v9076
  %v9078 = vpop.f32.mrb[0].mxu0
  %9079 = vmatprep.mubr.f32.mxu0 0.0
  %9080 = vmatmul.mubr.f32.gmra.mrb[0].mxu0 %v1173
  %v9081 = vpop.f32.mrb[0].mxu0
  %v9082 = vadd.f32 0.0, %v9081
  %v9083 = vpop.f32.mrb[0].mxu0
  %9084 = vmatprep.mubr.f32.mxu0 0.0
  %9085 = vmatmul.mubr.f32.gmra.mrb[0].mxu0 %v1176
  %v9086 = vpop.f32.mrb[0].mxu0
  %v9087 = vadd.f32 0.0, %v9086
  %v9088 = vpop.f32.mrb[0].mxu0
  %9089 = vmatprep.mubr.f32.mxu0 0.0
  %9090 = vmatmul.mubr.f32.gmra.mrb[0].mxu0 %v1179
  %v9091 = vpop.f32.mrb[0].mxu0
  %v9092 = vadd.f32 0.0, %v9091
  %v9093 = vpop.f32.mrb[0].mxu0
  %9094 = vmatprep.mubr.f32.mxu0 0.0
  %9095 = vmatmul.mubr.f32.gmra.mrb[0].mxu0 %v1182
  %v9096 = vpop.f32.mrb[0].mxu0
  %v9097 = vadd.f32 0.0, %v9096
  %v9098 = vpop.f32.mrb[0].mxu0
  %9099 = vmatprep.mubr.f32.mxu0 0.0
  %9100 = vmatmul.mubr.f32.gmra.mrb[0].mxu0 %v1185
  %v9101 = vpop.f32.mrb[0].mxu0
  %v9102 = vadd.f32 0.0, %v9101
  %v9103 = vpop.f32.mrb[0].mxu0
  %9104 = vmatprep.mubr.f32.mxu0 0.0
  %9105 = vmatmul.mubr.f32.gmra.mrb[0].mxu0 %v1188
  %v9106 = vpop.f32.mrb[0].mxu0
  %v9107 = vadd.f32 0.0, %v9106
  %v9108 = vpop.f32.mrb[0].mxu0
  %9109 = vmatprep.mubr.f32.mxu0 0.0
  %9110 = vmatmul.mubr.f32.gmra.mrb[0].mxu0 %v1191
  %v9111 = vpop.f32.mrb[0].mxu0
  %v9112 = vadd.f32 0.0, %v9111
  %v9113 = vpop.f32.mrb[0].mxu0
  %9114 = vmatprep.mubr.f32.mxu0 0.0
  %9115 = vmatmul.mubr.f32.gmra.mrb[0].mxu0 %v1194
  %v9116 = vpop.f32.mrb[0].mxu0
  %v9117 = vadd.f32 0.0, %v9116
  %v9118 = vpop.f32.mrb[0].mxu0
  %9119 = vmatprep.mubr.f32.mxu0 0.0
  %9120 = vmatmul.mubr.f32.gmra.mrb[0].mxu0 %v1197
  %v9121 = vpop.f32.mrb[0].mxu0
  %v9122 = vadd.f32 0.0, %v9121
  %v9123 = vpop.f32.mrb[0].mxu0
  %9124 = vmatprep.mubr.f32.mxu0 0.0
  %9125 = vmatmul.mubr.f32.gmra.mrb[0].mxu0 %v1200
  %v9126 = vpop.f32.mrb[0].mxu0
  %v9127 = vadd.f32 0.0, %v9126
  %v9128 = vpop.f32.mrb[0].mxu0
  %9129 = vmatprep.mubr.f32.mxu0 0.0
  %9130 = vmatmul.mubr.f32.gmra.mrb[0].mxu0 %v1203
  %v9131 = vpop.f32.mrb[0].mxu0
  %v9132 = vadd.f32 0.0, %v9131
  %v9133 = vpop.f32.mrb[0].mxu0
  %9134 = vmatprep.mubr.f32.mxu0 0.0
  %9135 = vmatmul.mubr.f32.gmra.mrb[0].mxu0 %v1206
  %v9136 = vpop.f32.mrb[0].mxu0
  %v9137 = vadd.f32 0.0, %v9136
  %v9138 = vpop.f32.mrb[0].mxu0
  %9139 = vmatprep.mubr.f32.mxu0 0.0
  %9140 = vmatmul.mubr.f32.gmra.mrb[0].mxu0 %v1209
  %v9141 = vpop.f32.mrb[0].mxu0
  %v9142 = vadd.f32 0.0, %v9141
  %v9143 = vpop.f32.mrb[0].mxu0
  %9144 = vmatprep.mubr.f32.mxu0 0.0
  %9145 = vmatmul.mubr.f32.gmra.mrb[0].mxu0 %v1212
  %v9146 = vpop.f32.mrb[0].mxu0
  %v9147 = vadd.f32 0.0, %v9146
  %v9148 = vpop.f32.mrb[0].mxu0
  %9149 = vmatprep.mubr.f32.mxu0 0.0
  %9150 = vmatmul.mubr.f32.gmra.mrb[0].mxu0 %v1215
  %v9151 = vpop.f32.mrb[0].mxu0
  %v9152 = vadd.f32 0.0, %v9151
  %v9153 = vpop.f32.mrb[0].mxu0
  %9154 = vmatprep.mubr.f32.mxu0 0.0
  %9155 = vmatmul.mubr.f32.gmra.mrb[0].mxu0 %v1218
  %v9156 = vpop.f32.mrb[0].mxu0
  %v9157 = vadd.f32 0.0, %v9156
  %v9158 = vpop.f32.mrb[0].mxu0
  %9159 = vmatprep.mubr.f32.mxu0 0.0
  %9160 = vmatmul.mubr.f32.gmra.mrb[0].mxu0 %v1221
  %v9161 = vpop.f32.mrb[0].mxu0
  %v9162 = vadd.f32 0.0, %v9161
  %v9163 = vpop.f32.mrb[0].mxu0
  %9164 = vmatprep.mubr.f32.mxu0 0.0
  %9165 = vmatmul.mubr.f32.gmra.mrb[0].mxu0 %v1224
  %v9166 = vpop.f32.mrb[0].mxu0
  %v9167 = vadd.f32 0.0, %v9166
  %v9168 = vpop.f32.mrb[0].mxu0
  %9169 = vmatprep.mubr.f32.mxu0 0.0
  %9170 = vmatmul.mubr.f32.gmra.mrb[0].mxu0 %v1227
  %v9171 = vpop.f32.mrb[0].mxu0
  %v9172 = vadd.f32 0.0, %v9171
  %v9173 = vpop.f32.mrb[0].mxu0
  %9174 = vmatprep.mubr.f32.mxu0 0.0
  %9175 = vmatmul.mubr.f32.gmra.mrb[0].mxu0 %v1230
  %v9176 = vpop.f32.mrb[0].mxu0
  %v9177 = vadd.f32 0.0, %v9176
  %v9178 = vpop.f32.mrb[0].mxu0
  %9179 = vdwg.mxu0
  %v9181 = vcombine.high %v7385, %v7385
  %v9183 = vunpack.c.l.s4 1966171168
  %v9184 = vunpack.c.0.s8 %v9183
  %v9185 = vlaneseq
  %v9186 = vshrl.u32 %v9185, 7
  %v9187 = vsub.s32 %v9184, %v9186
  %v9188 = vrot.slane %v9181, %v9187
  %v9189 = vcombine.high %v9188, %v9188
  %v9191 = vunpack.c.l.s4 1966171168
  %v9192 = vunpack.c.0.s8 %v9191
  %v9193 = vlaneseq
  %v9194 = vshrl.u32 %v9193, 7
  %v9195 = vsub.s32 %v9192, %v9194
  %v9196 = vrot.slane %v9188, %v9195
  %v9198 = vunpack.c.l.s4 1966171168
  %v9199 = vunpack.c.0.s8 %v9198
  %v9200 = vlaneseq
  %v9201 = vshrl.u32 %v9200, 7
  %v9202 = vsub.s32 %v9199, %v9201
  %v9203 = vrot.slane %v9189, %v9202
  %v9204 = vcombine.high %v9196, %v9196
  %v9205 = vcombine.high %v9203, %v9203
  %v9206 = vcombine.high %v7386, %v7386
  %v9208 = vunpack.c.l.s4 1966171168
  %v9209 = vunpack.c.0.s8 %v9208
  %v9210 = vlaneseq
  %v9211 = vshrl.u32 %v9210, 7
  %v9212 = vsub.s32 %v9209, %v9211
  %v9213 = vrot.slane %v7386, %v9212
  %v9215 = vunpack.c.l.s4 1966171168
  %v9216 = vunpack.c.0.s8 %v9215
  %v9217 = vlaneseq
  %v9218 = vshrl.u32 %v9217, 7
  %v9219 = vsub.s32 %v9216, %v9218
  %v9220 = vrot.slane %v9206, %v9219
  %v9221 = vcombine.high %v9213, %v9213
  %v9223 = vunpack.c.l.s4 1966171168
  %v9224 = vunpack.c.0.s8 %v9223
  %v9225 = vlaneseq
  %v9226 = vshrl.u32 %v9225, 7
  %v9227 = vsub.s32 %v9224, %v9226
  %v9228 = vrot.slane %v9213, %v9227
  %v9230 = vunpack.c.l.s4 1966171168
  %v9231 = vunpack.c.0.s8 %v9230
  %v9232 = vlaneseq
  %v9233 = vshrl.u32 %v9232, 7
  %v9234 = vsub.s32 %v9231, %v9233
  %v9235 = vrot.slane %v9220, %v9234
  %v9237 = vunpack.c.l.s4 1966171168
  %v9238 = vunpack.c.0.s8 %v9237
  %v9239 = vlaneseq
  %v9240 = vshrl.u32 %v9239, 7
  %v9241 = vsub.s32 %v9238, %v9240
  %v9242 = vrot.slane %v9221, %v9241
  %v9243 = vcombine.high %v9228, %v9228
  %v9244 = vcombine.high %v9242, %v9242
  %v9245 = vlaneseq
  %v9246 = vshrl.u32 %v9245, 7
  %v9247 = vsub.s32 0, %v9246
  %v9248 = vrot.slane %v9196, %v9247
  %v9249 = vlaneseq
  %v9250 = vshrl.u32 %v9249, 7
  %v9251 = vsub.s32 0, %v9250
  %v9252 = vrot.slane %v9203, %v9251
  %v9253 = vlaneseq
  %v9254 = vshrl.u32 %v9253, 7
  %v9255 = vsub.s32 0, %v9254
  %v9256 = vrot.slane %v9204, %v9255
  %v9257 = vlaneseq
  %v9258 = vshrl.u32 %v9257, 7
  %v9259 = vsub.s32 0, %v9258
  %v9260 = vrot.slane %v9205, %v9259
  %v9261 = vlaneseq
  %v9262 = vshrl.u32 %v9261, 7
  %v9263 = vsub.s32 0, %v9262
  %v9264 = vrot.slane %v9228, %v9263
  %v9265 = vlaneseq
  %v9266 = vshrl.u32 %v9265, 7
  %v9267 = vsub.s32 0, %v9266
  %v9268 = vrot.slane %v9242, %v9267
  %v9269 = vlaneseq
  %v9270 = vshrl.u32 %v9269, 7
  %v9271 = vsub.s32 0, %v9270
  %v9272 = vrot.slane %v9243, %v9271
  %v9273 = vlaneseq
  %v9274 = vshrl.u32 %v9273, 7
  %v9275 = vsub.s32 0, %v9274
  %v9276 = vrot.slane %v9244, %v9275
  %v9277 = vlaneseq
  %v9278 = vshrl.u32 %v9277, 7
  %v9279 = vsub.s32 0, %v9278
  %v9280 = vrot.slane %v9235, %v9279
  %v9290 = vmul.f32 %v9002, %v9248
  %v9291 = vmul.f32 %v9007, %v9248
  %v9292 = vmul.f32 %v9012, %v9248
  %v9293 = vmul.f32 %v9017, %v9248
  %v9294 = vmul.f32 %v9022, %v9252
  %v9295 = vmul.f32 %v9027, %v9252
  %v9296 = vmul.f32 %v9032, %v9252
  %v9297 = vmul.f32 %v9037, %v9252
  %v9298 = vmul.f32 %v9042, %v9256
  %v9299 = vmul.f32 %v9047, %v9256
  %v9300 = vmul.f32 %v9052, %v9256
  %v9301 = vmul.f32 %v9057, %v9256
  %v9302 = vmul.f32 %v9062, %v9260
  %v9303 = vmul.f32 %v9067, %v9260
  %v9304 = vmul.f32 %v9072, %v9260
  %v9305 = vmul.f32 %v9077, %v9260
  %v9306 = vmul.f32 %v9082, %v9264
  %v9307 = vmul.f32 %v9087, %v9264
  %v9308 = vmul.f32 %v9092, %v9264
  %v9309 = vmul.f32 %v9097, %v9264
  %v9310 = vmul.f32 %v9102, %v9268
  %v9311 = vmul.f32 %v9107, %v9268
  %v9312 = vmul.f32 %v9112, %v9268
  %v9313 = vmul.f32 %v9117, %v9268
  %v9314 = vmul.f32 %v9122, %v9272
  %v9315 = vmul.f32 %v9127, %v9272
  %v9316 = vmul.f32 %v9132, %v9272
  %v9317 = vmul.f32 %v9137, %v9272
  %v9318 = vmul.f32 %v9142, %v9276
  %v9319 = vmul.f32 %v9147, %v9276
  %v9320 = vmul.f32 %v9152, %v9276
  %v9321 = vmul.f32 %v9157, %v9276
  %v9322 = vmul.f32 %v9162, %v9280
  %v9323 = vmul.f32 %v9167, %v9280
  %v9324 = vmul.f32 %v9172, %v9280
  %v9325 = vmul.f32 %v9177, %v9280
  %v9326 = vsel %vm102, %v9290, 0.0
  %v9327 = vsel %vm102, %v9294, 0.0
  %v9328 = vadd.f32 %v9326, %v9327
  %v9329 = vsel %vm102, %v9298, 0.0
  %v9330 = vadd.f32 %v9328, %v9329
  %v9331 = vsel %vm102, %v9302, 0.0
  %v9332 = vadd.f32 %v9330, %v9331
  %v9333 = vsel %vm102, %v9306, 0.0
  %v9334 = vadd.f32 %v9332, %v9333
  %v9335 = vsel %vm102, %v9310, 0.0
  %v9336 = vadd.f32 %v9334, %v9335
  %v9337 = vsel %vm102, %v9314, 0.0
  %v9338 = vadd.f32 %v9336, %v9337
  %v9339 = vsel %vm102, %v9318, 0.0
  %v9340 = vadd.f32 %v9338, %v9339
  %v9341 = vsel %vm102, %v9322, 0.0
  %v9342 = vadd.f32 %v9340, %v9341
  %v9343 = vsel %vm102, %v9291, 0.0
  %v9344 = vsel %vm102, %v9295, 0.0
  %v9345 = vadd.f32 %v9343, %v9344
  %v9346 = vsel %vm102, %v9299, 0.0
  %v9347 = vadd.f32 %v9345, %v9346
  %v9348 = vsel %vm102, %v9303, 0.0
  %v9349 = vadd.f32 %v9347, %v9348
  %v9350 = vsel %vm102, %v9307, 0.0
  %v9351 = vadd.f32 %v9349, %v9350
  %v9352 = vsel %vm102, %v9311, 0.0
  %v9353 = vadd.f32 %v9351, %v9352
  %v9354 = vsel %vm102, %v9315, 0.0
  %v9355 = vadd.f32 %v9353, %v9354
  %v9356 = vsel %vm102, %v9319, 0.0
  %v9357 = vadd.f32 %v9355, %v9356
  %v9358 = vsel %vm102, %v9323, 0.0
  %v9359 = vadd.f32 %v9357, %v9358
  %v9360 = vsel %vm102, %v9292, 0.0
  %v9361 = vsel %vm102, %v9296, 0.0
  %v9362 = vadd.f32 %v9360, %v9361
  %v9363 = vsel %vm102, %v9300, 0.0
  %v9364 = vadd.f32 %v9362, %v9363
  %v9365 = vsel %vm102, %v9304, 0.0
  %v9366 = vadd.f32 %v9364, %v9365
  %v9367 = vsel %vm102, %v9308, 0.0
  %v9368 = vadd.f32 %v9366, %v9367
  %v9369 = vsel %vm102, %v9312, 0.0
  %v9370 = vadd.f32 %v9368, %v9369
  %v9371 = vsel %vm102, %v9316, 0.0
  %v9372 = vadd.f32 %v9370, %v9371
  %v9373 = vsel %vm102, %v9320, 0.0
  %v9374 = vadd.f32 %v9372, %v9373
  %v9375 = vsel %vm102, %v9324, 0.0
  %v9376 = vadd.f32 %v9374, %v9375
  %v9377 = vsel %vm102, %v9293, 0.0
  %v9378 = vsel %vm102, %v9297, 0.0
  %v9379 = vadd.f32 %v9377, %v9378
  %v9380 = vsel %vm102, %v9301, 0.0
  %v9381 = vadd.f32 %v9379, %v9380
  %v9382 = vsel %vm102, %v9305, 0.0
  %v9383 = vadd.f32 %v9381, %v9382
  %v9384 = vsel %vm102, %v9309, 0.0
  %v9385 = vadd.f32 %v9383, %v9384
  %v9386 = vsel %vm102, %v9313, 0.0
  %v9387 = vadd.f32 %v9385, %v9386
  %v9388 = vsel %vm102, %v9317, 0.0
  %v9389 = vadd.f32 %v9387, %v9388
  %v9390 = vsel %vm102, %v9321, 0.0
  %v9391 = vadd.f32 %v9389, %v9390
  %v9392 = vsel %vm102, %v9325, 0.0
  %v9393 = vadd.f32 %v9391, %v9392
  %v9394 = vlaneseq
  %v9395 = vshrl.u32 %v9394, 7
  %v9396 = vsub.s32 5, %v9395
  %v9397 = vrot.slane %v7383, %v9396
  %v9398 = vadd.f32 %v9342, %v9397
  %v9399 = vadd.f32 %v9359, %v9397
  %v9400 = vadd.f32 %v9376, %v9397
  %v9401 = vadd.f32 %v9393, %v9397
  %v9402 = vlaneseq
  %v9403 = vshrl.u32 %v9402, 7
  %v9404 = vsub.s32 6, %v9403
  %v9405 = vrot.slane %v7383, %v9404
  %v9406 = vmul.f32 %v9405, %v9398
  %v9407 = vmul.f32 %v9405, %v9399
  %v9408 = vmul.f32 %v9405, %v9400
  %v9409 = vmul.f32 %v9405, %v9401
  %v9410 = vadd.f32 %v8342, %v9406
  %v9411 = vadd.f32 %v8343, %v9407
  %v9412 = vadd.f32 %v8344, %v9408
  %v9413 = vadd.f32 %v8345, %v9409
  %v9414 = vsel %vm102, %v9410, 0.0
  %9415 = vadd.xlane.f32.xlu0 %v9414
  %v9416 = vpop.xlane.xlu0 %9415
  %v9417 = vsel %vm102, %v9411, 0.0
  %9418 = vadd.xlane.f32.xlu0 %v9417
  %v9419 = vpop.xlane.xlu0 %9418
  %v9420 = vsel %vm102, %v9412, 0.0
  %9421 = vadd.xlane.f32.xlu0 %v9420
  %v9422 = vpop.xlane.xlu0 %9421
  %v9423 = vsel %vm102, %v9413, 0.0
  %9424 = vadd.xlane.f32.xlu0 %v9423
  %v9425 = vpop.xlane.xlu0 %9424
  %v9426 = vmul.f32 %v9416, %v115
  %v9427 = vmul.f32 %v9419, %v115
  %v9428 = vmul.f32 %v9422, %v115
  %v9429 = vmul.f32 %v9425, %v115
  %v9430 = vsub.f32 %v9410, %v9426
  %v9431 = vsub.f32 %v9411, %v9427
  %v9432 = vsub.f32 %v9412, %v9428
  %v9433 = vsub.f32 %v9413, %v9429
  %v9434 = vmul.f32 %v9430, %v9430
  %v9435 = vmul.f32 %v9431, %v9431
  %v9436 = vmul.f32 %v9432, %v9432
  %v9437 = vmul.f32 %v9433, %v9433
  %v9438 = vsel %vm102, %v9434, 0.0
  %9439 = vadd.xlane.f32.xlu0 %v9438
  %v9440 = vpop.xlane.xlu0 %9439
  %v9441 = vsel %vm102, %v9435, 0.0
  %9442 = vadd.xlane.f32.xlu0 %v9441
  %v9443 = vpop.xlane.xlu0 %9442
  %v9444 = vsel %vm102, %v9436, 0.0
  %9445 = vadd.xlane.f32.xlu0 %v9444
  %v9446 = vpop.xlane.xlu0 %9445
  %v9447 = vsel %vm102, %v9437, 0.0
  %9448 = vadd.xlane.f32.xlu0 %v9447
  %v9449 = vpop.xlane.xlu0 %9448
  %v9450 = vmul.f32 %v9440, %v115
  %v9451 = vmul.f32 %v9443, %v115
  %v9452 = vmul.f32 %v9446, %v115
  %v9453 = vmul.f32 %v9449, %v115
  %v9454 = vadd.f32 %v9450, 1e-06
  %v9455 = vadd.f32 %v9451, 1e-06
  %v9456 = vadd.f32 %v9452, 1e-06
  %v9457 = vadd.f32 %v9453, 1e-06
  %v9458 = vrsqrt.pop %v9454
  %v9459 = vrsqrt.pop %v9455
  %v9460 = vrsqrt.pop %v9456
  %v9461 = vrsqrt.pop %v9457
  %v9462 = vmul.f32 %v9430, %v9458
  %v9463 = vmul.f32 %v9431, %v9459
  %v9464 = vmul.f32 %v9432, %v9460
  %v9465 = vmul.f32 %v9433, %v9461
  %v9466 = vlaneseq
  %v9467 = vshrl.u32 %v9466, 7
  %v9468 = vsub.s32 7, %v9467
  %v9469 = vrot.slane %v7383, %v9468
  %v9470 = vmul.f32 %v9462, %v9469
  %v9471 = vmul.f32 %v9463, %v9469
  %v9472 = vmul.f32 %v9464, %v9469
  %v9473 = vmul.f32 %v9465, %v9469
  %v9474 = vlaneseq
  %v9475 = vshrl.u32 %v9474, 7
  %v9476 = vsub.s32 0, %v9475
  %v9477 = vrot.slane %v7384, %v9476
  %v9478 = vadd.f32 %v9470, %v9477
  %v9479 = vadd.f32 %v9471, %v9477
  %v9480 = vadd.f32 %v9472, %v9477
  %v9481 = vadd.f32 %v9473, %v9477
  %v9482 = vld [vmem:[%s7 + $0x3] sm:$0x1]
  %v9483 = vlaneseq
  %v9484 = vshrl.u32 %v9483, 7
  %v9485 = vsub.s32 0, %v9484
  %v9486 = vrot.slane %v9482, %v9485
  %v9488 = vsel %vm102, %v9478, 0
  %v9491 = vsel %vm102, %v9479, 0
  %v9494 = vsel %vm102, %v9480, 0
  %v9497 = vsel %vm102, %v9481, 0
  %9499 = vmatprep.subr.mxu0 0.0
  %9500 = vmatpush1.msra.mxu0 %v7389
  %9501 = vmatprep.subr.mxu0 0.0
  %9502 = vmatpush1.msra.mxu0 %v7391
  %9503 = vmatprep.subr.mxu0 0.0
  %9504 = vmatpush1.msra.mxu0 %v7393
  %9505 = vmatprep.subr.mxu0 0.0
  %9506 = vmatpush1.msra.mxu0 %v7395
  %9507 = vmatprep.subr.mxu0 0.0
  %9508 = vmatpush1.msra.mxu0 0.0
  %9509 = vmatprep.subr.mxu0 0.0
  %9510 = vmatpush1.msra.mxu0 0.0
  %9511 = vmatprep.subr.mxu0 0.0
  %9512 = vmatpush1.msra.mxu0 0.0
  %9513 = vmatprep.subr.mxu0 0.0
  %9514 = vmatpush1.msra.mxu0 0.0
  %9515 = vmatprep.subr.mxu0 0.0
  %9516 = vmatpush1.msra.mxu0 0.0
  %9517 = vmatprep.subr.mxu0 0.0
  %9518 = vmatpush1.msra.mxu0 0.0
  %9519 = vmatprep.subr.mxu0 0.0
  %9520 = vmatpush1.msra.mxu0 0.0
  %9521 = vmatprep.subr.mxu0 0.0
  %9522 = vmatpush1.msra.mxu0 0.0
  %9523 = vmatprep.subr.mxu0 0.0
  %9524 = vmatpush1.msra.mxu0 0.0
  %9525 = vmatprep.subr.mxu0 0.0
  %9526 = vmatpush1.msra.mxu0 0.0
  %9527 = vmatprep.subr.mxu0 0.0
  %9528 = vmatpush1.msra.mxu0 0.0
  %9529 = vmatprep.subr.mxu0 0.0
  %9530 = vmatpush1.msra.mxu0 0.0
  %9531 = vmatprep.subr.mxu0 0.0
  %9532 = vmatpush1.msra.mxu0 0.0
  %9533 = vmatprep.subr.mxu0 0.0
  %9534 = vmatpush1.msra.mxu0 0.0
  %9535 = vmatprep.subr.mxu0 0.0
  %9536 = vmatpush1.msra.mxu0 0.0
  %9537 = vmatprep.subr.mxu0 0.0
  %9538 = vmatpush1.msra.mxu0 0.0
  %9539 = vmatprep.subr.mxu0 0.0
  %9540 = vmatpush1.msra.mxu0 0.0
  %9541 = vmatprep.subr.mxu0 0.0
  %9542 = vmatpush1.msra.mxu0 0.0
  %9543 = vmatprep.subr.mxu0 0.0
  %9544 = vmatpush1.msra.mxu0 0.0
  %9545 = vmatprep.subr.mxu0 0.0
  %9546 = vmatpush1.msra.mxu0 0.0
  %9547 = vmatprep.subr.mxu0 0.0
  %9548 = vmatpush1.msra.mxu0 0.0
  %9549 = vmatprep.subr.mxu0 0.0
  %9550 = vmatpush1.msra.mxu0 0.0
  %9551 = vmatprep.subr.mxu0 0.0
  %9552 = vmatpush1.msra.mxu0 0.0
  %9553 = vmatprep.subr.mxu0 0.0
  %9554 = vmatpush1.msra.mxu0 0.0
  %9555 = vmatprep.subr.mxu0 0.0
  %9556 = vmatpush1.msra.mxu0 0.0
  %9557 = vmatprep.subr.mxu0 0.0
  %9558 = vmatpush1.msra.mxu0 0.0
  %9559 = vmatprep.subr.mxu0 0.0
  %9560 = vmatpush1.msra.mxu0 0.0
  %9561 = vmatprep.subr.mxu0 0.0
  %9562 = vmatpush1.msra.mxu0 0.0
  %9563 = vmatprep.mubr.f32.mxu0 0.0
  %9564 = vmatmul.mubr.f32.gmra.mrb[0].mxu0 %v9488
  %v9565 = vpop.f32.mrb[0].mxu0
  %v9566 = vadd.f32 %v9486, %v9565
  %v9567 = vpop.f32.mrb[0].mxu0
  %9568 = vmatprep.mubr.f32.mxu0 0.0
  %9569 = vmatmul.mubr.f32.gmra.mrb[0].mxu0 %v9491
  %v9570 = vpop.f32.mrb[0].mxu0
  %v9571 = vadd.f32 %v9486, %v9570
  %v9572 = vpop.f32.mrb[0].mxu0
  %9573 = vmatprep.mubr.f32.mxu0 0.0
  %9574 = vmatmul.mubr.f32.gmra.mrb[0].mxu0 %v9494
  %v9575 = vpop.f32.mrb[0].mxu0
  %v9576 = vadd.f32 %v9486, %v9575
  %v9577 = vpop.f32.mrb[0].mxu0
  %9578 = vmatprep.mubr.f32.mxu0 0.0
  %9579 = vmatmul.mubr.f32.gmra.mrb[0].mxu0 %v9497
  %v9580 = vpop.f32.mrb[0].mxu0
  %v9581 = vadd.f32 %v9486, %v9580
  %v9582 = vpop.f32.mrb[0].mxu0
  %9583 = vdwg.mxu0
  %v9584 = vmul.f32 %v9566, 0.5
  %v9585 = vmul.f32 %v9571, 0.5
  %v9586 = vmul.f32 %v9576, 0.5
  %v9587 = vmul.f32 %v9581, 0.5
  %v9588 = vmul.f32 %v9566, 0.044715
  %v9589 = vmul.f32 %v9571, 0.044715
  %v9590 = vmul.f32 %v9576, 0.044715
  %v9591 = vmul.f32 %v9581, 0.044715
  %v9592 = vmul.f32 %v9588, %v9566
  %v9593 = vmul.f32 %v9589, %v9571
  %v9594 = vmul.f32 %v9590, %v9576
  %v9595 = vmul.f32 %v9591, %v9581
  %v9596 = vmul.f32 %v9592, %v9566
  %v9597 = vmul.f32 %v9593, %v9571
  %v9598 = vmul.f32 %v9594, %v9576
  %v9599 = vmul.f32 %v9595, %v9581
  %v9600 = vadd.f32 %v9566, %v9596
  %v9601 = vadd.f32 %v9571, %v9597
  %v9602 = vadd.f32 %v9576, %v9598
  %v9603 = vadd.f32 %v9581, %v9599
  %v9604 = vmul.f32 %v9600, 0.7978846
  %v9605 = vmul.f32 %v9601, 0.7978846
  %v9606 = vmul.f32 %v9602, 0.7978846
  %v9607 = vmul.f32 %v9603, 0.7978846
  %v9608 = vtanh.pop %v9604
  %v9609 = vtanh.pop %v9605
  %v9610 = vtanh.pop %v9606
  %v9611 = vtanh.pop %v9607
  %v9612 = vadd.f32 %v9608, 1.0
  %v9613 = vadd.f32 %v9609, 1.0
  %v9614 = vadd.f32 %v9610, 1.0
  %v9615 = vadd.f32 %v9611, 1.0
  %v9616 = vmul.f32 %v9584, %v9612
  %v9617 = vmul.f32 %v9585, %v9613
  %v9618 = vmul.f32 %v9586, %v9614
  %v9619 = vmul.f32 %v9587, %v9615
  %s9620 = scalar_lea.vmem %s6, 384
  %v9621 = vld [vmem:[%s9620] sm:$0xff]
  %v9622 = vld [vmem:[%s9620 + $0x8] sm:$0xff]
  %v9623 = vld [vmem:[%s9620 + $0x10] sm:$0xff]
  %v9624 = vld [vmem:[%s9620 + $0x18] sm:$0xff]
  %v9625 = vld [vmem:[%s9620 + $0x20] sm:$0xff]
  %v9626 = vld [vmem:[%s9620 + $0x28] sm:$0xff]
  %v9627 = vld [vmem:[%s9620 + $0x30] sm:$0xff]
  %v9628 = vld [vmem:[%s9620 + $0x38] sm:$0xff]
  %v9629 = vld [vmem:[%s9620 + $0x40] sm:$0xff]
  %v9630 = vld [vmem:[%s9620 + $0x48] sm:$0xff]
  %v9631 = vld [vmem:[%s9620 + $0x50] sm:$0xff]
  %v9632 = vld [vmem:[%s9620 + $0x58] sm:$0xff]
  %v9633 = vld [vmem:[%s9620 + $0x60] sm:$0xff]
  %v9634 = vld [vmem:[%s9620 + $0x68] sm:$0xff]
  %v9635 = vld [vmem:[%s9620 + $0x70] sm:$0xff]
  %v9636 = vld [vmem:[%s9620 + $0x78] sm:$0xff]
  %v9637 = vlaneseq
  %v9638 = vshrl.u32 %v9637, 7
  %v9639 = vsub.s32 1, %v9638
  %v9640 = vrot.slane %v7384, %v9639
  %9641 = vmatprep.subr.mxu0 0.0
  %9642 = vmatpush1.msra.mxu0 %v9621
  %9643 = vmatprep.subr.mxu0 0.0
  %9644 = vmatpush1.msra.mxu0 %v9622
  %9645 = vmatprep.subr.mxu0 0.0
  %9646 = vmatpush1.msra.mxu0 %v9623
  %9647 = vmatprep.subr.mxu0 0.0
  %9648 = vmatpush1.msra.mxu0 %v9624
  %9649 = vmatprep.subr.mxu0 0.0
  %9650 = vmatpush1.msra.mxu0 %v9625
  %9651 = vmatprep.subr.mxu0 0.0
  %9652 = vmatpush1.msra.mxu0 %v9626
  %9653 = vmatprep.subr.mxu0 0.0
  %9654 = vmatpush1.msra.mxu0 %v9627
  %9655 = vmatprep.subr.mxu0 0.0
  %9656 = vmatpush1.msra.mxu0 %v9628
  %9657 = vmatprep.subr.mxu0 0.0
  %9658 = vmatpush1.msra.mxu0 %v9629
  %9659 = vmatprep.subr.mxu0 0.0
  %9660 = vmatpush1.msra.mxu0 %v9630
  %9661 = vmatprep.subr.mxu0 0.0
  %9662 = vmatpush1.msra.mxu0 %v9631
  %9663 = vmatprep.subr.mxu0 0.0
  %9664 = vmatpush1.msra.mxu0 %v9632
  %9665 = vmatprep.subr.mxu0 0.0
  %9666 = vmatpush1.msra.mxu0 %v9633
  %9667 = vmatprep.subr.mxu0 0.0
  %9668 = vmatpush1.msra.mxu0 %v9634
  %9669 = vmatprep.subr.mxu0 0.0
  %9670 = vmatpush1.msra.mxu0 %v9635
  %9671 = vmatprep.subr.mxu0 0.0
  %9672 = vmatpush1.msra.mxu0 %v9636
  %9673 = vmatprep.subr.mxu0 0.0
  %9674 = vmatpush1.msra.mxu0 0.0
  %9675 = vmatprep.subr.mxu0 0.0
  %9676 = vmatpush1.msra.mxu0 0.0
  %9677 = vmatprep.subr.mxu0 0.0
  %9678 = vmatpush1.msra.mxu0 0.0
  %9679 = vmatprep.subr.mxu0 0.0
  %9680 = vmatpush1.msra.mxu0 0.0
  %9681 = vmatprep.subr.mxu0 0.0
  %9682 = vmatpush1.msra.mxu0 0.0
  %9683 = vmatprep.subr.mxu0 0.0
  %9684 = vmatpush1.msra.mxu0 0.0
  %9685 = vmatprep.subr.mxu0 0.0
  %9686 = vmatpush1.msra.mxu0 0.0
  %9687 = vmatprep.subr.mxu0 0.0
  %9688 = vmatpush1.msra.mxu0 0.0
  %9689 = vmatprep.subr.mxu0 0.0
  %9690 = vmatpush1.msra.mxu0 0.0
  %9691 = vmatprep.subr.mxu0 0.0
  %9692 = vmatpush1.msra.mxu0 0.0
  %9693 = vmatprep.subr.mxu0 0.0
  %9694 = vmatpush1.msra.mxu0 0.0
  %9695 = vmatprep.subr.mxu0 0.0
  %9696 = vmatpush1.msra.mxu0 0.0
  %9697 = vmatprep.subr.mxu0 0.0
  %9698 = vmatpush1.msra.mxu0 0.0
  %9699 = vmatprep.subr.mxu0 0.0
  %9700 = vmatpush1.msra.mxu0 0.0
  %9701 = vmatprep.subr.mxu0 0.0
  %9702 = vmatpush1.msra.mxu0 0.0
  %9703 = vmatprep.subr.mxu0 0.0
  %9704 = vmatpush1.msra.mxu0 0.0
  %9705 = vmatprep.mubr.f32.mxu0 0.0
  %9706 = vmatmul.mubr.f32.gmra.mrb[0].mxu0 %v9616
  %v9707 = vpop.f32.mrb[0].mxu0
  %v9708 = vadd.f32 %v9640, %v9707
  %v9709 = vpop.f32.mrb[0].mxu0
  %9710 = vmatprep.mubr.f32.mxu0 0.0
  %9711 = vmatmul.mubr.f32.gmra.mrb[0].mxu0 %v9617
  %v9712 = vpop.f32.mrb[0].mxu0
  %v9713 = vadd.f32 %v9640, %v9712
  %v9714 = vpop.f32.mrb[0].mxu0
  %9715 = vmatprep.mubr.f32.mxu0 0.0
  %9716 = vmatmul.mubr.f32.gmra.mrb[0].mxu0 %v9618
  %v9717 = vpop.f32.mrb[0].mxu0
  %v9718 = vadd.f32 %v9640, %v9717
  %v9719 = vpop.f32.mrb[0].mxu0
  %9720 = vmatprep.mubr.f32.mxu0 0.0
  %9721 = vmatmul.mubr.f32.gmra.mrb[0].mxu0 %v9619
  %v9722 = vpop.f32.mrb[0].mxu0
  %v9723 = vadd.f32 %v9640, %v9722
  %v9724 = vpop.f32.mrb[0].mxu0
  %9725 = vdwg.mxu0
  %v9726 = vlaneseq
  %v9727 = vshrl.u32 %v9726, 7
  %v9728 = vsub.s32 2, %v9727
  %v9729 = vrot.slane %v7384, %v9728
  %v9730 = vmul.f32 %v9729, %v9708
  %v9731 = vmul.f32 %v9729, %v9713
  %v9732 = vmul.f32 %v9729, %v9718
  %v9733 = vmul.f32 %v9729, %v9723
  %v9734 = vadd.f32 %v9410, %v9730
  %v9735 = vadd.f32 %v9411, %v9731
  %v9736 = vadd.f32 %v9412, %v9732
  %v9737 = vadd.f32 %v9413, %v9733
  %9742 = vrot.lane.b32.xlu0 %v5020, 32
  %v9743 = vpop.permute.xlu0 %9742
  %9744 = vrot.lane.b32.xlu0 %v5021, 32
  %v9745 = vpop.permute.xlu0 %9744
  %9746 = vrot.lane.b32.xlu0 %v5022, 32
  %v9747 = vpop.permute.xlu0 %9746
  %9748 = vrot.lane.b32.xlu0 %v5023, 32
  %v9749 = vpop.permute.xlu0 %9748
  %9758 = vrot.lane.b32.xlu0 %v7377, 64
  %v9759 = vpop.permute.xlu0 %9758
  %9760 = vrot.lane.b32.xlu0 %v7378, 64
  %v9761 = vpop.permute.xlu0 %9760
  %9762 = vrot.lane.b32.xlu0 %v7379, 64
  %v9763 = vpop.permute.xlu0 %9762
  %9764 = vrot.lane.b32.xlu0 %v7380, 64
  %v9765 = vpop.permute.xlu0 %9764
  %9774 = vrot.lane.b32.xlu0 %v9734, 96
  %v9775 = vpop.permute.xlu0 %9774
  %9776 = vrot.lane.b32.xlu0 %v9735, 96
  %v9777 = vpop.permute.xlu0 %9776
  %9778 = vrot.lane.b32.xlu0 %v9736, 96
  %v9779 = vpop.permute.xlu0 %9778
  %9780 = vrot.lane.b32.xlu0 %v9737, 96
  %v9781 = vpop.permute.xlu0 %9780
  %v9786 = vsel %vm102, %v2551, %v9743
  %v9787 = vsel %vm102, %v2552, %v9745
  %v9788 = vsel %vm102, %v2553, %v9747
  %v9789 = vsel %vm102, %v2554, %v9749
  %vm9790 = vcmask 523264
  %v9791 = vsel %vm9790, %v9786, %v9759
  %v9792 = vsel %vm9790, %v9787, %v9761
  %v9793 = vsel %vm9790, %v9788, %v9763
  %v9794 = vsel %vm9790, %v9789, %v9765
  %vm9795 = vcmask 785408
  %v9796 = vsel %vm9795, %v9791, %v9775
  %v9797 = vsel %vm9795, %v9792, %v9777
  %v9798 = vsel %vm9795, %v9793, %v9779
  %v9799 = vsel %vm9795, %v9794, %v9781
  %9800 = vst [vmem:[%s10] sm:$0xff] %v9796
  %9801 = vst [vmem:[%s10 + $0x8] sm:$0xff] %v9797
  %9802 = vst [vmem:[%s10 + $0x10] sm:$0xff] %v9798
  %9803 = vst [vmem:[%s10 + $0x18] sm:$0xff] %v9799
  // Predicated region
  $region42: #{xcit_forward.1} parent=0 // pred_check
    _
  $region43: #{xcit_forward.1} parent=0 // pred_check_branch
    %9805 = sbr.rel (0) target = $region45
  $region44: #{xcit_forward.1} parent=0 // pred_region
    _
  $region45: #{xcit_forward.1} parent=0 // pred_fallthru
    _
  // Predicated region
  $region46: #{xcit_forward.1} parent=0 // pred_check
    _
  $region47: #{xcit_forward.1} parent=0 // pred_check_branch
    %9807 = sbr.rel (0) target = $region49
  $region48: #{xcit_forward.1} parent=0 // pred_region
    _
  $region49: #{xcit_forward.1} parent=0 // pred_fallthru
    _
  // Predicated region
  $region50: #{xcit_forward.1} parent=0 // pred_check
    _
  $region51: #{xcit_forward.1} parent=0 // pred_check_branch
    %9809 = sbr.rel (0) target = $region53
  $region52: #{xcit_forward.1} parent=0 // pred_region
    _
  $region53: #{xcit_forward.1} parent=0 // pred_fallthru
    _
  // Predicated region
  $region54: #{xcit_forward.1} parent=0 // pred_check
    _
  $region55: #{xcit_forward.1} parent=0 // pred_check_branch
    %9811 = sbr.rel (0) target = $region57
  $region56: #{xcit_forward.1} parent=0 // pred_region
    _
  $region57: #{xcit_forward.1} parent=0 // pred_fallthru
    _

</llo_original>
